<compile_context>
chip_gen: v7x
topology: tpu7x:2x2x1
jax: 0.10.0
libtpu: 0.0.40
codegen_flags: <defaults>
</compile_context>

<pallas_src>
import functools

import jax
import jax.numpy as jnp
from jax.experimental import pallas as pl
from jax.experimental.pallas import tpu as pltpu

EPS = 1e-6          # TODO(synk): module-level `eps` of the original repo; exact value not given.
LEAKY_SLOPE = 0.2   # DCGAN-style LeakyReLU slope assumed for DCNetwork.
LANE = 128          # TPU lane width: weight/bias/output columns padded to this.


def _rup(n, m=LANE):
    return -(-n // m) * m


def _leaky(v):
    return jnp.where(v >= 0.0, v, LEAKY_SLOPE * v)


# ----------------------------------------------------------------------------
# Pallas kernel 1: fused (cols @ W + b) -> LeakyReLU  (conv stack, bf16 in,
# f32 accumulate, bf16 out so the next layer's patches are half-width).
# ----------------------------------------------------------------------------
def _matmul_bias_leaky_kernel(x_ref, w_ref, b_ref, o_ref):
    y = jnp.dot(x_ref[...], w_ref[...], preferred_element_type=jnp.float32)
    y = _leaky(y + b_ref[...])
    o_ref[...] = y.astype(o_ref.dtype)


def matmul_bias_leaky(x, w, b, out_dtype=jnp.bfloat16):
    """x: (M, K) bf16, w: (K, Np) bf16, b: (1, Np) f32 -> (M, Np) out_dtype.

    Np is pre-padded to a multiple of 128 (lane-dense, unmasked stores).  M is
    tiled with a 'parallel' grid when large enough (v7x megacore / VMEM budget);
    otherwise a single whole-array VMEM block.
    """
    m, k = x.shape
    n = w.shape[1]
    tm = 256 if (m > 256 and m % 256 == 0) else m
    grid = (m // tm,)
    flops = 2 * m * k * n
    bytes_accessed = (x.size * x.dtype.itemsize + w.size * w.dtype.itemsize
                      + b.size * b.dtype.itemsize + m * n * jnp.dtype(out_dtype).itemsize)
    return pl.pallas_call(
        _matmul_bias_leaky_kernel,
        out_shape=jax.ShapeDtypeStruct((m, n), out_dtype),
        grid_spec=pltpu.PrefetchScalarGridSpec(
            num_scalar_prefetch=0,
            grid=grid,
            in_specs=[pl.BlockSpec((tm, k), lambda i: (i, 0)),
                      pl.BlockSpec((k, n), lambda i: (0, 0)),
                      pl.BlockSpec((1, n), lambda i: (0, 0))],
            out_specs=pl.BlockSpec((tm, n), lambda i: (i, 0))),
        compiler_params=pltpu.CompilerParams(dimension_semantics=("parallel",)),
        cost_estimate=pl.CostEstimate(flops=flops, transcendentals=0,
                                      bytes_accessed=bytes_accessed),
    )(x, w, b)


# ----------------------------------------------------------------------------
# Conv layer = NHWC window extraction (cheap XLA glue, no big transposes)
#              + Pallas fused matmul/bias/leaky kernel.
# ----------------------------------------------------------------------------
def _im2col_nhwc(x, k, stride, pad):
    """(N, H, W, C) -> (N*Ho*Wo, k*k*C), rows flattened in (kh, kw, c) order."""
    n, h, w, c = x.shape
    xp = jnp.pad(x, ((0, 0), (pad, pad), (pad, pad), (0, 0)))
    ho = (h + 2 * pad - k) // stride + 1
    wo = (w + 2 * pad - k) // stride + 1
    wins = [xp[:, i:i + stride * ho:stride, j:j + stride * wo:stride, :]
            for i in range(k) for j in range(k)]
    cols = jnp.stack(wins, axis=3).reshape(n * ho * wo, k * k * c)
    return cols, ho, wo


def conv_bias_leaky(x_nhwc, w_packed, b_packed, *, kernel_size, stride, pad):
    """One DCGAN conv layer, channels-last, lane-padded output channels."""
    n = x_nhwc.shape[0]
    coutp = w_packed.shape[1]
    cols, ho, wo = _im2col_nhwc(x_nhwc, kernel_size, stride, pad)
    y = matmul_bias_leaky(cols.astype(jnp.bfloat16), w_packed, b_packed)
    return y.reshape(n, ho, wo, coutp)


# ----------------------------------------------------------------------------
# Pallas kernel 2: the whole FC head in one call.
# ----------------------------------------------------------------------------
def _head_kernel(z_ref, xf_ref,
                 wz1, bz1, wz2, bz2, wz3, bz3,
                 wxf, bxf,
                 wzx1z, wzx1x, bzx1, wzx2, bzx2, wzx3, bzx3,
                 dec_ref, xrep_ref):
    bf16 = jnp.bfloat16

    def dense(h, w_ref, b_ref):
        return jnp.dot(h.astype(bf16), w_ref[...],
                       preferred_element_type=jnp.float32) + b_ref[...]

    # z_discriminator (Dropout(0.3) = identity in eval mode).
    h = _leaky(dense(z_ref[...], wz1, bz1))
    h = _leaky(dense(h, wz2, bz2))
    z_rep = _leaky(dense(h, wz3, bz3))

    # x_discriminator final (embedded) projection on the flattened NHWC features.
    x_rep = _leaky(dense(xf_ref[...], wxf, bxf))
    xrep_ref[...] = x_rep.astype(xrep_ref.dtype)

    # zx_discriminator on concat(z_rep, x_rep) + eps; the concat is folded into
    # two matmuls against the split first-layer weight (padded rows are zero).
    h = (jnp.dot((z_rep + EPS).astype(bf16), wzx1z[...], preferred_element_type=jnp.float32)
         + jnp.dot((x_rep + EPS).astype(bf16), wzx1x[...], preferred_element_type=jnp.float32)
         + bzx1[...])
    h = _leaky(h)
    h = _leaky(dense(h, wzx2, bzx2))

    # Final 1-unit head: VPU multiply + lane reduction (no 1-lane MXU matmul);
    # sigmoid via EUP exp + approximate reciprocal.
    logit = jnp.sum(h * wzx3[...], axis=-1, keepdims=True) + bzx3[...]
    dec_ref[...] = pl.reciprocal(1.0 + jnp.exp(-logit), approx=True).astype(dec_ref.dtype)


def head_forward(packed, z, x_feat, *, latent_dim):
    n = z.shape[0]
    d2 = 2 * latent_dim
    vmem = pl.BlockSpec(memory_space=pltpu.MemorySpace.VMEM)
    inputs = (z.astype(jnp.bfloat16), x_feat.astype(jnp.bfloat16),
              *packed["z_fc1"], *packed["z_fc2"], *packed["z_final"],
              *packed["x_final"],
              packed["zx_fc1_wz"], packed["zx_fc1_wx"], packed["zx_fc1_b"],
              *packed["zx_fc2"], *packed["zx_final"])
    dec, xrep_pad = pl.pallas_call(
        _head_kernel,
        out_shape=(jax.ShapeDtypeStruct((n, 1), jnp.float32),
                   jax.ShapeDtypeStruct((n, _rup(d2)), jnp.float32)),
        in_specs=[vmem] * len(inputs),
        out_specs=(vmem, vmem),
    )(*inputs)
    return dec, xrep_pad[:, :d2]


# ----------------------------------------------------------------------------
# DualDiscriminator forward (Pallas path)
# ----------------------------------------------------------------------------
def dual_discriminator_forward(packed, z, x, *, kernel_size, stride, padding, latent_dim):
    # TODO(synk): tuple-valued z (concat of categorical/gaussian parts) is plain
    # concatenation glue; only the dense-z path is exercised here.
    h = jnp.transpose(x, (0, 2, 3, 1))             # NCHW -> NHWC once, at the boundary
    for (w, b), p in zip(packed["x_convs"], padding):
        h = conv_bias_leaky(h, w, b, kernel_size=kernel_size, stride=stride, pad=p)
    x_feat = h.reshape(h.shape[0], -1)             # free reshape, bf16, lane-padded channels
    return head_forward(packed, z, x_feat, latent_dim=latent_dim)


# ----------------------------------------------------------------------------
# Raw (PyTorch-layout) parameters + init-time packing for the Pallas path
# ----------------------------------------------------------------------------
def init_raw_params(key, *, manifest_dim, latent_dim, channels, kernel_size, stride, padding):
    keys = iter(jax.random.split(key, 32))

    def nrm(shape, scale=0.05):
        return scale * jax.random.normal(next(keys), shape, jnp.float32)

    raw = {}
    x_convs = []
    dim = manifest_dim
    for i in range(len(channels) - 1):
        cin, cout = channels[i], channels[i + 1]
        x_convs.append((nrm((cout, cin, kernel_size, kernel_size)),
                        jnp.zeros((cout,), jnp.float32)))          # bias=False
        dim = (dim + 2 * padding[i] - kernel_size) // stride + 1
    raw["x_convs"] = x_convs
    d2 = 2 * latent_dim
    raw["x_final"] = (nrm((d2, channels[-1], dim, dim)), jnp.zeros((d2,), jnp.float32))
    raw["z_fc"] = [(nrm((latent_dim, d2)), nrm((d2,))), (nrm((d2, d2)), nrm((d2,)))]
    raw["z_final"] = (nrm((d2, d2)), nrm((d2,)))
    d4 = 2 * d2
    raw["zx_fc"] = [(nrm((d4, d4)), nrm((d4,))), (nrm((d4, d4)), nrm((d4,)))]
    raw["zx_final"] = (nrm((d4, 1)), nrm((1,)))
    return raw


def pack_params(raw, *, latent_dim, channels, kernel_size):
    """Pre-pack/pad weights once at init: bf16 matmul operands, lane-dense (x128)
    output columns, conv weights in NHWC patch order, zx first layer split so the
    z/x concatenation never has to be materialised."""
    k = kernel_size
    d2, d4 = 2 * latent_dim, 4 * latent_dim
    d2p, d4p = _rup(d2), _rup(d4)

    def pad2(a, rows, cols, dtype=jnp.bfloat16):
        buf = jnp.zeros((rows, cols), jnp.float32).at[:a.shape[0], :a.shape[1]].set(a)
        return buf.astype(dtype)

    def pad_bias(b, cols):
        return jnp.zeros((1, cols), jnp.float32).at[0, :b.shape[0]].set(b)

    packed = {}

    # Conv stack: (kh, kw, cin) patch flattening; intermediate channels padded to 128.
    convs = []
    cin_pad = channels[0]                          # real input channels stay un-padded
    for (w, b) in raw["x_convs"]:
        cout, cin = w.shape[0], w.shape[1]
        coutp = _rup(cout)
        wt = jnp.transpose(w, (2, 3, 1, 0))        # (kh, kw, cin, cout)
        buf = jnp.zeros((k, k, cin_pad, coutp), jnp.float32).at[:, :, :cin, :cout].set(wt)
        convs.append((buf.reshape(k * k * cin_pad, coutp).astype(jnp.bfloat16),
                      pad_bias(b, coutp)))
        cin_pad = coutp                            # next layer sees padded channels
    packed["x_convs"] = convs

    # x_final: full-spatial projection over the NHWC-flattened (padded) feature map.
    wf, bf = raw["x_final"]
    cout, cin, dh, dw = wf.shape
    cinp = _rup(cin)
    wt = jnp.transpose(wf, (2, 3, 1, 0))           # (h, w, cin, cout)
    buf = jnp.zeros((dh, dw, cinp, d2p), jnp.float32).at[:, :, :cin, :cout].set(wt)
    packed["x_final"] = (buf.reshape(dh * dw * cinp, d2p).astype(jnp.bfloat16),
                         pad_bias(bf, d2p))

    # z path.
    (w1, b1), (w2, b2) = raw["z_fc"]
    packed["z_fc1"] = (pad2(w1, latent_dim, d2p), pad_bias(b1, d2p))
    packed["z_fc2"] = (pad2(w2, d2p, d2p), pad_bias(b2, d2p))
    w3, b3 = raw["z_final"]
    packed["z_final"] = (pad2(w3, d2p, d2p), pad_bias(b3, d2p))

    # zx path: split first-layer weight into z / x halves.
    (wa, ba), (wb, bb) = raw["zx_fc"]
    packed["zx_fc1_wz"] = pad2(wa[:d2, :], d2p, d4p)
    packed["zx_fc1_wx"] = pad2(wa[d2:, :], d2p, d4p)
    packed["zx_fc1_b"] = pad_bias(ba, d4p)
    packed["zx_fc2"] = (pad2(wb, d4p, d4p), pad_bias(bb, d4p))
    wo, bo = raw["zx_final"]
    packed["zx_final"] = (jnp.zeros((1, d4p), jnp.float32).at[0, :d4].set(wo[:, 0]),
                          bo.reshape(1, 1).astype(jnp.float32))
    return packed


# ----------------------------------------------------------------------------
# Pure-JAX f32 reference (PyTorch layout) for numerical verification
# ----------------------------------------------------------------------------
def reference_forward(raw, z, x, *, stride, padding):
    h = z
    for (w, b) in raw["z_fc"]:
        h = _leaky(h @ w + b)
    wz, bz = raw["z_final"]
    z_rep = _leaky(h @ wz + bz)

    h = x
    for (w, b), p in zip(raw["x_convs"], padding):
        y = jax.lax.conv_general_dilated(h, w, (stride, stride), [(p, p), (p, p)],
                                         dimension_numbers=("NCHW", "OIHW", "NCHW"))
        h = _leaky(y + b.reshape(1, -1, 1, 1))
    wf, bf = raw["x_final"]
    y = jax.lax.conv_general_dilated(h, wf, (1, 1), [(0, 0), (0, 0)],
                                     dimension_numbers=("NCHW", "OIHW", "NCHW"))
    x_rep = _leaky(y.reshape(y.shape[0], -1) + bf)

    zx = jnp.concatenate([z_rep, x_rep], axis=1) + EPS
    h = zx
    for (w, b) in raw["zx_fc"]:
        h = _leaky(h @ w + b)
    wo, bo = raw["zx_final"]
    decision = jax.nn.sigmoid(h @ wo + bo)
    return decision, x_rep


if __name__ == "__main__":
    # Small, module-consistent configuration (default DCGAN arch shrunk in width).
    BATCH = 2
    MANIFEST_DIM = 28
    LATENT_DIM = 16
    CHANNELS = (1, 16, 32, 64, 128)
    KERNEL = 4
    STRIDE = 2
    PADDING = (3, 1, 1, 1)

    root = jax.random.PRNGKey(0)
    k_params, k_z, k_x = jax.random.split(root, 3)

    raw = init_raw_params(k_params, manifest_dim=MANIFEST_DIM, latent_dim=LATENT_DIM,
                          channels=CHANNELS, kernel_size=KERNEL, stride=STRIDE,
                          padding=PADDING)
    packed = pack_params(raw, latent_dim=LATENT_DIM, channels=CHANNELS,
                         kernel_size=KERNEL)

    z = jax.random.normal(k_z, (BATCH, LATENT_DIM), jnp.float32)
    x = jax.random.normal(k_x, (BATCH, CHANNELS[0], MANIFEST_DIM, MANIFEST_DIM),
                          jnp.float32)

    fwd = jax.jit(functools.partial(dual_discriminator_forward,
                                    kernel_size=KERNEL, stride=STRIDE,
                                    padding=PADDING, latent_dim=LATENT_DIM))
    decision, x_rep = fwd(packed, z, x)
    jax.block_until_ready((decision, x_rep))

    ref_decision, ref_x_rep = reference_forward(raw, z, x, stride=STRIDE, padding=PADDING)

    assert decision.shape == (BATCH, 1)
    assert x_rep.shape == (BATCH, 2 * LATENT_DIM)
    # bf16 matmul operands (f32 accumulation) -> slightly looser tolerance than pure f32.
    assert jnp.allclose(decision, ref_decision, rtol=5e-2, atol=5e-3), \
        float(jnp.max(jnp.abs(decision - ref_decision)))
    assert jnp.allclose(x_rep, ref_x_rep, rtol=5e-2, atol=5e-3), \
        float(jnp.max(jnp.abs(x_rep - ref_x_rep)))

    print("KERNEL_OK")
</pallas_src>

<mosaic_0001>
module attributes {stable_mosaic.version = 11 : i64} {
  func.func @_matmul_bias_leaky_kernel(%arg0: i32, %arg1: memref<256x16xbf16, #tpu.memory_space<vmem>>, %arg2: memref<16x128xbf16, #tpu.memory_space<vmem>>, %arg3: memref<1x128xf32, #tpu.memory_space<vmem>>, %arg4: memref<256x128xbf16, #tpu.memory_space<vmem>>) attributes {dimension_semantics = [#tpu.dimension_semantics<parallel>], iteration_bounds = array<i64: 2>, scalar_prefetch = 0 : i64, scratch_operands = 0 : i64, tpu.core_type = #tpu.core_type<tc>, window_params = [{transform_indices = @transform_0, window_bounds = array<i64: 256, 16>}, {pipeline_mode = #tpu.pipeline_mode<synchronous>, transform_indices = @transform_1, window_bounds = array<i64: 16, 128>}, {pipeline_mode = #tpu.pipeline_mode<synchronous>, transform_indices = @transform_2, window_bounds = array<i64: 1, 128>}, {transform_indices = @transform_3, window_bounds = array<i64: 256, 128>}]} {
    %c0 = arith.constant 0 : index
    %c0_0 = arith.constant 0 : index
    %0 = vector.load %arg1[%c0, %c0_0] : memref<256x16xbf16, #tpu.memory_space<vmem>>, vector<256x16xbf16>
    %c0_1 = arith.constant 0 : index
    %c0_2 = arith.constant 0 : index
    %1 = vector.load %arg2[%c0_1, %c0_2] : memref<16x128xbf16, #tpu.memory_space<vmem>>, vector<16x128xbf16>
    %cst = arith.constant dense<0.000000e+00> : vector<256x128xf32>
    %2 = tpu.matmul %0, %1, %cst {dimension_numbers = #tpu.dot_dimension_numbers<[1], [0], [0], [1], [0, 0, 1, 1], [], []>} : vector<256x16xbf16>, vector<16x128xbf16>, vector<256x128xf32> -> vector<256x128xf32>
    %c0_3 = arith.constant 0 : index
    %c0_4 = arith.constant 0 : index
    %3 = vector.load %arg3[%c0_3, %c0_4] : memref<1x128xf32, #tpu.memory_space<vmem>>, vector<1x128xf32>
    %4 = vector.broadcast %3 : vector<1x128xf32> to vector<256x128xf32>
    %5 = arith.addf %2, %4 : vector<256x128xf32>
    %cst_5 = arith.constant 0.000000e+00 : f32
    %6 = vector.broadcast %cst_5 : f32 to vector<256x128xf32>
    %7 = arith.cmpf oge, %5, %6 : vector<256x128xf32>
    %cst_6 = arith.constant 2.000000e-01 : f32
    %8 = vector.broadcast %cst_6 : f32 to vector<256x128xf32>
    %9 = arith.mulf %8, %5 : vector<256x128xf32>
    %10 = arith.select %7, %5, %9 : vector<256x128xi1>, vector<256x128xf32>
    %11 = arith.truncf %10 : vector<256x128xf32> to vector<256x128xbf16>
    %c0_7 = arith.constant 0 : index
    %c0_8 = arith.constant 0 : index
    %12 = vector.load %arg4[%c0_7, %c0_8] : memref<256x128xbf16, #tpu.memory_space<vmem>>, vector<256x128xbf16>
    tpu.vector_store %arg4[%c0_7, %c0_8], %11 {strides = array<i32>} : memref<256x128xbf16, #tpu.memory_space<vmem>>, vector<256x128xbf16>,
    return
  }
  func.func @transform_0(%arg0: i32) -> (i32, i32) {
    %c0_i32 = arith.constant 0 : i32
    %c0_i32_0 = arith.constant 0 : i32
    return %arg0, %c0_i32 : i32, i32
  }
  func.func @transform_1(%arg0: i32) -> (i32, i32) {
    %c0_i32 = arith.constant 0 : i32
    %c0_i32_0 = arith.constant 0 : i32
    %c0_i32_1 = arith.constant 0 : i32
    return %c0_i32, %c0_i32_0 : i32, i32
  }
  func.func @transform_2(%arg0: i32) -> (i32, i32) {
    %c0_i32 = arith.constant 0 : i32
    %c0_i32_0 = arith.constant 0 : i32
    %c0_i32_1 = arith.constant 0 : i32
    return %c0_i32, %c0_i32_0 : i32, i32
  }
  func.func @transform_3(%arg0: i32) -> (i32, i32) {
    %c0_i32 = arith.constant 0 : i32
    %c0_i32_0 = arith.constant 0 : i32
    return %arg0, %c0_i32 : i32, i32
  }
}

module attributes {stable_mosaic.version = 11 : i64} {
  func.func @_matmul_bias_leaky_kernel(%arg0: i32, %arg1: memref<128x2048xbf16, #tpu.memory_space<vmem>>, %arg2: memref<2048x128xbf16, #tpu.memory_space<vmem>>, %arg3: memref<1x128xf32, #tpu.memory_space<vmem>>, %arg4: memref<128x128xbf16, #tpu.memory_space<vmem>>) attributes {dimension_semantics = [#tpu.dimension_semantics<parallel>], iteration_bounds = array<i64: 1>, scalar_prefetch = 0 : i64, scratch_operands = 0 : i64, tpu.core_type = #tpu.core_type<tc>, window_params = [{transform_indices = @transform_0, window_bounds = array<i64: 128, 2048>}, {pipeline_mode = #tpu.pipeline_mode<synchronous>, transform_indices = @transform_1, window_bounds = array<i64: 2048, 128>}, {pipeline_mode = #tpu.pipeline_mode<synchronous>, transform_indices = @transform_2, window_bounds = array<i64: 1, 128>}, {transform_indices = @transform_3, window_bounds = array<i64: 128, 128>}]} {
    %c0 = arith.constant 0 : index
    %c0_0 = arith.constant 0 : index
    %0 = vector.load %arg1[%c0, %c0_0] : memref<128x2048xbf16, #tpu.memory_space<vmem>>, vector<128x2048xbf16>
    %c0_1 = arith.constant 0 : index
    %c0_2 = arith.constant 0 : index
    %1 = vector.load %arg2[%c0_1, %c0_2] : memref<2048x128xbf16, #tpu.memory_space<vmem>>, vector<2048x128xbf16>
    %cst = arith.constant dense<0.000000e+00> : vector<128x128xf32>
    %2 = tpu.matmul %0, %1, %cst {dimension_numbers = #tpu.dot_dimension_numbers<[1], [0], [0], [1], [0, 0, 1, 1], [], []>} : vector<128x2048xbf16>, vector<2048x128xbf16>, vector<128x128xf32> -> vector<128x128xf32>
    %c0_3 = arith.constant 0 : index
    %c0_4 = arith.constant 0 : index
    %3 = vector.load %arg3[%c0_3, %c0_4] : memref<1x128xf32, #tpu.memory_space<vmem>>, vector<1x128xf32>
    %4 = vector.broadcast %3 : vector<1x128xf32> to vector<128x128xf32>
    %5 = arith.addf %2, %4 : vector<128x128xf32>
    %cst_5 = arith.constant 0.000000e+00 : f32
    %6 = vector.broadcast %cst_5 : f32 to vector<128x128xf32>
    %7 = arith.cmpf oge, %5, %6 : vector<128x128xf32>
    %cst_6 = arith.constant 2.000000e-01 : f32
    %8 = vector.broadcast %cst_6 : f32 to vector<128x128xf32>
    %9 = arith.mulf %8, %5 : vector<128x128xf32>
    %10 = arith.select %7, %5, %9 : vector<128x128xi1>, vector<128x128xf32>
    %11 = arith.truncf %10 : vector<128x128xf32> to vector<128x128xbf16>
    %c0_7 = arith.constant 0 : index
    %c0_8 = arith.constant 0 : index
    %12 = vector.load %arg4[%c0_7, %c0_8] : memref<128x128xbf16, #tpu.memory_space<vmem>>, vector<128x128xbf16>
    tpu.vector_store %arg4[%c0_7, %c0_8], %11 {strides = array<i32>} : memref<128x128xbf16, #tpu.memory_space<vmem>>, vector<128x128xbf16>,
    return
  }
  func.func @transform_0(%arg0: i32) -> (i32, i32) {
    %c0_i32 = arith.constant 0 : i32
    %c0_i32_0 = arith.constant 0 : i32
    return %arg0, %c0_i32 : i32, i32
  }
  func.func @transform_1(%arg0: i32) -> (i32, i32) {
    %c0_i32 = arith.constant 0 : i32
    %c0_i32_0 = arith.constant 0 : i32
    %c0_i32_1 = arith.constant 0 : i32
    return %c0_i32, %c0_i32_0 : i32, i32
  }
  func.func @transform_2(%arg0: i32) -> (i32, i32) {
    %c0_i32 = arith.constant 0 : i32
    %c0_i32_0 = arith.constant 0 : i32
    %c0_i32_1 = arith.constant 0 : i32
    return %c0_i32, %c0_i32_0 : i32, i32
  }
  func.func @transform_3(%arg0: i32) -> (i32, i32) {
    %c0_i32 = arith.constant 0 : i32
    %c0_i32_0 = arith.constant 0 : i32
    return %arg0, %c0_i32 : i32, i32
  }
}

module attributes {stable_mosaic.version = 11 : i64} {
  func.func @_matmul_bias_leaky_kernel(%arg0: i32, %arg1: memref<32x2048xbf16, #tpu.memory_space<vmem>>, %arg2: memref<2048x128xbf16, #tpu.memory_space<vmem>>, %arg3: memref<1x128xf32, #tpu.memory_space<vmem>>, %arg4: memref<32x128xbf16, #tpu.memory_space<vmem>>) attributes {dimension_semantics = [#tpu.dimension_semantics<parallel>], iteration_bounds = array<i64: 1>, scalar_prefetch = 0 : i64, scratch_operands = 0 : i64, tpu.core_type = #tpu.core_type<tc>, window_params = [{transform_indices = @transform_0, window_bounds = array<i64: 32, 2048>}, {pipeline_mode = #tpu.pipeline_mode<synchronous>, transform_indices = @transform_1, window_bounds = array<i64: 2048, 128>}, {pipeline_mode = #tpu.pipeline_mode<synchronous>, transform_indices = @transform_2, window_bounds = array<i64: 1, 128>}, {transform_indices = @transform_3, window_bounds = array<i64: 32, 128>}]} {
    %c0 = arith.constant 0 : index
    %c0_0 = arith.constant 0 : index
    %0 = vector.load %arg1[%c0, %c0_0] : memref<32x2048xbf16, #tpu.memory_space<vmem>>, vector<32x2048xbf16>
    %c0_1 = arith.constant 0 : index
    %c0_2 = arith.constant 0 : index
    %1 = vector.load %arg2[%c0_1, %c0_2] : memref<2048x128xbf16, #tpu.memory_space<vmem>>, vector<2048x128xbf16>
    %cst = arith.constant dense<0.000000e+00> : vector<32x128xf32>
    %2 = tpu.matmul %0, %1, %cst {dimension_numbers = #tpu.dot_dimension_numbers<[1], [0], [0], [1], [0, 0, 1, 1], [], []>} : vector<32x2048xbf16>, vector<2048x128xbf16>, vector<32x128xf32> -> vector<32x128xf32>
    %c0_3 = arith.constant 0 : index
    %c0_4 = arith.constant 0 : index
    %3 = vector.load %arg3[%c0_3, %c0_4] : memref<1x128xf32, #tpu.memory_space<vmem>>, vector<1x128xf32>
    %4 = vector.broadcast %3 : vector<1x128xf32> to vector<32x128xf32>
    %5 = arith.addf %2, %4 : vector<32x128xf32>
    %cst_5 = arith.constant 0.000000e+00 : f32
    %6 = vector.broadcast %cst_5 : f32 to vector<32x128xf32>
    %7 = arith.cmpf oge, %5, %6 : vector<32x128xf32>
    %cst_6 = arith.constant 2.000000e-01 : f32
    %8 = vector.broadcast %cst_6 : f32 to vector<32x128xf32>
    %9 = arith.mulf %8, %5 : vector<32x128xf32>
    %10 = arith.select %7, %5, %9 : vector<32x128xi1>, vector<32x128xf32>
    %11 = arith.truncf %10 : vector<32x128xf32> to vector<32x128xbf16>
    %c0_7 = arith.constant 0 : index
    %c0_8 = arith.constant 0 : index
    %12 = vector.load %arg4[%c0_7, %c0_8] : memref<32x128xbf16, #tpu.memory_space<vmem>>, vector<32x128xbf16>
    tpu.vector_store %arg4[%c0_7, %c0_8], %11 {strides = array<i32>} : memref<32x128xbf16, #tpu.memory_space<vmem>>, vector<32x128xbf16>,
    return
  }
  func.func @transform_0(%arg0: i32) -> (i32, i32) {
    %c0_i32 = arith.constant 0 : i32
    %c0_i32_0 = arith.constant 0 : i32
    return %arg0, %c0_i32 : i32, i32
  }
  func.func @transform_1(%arg0: i32) -> (i32, i32) {
    %c0_i32 = arith.constant 0 : i32
    %c0_i32_0 = arith.constant 0 : i32
    %c0_i32_1 = arith.constant 0 : i32
    return %c0_i32, %c0_i32_0 : i32, i32
  }
  func.func @transform_2(%arg0: i32) -> (i32, i32) {
    %c0_i32 = arith.constant 0 : i32
    %c0_i32_0 = arith.constant 0 : i32
    %c0_i32_1 = arith.constant 0 : i32
    return %c0_i32, %c0_i32_0 : i32, i32
  }
  func.func @transform_3(%arg0: i32) -> (i32, i32) {
    %c0_i32 = arith.constant 0 : i32
    %c0_i32_0 = arith.constant 0 : i32
    return %arg0, %c0_i32 : i32, i32
  }
}

module attributes {stable_mosaic.version = 11 : i64} {
  func.func @_matmul_bias_leaky_kernel(%arg0: i32, %arg1: memref<8x2048xbf16, #tpu.memory_space<vmem>>, %arg2: memref<2048x128xbf16, #tpu.memory_space<vmem>>, %arg3: memref<1x128xf32, #tpu.memory_space<vmem>>, %arg4: memref<8x128xbf16, #tpu.memory_space<vmem>>) attributes {dimension_semantics = [#tpu.dimension_semantics<parallel>], iteration_bounds = array<i64: 1>, scalar_prefetch = 0 : i64, scratch_operands = 0 : i64, tpu.core_type = #tpu.core_type<tc>, window_params = [{transform_indices = @transform_0, window_bounds = array<i64: 8, 2048>}, {pipeline_mode = #tpu.pipeline_mode<synchronous>, transform_indices = @transform_1, window_bounds = array<i64: 2048, 128>}, {pipeline_mode = #tpu.pipeline_mode<synchronous>, transform_indices = @transform_2, window_bounds = array<i64: 1, 128>}, {transform_indices = @transform_3, window_bounds = array<i64: 8, 128>}]} {
    %c0 = arith.constant 0 : index
    %c0_0 = arith.constant 0 : index
    %0 = vector.load %arg1[%c0, %c0_0] : memref<8x2048xbf16, #tpu.memory_space<vmem>>, vector<8x2048xbf16>
    %c0_1 = arith.constant 0 : index
    %c0_2 = arith.constant 0 : index
    %1 = vector.load %arg2[%c0_1, %c0_2] : memref<2048x128xbf16, #tpu.memory_space<vmem>>, vector<2048x128xbf16>
    %cst = arith.constant dense<0.000000e+00> : vector<8x128xf32>
    %2 = tpu.matmul %0, %1, %cst {dimension_numbers = #tpu.dot_dimension_numbers<[1], [0], [0], [1], [0, 0, 1, 1], [], []>} : vector<8x2048xbf16>, vector<2048x128xbf16>, vector<8x128xf32> -> vector<8x128xf32>
    %c0_3 = arith.constant 0 : index
    %c0_4 = arith.constant 0 : index
    %3 = vector.load %arg3[%c0_3, %c0_4] : memref<1x128xf32, #tpu.memory_space<vmem>>, vector<1x128xf32>
    %4 = vector.broadcast %3 : vector<1x128xf32> to vector<8x128xf32>
    %5 = arith.addf %2, %4 : vector<8x128xf32>
    %cst_5 = arith.constant 0.000000e+00 : f32
    %6 = vector.broadcast %cst_5 : f32 to vector<8x128xf32>
    %7 = arith.cmpf oge, %5, %6 : vector<8x128xf32>
    %cst_6 = arith.constant 2.000000e-01 : f32
    %8 = vector.broadcast %cst_6 : f32 to vector<8x128xf32>
    %9 = arith.mulf %8, %5 : vector<8x128xf32>
    %10 = arith.select %7, %5, %9 : vector<8x128xi1>, vector<8x128xf32>
    %11 = arith.truncf %10 : vector<8x128xf32> to vector<8x128xbf16>
    %c0_7 = arith.constant 0 : index
    %c0_8 = arith.constant 0 : index
    %12 = vector.load %arg4[%c0_7, %c0_8] : memref<8x128xbf16, #tpu.memory_space<vmem>>, vector<8x128xbf16>
    tpu.vector_store %arg4[%c0_7, %c0_8], %11 {strides = array<i32>} : memref<8x128xbf16, #tpu.memory_space<vmem>>, vector<8x128xbf16>,
    return
  }
  func.func @transform_0(%arg0: i32) -> (i32, i32) {
    %c0_i32 = arith.constant 0 : i32
    %c0_i32_0 = arith.constant 0 : i32
    return %arg0, %c0_i32 : i32, i32
  }
  func.func @transform_1(%arg0: i32) -> (i32, i32) {
    %c0_i32 = arith.constant 0 : i32
    %c0_i32_0 = arith.constant 0 : i32
    %c0_i32_1 = arith.constant 0 : i32
    return %c0_i32, %c0_i32_0 : i32, i32
  }
  func.func @transform_2(%arg0: i32) -> (i32, i32) {
    %c0_i32 = arith.constant 0 : i32
    %c0_i32_0 = arith.constant 0 : i32
    %c0_i32_1 = arith.constant 0 : i32
    return %c0_i32, %c0_i32_0 : i32, i32
  }
  func.func @transform_3(%arg0: i32) -> (i32, i32) {
    %c0_i32 = arith.constant 0 : i32
    %c0_i32_0 = arith.constant 0 : i32
    return %arg0, %c0_i32 : i32, i32
  }
}

module attributes {stable_mosaic.version = 11 : i64} {
  func.func @_head_kernel(%arg0: memref<2x16xbf16, #tpu.memory_space<vmem>>, %arg1: memref<2x512xbf16, #tpu.memory_space<vmem>>, %arg2: memref<16x128xbf16, #tpu.memory_space<vmem>>, %arg3: memref<1x128xf32, #tpu.memory_space<vmem>>, %arg4: memref<128x128xbf16, #tpu.memory_space<vmem>>, %arg5: memref<1x128xf32, #tpu.memory_space<vmem>>, %arg6: memref<128x128xbf16, #tpu.memory_space<vmem>>, %arg7: memref<1x128xf32, #tpu.memory_space<vmem>>, %arg8: memref<512x128xbf16, #tpu.memory_space<vmem>>, %arg9: memref<1x128xf32, #tpu.memory_space<vmem>>, %arg10: memref<128x128xbf16, #tpu.memory_space<vmem>>, %arg11: memref<128x128xbf16, #tpu.memory_space<vmem>>, %arg12: memref<1x128xf32, #tpu.memory_space<vmem>>, %arg13: memref<128x128xbf16, #tpu.memory_space<vmem>>, %arg14: memref<1x128xf32, #tpu.memory_space<vmem>>, %arg15: memref<1x128xf32, #tpu.memory_space<vmem>>, %arg16: memref<1x1xf32, #tpu.memory_space<vmem>>, %arg17: memref<2x1xf32, #tpu.memory_space<vmem>>, %arg18: memref<2x128xf32, #tpu.memory_space<vmem>>) attributes {dimension_semantics = [], scalar_prefetch = 0 : i64, scratch_operands = 0 : i64, tpu.core_type = #tpu.core_type<tc>} {
    %c0 = arith.constant 0 : index
    %c0_0 = arith.constant 0 : index
    %0 = vector.load %arg0[%c0, %c0_0] : memref<2x16xbf16, #tpu.memory_space<vmem>>, vector<2x16xbf16>
    %c0_1 = arith.constant 0 : index
    %c0_2 = arith.constant 0 : index
    %1 = vector.load %arg2[%c0_1, %c0_2] : memref<16x128xbf16, #tpu.memory_space<vmem>>, vector<16x128xbf16>
    %cst = arith.constant dense<0.000000e+00> : vector<2x128xf32>
    %2 = tpu.matmul %0, %1, %cst {dimension_numbers = #tpu.dot_dimension_numbers<[1], [0], [0], [1], [0, 0, 1, 1], [], []>} : vector<2x16xbf16>, vector<16x128xbf16>, vector<2x128xf32> -> vector<2x128xf32>
    %c0_3 = arith.constant 0 : index
    %c0_4 = arith.constant 0 : index
    %3 = vector.load %arg3[%c0_3, %c0_4] : memref<1x128xf32, #tpu.memory_space<vmem>>, vector<1x128xf32>
    %4 = vector.broadcast %3 : vector<1x128xf32> to vector<2x128xf32>
    %5 = arith.addf %2, %4 : vector<2x128xf32>
    %cst_5 = arith.constant 0.000000e+00 : f32
    %6 = vector.broadcast %cst_5 : f32 to vector<2x128xf32>
    %7 = arith.cmpf oge, %5, %6 : vector<2x128xf32>
    %cst_6 = arith.constant 2.000000e-01 : f32
    %8 = vector.broadcast %cst_6 : f32 to vector<2x128xf32>
    %9 = arith.mulf %8, %5 : vector<2x128xf32>
    %10 = arith.select %7, %5, %9 : vector<2x128xi1>, vector<2x128xf32>
    %11 = arith.truncf %10 : vector<2x128xf32> to vector<2x128xbf16>
    %c0_7 = arith.constant 0 : index
    %c0_8 = arith.constant 0 : index
    %12 = vector.load %arg4[%c0_7, %c0_8] : memref<128x128xbf16, #tpu.memory_space<vmem>>, vector<128x128xbf16>
    %cst_9 = arith.constant dense<0.000000e+00> : vector<2x128xf32>
    %13 = tpu.matmul %11, %12, %cst_9 {dimension_numbers = #tpu.dot_dimension_numbers<[1], [0], [0], [1], [0, 0, 1, 1], [], []>} : vector<2x128xbf16>, vector<128x128xbf16>, vector<2x128xf32> -> vector<2x128xf32>
    %c0_10 = arith.constant 0 : index
    %c0_11 = arith.constant 0 : index
    %14 = vector.load %arg5[%c0_10, %c0_11] : memref<1x128xf32, #tpu.memory_space<vmem>>, vector<1x128xf32>
    %15 = vector.broadcast %14 : vector<1x128xf32> to vector<2x128xf32>
    %16 = arith.addf %13, %15 : vector<2x128xf32>
    %cst_12 = arith.constant 0.000000e+00 : f32
    %17 = vector.broadcast %cst_12 : f32 to vector<2x128xf32>
    %18 = arith.cmpf oge, %16, %17 : vector<2x128xf32>
    %cst_13 = arith.constant 2.000000e-01 : f32
    %19 = vector.broadcast %cst_13 : f32 to vector<2x128xf32>
    %20 = arith.mulf %19, %16 : vector<2x128xf32>
    %21 = arith.select %18, %16, %20 : vector<2x128xi1>, vector<2x128xf32>
    %22 = arith.truncf %21 : vector<2x128xf32> to vector<2x128xbf16>
    %c0_14 = arith.constant 0 : index
    %c0_15 = arith.constant 0 : index
    %23 = vector.load %arg6[%c0_14, %c0_15] : memref<128x128xbf16, #tpu.memory_space<vmem>>, vector<128x128xbf16>
    %cst_16 = arith.constant dense<0.000000e+00> : vector<2x128xf32>
    %24 = tpu.matmul %22, %23, %cst_16 {dimension_numbers = #tpu.dot_dimension_numbers<[1], [0], [0], [1], [0, 0, 1, 1], [], []>} : vector<2x128xbf16>, vector<128x128xbf16>, vector<2x128xf32> -> vector<2x128xf32>
    %c0_17 = arith.constant 0 : index
    %c0_18 = arith.constant 0 : index
    %25 = vector.load %arg7[%c0_17, %c0_18] : memref<1x128xf32, #tpu.memory_space<vmem>>, vector<1x128xf32>
    %26 = vector.broadcast %25 : vector<1x128xf32> to vector<2x128xf32>
    %27 = arith.addf %24, %26 : vector<2x128xf32>
    %cst_19 = arith.constant 0.000000e+00 : f32
    %28 = vector.broadcast %cst_19 : f32 to vector<2x128xf32>
    %29 = arith.cmpf oge, %27, %28 : vector<2x128xf32>
    %cst_20 = arith.constant 2.000000e-01 : f32
    %30 = vector.broadcast %cst_20 : f32 to vector<2x128xf32>
    %31 = arith.mulf %30, %27 : vector<2x128xf32>
    %32 = arith.select %29, %27, %31 : vector<2x128xi1>, vector<2x128xf32>
    %c0_21 = arith.constant 0 : index
    %c0_22 = arith.constant 0 : index
    %33 = vector.load %arg1[%c0_21, %c0_22] : memref<2x512xbf16, #tpu.memory_space<vmem>>, vector<2x512xbf16>
    %c0_23 = arith.constant 0 : index
    %c0_24 = arith.constant 0 : index
    %34 = vector.load %arg8[%c0_23, %c0_24] : memref<512x128xbf16, #tpu.memory_space<vmem>>, vector<512x128xbf16>
    %cst_25 = arith.constant dense<0.000000e+00> : vector<2x128xf32>
    %35 = tpu.matmul %33, %34, %cst_25 {dimension_numbers = #tpu.dot_dimension_numbers<[1], [0], [0], [1], [0, 0, 1, 1], [], []>} : vector<2x512xbf16>, vector<512x128xbf16>, vector<2x128xf32> -> vector<2x128xf32>
    %c0_26 = arith.constant 0 : index
    %c0_27 = arith.constant 0 : index
    %36 = vector.load %arg9[%c0_26, %c0_27] : memref<1x128xf32, #tpu.memory_space<vmem>>, vector<1x128xf32>
    %37 = vector.broadcast %36 : vector<1x128xf32> to vector<2x128xf32>
    %38 = arith.addf %35, %37 : vector<2x128xf32>
    %cst_28 = arith.constant 0.000000e+00 : f32
    %39 = vector.broadcast %cst_28 : f32 to vector<2x128xf32>
    %40 = arith.cmpf oge, %38, %39 : vector<2x128xf32>
    %cst_29 = arith.constant 2.000000e-01 : f32
    %41 = vector.broadcast %cst_29 : f32 to vector<2x128xf32>
    %42 = arith.mulf %41, %38 : vector<2x128xf32>
    %43 = arith.select %40, %38, %42 : vector<2x128xi1>, vector<2x128xf32>
    %c0_30 = arith.constant 0 : index
    %c0_31 = arith.constant 0 : index
    %44 = vector.load %arg18[%c0_30, %c0_31] : memref<2x128xf32, #tpu.memory_space<vmem>>, vector<2x128xf32>
    tpu.vector_store %arg18[%c0_30, %c0_31], %43 {strides = array<i32>} : memref<2x128xf32, #tpu.memory_space<vmem>>, vector<2x128xf32>,
    %cst_32 = arith.constant 9.99999997E-7 : f32
    %45 = vector.broadcast %cst_32 : f32 to vector<2x128xf32>
    %46 = arith.addf %32, %45 : vector<2x128xf32>
    %47 = arith.truncf %46 : vector<2x128xf32> to vector<2x128xbf16>
    %c0_33 = arith.constant 0 : index
    %c0_34 = arith.constant 0 : index
    %48 = vector.load %arg10[%c0_33, %c0_34] : memref<128x128xbf16, #tpu.memory_space<vmem>>, vector<128x128xbf16>
    %cst_35 = arith.constant dense<0.000000e+00> : vector<2x128xf32>
    %49 = tpu.matmul %47, %48, %cst_35 {dimension_numbers = #tpu.dot_dimension_numbers<[1], [0], [0], [1], [0, 0, 1, 1], [], []>} : vector<2x128xbf16>, vector<128x128xbf16>, vector<2x128xf32> -> vector<2x128xf32>
    %cst_36 = arith.constant 9.99999997E-7 : f32
    %50 = vector.broadcast %cst_36 : f32 to vector<2x128xf32>
    %51 = arith.addf %43, %50 : vector<2x128xf32>
    %52 = arith.truncf %51 : vector<2x128xf32> to vector<2x128xbf16>
    %c0_37 = arith.constant 0 : index
    %c0_38 = arith.constant 0 : index
    %53 = vector.load %arg11[%c0_37, %c0_38] : memref<128x128xbf16, #tpu.memory_space<vmem>>, vector<128x128xbf16>
    %cst_39 = arith.constant dense<0.000000e+00> : vector<2x128xf32>
    %54 = tpu.matmul %52, %53, %cst_39 {dimension_numbers = #tpu.dot_dimension_numbers<[1], [0], [0], [1], [0, 0, 1, 1], [], []>} : vector<2x128xbf16>, vector<128x128xbf16>, vector<2x128xf32> -> vector<2x128xf32>
    %55 = arith.addf %49, %54 : vector<2x128xf32>
    %c0_40 = arith.constant 0 : index
    %c0_41 = arith.constant 0 : index
    %56 = vector.load %arg12[%c0_40, %c0_41] : memref<1x128xf32, #tpu.memory_space<vmem>>, vector<1x128xf32>
    %57 = vector.broadcast %56 : vector<1x128xf32> to vector<2x128xf32>
    %58 = arith.addf %55, %57 : vector<2x128xf32>
    %cst_42 = arith.constant 0.000000e+00 : f32
    %59 = vector.broadcast %cst_42 : f32 to vector<2x128xf32>
    %60 = arith.cmpf oge, %58, %59 : vector<2x128xf32>
    %cst_43 = arith.constant 2.000000e-01 : f32
    %61 = vector.broadcast %cst_43 : f32 to vector<2x128xf32>
    %62 = arith.mulf %61, %58 : vector<2x128xf32>
    %63 = arith.select %60, %58, %62 : vector<2x128xi1>, vector<2x128xf32>
    %64 = arith.truncf %63 : vector<2x128xf32> to vector<2x128xbf16>
    %c0_44 = arith.constant 0 : index
    %c0_45 = arith.constant 0 : index
    %65 = vector.load %arg13[%c0_44, %c0_45] : memref<128x128xbf16, #tpu.memory_space<vmem>>, vector<128x128xbf16>
    %cst_46 = arith.constant dense<0.000000e+00> : vector<2x128xf32>
    %66 = tpu.matmul %64, %65, %cst_46 {dimension_numbers = #tpu.dot_dimension_numbers<[1], [0], [0], [1], [0, 0, 1, 1], [], []>} : vector<2x128xbf16>, vector<128x128xbf16>, vector<2x128xf32> -> vector<2x128xf32>
    %c0_47 = arith.constant 0 : index
    %c0_48 = arith.constant 0 : index
    %67 = vector.load %arg14[%c0_47, %c0_48] : memref<1x128xf32, #tpu.memory_space<vmem>>, vector<1x128xf32>
    %68 = vector.broadcast %67 : vector<1x128xf32> to vector<2x128xf32>
    %69 = arith.addf %66, %68 : vector<2x128xf32>
    %cst_49 = arith.constant 0.000000e+00 : f32
    %70 = vector.broadcast %cst_49 : f32 to vector<2x128xf32>
    %71 = arith.cmpf oge, %69, %70 : vector<2x128xf32>
    %cst_50 = arith.constant 2.000000e-01 : f32
    %72 = vector.broadcast %cst_50 : f32 to vector<2x128xf32>
    %73 = arith.mulf %72, %69 : vector<2x128xf32>
    %74 = arith.select %71, %69, %73 : vector<2x128xi1>, vector<2x128xf32>
    %c0_51 = arith.constant 0 : index
    %c0_52 = arith.constant 0 : index
    %75 = vector.load %arg15[%c0_51, %c0_52] : memref<1x128xf32, #tpu.memory_space<vmem>>, vector<1x128xf32>
    %76 = vector.broadcast %75 : vector<1x128xf32> to vector<2x128xf32>
    %77 = arith.mulf %74, %76 : vector<2x128xf32>
    %cst_53 = arith.constant dense<0.000000e+00> : vector<2xf32>
    %78 = vector.multi_reduction <add>, %77, %cst_53 [1] : vector<2x128xf32> to vector<2xf32>
    %79 = vector.shape_cast %78 : vector<2xf32> to vector<2x1xf32>
    %c0_54 = arith.constant 0 : index
    %c0_55 = arith.constant 0 : index
    %80 = vector.load %arg16[%c0_54, %c0_55] : memref<1x1xf32, #tpu.memory_space<vmem>>, vector<1x1xf32>
    %81 = vector.broadcast %80 : vector<1x1xf32> to vector<2x1xf32>
    %82 = arith.addf %79, %81 : vector<2x1xf32>
    %cst_56 = arith.constant 0.000000e+00 : f32
    %83 = vector.broadcast %cst_56 : f32 to vector<2x1xf32>
    %84 = arith.subf %83, %82 : vector<2x1xf32>
    %85 = math.exp %84 : vector<2x1xf32>
    %cst_57 = arith.constant 1.000000e+00 : f32
    %86 = vector.broadcast %cst_57 : f32 to vector<2x1xf32>
    %87 = arith.addf %86, %85 : vector<2x1xf32>
    %88 = tpu.reciprocal %87 {approx = true} : vector<2x1xf32> -> vector<2x1xf32>
    %c0_58 = arith.constant 0 : index
    %c0_59 = arith.constant 0 : index
    %89 = vector.load %arg17[%c0_58, %c0_59] : memref<2x1xf32, #tpu.memory_space<vmem>>, vector<2x1xf32>
    tpu.vector_store %arg17[%c0_58, %c0_59], %88 {strides = array<i32>} : memref<2x1xf32, #tpu.memory_space<vmem>>, vector<2x1xf32>,
    return
  }
}

</mosaic_0001>

<llo_original>
// kernel: dual_discriminator_forward.5
$region0: #{dual_discriminator_forward.5}
  #allocation0 [shape = 'u32[]', space=smem, size = 0x4, offset = 0x4, fixed_abs, tag = 'smem constant byte address 0x4 - core index']
  #allocation1 [shape = 'u32[144,128]{1,0:T(1,128)}', space=vmem, size = 0x12000, scoped, tag = 'internal scratch']
  %s0 = inlined_call_operand.vmem [shape: bf16[512,16], index: 0, kind: input, shape index: {}]
  %s1 = inlined_call_operand.vmem [shape: bf16[16,128], index: 1, kind: input, shape index: {}]
  %s2 = inlined_call_operand.vmem [shape: f32[1,128], index: 2, kind: input, shape index: {}]
  %s3 = inlined_call_operand.vmem [shape: bf16[512,128], index: 3, kind: output, shape index: {}]
  %s4 = sld [smem:[#allocation0]]
  $region45: #{dual_discriminator_forward.5} parent=0
    _
  %s6 = ssub.s32 1, %s4
  %s7 = scalar_select 0, %s6, %s4
  loop: start=0, step=1, limit=4
  $region2: #{dual_discriminator_forward.5} parent=0 // loop_pre_header
    _
  $region3: #{dual_discriminator_forward.5} parent=0 // loop_header
    %s9 = sphi 0, %s13
    %p10 = scmp.ge.s32.totalorder %s9, 4
    %s19 = sphi 0, %s21
    %s22 = sphi 0, %s19
    %s23 = sphi 0, %s22
    %s39 = sphi 0, %s23
    %s43 = sphi 0, %s43
    %s45 = sphi 0, %s43
    %s46 = sphi 0, %s45
    %s60 = sphi 0, %s46
    %s64 = sphi 0, %s64
    %s66 = sphi 0, %s64
    %s67 = sphi 0, %s66
    %s81 = sphi 0, %s67
    %s87 = sphi 0, %s89
    %s90 = sphi 0, %s87
    %s91 = sphi 0, %s90
    %s107 = sphi 0, %s91
  $region4: #{dual_discriminator_forward.5} parent=0 // loop_header_branch
    %12 = sbr.rel (%p10) target = $region8
  $region5: #{dual_discriminator_forward.5} parent=0 // loop_body
    %s14 = ssub.s32 %s9, 1
    %s15 = ssub.s32 %s9, 2
    %s16 = sadd.s32 %s9, 1
    %s17 = ssub.s32 %s9, %s16
    %p18 = scmp.eq.s32.totalorder %s17, 0
    %s20 = sadd.s32 %s19, 1
    %s21 = scalar_select %p18, %s19, %s20
    %p24 = pneg %p18
    %p25 = scmp.eq.s32.totalorder %s9, 1
    %p26 = por %p24, %p25
    %p27 = scmp.ne.s32.totalorder %s19, %s22
    %p28 = scmp.eq.s32.totalorder %s9, 0
    %p29 = por %p27, %p28
    %p30 = scmp.ne.s32.totalorder %s19, %s22
    %p31 = scmp.eq.s32.totalorder %s14, 1
    %p32 = por %p30, %p31
    %p33 = scmp.ne.s32.totalorder %s22, %s23
    %p34 = scmp.eq.s32.totalorder %s14, 0
    %p35 = por %p33, %p34
    %p36 = scmp.ne.s32.totalorder %s22, %s23
    %p37 = scmp.eq.s32.totalorder %s15, 1
    %p38 = por %p36, %p37
    %p40 = scmp.ne.s32.totalorder %s23, %s39
    %p41 = scmp.eq.s32.totalorder %s15, 0
    %p42 = por %p40, %p41
    %s44 = sadd.s32 %s43, 1
    %p47 = scmp.eq.s32.totalorder %s9, 1
    %p48 = scmp.ne.s32.totalorder %s43, %s45
    %p49 = scmp.eq.s32.totalorder %s9, 0
    %p50 = por %p48, %p49
    %p51 = scmp.ne.s32.totalorder %s43, %s45
    %p52 = scmp.eq.s32.totalorder %s14, 1
    %p53 = por %p51, %p52
    %p54 = scmp.ne.s32.totalorder %s45, %s46
    %p55 = scmp.eq.s32.totalorder %s14, 0
    %p56 = por %p54, %p55
    %p57 = scmp.ne.s32.totalorder %s45, %s46
    %p58 = scmp.eq.s32.totalorder %s15, 1
    %p59 = por %p57, %p58
    %p61 = scmp.ne.s32.totalorder %s46, %s60
    %p62 = scmp.eq.s32.totalorder %s15, 0
    %p63 = por %p61, %p62
    %s65 = sadd.s32 %s64, 1
    %p68 = scmp.eq.s32.totalorder %s9, 1
    %p69 = scmp.ne.s32.totalorder %s64, %s66
    %p70 = scmp.eq.s32.totalorder %s9, 0
    %p71 = por %p69, %p70
    %p72 = scmp.ne.s32.totalorder %s64, %s66
    %p73 = scmp.eq.s32.totalorder %s14, 1
    %p74 = por %p72, %p73
    %p75 = scmp.ne.s32.totalorder %s66, %s67
    %p76 = scmp.eq.s32.totalorder %s14, 0
    %p77 = por %p75, %p76
    %p78 = scmp.ne.s32.totalorder %s66, %s67
    %p79 = scmp.eq.s32.totalorder %s15, 1
    %p80 = por %p78, %p79
    %p82 = scmp.ne.s32.totalorder %s67, %s81
    %p83 = scmp.eq.s32.totalorder %s15, 0
    %p84 = por %p82, %p83
    %s85 = ssub.s32 %s9, %s16
    %p86 = scmp.eq.s32.totalorder %s85, 0
    %s88 = sadd.s32 %s87, 1
    %s89 = scalar_select %p86, %s87, %s88
    %p92 = pneg %p86
    %p93 = scmp.eq.s32.totalorder %s9, 1
    %p94 = por %p92, %p93
    %p95 = scmp.ne.s32.totalorder %s87, %s90
    %p96 = scmp.eq.s32.totalorder %s9, 0
    %p97 = por %p95, %p96
    %p98 = scmp.ne.s32.totalorder %s87, %s90
    %p99 = scmp.eq.s32.totalorder %s14, 1
    %p100 = por %p98, %p99
    %p101 = scmp.ne.s32.totalorder %s90, %s91
    %p102 = scmp.eq.s32.totalorder %s14, 0
    %p103 = por %p101, %p102
    %p104 = scmp.ne.s32.totalorder %s90, %s91
    %p105 = scmp.eq.s32.totalorder %s15, 1
    %p106 = por %p104, %p105
    %p108 = scmp.ne.s32.totalorder %s91, %s107
    %p109 = scmp.eq.s32.totalorder %s15, 0
    %p110 = por %p108, %p109
    %p111 = scmp.le.s32.totalorder 1, %s9
    %p112 = scmp.lt.s32.totalorder %s9, 3
    %p113 = pnand %p111, %p112
    %p114 = pneg %p113
    // Predicated region
    $region9: #{dual_discriminator_forward.5} parent=5 // pred_check
      _
    $region10: #{dual_discriminator_forward.5} parent=5 // pred_check_branch
      %116 = sbr.rel (%p113) target = $region12
    $region11: #{dual_discriminator_forward.5} parent=5 // pred_region
      %s117 = ssub.s32 %s9, 1
      // Predicated region
      $region13: #{dual_discriminator_forward.5} parent=11 // pred_check
        %p118 = pneg %p56
      $region14: #{dual_discriminator_forward.5} parent=11 // pred_check_branch
        %120 = sbr.rel (%p118) target = $region16
      $region15: #{dual_discriminator_forward.5} parent=11 // pred_region
        _
      $region16: #{dual_discriminator_forward.5} parent=11 // pred_fallthru
        _
      // Predicated region
      $region17: #{dual_discriminator_forward.5} parent=11 // pred_check
        %p121 = pneg %p77
      $region18: #{dual_discriminator_forward.5} parent=11 // pred_check_branch
        %123 = sbr.rel (%p121) target = $region20
      $region19: #{dual_discriminator_forward.5} parent=11 // pred_region
        _
      $region20: #{dual_discriminator_forward.5} parent=11 // pred_fallthru
        _
    $region12: #{dual_discriminator_forward.5} parent=5 // pred_fallthru
      _
    %p124 = scmp.lt.s32.totalorder %s9, 2
    // Predicated region
    $region21: #{dual_discriminator_forward.5} parent=5 // pred_check
      %p125 = pneg %p124
    $region22: #{dual_discriminator_forward.5} parent=5 // pred_check_branch
      %127 = sbr.rel (%p125) target = $region24
    $region23: #{dual_discriminator_forward.5} parent=5 // pred_region
      // Predicated region
      $region25: #{dual_discriminator_forward.5} parent=23 // pred_check
        %p128 = pneg %p29
      $region26: #{dual_discriminator_forward.5} parent=23 // pred_check_branch
        %130 = sbr.rel (%p128) target = $region28
      $region27: #{dual_discriminator_forward.5} parent=23 // pred_region
        %s131 = smul.u32 32, %s9
        %p132 = scmp.lt.s32.totalorder %s131, 63
        %s133 = scalar_select %p132, %s131, 63
        %s134 = smul.addr %s133, 4
        %s135 = scalar_lea.vmem %s0, %s134
        %s136 = smul.u32 32, %s9
      $region28: #{dual_discriminator_forward.5} parent=23 // pred_fallthru
        _
    $region24: #{dual_discriminator_forward.5} parent=5 // pred_fallthru
      _
    %p137 = scmp.le.s32.totalorder 1, %s9
    %p138 = scmp.lt.s32.totalorder %s9, 3
    %p139 = pnand %p137, %p138
    %p140 = pneg %p139
    // Predicated region
    $region29: #{dual_discriminator_forward.5} parent=5 // pred_check
      _
    $region30: #{dual_discriminator_forward.5} parent=5 // pred_check_branch
      %142 = sbr.rel (%p139) target = $region32
    $region31: #{dual_discriminator_forward.5} parent=5 // pred_region
      %s143 = ssub.s32 %s9, 1
      %s144 = smul.u32 32, %s14
      %p145 = scmp.lt.s32.totalorder %s144, 63
      %s146 = scalar_select %p145, %s144, 63
      %s147 = smul.addr %s146, 4
      %s148 = scalar_lea.vmem %s0, %s147
      %p149 = pneg %p35
      %p150 = pneg %p32
      %p151 = pneg %p56
      %p152 = pneg %p53
      %p153 = pneg %p77
      %p154 = pneg %p74
      %p155 = pneg %p103
      %p156 = pneg %p100
      %s157 = smul.u32 32, %s14
      %p158 = scmp.lt.s32.totalorder %s157, 63
      %s159 = scalar_select %p158, %s157, 63
      %s160 = smul.addr %s159, 4
      %s161 = scalar_lea.vmem %s3, %s160
      %s162 = smul.u32 32, %s14
      %p163 = scmp.lt.s32.totalorder %s162, 63
      %s164 = scalar_select %p163, %s162, 63
      %s165 = smul.addr %s164, 4
      %s166 = scalar_lea.vmem %s0, %s165
      %s167 = smul.u32 32, %s14
      %s168 = smul.u32 32, %s14
      %p169 = scmp.lt.s32.totalorder %s168, 63
      %s170 = scalar_select %p169, %s168, 63
      %s171 = smul.addr %s170, 4
      %s172 = scalar_lea.vmem %s3, %s171
      %s173 = smul.u32 32, %s14
      %v175 = vld [vmem:[%s166] sm:$0xf]
      %v176 = vld [vmem:[%s166 + $0x4] sm:$0xf]
      %v177 = vld [vmem:[%s166 + $0x8] sm:$0xf]
      %v178 = vld [vmem:[%s166 + $0xc] sm:$0xf]
      %v179 = vld [vmem:[%s166 + $0x10] sm:$0xf]
      %v180 = vld [vmem:[%s166 + $0x14] sm:$0xf]
      %v181 = vld [vmem:[%s166 + $0x18] sm:$0xf]
      %v182 = vld [vmem:[%s166 + $0x1c] sm:$0xf]
      %v183 = vld [vmem:[%s166 + $0x20] sm:$0xf]
      %v184 = vld [vmem:[%s166 + $0x24] sm:$0xf]
      %v185 = vld [vmem:[%s166 + $0x28] sm:$0xf]
      %v186 = vld [vmem:[%s166 + $0x2c] sm:$0xf]
      %v187 = vld [vmem:[%s166 + $0x30] sm:$0xf]
      %v188 = vld [vmem:[%s166 + $0x34] sm:$0xf]
      %v189 = vld [vmem:[%s166 + $0x38] sm:$0xf]
      %v190 = vld [vmem:[%s166 + $0x3c] sm:$0xf]
      %v191 = vld [vmem:[%s166 + $0x40] sm:$0xf]
      %v192 = vld [vmem:[%s166 + $0x44] sm:$0xf]
      %v193 = vld [vmem:[%s166 + $0x48] sm:$0xf]
      %v194 = vld [vmem:[%s166 + $0x4c] sm:$0xf]
      %v195 = vld [vmem:[%s166 + $0x50] sm:$0xf]
      %v196 = vld [vmem:[%s166 + $0x54] sm:$0xf]
      %v197 = vld [vmem:[%s166 + $0x58] sm:$0xf]
      %v198 = vld [vmem:[%s166 + $0x5c] sm:$0xf]
      %v199 = vld [vmem:[%s166 + $0x60] sm:$0xf]
      %v200 = vld [vmem:[%s166 + $0x64] sm:$0xf]
      %v201 = vld [vmem:[%s166 + $0x68] sm:$0xf]
      %v202 = vld [vmem:[%s166 + $0x6c] sm:$0xf]
      %v203 = vld [vmem:[%s166 + $0x70] sm:$0xf]
      %v204 = vld [vmem:[%s166 + $0x74] sm:$0xf]
      %v205 = vld [vmem:[%s166 + $0x78] sm:$0xf]
      %v206 = vld [vmem:[%s166 + $0x7c] sm:$0xf]
      %v207 = vld [vmem:[%s1] sm:$0xf]
      %v208 = vld [vmem:[%s1 + $0x4] sm:$0xf]
      %v209 = vld [vmem:[%s2] sm:$0x1]
      %v211 = vlaneseq
      %v212 = vshrl.u32 %v211, 7
      %v213 = vsub.s32 0, %v212
      %v214 = vrot.slane %v209, %v213
      %v248 = vunpack.c.l.b16 %v175
      %v249 = vunpack.c.l.b16 %v176
      %v250 = vunpack.c.l.b16 %v177
      %v251 = vunpack.c.l.b16 %v178
      %v252 = vunpack.c.l.b16 %v179
      %v253 = vunpack.c.l.b16 %v180
      %v254 = vunpack.c.l.b16 %v181
      %v255 = vunpack.c.l.b16 %v182
      %v256 = vunpack.c.l.b16 %v183
      %v257 = vunpack.c.l.b16 %v184
      %v258 = vunpack.c.l.b16 %v185
      %v259 = vunpack.c.l.b16 %v186
      %v260 = vunpack.c.l.b16 %v187
      %v261 = vunpack.c.l.b16 %v188
      %v262 = vunpack.c.l.b16 %v189
      %v263 = vunpack.c.l.b16 %v190
      %v264 = vunpack.c.l.b16 %v191
      %v265 = vunpack.c.l.b16 %v192
      %v266 = vunpack.c.l.b16 %v193
      %v267 = vunpack.c.l.b16 %v194
      %v268 = vunpack.c.l.b16 %v195
      %v269 = vunpack.c.l.b16 %v196
      %v270 = vunpack.c.l.b16 %v197
      %v271 = vunpack.c.l.b16 %v198
      %v272 = vunpack.c.l.b16 %v199
      %v273 = vunpack.c.l.b16 %v200
      %v274 = vunpack.c.l.b16 %v201
      %v275 = vunpack.c.l.b16 %v202
      %v276 = vunpack.c.l.b16 %v203
      %v277 = vunpack.c.l.b16 %v204
      %v278 = vunpack.c.l.b16 %v205
      %v279 = vunpack.c.l.b16 %v206
      %v280 = vpack.c.b16 %v249, %v248
      %v281 = vpack.c.b16 %v251, %v250
      %v282 = vpack.c.b16 %v253, %v252
      %v283 = vpack.c.b16 %v255, %v254
      %v284 = vpack.c.b16 %v257, %v256
      %v285 = vpack.c.b16 %v259, %v258
      %v286 = vpack.c.b16 %v261, %v260
      %v287 = vpack.c.b16 %v263, %v262
      %v288 = vpack.c.b16 %v265, %v264
      %v289 = vpack.c.b16 %v267, %v266
      %v290 = vpack.c.b16 %v269, %v268
      %v291 = vpack.c.b16 %v271, %v270
      %v292 = vpack.c.b16 %v273, %v272
      %v293 = vpack.c.b16 %v275, %v274
      %v294 = vpack.c.b16 %v277, %v276
      %v295 = vpack.c.b16 %v279, %v278
      %v298 = vunpack.c.l.b16 %v207
      %v299 = vunpack.c.l.b16 %v208
      %v300 = vpack.c.b16 %v299, %v298
      %vm302 = vcmask 130048
      %v304 = vsel %vm302, %v280, 0
      %v307 = vsel %vm302, %v281, 0
      %v310 = vsel %vm302, %v282, 0
      %v313 = vsel %vm302, %v283, 0
      %v316 = vsel %vm302, %v284, 0
      %v319 = vsel %vm302, %v285, 0
      %v322 = vsel %vm302, %v286, 0
      %v325 = vsel %vm302, %v287, 0
      %v328 = vsel %vm302, %v288, 0
      %v331 = vsel %vm302, %v289, 0
      %v334 = vsel %vm302, %v290, 0
      %v337 = vsel %vm302, %v291, 0
      %v340 = vsel %vm302, %v292, 0
      %v343 = vsel %vm302, %v293, 0
      %v346 = vsel %vm302, %v294, 0
      %v349 = vsel %vm302, %v295, 0
      %351 = vmatprep.subr.bf16.mxu0 0
      %352 = vmatpush1.bf16.msra.mxu0 %v300
      %353 = vmatprep.subr.bf16.mxu0 0
      %354 = vmatpush1.bf16.msra.mxu0 0
      %355 = vmatprep.subr.bf16.mxu0 0
      %356 = vmatpush1.bf16.msra.mxu0 0
      %357 = vmatprep.subr.bf16.mxu0 0
      %358 = vmatpush1.bf16.msra.mxu0 0
      %359 = vmatprep.subr.bf16.mxu0 0
      %360 = vmatpush1.bf16.msra.mxu0 0
      %361 = vmatprep.subr.bf16.mxu0 0
      %362 = vmatpush1.bf16.msra.mxu0 0
      %363 = vmatprep.subr.bf16.mxu0 0
      %364 = vmatpush1.bf16.msra.mxu0 0
      %365 = vmatprep.subr.bf16.mxu0 0
      %366 = vmatpush1.bf16.msra.mxu0 0
      %367 = vmatprep.subr.bf16.mxu0 0
      %368 = vmatpush1.bf16.msra.mxu0 0
      %369 = vmatprep.subr.bf16.mxu0 0
      %370 = vmatpush1.bf16.msra.mxu0 0
      %371 = vmatprep.subr.bf16.mxu0 0
      %372 = vmatpush1.bf16.msra.mxu0 0
      %373 = vmatprep.subr.bf16.mxu0 0
      %374 = vmatpush1.bf16.msra.mxu0 0
      %375 = vmatprep.subr.bf16.mxu0 0
      %376 = vmatpush1.bf16.msra.mxu0 0
      %377 = vmatprep.subr.bf16.mxu0 0
      %378 = vmatpush1.bf16.msra.mxu0 0
      %379 = vmatprep.subr.bf16.mxu0 0
      %380 = vmatpush1.bf16.msra.mxu0 0
      %381 = vmatprep.subr.bf16.mxu0 0
      %382 = vmatpush1.bf16.msra.mxu0 0
      %383 = vmatprep.mubr.bf16.mxu0 0
      %384 = vmatmul.mubr.bf16.gmra.mrb[0].mxu0 %v304
      %v385 = vpop.f32.mrb[0].mxu0
      %v386 = vadd.f32 %v214, %v385
      %v387 = vpop.f32.mrb[0].mxu0
      %v388 = vpop.f32.mrb[0].mxu0
      %v389 = vadd.f32 %v214, %v388
      %v390 = vpop.f32.mrb[0].mxu0
      %391 = vmatprep.mubr.bf16.mxu0 0
      %392 = vmatmul.mubr.bf16.gmra.mrb[0].mxu0 %v307
      %v393 = vpop.f32.mrb[0].mxu0
      %v394 = vadd.f32 %v214, %v393
      %v395 = vpop.f32.mrb[0].mxu0
      %v396 = vpop.f32.mrb[0].mxu0
      %v397 = vadd.f32 %v214, %v396
      %v398 = vpop.f32.mrb[0].mxu0
      %399 = vmatprep.mubr.bf16.mxu0 0
      %400 = vmatmul.mubr.bf16.gmra.mrb[0].mxu0 %v310
      %v401 = vpop.f32.mrb[0].mxu0
      %v402 = vadd.f32 %v214, %v401
      %v403 = vpop.f32.mrb[0].mxu0
      %v404 = vpop.f32.mrb[0].mxu0
      %v405 = vadd.f32 %v214, %v404
      %v406 = vpop.f32.mrb[0].mxu0
      %407 = vmatprep.mubr.bf16.mxu0 0
      %408 = vmatmul.mubr.bf16.gmra.mrb[0].mxu0 %v313
      %v409 = vpop.f32.mrb[0].mxu0
      %v410 = vadd.f32 %v214, %v409
      %v411 = vpop.f32.mrb[0].mxu0
      %v412 = vpop.f32.mrb[0].mxu0
      %v413 = vadd.f32 %v214, %v412
      %v414 = vpop.f32.mrb[0].mxu0
      %415 = vmatprep.mubr.bf16.mxu0 0
      %416 = vmatmul.mubr.bf16.gmra.mrb[0].mxu0 %v316
      %v417 = vpop.f32.mrb[0].mxu0
      %v418 = vadd.f32 %v214, %v417
      %v419 = vpop.f32.mrb[0].mxu0
      %v420 = vpop.f32.mrb[0].mxu0
      %v421 = vadd.f32 %v214, %v420
      %v422 = vpop.f32.mrb[0].mxu0
      %423 = vmatprep.mubr.bf16.mxu0 0
      %424 = vmatmul.mubr.bf16.gmra.mrb[0].mxu0 %v319
      %v425 = vpop.f32.mrb[0].mxu0
      %v426 = vadd.f32 %v214, %v425
      %v427 = vpop.f32.mrb[0].mxu0
      %v428 = vpop.f32.mrb[0].mxu0
      %v429 = vadd.f32 %v214, %v428
      %v430 = vpop.f32.mrb[0].mxu0
      %431 = vmatprep.mubr.bf16.mxu0 0
      %432 = vmatmul.mubr.bf16.gmra.mrb[0].mxu0 %v322
      %v433 = vpop.f32.mrb[0].mxu0
      %v434 = vadd.f32 %v214, %v433
      %v435 = vpop.f32.mrb[0].mxu0
      %v436 = vpop.f32.mrb[0].mxu0
      %v437 = vadd.f32 %v214, %v436
      %v438 = vpop.f32.mrb[0].mxu0
      %439 = vmatprep.mubr.bf16.mxu0 0
      %440 = vmatmul.mubr.bf16.gmra.mrb[0].mxu0 %v325
      %v441 = vpop.f32.mrb[0].mxu0
      %v442 = vadd.f32 %v214, %v441
      %v443 = vpop.f32.mrb[0].mxu0
      %v444 = vpop.f32.mrb[0].mxu0
      %v445 = vadd.f32 %v214, %v444
      %v446 = vpop.f32.mrb[0].mxu0
      %447 = vmatprep.mubr.bf16.mxu0 0
      %448 = vmatmul.mubr.bf16.gmra.mrb[0].mxu0 %v328
      %v449 = vpop.f32.mrb[0].mxu0
      %v450 = vadd.f32 %v214, %v449
      %v451 = vpop.f32.mrb[0].mxu0
      %v452 = vpop.f32.mrb[0].mxu0
      %v453 = vadd.f32 %v214, %v452
      %v454 = vpop.f32.mrb[0].mxu0
      %455 = vmatprep.mubr.bf16.mxu0 0
      %456 = vmatmul.mubr.bf16.gmra.mrb[0].mxu0 %v331
      %v457 = vpop.f32.mrb[0].mxu0
      %v458 = vadd.f32 %v214, %v457
      %v459 = vpop.f32.mrb[0].mxu0
      %v460 = vpop.f32.mrb[0].mxu0
      %v461 = vadd.f32 %v214, %v460
      %v462 = vpop.f32.mrb[0].mxu0
      %463 = vmatprep.mubr.bf16.mxu0 0
      %464 = vmatmul.mubr.bf16.gmra.mrb[0].mxu0 %v334
      %v465 = vpop.f32.mrb[0].mxu0
      %v466 = vadd.f32 %v214, %v465
      %v467 = vpop.f32.mrb[0].mxu0
      %v468 = vpop.f32.mrb[0].mxu0
      %v469 = vadd.f32 %v214, %v468
      %v470 = vpop.f32.mrb[0].mxu0
      %471 = vmatprep.mubr.bf16.mxu0 0
      %472 = vmatmul.mubr.bf16.gmra.mrb[0].mxu0 %v337
      %v473 = vpop.f32.mrb[0].mxu0
      %v474 = vadd.f32 %v214, %v473
      %v475 = vpop.f32.mrb[0].mxu0
      %v476 = vpop.f32.mrb[0].mxu0
      %v477 = vadd.f32 %v214, %v476
      %v478 = vpop.f32.mrb[0].mxu0
      %479 = vmatprep.mubr.bf16.mxu0 0
      %480 = vmatmul.mubr.bf16.gmra.mrb[0].mxu0 %v340
      %v481 = vpop.f32.mrb[0].mxu0
      %v482 = vadd.f32 %v214, %v481
      %v483 = vpop.f32.mrb[0].mxu0
      %v484 = vpop.f32.mrb[0].mxu0
      %v485 = vadd.f32 %v214, %v484
      %v486 = vpop.f32.mrb[0].mxu0
      %487 = vmatprep.mubr.bf16.mxu0 0
      %488 = vmatmul.mubr.bf16.gmra.mrb[0].mxu0 %v343
      %v489 = vpop.f32.mrb[0].mxu0
      %v490 = vadd.f32 %v214, %v489
      %v491 = vpop.f32.mrb[0].mxu0
      %v492 = vpop.f32.mrb[0].mxu0
      %v493 = vadd.f32 %v214, %v492
      %v494 = vpop.f32.mrb[0].mxu0
      %495 = vmatprep.mubr.bf16.mxu0 0
      %496 = vmatmul.mubr.bf16.gmra.mrb[0].mxu0 %v346
      %v497 = vpop.f32.mrb[0].mxu0
      %v498 = vadd.f32 %v214, %v497
      %v499 = vpop.f32.mrb[0].mxu0
      %v500 = vpop.f32.mrb[0].mxu0
      %v501 = vadd.f32 %v214, %v500
      %v502 = vpop.f32.mrb[0].mxu0
      %503 = vmatprep.mubr.bf16.mxu0 0
      %504 = vmatmul.mubr.bf16.gmra.mrb[0].mxu0 %v349
      %v505 = vpop.f32.mrb[0].mxu0
      %v506 = vadd.f32 %v214, %v505
      %v507 = vpop.f32.mrb[0].mxu0
      %v508 = vpop.f32.mrb[0].mxu0
      %v509 = vadd.f32 %v214, %v508
      %v510 = vpop.f32.mrb[0].mxu0
      %511 = vdwg.mxu0
      %vm512 = vcmp.ge.f32.partialorder %v386, 0.0
      %vm513 = vcmp.ge.f32.partialorder %v389, 0.0
      %vm514 = vcmp.ge.f32.partialorder %v394, 0.0
      %vm515 = vcmp.ge.f32.partialorder %v397, 0.0
      %vm516 = vcmp.ge.f32.partialorder %v402, 0.0
      %vm517 = vcmp.ge.f32.partialorder %v405, 0.0
      %vm518 = vcmp.ge.f32.partialorder %v410, 0.0
      %vm519 = vcmp.ge.f32.partialorder %v413, 0.0
      %vm520 = vcmp.ge.f32.partialorder %v418, 0.0
      %vm521 = vcmp.ge.f32.partialorder %v421, 0.0
      %vm522 = vcmp.ge.f32.partialorder %v426, 0.0
      %vm523 = vcmp.ge.f32.partialorder %v429, 0.0
      %vm524 = vcmp.ge.f32.partialorder %v434, 0.0
      %vm525 = vcmp.ge.f32.partialorder %v437, 0.0
      %vm526 = vcmp.ge.f32.partialorder %v442, 0.0
      %vm527 = vcmp.ge.f32.partialorder %v445, 0.0
      %vm528 = vcmp.ge.f32.partialorder %v450, 0.0
      %vm529 = vcmp.ge.f32.partialorder %v453, 0.0
      %vm530 = vcmp.ge.f32.partialorder %v458, 0.0
      %vm531 = vcmp.ge.f32.partialorder %v461, 0.0
      %vm532 = vcmp.ge.f32.partialorder %v466, 0.0
      %vm533 = vcmp.ge.f32.partialorder %v469, 0.0
      %vm534 = vcmp.ge.f32.partialorder %v474, 0.0
      %vm535 = vcmp.ge.f32.partialorder %v477, 0.0
      %vm536 = vcmp.ge.f32.partialorder %v482, 0.0
      %vm537 = vcmp.ge.f32.partialorder %v485, 0.0
      %vm538 = vcmp.ge.f32.partialorder %v490, 0.0
      %vm539 = vcmp.ge.f32.partialorder %v493, 0.0
      %vm540 = vcmp.ge.f32.partialorder %v498, 0.0
      %vm541 = vcmp.ge.f32.partialorder %v501, 0.0
      %vm542 = vcmp.ge.f32.partialorder %v506, 0.0
      %vm543 = vcmp.ge.f32.partialorder %v509, 0.0
      %v544 = vmul.f32 %v386, 0.2
      %v545 = vmul.f32 %v389, 0.2
      %v546 = vmul.f32 %v394, 0.2
      %v547 = vmul.f32 %v397, 0.2
      %v548 = vmul.f32 %v402, 0.2
      %v549 = vmul.f32 %v405, 0.2
      %v550 = vmul.f32 %v410, 0.2
      %v551 = vmul.f32 %v413, 0.2
      %v552 = vmul.f32 %v418, 0.2
      %v553 = vmul.f32 %v421, 0.2
      %v554 = vmul.f32 %v426, 0.2
      %v555 = vmul.f32 %v429, 0.2
      %v556 = vmul.f32 %v434, 0.2
      %v557 = vmul.f32 %v437, 0.2
      %v558 = vmul.f32 %v442, 0.2
      %v559 = vmul.f32 %v445, 0.2
      %v560 = vmul.f32 %v450, 0.2
      %v561 = vmul.f32 %v453, 0.2
      %v562 = vmul.f32 %v458, 0.2
      %v563 = vmul.f32 %v461, 0.2
      %v564 = vmul.f32 %v466, 0.2
      %v565 = vmul.f32 %v469, 0.2
      %v566 = vmul.f32 %v474, 0.2
      %v567 = vmul.f32 %v477, 0.2
      %v568 = vmul.f32 %v482, 0.2
      %v569 = vmul.f32 %v485, 0.2
      %v570 = vmul.f32 %v490, 0.2
      %v571 = vmul.f32 %v493, 0.2
      %v572 = vmul.f32 %v498, 0.2
      %v573 = vmul.f32 %v501, 0.2
      %v574 = vmul.f32 %v506, 0.2
      %v575 = vmul.f32 %v509, 0.2
      %v576 = vsel %vm512, %v386, %v544
      %v577 = vsel %vm513, %v389, %v545
      %v578 = vsel %vm514, %v394, %v546
      %v579 = vsel %vm515, %v397, %v547
      %v580 = vsel %vm516, %v402, %v548
      %v581 = vsel %vm517, %v405, %v549
      %v582 = vsel %vm518, %v410, %v550
      %v583 = vsel %vm519, %v413, %v551
      %v584 = vsel %vm520, %v418, %v552
      %v585 = vsel %vm521, %v421, %v553
      %v586 = vsel %vm522, %v426, %v554
      %v587 = vsel %vm523, %v429, %v555
      %v588 = vsel %vm524, %v434, %v556
      %v589 = vsel %vm525, %v437, %v557
      %v590 = vsel %vm526, %v442, %v558
      %v591 = vsel %vm527, %v445, %v559
      %v592 = vsel %vm528, %v450, %v560
      %v593 = vsel %vm529, %v453, %v561
      %v594 = vsel %vm530, %v458, %v562
      %v595 = vsel %vm531, %v461, %v563
      %v596 = vsel %vm532, %v466, %v564
      %v597 = vsel %vm533, %v469, %v565
      %v598 = vsel %vm534, %v474, %v566
      %v599 = vsel %vm535, %v477, %v567
      %v600 = vsel %vm536, %v482, %v568
      %v601 = vsel %vm537, %v485, %v569
      %v602 = vsel %vm538, %v490, %v570
      %v603 = vsel %vm539, %v493, %v571
      %v604 = vsel %vm540, %v498, %v572
      %v605 = vsel %vm541, %v501, %v573
      %v606 = vsel %vm542, %v506, %v574
      %v607 = vsel %vm543, %v509, %v575
      %v608 = vpack.c.bf16 %v577, %v576
      %v609 = vpack.c.bf16 %v579, %v578
      %v610 = vpack.c.bf16 %v581, %v580
      %v611 = vpack.c.bf16 %v583, %v582
      %v612 = vpack.c.bf16 %v585, %v584
      %v613 = vpack.c.bf16 %v587, %v586
      %v614 = vpack.c.bf16 %v589, %v588
      %v615 = vpack.c.bf16 %v591, %v590
      %v616 = vpack.c.bf16 %v593, %v592
      %v617 = vpack.c.bf16 %v595, %v594
      %v618 = vpack.c.bf16 %v597, %v596
      %v619 = vpack.c.bf16 %v599, %v598
      %v620 = vpack.c.bf16 %v601, %v600
      %v621 = vpack.c.bf16 %v603, %v602
      %v622 = vpack.c.bf16 %v605, %v604
      %v623 = vpack.c.bf16 %v607, %v606
      %v640 = vunpack.c.l.b16 %v608
      %v641 = vunpack.c.h.b16 %v608
      %v642 = vunpack.c.l.b16 %v609
      %v643 = vunpack.c.h.b16 %v609
      %v644 = vunpack.c.l.b16 %v610
      %v645 = vunpack.c.h.b16 %v610
      %v646 = vunpack.c.l.b16 %v611
      %v647 = vunpack.c.h.b16 %v611
      %v648 = vunpack.c.l.b16 %v612
      %v649 = vunpack.c.h.b16 %v612
      %v650 = vunpack.c.l.b16 %v613
      %v651 = vunpack.c.h.b16 %v613
      %v652 = vunpack.c.l.b16 %v614
      %v653 = vunpack.c.h.b16 %v614
      %v654 = vunpack.c.l.b16 %v615
      %v655 = vunpack.c.h.b16 %v615
      %v656 = vunpack.c.l.b16 %v616
      %v657 = vunpack.c.h.b16 %v616
      %v658 = vunpack.c.l.b16 %v617
      %v659 = vunpack.c.h.b16 %v617
      %v660 = vunpack.c.l.b16 %v618
      %v661 = vunpack.c.h.b16 %v618
      %v662 = vunpack.c.l.b16 %v619
      %v663 = vunpack.c.h.b16 %v619
      %v664 = vunpack.c.l.b16 %v620
      %v665 = vunpack.c.h.b16 %v620
      %v666 = vunpack.c.l.b16 %v621
      %v667 = vunpack.c.h.b16 %v621
      %v668 = vunpack.c.l.b16 %v622
      %v669 = vunpack.c.h.b16 %v622
      %v670 = vunpack.c.l.b16 %v623
      %v671 = vunpack.c.h.b16 %v623
      %v672 = vpack.c.b16 %v640, %v640
      %v673 = vpack.c.b16 %v641, %v641
      %v674 = vpack.c.b16 %v642, %v642
      %v675 = vpack.c.b16 %v643, %v643
      %v676 = vpack.c.b16 %v644, %v644
      %v677 = vpack.c.b16 %v645, %v645
      %v678 = vpack.c.b16 %v646, %v646
      %v679 = vpack.c.b16 %v647, %v647
      %v680 = vpack.c.b16 %v648, %v648
      %v681 = vpack.c.b16 %v649, %v649
      %v682 = vpack.c.b16 %v650, %v650
      %v683 = vpack.c.b16 %v651, %v651
      %v684 = vpack.c.b16 %v652, %v652
      %v685 = vpack.c.b16 %v653, %v653
      %v686 = vpack.c.b16 %v654, %v654
      %v687 = vpack.c.b16 %v655, %v655
      %v688 = vpack.c.b16 %v656, %v656
      %v689 = vpack.c.b16 %v657, %v657
      %v690 = vpack.c.b16 %v658, %v658
      %v691 = vpack.c.b16 %v659, %v659
      %v692 = vpack.c.b16 %v660, %v660
      %v693 = vpack.c.b16 %v661, %v661
      %v694 = vpack.c.b16 %v662, %v662
      %v695 = vpack.c.b16 %v663, %v663
      %v696 = vpack.c.b16 %v664, %v664
      %v697 = vpack.c.b16 %v665, %v665
      %v698 = vpack.c.b16 %v666, %v666
      %v699 = vpack.c.b16 %v667, %v667
      %v700 = vpack.c.b16 %v668, %v668
      %v701 = vpack.c.b16 %v669, %v669
      %v702 = vpack.c.b16 %v670, %v670
      %v703 = vpack.c.b16 %v671, %v671
      %736 = vst [vmem:[%s172] sm:$0xf] %v672
      %737 = vst [vmem:[%s172 + $0x4] sm:$0xf] %v673
      %738 = vst [vmem:[%s172 + $0x8] sm:$0xf] %v674
      %739 = vst [vmem:[%s172 + $0xc] sm:$0xf] %v675
      %740 = vst [vmem:[%s172 + $0x10] sm:$0xf] %v676
      %741 = vst [vmem:[%s172 + $0x14] sm:$0xf] %v677
      %742 = vst [vmem:[%s172 + $0x18] sm:$0xf] %v678
      %743 = vst [vmem:[%s172 + $0x1c] sm:$0xf] %v679
      %744 = vst [vmem:[%s172 + $0x20] sm:$0xf] %v680
      %745 = vst [vmem:[%s172 + $0x24] sm:$0xf] %v681
      %746 = vst [vmem:[%s172 + $0x28] sm:$0xf] %v682
      %747 = vst [vmem:[%s172 + $0x2c] sm:$0xf] %v683
      %748 = vst [vmem:[%s172 + $0x30] sm:$0xf] %v684
      %749 = vst [vmem:[%s172 + $0x34] sm:$0xf] %v685
      %750 = vst [vmem:[%s172 + $0x38] sm:$0xf] %v686
      %751 = vst [vmem:[%s172 + $0x3c] sm:$0xf] %v687
      %752 = vst [vmem:[%s172 + $0x40] sm:$0xf] %v688
      %753 = vst [vmem:[%s172 + $0x44] sm:$0xf] %v689
      %754 = vst [vmem:[%s172 + $0x48] sm:$0xf] %v690
      %755 = vst [vmem:[%s172 + $0x4c] sm:$0xf] %v691
      %756 = vst [vmem:[%s172 + $0x50] sm:$0xf] %v692
      %757 = vst [vmem:[%s172 + $0x54] sm:$0xf] %v693
      %758 = vst [vmem:[%s172 + $0x58] sm:$0xf] %v694
      %759 = vst [vmem:[%s172 + $0x5c] sm:$0xf] %v695
      %760 = vst [vmem:[%s172 + $0x60] sm:$0xf] %v696
      %761 = vst [vmem:[%s172 + $0x64] sm:$0xf] %v697
      %762 = vst [vmem:[%s172 + $0x68] sm:$0xf] %v698
      %763 = vst [vmem:[%s172 + $0x6c] sm:$0xf] %v699
      %764 = vst [vmem:[%s172 + $0x70] sm:$0xf] %v700
      %765 = vst [vmem:[%s172 + $0x74] sm:$0xf] %v701
      %766 = vst [vmem:[%s172 + $0x78] sm:$0xf] %v702
      %767 = vst [vmem:[%s172 + $0x7c] sm:$0xf] %v703
      %s768 = smul.u32 32, %s14
      %p769 = scmp.lt.s32.totalorder %s768, 63
      %s770 = scalar_select %p769, %s768, 63
      %s771 = smul.addr %s770, 4
      %s772 = scalar_lea.vmem %s3, %s771
      // Predicated region
      $region33: #{dual_discriminator_forward.5} parent=31 // pred_check
        %p773 = pneg %p100
      $region34: #{dual_discriminator_forward.5} parent=31 // pred_check_branch
        %775 = sbr.rel (%p773) target = $region36
      $region35: #{dual_discriminator_forward.5} parent=31 // pred_region
        %s776 = smul.u32 32, %s14
      $region36: #{dual_discriminator_forward.5} parent=31 // pred_fallthru
        _
    $region32: #{dual_discriminator_forward.5} parent=5 // pred_fallthru
      _
    %p777 = scmp.le.s32.totalorder 2, %s9
    // Predicated region
    $region37: #{dual_discriminator_forward.5} parent=5 // pred_check
      %p778 = pneg %p777
    $region38: #{dual_discriminator_forward.5} parent=5 // pred_check_branch
      %780 = sbr.rel (%p778) target = $region40
    $region39: #{dual_discriminator_forward.5} parent=5 // pred_region
      %s781 = ssub.s32 %s9, 2
      // Predicated region
      $region41: #{dual_discriminator_forward.5} parent=39 // pred_check
        %p782 = pneg %p106
      $region42: #{dual_discriminator_forward.5} parent=39 // pred_check_branch
        %784 = sbr.rel (%p782) target = $region44
      $region43: #{dual_discriminator_forward.5} parent=39 // pred_region
        %s785 = smul.u32 32, %s15
        %p786 = scmp.lt.s32.totalorder %s785, 63
        %s787 = scalar_select %p786, %s785, 63
        %s788 = smul.addr %s787, 4
        %s789 = scalar_lea.vmem %s3, %s788
      $region44: #{dual_discriminator_forward.5} parent=39 // pred_fallthru
        _
    $region40: #{dual_discriminator_forward.5} parent=5 // pred_fallthru
      _
  $region6: #{dual_discriminator_forward.5} parent=0 // loop_footer
    %s13 = sadd.s32 1, %s9
  $region7: #{dual_discriminator_forward.5} parent=0 // loop_footer_branch
    %8 = sbr.rel target = $region3
  $region8: #{dual_discriminator_forward.5} parent=0 // loop_exit
    _

// kernel: dual_discriminator_forward.6
$region0: #{dual_discriminator_forward.6}
  #allocation0 [shape = 'u32[]', space=smem, size = 0x4, offset = 0x4, fixed_abs, tag = 'smem constant byte address 0x4 - core index']
  #allocation1 [shape = 'u32[144,128]{1,0:T(1,128)}', space=vmem, size = 0x12000, scoped, tag = 'internal scratch']
  %s0 = inlined_call_operand.vmem [shape: bf16[128,2048], index: 0, kind: input, shape index: {}]
  %s1 = inlined_call_operand.vmem [shape: bf16[2048,128], index: 1, kind: input, shape index: {}]
  %s2 = inlined_call_operand.vmem [shape: f32[1,128], index: 2, kind: input, shape index: {}]
  %s3 = inlined_call_operand.vmem [shape: bf16[128,128], index: 3, kind: output, shape index: {}]
  %s4 = sld [smem:[#allocation0]]
  $region22: #{dual_discriminator_forward.6} parent=0
    _
  %s6 = ssub.s32 1, %s4
  %s7 = scalar_select 0, %s6, %s4
  // Predicated region
  $region2: #{dual_discriminator_forward.6} parent=0 // pred_check
    _
  $region3: #{dual_discriminator_forward.6} parent=0 // pred_check_branch
    %9 = sbr.rel (0) target = $region5
  $region4: #{dual_discriminator_forward.6} parent=0 // pred_region
    _
  $region5: #{dual_discriminator_forward.6} parent=0 // pred_fallthru
    _
  // Predicated region
  $region6: #{dual_discriminator_forward.6} parent=0 // pred_check
    _
  $region7: #{dual_discriminator_forward.6} parent=0 // pred_check_branch
    %11 = sbr.rel (0) target = $region9
  $region8: #{dual_discriminator_forward.6} parent=0 // pred_region
    _
  $region9: #{dual_discriminator_forward.6} parent=0 // pred_fallthru
    _
  // Predicated region
  $region10: #{dual_discriminator_forward.6} parent=0 // pred_check
    _
  $region11: #{dual_discriminator_forward.6} parent=0 // pred_check_branch
    %13 = sbr.rel (0) target = $region13
  $region12: #{dual_discriminator_forward.6} parent=0 // pred_region
    _
  $region13: #{dual_discriminator_forward.6} parent=0 // pred_fallthru
    _
  %v15 = vld [vmem:[%s0] sm:$0xff]
  %v16 = vld [vmem:[%s0 + $0x8] sm:$0xff]
  %v17 = vld [vmem:[%s0 + $0x10] sm:$0xff]
  %v18 = vld [vmem:[%s0 + $0x18] sm:$0xff]
  %v19 = vld [vmem:[%s0 + $0x20] sm:$0xff]
  %v20 = vld [vmem:[%s0 + $0x28] sm:$0xff]
  %v21 = vld [vmem:[%s0 + $0x30] sm:$0xff]
  %v22 = vld [vmem:[%s0 + $0x38] sm:$0xff]
  %v23 = vld [vmem:[%s0 + $0x40] sm:$0xff]
  %v24 = vld [vmem:[%s0 + $0x48] sm:$0xff]
  %v25 = vld [vmem:[%s0 + $0x50] sm:$0xff]
  %v26 = vld [vmem:[%s0 + $0x58] sm:$0xff]
  %v27 = vld [vmem:[%s0 + $0x60] sm:$0xff]
  %v28 = vld [vmem:[%s0 + $0x68] sm:$0xff]
  %v29 = vld [vmem:[%s0 + $0x70] sm:$0xff]
  %v30 = vld [vmem:[%s0 + $0x78] sm:$0xff]
  %v31 = vld [vmem:[%s0 + $0x80] sm:$0xff]
  %v32 = vld [vmem:[%s0 + $0x88] sm:$0xff]
  %v33 = vld [vmem:[%s0 + $0x90] sm:$0xff]
  %v34 = vld [vmem:[%s0 + $0x98] sm:$0xff]
  %v35 = vld [vmem:[%s0 + $0xa0] sm:$0xff]
  %v36 = vld [vmem:[%s0 + $0xa8] sm:$0xff]
  %v37 = vld [vmem:[%s0 + $0xb0] sm:$0xff]
  %v38 = vld [vmem:[%s0 + $0xb8] sm:$0xff]
  %v39 = vld [vmem:[%s0 + $0xc0] sm:$0xff]
  %v40 = vld [vmem:[%s0 + $0xc8] sm:$0xff]
  %v41 = vld [vmem:[%s0 + $0xd0] sm:$0xff]
  %v42 = vld [vmem:[%s0 + $0xd8] sm:$0xff]
  %v43 = vld [vmem:[%s0 + $0xe0] sm:$0xff]
  %v44 = vld [vmem:[%s0 + $0xe8] sm:$0xff]
  %v45 = vld [vmem:[%s0 + $0xf0] sm:$0xff]
  %v46 = vld [vmem:[%s0 + $0xf8] sm:$0xff]
  %v47 = vld [vmem:[%s0 + $0x100] sm:$0xff]
  %v48 = vld [vmem:[%s0 + $0x108] sm:$0xff]
  %v49 = vld [vmem:[%s0 + $0x110] sm:$0xff]
  %v50 = vld [vmem:[%s0 + $0x118] sm:$0xff]
  %v51 = vld [vmem:[%s0 + $0x120] sm:$0xff]
  %v52 = vld [vmem:[%s0 + $0x128] sm:$0xff]
  %v53 = vld [vmem:[%s0 + $0x130] sm:$0xff]
  %v54 = vld [vmem:[%s0 + $0x138] sm:$0xff]
  %v55 = vld [vmem:[%s0 + $0x140] sm:$0xff]
  %v56 = vld [vmem:[%s0 + $0x148] sm:$0xff]
  %v57 = vld [vmem:[%s0 + $0x150] sm:$0xff]
  %v58 = vld [vmem:[%s0 + $0x158] sm:$0xff]
  %v59 = vld [vmem:[%s0 + $0x160] sm:$0xff]
  %v60 = vld [vmem:[%s0 + $0x168] sm:$0xff]
  %v61 = vld [vmem:[%s0 + $0x170] sm:$0xff]
  %v62 = vld [vmem:[%s0 + $0x178] sm:$0xff]
  %v63 = vld [vmem:[%s0 + $0x180] sm:$0xff]
  %v64 = vld [vmem:[%s0 + $0x188] sm:$0xff]
  %v65 = vld [vmem:[%s0 + $0x190] sm:$0xff]
  %v66 = vld [vmem:[%s0 + $0x198] sm:$0xff]
  %v67 = vld [vmem:[%s0 + $0x1a0] sm:$0xff]
  %v68 = vld [vmem:[%s0 + $0x1a8] sm:$0xff]
  %v69 = vld [vmem:[%s0 + $0x1b0] sm:$0xff]
  %v70 = vld [vmem:[%s0 + $0x1b8] sm:$0xff]
  %v71 = vld [vmem:[%s0 + $0x1c0] sm:$0xff]
  %v72 = vld [vmem:[%s0 + $0x1c8] sm:$0xff]
  %v73 = vld [vmem:[%s0 + $0x1d0] sm:$0xff]
  %v74 = vld [vmem:[%s0 + $0x1d8] sm:$0xff]
  %v75 = vld [vmem:[%s0 + $0x1e0] sm:$0xff]
  %v76 = vld [vmem:[%s0 + $0x1e8] sm:$0xff]
  %v77 = vld [vmem:[%s0 + $0x1f0] sm:$0xff]
  %v78 = vld [vmem:[%s0 + $0x1f8] sm:$0xff]
  %v79 = vld [vmem:[%s0 + $0x200] sm:$0xff]
  %v80 = vld [vmem:[%s0 + $0x208] sm:$0xff]
  %v81 = vld [vmem:[%s0 + $0x210] sm:$0xff]
  %v82 = vld [vmem:[%s0 + $0x218] sm:$0xff]
  %v83 = vld [vmem:[%s0 + $0x220] sm:$0xff]
  %v84 = vld [vmem:[%s0 + $0x228] sm:$0xff]
  %v85 = vld [vmem:[%s0 + $0x230] sm:$0xff]
  %v86 = vld [vmem:[%s0 + $0x238] sm:$0xff]
  %v87 = vld [vmem:[%s0 + $0x240] sm:$0xff]
  %v88 = vld [vmem:[%s0 + $0x248] sm:$0xff]
  %v89 = vld [vmem:[%s0 + $0x250] sm:$0xff]
  %v90 = vld [vmem:[%s0 + $0x258] sm:$0xff]
  %v91 = vld [vmem:[%s0 + $0x260] sm:$0xff]
  %v92 = vld [vmem:[%s0 + $0x268] sm:$0xff]
  %v93 = vld [vmem:[%s0 + $0x270] sm:$0xff]
  %v94 = vld [vmem:[%s0 + $0x278] sm:$0xff]
  %v95 = vld [vmem:[%s0 + $0x280] sm:$0xff]
  %v96 = vld [vmem:[%s0 + $0x288] sm:$0xff]
  %v97 = vld [vmem:[%s0 + $0x290] sm:$0xff]
  %v98 = vld [vmem:[%s0 + $0x298] sm:$0xff]
  %v99 = vld [vmem:[%s0 + $0x2a0] sm:$0xff]
  %v100 = vld [vmem:[%s0 + $0x2a8] sm:$0xff]
  %v101 = vld [vmem:[%s0 + $0x2b0] sm:$0xff]
  %v102 = vld [vmem:[%s0 + $0x2b8] sm:$0xff]
  %v103 = vld [vmem:[%s0 + $0x2c0] sm:$0xff]
  %v104 = vld [vmem:[%s0 + $0x2c8] sm:$0xff]
  %v105 = vld [vmem:[%s0 + $0x2d0] sm:$0xff]
  %v106 = vld [vmem:[%s0 + $0x2d8] sm:$0xff]
  %v107 = vld [vmem:[%s0 + $0x2e0] sm:$0xff]
  %v108 = vld [vmem:[%s0 + $0x2e8] sm:$0xff]
  %v109 = vld [vmem:[%s0 + $0x2f0] sm:$0xff]
  %v110 = vld [vmem:[%s0 + $0x2f8] sm:$0xff]
  %v111 = vld [vmem:[%s0 + $0x300] sm:$0xff]
  %v112 = vld [vmem:[%s0 + $0x308] sm:$0xff]
  %v113 = vld [vmem:[%s0 + $0x310] sm:$0xff]
  %v114 = vld [vmem:[%s0 + $0x318] sm:$0xff]
  %v115 = vld [vmem:[%s0 + $0x320] sm:$0xff]
  %v116 = vld [vmem:[%s0 + $0x328] sm:$0xff]
  %v117 = vld [vmem:[%s0 + $0x330] sm:$0xff]
  %v118 = vld [vmem:[%s0 + $0x338] sm:$0xff]
  %v119 = vld [vmem:[%s0 + $0x340] sm:$0xff]
  %v120 = vld [vmem:[%s0 + $0x348] sm:$0xff]
  %v121 = vld [vmem:[%s0 + $0x350] sm:$0xff]
  %v122 = vld [vmem:[%s0 + $0x358] sm:$0xff]
  %v123 = vld [vmem:[%s0 + $0x360] sm:$0xff]
  %v124 = vld [vmem:[%s0 + $0x368] sm:$0xff]
  %v125 = vld [vmem:[%s0 + $0x370] sm:$0xff]
  %v126 = vld [vmem:[%s0 + $0x378] sm:$0xff]
  %v127 = vld [vmem:[%s0 + $0x380] sm:$0xff]
  %v128 = vld [vmem:[%s0 + $0x388] sm:$0xff]
  %v129 = vld [vmem:[%s0 + $0x390] sm:$0xff]
  %v130 = vld [vmem:[%s0 + $0x398] sm:$0xff]
  %v131 = vld [vmem:[%s0 + $0x3a0] sm:$0xff]
  %v132 = vld [vmem:[%s0 + $0x3a8] sm:$0xff]
  %v133 = vld [vmem:[%s0 + $0x3b0] sm:$0xff]
  %v134 = vld [vmem:[%s0 + $0x3b8] sm:$0xff]
  %v135 = vld [vmem:[%s0 + $0x3c0] sm:$0xff]
  %v136 = vld [vmem:[%s0 + $0x3c8] sm:$0xff]
  %v137 = vld [vmem:[%s0 + $0x3d0] sm:$0xff]
  %v138 = vld [vmem:[%s0 + $0x3d8] sm:$0xff]
  %v139 = vld [vmem:[%s0 + $0x3e0] sm:$0xff]
  %v140 = vld [vmem:[%s0 + $0x3e8] sm:$0xff]
  %v141 = vld [vmem:[%s0 + $0x3f0] sm:$0xff]
  %v142 = vld [vmem:[%s0 + $0x3f8] sm:$0xff]
  %v143 = vld [vmem:[%s1] sm:$0xf]
  %v144 = vld [vmem:[%s1 + $0x4] sm:$0xf]
  %v145 = vld [vmem:[%s1 + $0x8] sm:$0xf]
  %v146 = vld [vmem:[%s1 + $0xc] sm:$0xf]
  %v147 = vld [vmem:[%s1 + $0x10] sm:$0xf]
  %v148 = vld [vmem:[%s1 + $0x14] sm:$0xf]
  %v149 = vld [vmem:[%s1 + $0x18] sm:$0xf]
  %v150 = vld [vmem:[%s1 + $0x1c] sm:$0xf]
  %v151 = vld [vmem:[%s1 + $0x20] sm:$0xf]
  %v152 = vld [vmem:[%s1 + $0x24] sm:$0xf]
  %v153 = vld [vmem:[%s1 + $0x28] sm:$0xf]
  %v154 = vld [vmem:[%s1 + $0x2c] sm:$0xf]
  %v155 = vld [vmem:[%s1 + $0x30] sm:$0xf]
  %v156 = vld [vmem:[%s1 + $0x34] sm:$0xf]
  %v157 = vld [vmem:[%s1 + $0x38] sm:$0xf]
  %v158 = vld [vmem:[%s1 + $0x3c] sm:$0xf]
  %v159 = vld [vmem:[%s1 + $0x40] sm:$0xf]
  %v160 = vld [vmem:[%s1 + $0x44] sm:$0xf]
  %v161 = vld [vmem:[%s1 + $0x48] sm:$0xf]
  %v162 = vld [vmem:[%s1 + $0x4c] sm:$0xf]
  %v163 = vld [vmem:[%s1 + $0x50] sm:$0xf]
  %v164 = vld [vmem:[%s1 + $0x54] sm:$0xf]
  %v165 = vld [vmem:[%s1 + $0x58] sm:$0xf]
  %v166 = vld [vmem:[%s1 + $0x5c] sm:$0xf]
  %v167 = vld [vmem:[%s1 + $0x60] sm:$0xf]
  %v168 = vld [vmem:[%s1 + $0x64] sm:$0xf]
  %v169 = vld [vmem:[%s1 + $0x68] sm:$0xf]
  %v170 = vld [vmem:[%s1 + $0x6c] sm:$0xf]
  %v171 = vld [vmem:[%s1 + $0x70] sm:$0xf]
  %v172 = vld [vmem:[%s1 + $0x74] sm:$0xf]
  %v173 = vld [vmem:[%s1 + $0x78] sm:$0xf]
  %v174 = vld [vmem:[%s1 + $0x7c] sm:$0xf]
  %v175 = vld [vmem:[%s1 + $0x80] sm:$0xf]
  %v176 = vld [vmem:[%s1 + $0x84] sm:$0xf]
  %v177 = vld [vmem:[%s1 + $0x88] sm:$0xf]
  %v178 = vld [vmem:[%s1 + $0x8c] sm:$0xf]
  %v179 = vld [vmem:[%s1 + $0x90] sm:$0xf]
  %v180 = vld [vmem:[%s1 + $0x94] sm:$0xf]
  %v181 = vld [vmem:[%s1 + $0x98] sm:$0xf]
  %v182 = vld [vmem:[%s1 + $0x9c] sm:$0xf]
  %v183 = vld [vmem:[%s1 + $0xa0] sm:$0xf]
  %v184 = vld [vmem:[%s1 + $0xa4] sm:$0xf]
  %v185 = vld [vmem:[%s1 + $0xa8] sm:$0xf]
  %v186 = vld [vmem:[%s1 + $0xac] sm:$0xf]
  %v187 = vld [vmem:[%s1 + $0xb0] sm:$0xf]
  %v188 = vld [vmem:[%s1 + $0xb4] sm:$0xf]
  %v189 = vld [vmem:[%s1 + $0xb8] sm:$0xf]
  %v190 = vld [vmem:[%s1 + $0xbc] sm:$0xf]
  %v191 = vld [vmem:[%s1 + $0xc0] sm:$0xf]
  %v192 = vld [vmem:[%s1 + $0xc4] sm:$0xf]
  %v193 = vld [vmem:[%s1 + $0xc8] sm:$0xf]
  %v194 = vld [vmem:[%s1 + $0xcc] sm:$0xf]
  %v195 = vld [vmem:[%s1 + $0xd0] sm:$0xf]
  %v196 = vld [vmem:[%s1 + $0xd4] sm:$0xf]
  %v197 = vld [vmem:[%s1 + $0xd8] sm:$0xf]
  %v198 = vld [vmem:[%s1 + $0xdc] sm:$0xf]
  %v199 = vld [vmem:[%s1 + $0xe0] sm:$0xf]
  %v200 = vld [vmem:[%s1 + $0xe4] sm:$0xf]
  %v201 = vld [vmem:[%s1 + $0xe8] sm:$0xf]
  %v202 = vld [vmem:[%s1 + $0xec] sm:$0xf]
  %v203 = vld [vmem:[%s1 + $0xf0] sm:$0xf]
  %v204 = vld [vmem:[%s1 + $0xf4] sm:$0xf]
  %v205 = vld [vmem:[%s1 + $0xf8] sm:$0xf]
  %v206 = vld [vmem:[%s1 + $0xfc] sm:$0xf]
  %v207 = vld [vmem:[%s1 + $0x100] sm:$0xf]
  %v208 = vld [vmem:[%s1 + $0x104] sm:$0xf]
  %v209 = vld [vmem:[%s1 + $0x108] sm:$0xf]
  %v210 = vld [vmem:[%s1 + $0x10c] sm:$0xf]
  %v211 = vld [vmem:[%s1 + $0x110] sm:$0xf]
  %v212 = vld [vmem:[%s1 + $0x114] sm:$0xf]
  %v213 = vld [vmem:[%s1 + $0x118] sm:$0xf]
  %v214 = vld [vmem:[%s1 + $0x11c] sm:$0xf]
  %v215 = vld [vmem:[%s1 + $0x120] sm:$0xf]
  %v216 = vld [vmem:[%s1 + $0x124] sm:$0xf]
  %v217 = vld [vmem:[%s1 + $0x128] sm:$0xf]
  %v218 = vld [vmem:[%s1 + $0x12c] sm:$0xf]
  %v219 = vld [vmem:[%s1 + $0x130] sm:$0xf]
  %v220 = vld [vmem:[%s1 + $0x134] sm:$0xf]
  %v221 = vld [vmem:[%s1 + $0x138] sm:$0xf]
  %v222 = vld [vmem:[%s1 + $0x13c] sm:$0xf]
  %v223 = vld [vmem:[%s1 + $0x140] sm:$0xf]
  %v224 = vld [vmem:[%s1 + $0x144] sm:$0xf]
  %v225 = vld [vmem:[%s1 + $0x148] sm:$0xf]
  %v226 = vld [vmem:[%s1 + $0x14c] sm:$0xf]
  %v227 = vld [vmem:[%s1 + $0x150] sm:$0xf]
  %v228 = vld [vmem:[%s1 + $0x154] sm:$0xf]
  %v229 = vld [vmem:[%s1 + $0x158] sm:$0xf]
  %v230 = vld [vmem:[%s1 + $0x15c] sm:$0xf]
  %v231 = vld [vmem:[%s1 + $0x160] sm:$0xf]
  %v232 = vld [vmem:[%s1 + $0x164] sm:$0xf]
  %v233 = vld [vmem:[%s1 + $0x168] sm:$0xf]
  %v234 = vld [vmem:[%s1 + $0x16c] sm:$0xf]
  %v235 = vld [vmem:[%s1 + $0x170] sm:$0xf]
  %v236 = vld [vmem:[%s1 + $0x174] sm:$0xf]
  %v237 = vld [vmem:[%s1 + $0x178] sm:$0xf]
  %v238 = vld [vmem:[%s1 + $0x17c] sm:$0xf]
  %v239 = vld [vmem:[%s1 + $0x180] sm:$0xf]
  %v240 = vld [vmem:[%s1 + $0x184] sm:$0xf]
  %v241 = vld [vmem:[%s1 + $0x188] sm:$0xf]
  %v242 = vld [vmem:[%s1 + $0x18c] sm:$0xf]
  %v243 = vld [vmem:[%s1 + $0x190] sm:$0xf]
  %v244 = vld [vmem:[%s1 + $0x194] sm:$0xf]
  %v245 = vld [vmem:[%s1 + $0x198] sm:$0xf]
  %v246 = vld [vmem:[%s1 + $0x19c] sm:$0xf]
  %v247 = vld [vmem:[%s1 + $0x1a0] sm:$0xf]
  %v248 = vld [vmem:[%s1 + $0x1a4] sm:$0xf]
  %v249 = vld [vmem:[%s1 + $0x1a8] sm:$0xf]
  %v250 = vld [vmem:[%s1 + $0x1ac] sm:$0xf]
  %v251 = vld [vmem:[%s1 + $0x1b0] sm:$0xf]
  %v252 = vld [vmem:[%s1 + $0x1b4] sm:$0xf]
  %v253 = vld [vmem:[%s1 + $0x1b8] sm:$0xf]
  %v254 = vld [vmem:[%s1 + $0x1bc] sm:$0xf]
  %v255 = vld [vmem:[%s1 + $0x1c0] sm:$0xf]
  %v256 = vld [vmem:[%s1 + $0x1c4] sm:$0xf]
  %v257 = vld [vmem:[%s1 + $0x1c8] sm:$0xf]
  %v258 = vld [vmem:[%s1 + $0x1cc] sm:$0xf]
  %v259 = vld [vmem:[%s1 + $0x1d0] sm:$0xf]
  %v260 = vld [vmem:[%s1 + $0x1d4] sm:$0xf]
  %v261 = vld [vmem:[%s1 + $0x1d8] sm:$0xf]
  %v262 = vld [vmem:[%s1 + $0x1dc] sm:$0xf]
  %v263 = vld [vmem:[%s1 + $0x1e0] sm:$0xf]
  %v264 = vld [vmem:[%s1 + $0x1e4] sm:$0xf]
  %v265 = vld [vmem:[%s1 + $0x1e8] sm:$0xf]
  %v266 = vld [vmem:[%s1 + $0x1ec] sm:$0xf]
  %v267 = vld [vmem:[%s1 + $0x1f0] sm:$0xf]
  %v268 = vld [vmem:[%s1 + $0x1f4] sm:$0xf]
  %v269 = vld [vmem:[%s1 + $0x1f8] sm:$0xf]
  %v270 = vld [vmem:[%s1 + $0x1fc] sm:$0xf]
  %v271 = vld [vmem:[%s1 + $0x200] sm:$0xf]
  %v272 = vld [vmem:[%s1 + $0x204] sm:$0xf]
  %v273 = vld [vmem:[%s1 + $0x208] sm:$0xf]
  %v274 = vld [vmem:[%s1 + $0x20c] sm:$0xf]
  %v275 = vld [vmem:[%s1 + $0x210] sm:$0xf]
  %v276 = vld [vmem:[%s1 + $0x214] sm:$0xf]
  %v277 = vld [vmem:[%s1 + $0x218] sm:$0xf]
  %v278 = vld [vmem:[%s1 + $0x21c] sm:$0xf]
  %v279 = vld [vmem:[%s1 + $0x220] sm:$0xf]
  %v280 = vld [vmem:[%s1 + $0x224] sm:$0xf]
  %v281 = vld [vmem:[%s1 + $0x228] sm:$0xf]
  %v282 = vld [vmem:[%s1 + $0x22c] sm:$0xf]
  %v283 = vld [vmem:[%s1 + $0x230] sm:$0xf]
  %v284 = vld [vmem:[%s1 + $0x234] sm:$0xf]
  %v285 = vld [vmem:[%s1 + $0x238] sm:$0xf]
  %v286 = vld [vmem:[%s1 + $0x23c] sm:$0xf]
  %v287 = vld [vmem:[%s1 + $0x240] sm:$0xf]
  %v288 = vld [vmem:[%s1 + $0x244] sm:$0xf]
  %v289 = vld [vmem:[%s1 + $0x248] sm:$0xf]
  %v290 = vld [vmem:[%s1 + $0x24c] sm:$0xf]
  %v291 = vld [vmem:[%s1 + $0x250] sm:$0xf]
  %v292 = vld [vmem:[%s1 + $0x254] sm:$0xf]
  %v293 = vld [vmem:[%s1 + $0x258] sm:$0xf]
  %v294 = vld [vmem:[%s1 + $0x25c] sm:$0xf]
  %v295 = vld [vmem:[%s1 + $0x260] sm:$0xf]
  %v296 = vld [vmem:[%s1 + $0x264] sm:$0xf]
  %v297 = vld [vmem:[%s1 + $0x268] sm:$0xf]
  %v298 = vld [vmem:[%s1 + $0x26c] sm:$0xf]
  %v299 = vld [vmem:[%s1 + $0x270] sm:$0xf]
  %v300 = vld [vmem:[%s1 + $0x274] sm:$0xf]
  %v301 = vld [vmem:[%s1 + $0x278] sm:$0xf]
  %v302 = vld [vmem:[%s1 + $0x27c] sm:$0xf]
  %v303 = vld [vmem:[%s1 + $0x280] sm:$0xf]
  %v304 = vld [vmem:[%s1 + $0x284] sm:$0xf]
  %v305 = vld [vmem:[%s1 + $0x288] sm:$0xf]
  %v306 = vld [vmem:[%s1 + $0x28c] sm:$0xf]
  %v307 = vld [vmem:[%s1 + $0x290] sm:$0xf]
  %v308 = vld [vmem:[%s1 + $0x294] sm:$0xf]
  %v309 = vld [vmem:[%s1 + $0x298] sm:$0xf]
  %v310 = vld [vmem:[%s1 + $0x29c] sm:$0xf]
  %v311 = vld [vmem:[%s1 + $0x2a0] sm:$0xf]
  %v312 = vld [vmem:[%s1 + $0x2a4] sm:$0xf]
  %v313 = vld [vmem:[%s1 + $0x2a8] sm:$0xf]
  %v314 = vld [vmem:[%s1 + $0x2ac] sm:$0xf]
  %v315 = vld [vmem:[%s1 + $0x2b0] sm:$0xf]
  %v316 = vld [vmem:[%s1 + $0x2b4] sm:$0xf]
  %v317 = vld [vmem:[%s1 + $0x2b8] sm:$0xf]
  %v318 = vld [vmem:[%s1 + $0x2bc] sm:$0xf]
  %v319 = vld [vmem:[%s1 + $0x2c0] sm:$0xf]
  %v320 = vld [vmem:[%s1 + $0x2c4] sm:$0xf]
  %v321 = vld [vmem:[%s1 + $0x2c8] sm:$0xf]
  %v322 = vld [vmem:[%s1 + $0x2cc] sm:$0xf]
  %v323 = vld [vmem:[%s1 + $0x2d0] sm:$0xf]
  %v324 = vld [vmem:[%s1 + $0x2d4] sm:$0xf]
  %v325 = vld [vmem:[%s1 + $0x2d8] sm:$0xf]
  %v326 = vld [vmem:[%s1 + $0x2dc] sm:$0xf]
  %v327 = vld [vmem:[%s1 + $0x2e0] sm:$0xf]
  %v328 = vld [vmem:[%s1 + $0x2e4] sm:$0xf]
  %v329 = vld [vmem:[%s1 + $0x2e8] sm:$0xf]
  %v330 = vld [vmem:[%s1 + $0x2ec] sm:$0xf]
  %v331 = vld [vmem:[%s1 + $0x2f0] sm:$0xf]
  %v332 = vld [vmem:[%s1 + $0x2f4] sm:$0xf]
  %v333 = vld [vmem:[%s1 + $0x2f8] sm:$0xf]
  %v334 = vld [vmem:[%s1 + $0x2fc] sm:$0xf]
  %v335 = vld [vmem:[%s1 + $0x300] sm:$0xf]
  %v336 = vld [vmem:[%s1 + $0x304] sm:$0xf]
  %v337 = vld [vmem:[%s1 + $0x308] sm:$0xf]
  %v338 = vld [vmem:[%s1 + $0x30c] sm:$0xf]
  %v339 = vld [vmem:[%s1 + $0x310] sm:$0xf]
  %v340 = vld [vmem:[%s1 + $0x314] sm:$0xf]
  %v341 = vld [vmem:[%s1 + $0x318] sm:$0xf]
  %v342 = vld [vmem:[%s1 + $0x31c] sm:$0xf]
  %v343 = vld [vmem:[%s1 + $0x320] sm:$0xf]
  %v344 = vld [vmem:[%s1 + $0x324] sm:$0xf]
  %v345 = vld [vmem:[%s1 + $0x328] sm:$0xf]
  %v346 = vld [vmem:[%s1 + $0x32c] sm:$0xf]
  %v347 = vld [vmem:[%s1 + $0x330] sm:$0xf]
  %v348 = vld [vmem:[%s1 + $0x334] sm:$0xf]
  %v349 = vld [vmem:[%s1 + $0x338] sm:$0xf]
  %v350 = vld [vmem:[%s1 + $0x33c] sm:$0xf]
  %v351 = vld [vmem:[%s1 + $0x340] sm:$0xf]
  %v352 = vld [vmem:[%s1 + $0x344] sm:$0xf]
  %v353 = vld [vmem:[%s1 + $0x348] sm:$0xf]
  %v354 = vld [vmem:[%s1 + $0x34c] sm:$0xf]
  %v355 = vld [vmem:[%s1 + $0x350] sm:$0xf]
  %v356 = vld [vmem:[%s1 + $0x354] sm:$0xf]
  %v357 = vld [vmem:[%s1 + $0x358] sm:$0xf]
  %v358 = vld [vmem:[%s1 + $0x35c] sm:$0xf]
  %v359 = vld [vmem:[%s1 + $0x360] sm:$0xf]
  %v360 = vld [vmem:[%s1 + $0x364] sm:$0xf]
  %v361 = vld [vmem:[%s1 + $0x368] sm:$0xf]
  %v362 = vld [vmem:[%s1 + $0x36c] sm:$0xf]
  %v363 = vld [vmem:[%s1 + $0x370] sm:$0xf]
  %v364 = vld [vmem:[%s1 + $0x374] sm:$0xf]
  %v365 = vld [vmem:[%s1 + $0x378] sm:$0xf]
  %v366 = vld [vmem:[%s1 + $0x37c] sm:$0xf]
  %v367 = vld [vmem:[%s1 + $0x380] sm:$0xf]
  %v368 = vld [vmem:[%s1 + $0x384] sm:$0xf]
  %v369 = vld [vmem:[%s1 + $0x388] sm:$0xf]
  %v370 = vld [vmem:[%s1 + $0x38c] sm:$0xf]
  %v371 = vld [vmem:[%s1 + $0x390] sm:$0xf]
  %v372 = vld [vmem:[%s1 + $0x394] sm:$0xf]
  %v373 = vld [vmem:[%s1 + $0x398] sm:$0xf]
  %v374 = vld [vmem:[%s1 + $0x39c] sm:$0xf]
  %v375 = vld [vmem:[%s1 + $0x3a0] sm:$0xf]
  %v376 = vld [vmem:[%s1 + $0x3a4] sm:$0xf]
  %v377 = vld [vmem:[%s1 + $0x3a8] sm:$0xf]
  %v378 = vld [vmem:[%s1 + $0x3ac] sm:$0xf]
  %v379 = vld [vmem:[%s1 + $0x3b0] sm:$0xf]
  %v380 = vld [vmem:[%s1 + $0x3b4] sm:$0xf]
  %v381 = vld [vmem:[%s1 + $0x3b8] sm:$0xf]
  %v382 = vld [vmem:[%s1 + $0x3bc] sm:$0xf]
  %v383 = vld [vmem:[%s1 + $0x3c0] sm:$0xf]
  %v384 = vld [vmem:[%s1 + $0x3c4] sm:$0xf]
  %v385 = vld [vmem:[%s1 + $0x3c8] sm:$0xf]
  %v386 = vld [vmem:[%s1 + $0x3cc] sm:$0xf]
  %v387 = vld [vmem:[%s1 + $0x3d0] sm:$0xf]
  %v388 = vld [vmem:[%s1 + $0x3d4] sm:$0xf]
  %v389 = vld [vmem:[%s1 + $0x3d8] sm:$0xf]
  %v390 = vld [vmem:[%s1 + $0x3dc] sm:$0xf]
  %v391 = vld [vmem:[%s1 + $0x3e0] sm:$0xf]
  %v392 = vld [vmem:[%s1 + $0x3e4] sm:$0xf]
  %v393 = vld [vmem:[%s1 + $0x3e8] sm:$0xf]
  %v394 = vld [vmem:[%s1 + $0x3ec] sm:$0xf]
  %v395 = vld [vmem:[%s1 + $0x3f0] sm:$0xf]
  %v396 = vld [vmem:[%s1 + $0x3f4] sm:$0xf]
  %v397 = vld [vmem:[%s1 + $0x3f8] sm:$0xf]
  %v398 = vld [vmem:[%s1 + $0x3fc] sm:$0xf]
  %v399 = vld [vmem:[%s2] sm:$0x1]
  %v401 = vlaneseq
  %v402 = vshrl.u32 %v401, 7
  %v403 = vsub.s32 0, %v402
  %v404 = vrot.slane %v399, %v403
  %v534 = vunpack.c.l.b16 %v15
  %v535 = vunpack.c.h.b16 %v15
  %v536 = vunpack.c.l.b16 %v16
  %v537 = vunpack.c.h.b16 %v16
  %v538 = vunpack.c.l.b16 %v17
  %v539 = vunpack.c.h.b16 %v17
  %v540 = vunpack.c.l.b16 %v18
  %v541 = vunpack.c.h.b16 %v18
  %v542 = vunpack.c.l.b16 %v19
  %v543 = vunpack.c.h.b16 %v19
  %v544 = vunpack.c.l.b16 %v20
  %v545 = vunpack.c.h.b16 %v20
  %v546 = vunpack.c.l.b16 %v21
  %v547 = vunpack.c.h.b16 %v21
  %v548 = vunpack.c.l.b16 %v22
  %v549 = vunpack.c.h.b16 %v22
  %v550 = vunpack.c.l.b16 %v23
  %v551 = vunpack.c.h.b16 %v23
  %v552 = vunpack.c.l.b16 %v24
  %v553 = vunpack.c.h.b16 %v24
  %v554 = vunpack.c.l.b16 %v25
  %v555 = vunpack.c.h.b16 %v25
  %v556 = vunpack.c.l.b16 %v26
  %v557 = vunpack.c.h.b16 %v26
  %v558 = vunpack.c.l.b16 %v27
  %v559 = vunpack.c.h.b16 %v27
  %v560 = vunpack.c.l.b16 %v28
  %v561 = vunpack.c.h.b16 %v28
  %v562 = vunpack.c.l.b16 %v29
  %v563 = vunpack.c.h.b16 %v29
  %v564 = vunpack.c.l.b16 %v30
  %v565 = vunpack.c.h.b16 %v30
  %v566 = vunpack.c.l.b16 %v31
  %v567 = vunpack.c.h.b16 %v31
  %v568 = vunpack.c.l.b16 %v32
  %v569 = vunpack.c.h.b16 %v32
  %v570 = vunpack.c.l.b16 %v33
  %v571 = vunpack.c.h.b16 %v33
  %v572 = vunpack.c.l.b16 %v34
  %v573 = vunpack.c.h.b16 %v34
  %v574 = vunpack.c.l.b16 %v35
  %v575 = vunpack.c.h.b16 %v35
  %v576 = vunpack.c.l.b16 %v36
  %v577 = vunpack.c.h.b16 %v36
  %v578 = vunpack.c.l.b16 %v37
  %v579 = vunpack.c.h.b16 %v37
  %v580 = vunpack.c.l.b16 %v38
  %v581 = vunpack.c.h.b16 %v38
  %v582 = vunpack.c.l.b16 %v39
  %v583 = vunpack.c.h.b16 %v39
  %v584 = vunpack.c.l.b16 %v40
  %v585 = vunpack.c.h.b16 %v40
  %v586 = vunpack.c.l.b16 %v41
  %v587 = vunpack.c.h.b16 %v41
  %v588 = vunpack.c.l.b16 %v42
  %v589 = vunpack.c.h.b16 %v42
  %v590 = vunpack.c.l.b16 %v43
  %v591 = vunpack.c.h.b16 %v43
  %v592 = vunpack.c.l.b16 %v44
  %v593 = vunpack.c.h.b16 %v44
  %v594 = vunpack.c.l.b16 %v45
  %v595 = vunpack.c.h.b16 %v45
  %v596 = vunpack.c.l.b16 %v46
  %v597 = vunpack.c.h.b16 %v46
  %v598 = vunpack.c.l.b16 %v47
  %v599 = vunpack.c.h.b16 %v47
  %v600 = vunpack.c.l.b16 %v48
  %v601 = vunpack.c.h.b16 %v48
  %v602 = vunpack.c.l.b16 %v49
  %v603 = vunpack.c.h.b16 %v49
  %v604 = vunpack.c.l.b16 %v50
  %v605 = vunpack.c.h.b16 %v50
  %v606 = vunpack.c.l.b16 %v51
  %v607 = vunpack.c.h.b16 %v51
  %v608 = vunpack.c.l.b16 %v52
  %v609 = vunpack.c.h.b16 %v52
  %v610 = vunpack.c.l.b16 %v53
  %v611 = vunpack.c.h.b16 %v53
  %v612 = vunpack.c.l.b16 %v54
  %v613 = vunpack.c.h.b16 %v54
  %v614 = vunpack.c.l.b16 %v55
  %v615 = vunpack.c.h.b16 %v55
  %v616 = vunpack.c.l.b16 %v56
  %v617 = vunpack.c.h.b16 %v56
  %v618 = vunpack.c.l.b16 %v57
  %v619 = vunpack.c.h.b16 %v57
  %v620 = vunpack.c.l.b16 %v58
  %v621 = vunpack.c.h.b16 %v58
  %v622 = vunpack.c.l.b16 %v59
  %v623 = vunpack.c.h.b16 %v59
  %v624 = vunpack.c.l.b16 %v60
  %v625 = vunpack.c.h.b16 %v60
  %v626 = vunpack.c.l.b16 %v61
  %v627 = vunpack.c.h.b16 %v61
  %v628 = vunpack.c.l.b16 %v62
  %v629 = vunpack.c.h.b16 %v62
  %v630 = vunpack.c.l.b16 %v63
  %v631 = vunpack.c.h.b16 %v63
  %v632 = vunpack.c.l.b16 %v64
  %v633 = vunpack.c.h.b16 %v64
  %v634 = vunpack.c.l.b16 %v65
  %v635 = vunpack.c.h.b16 %v65
  %v636 = vunpack.c.l.b16 %v66
  %v637 = vunpack.c.h.b16 %v66
  %v638 = vunpack.c.l.b16 %v67
  %v639 = vunpack.c.h.b16 %v67
  %v640 = vunpack.c.l.b16 %v68
  %v641 = vunpack.c.h.b16 %v68
  %v642 = vunpack.c.l.b16 %v69
  %v643 = vunpack.c.h.b16 %v69
  %v644 = vunpack.c.l.b16 %v70
  %v645 = vunpack.c.h.b16 %v70
  %v646 = vunpack.c.l.b16 %v71
  %v647 = vunpack.c.h.b16 %v71
  %v648 = vunpack.c.l.b16 %v72
  %v649 = vunpack.c.h.b16 %v72
  %v650 = vunpack.c.l.b16 %v73
  %v651 = vunpack.c.h.b16 %v73
  %v652 = vunpack.c.l.b16 %v74
  %v653 = vunpack.c.h.b16 %v74
  %v654 = vunpack.c.l.b16 %v75
  %v655 = vunpack.c.h.b16 %v75
  %v656 = vunpack.c.l.b16 %v76
  %v657 = vunpack.c.h.b16 %v76
  %v658 = vunpack.c.l.b16 %v77
  %v659 = vunpack.c.h.b16 %v77
  %v660 = vunpack.c.l.b16 %v78
  %v661 = vunpack.c.h.b16 %v78
  %v662 = vunpack.c.l.b16 %v79
  %v663 = vunpack.c.h.b16 %v79
  %v664 = vunpack.c.l.b16 %v80
  %v665 = vunpack.c.h.b16 %v80
  %v666 = vunpack.c.l.b16 %v81
  %v667 = vunpack.c.h.b16 %v81
  %v668 = vunpack.c.l.b16 %v82
  %v669 = vunpack.c.h.b16 %v82
  %v670 = vunpack.c.l.b16 %v83
  %v671 = vunpack.c.h.b16 %v83
  %v672 = vunpack.c.l.b16 %v84
  %v673 = vunpack.c.h.b16 %v84
  %v674 = vunpack.c.l.b16 %v85
  %v675 = vunpack.c.h.b16 %v85
  %v676 = vunpack.c.l.b16 %v86
  %v677 = vunpack.c.h.b16 %v86
  %v678 = vunpack.c.l.b16 %v87
  %v679 = vunpack.c.h.b16 %v87
  %v680 = vunpack.c.l.b16 %v88
  %v681 = vunpack.c.h.b16 %v88
  %v682 = vunpack.c.l.b16 %v89
  %v683 = vunpack.c.h.b16 %v89
  %v684 = vunpack.c.l.b16 %v90
  %v685 = vunpack.c.h.b16 %v90
  %v686 = vunpack.c.l.b16 %v91
  %v687 = vunpack.c.h.b16 %v91
  %v688 = vunpack.c.l.b16 %v92
  %v689 = vunpack.c.h.b16 %v92
  %v690 = vunpack.c.l.b16 %v93
  %v691 = vunpack.c.h.b16 %v93
  %v692 = vunpack.c.l.b16 %v94
  %v693 = vunpack.c.h.b16 %v94
  %v694 = vunpack.c.l.b16 %v95
  %v695 = vunpack.c.h.b16 %v95
  %v696 = vunpack.c.l.b16 %v96
  %v697 = vunpack.c.h.b16 %v96
  %v698 = vunpack.c.l.b16 %v97
  %v699 = vunpack.c.h.b16 %v97
  %v700 = vunpack.c.l.b16 %v98
  %v701 = vunpack.c.h.b16 %v98
  %v702 = vunpack.c.l.b16 %v99
  %v703 = vunpack.c.h.b16 %v99
  %v704 = vunpack.c.l.b16 %v100
  %v705 = vunpack.c.h.b16 %v100
  %v706 = vunpack.c.l.b16 %v101
  %v707 = vunpack.c.h.b16 %v101
  %v708 = vunpack.c.l.b16 %v102
  %v709 = vunpack.c.h.b16 %v102
  %v710 = vunpack.c.l.b16 %v103
  %v711 = vunpack.c.h.b16 %v103
  %v712 = vunpack.c.l.b16 %v104
  %v713 = vunpack.c.h.b16 %v104
  %v714 = vunpack.c.l.b16 %v105
  %v715 = vunpack.c.h.b16 %v105
  %v716 = vunpack.c.l.b16 %v106
  %v717 = vunpack.c.h.b16 %v106
  %v718 = vunpack.c.l.b16 %v107
  %v719 = vunpack.c.h.b16 %v107
  %v720 = vunpack.c.l.b16 %v108
  %v721 = vunpack.c.h.b16 %v108
  %v722 = vunpack.c.l.b16 %v109
  %v723 = vunpack.c.h.b16 %v109
  %v724 = vunpack.c.l.b16 %v110
  %v725 = vunpack.c.h.b16 %v110
  %v726 = vunpack.c.l.b16 %v111
  %v727 = vunpack.c.h.b16 %v111
  %v728 = vunpack.c.l.b16 %v112
  %v729 = vunpack.c.h.b16 %v112
  %v730 = vunpack.c.l.b16 %v113
  %v731 = vunpack.c.h.b16 %v113
  %v732 = vunpack.c.l.b16 %v114
  %v733 = vunpack.c.h.b16 %v114
  %v734 = vunpack.c.l.b16 %v115
  %v735 = vunpack.c.h.b16 %v115
  %v736 = vunpack.c.l.b16 %v116
  %v737 = vunpack.c.h.b16 %v116
  %v738 = vunpack.c.l.b16 %v117
  %v739 = vunpack.c.h.b16 %v117
  %v740 = vunpack.c.l.b16 %v118
  %v741 = vunpack.c.h.b16 %v118
  %v742 = vunpack.c.l.b16 %v119
  %v743 = vunpack.c.h.b16 %v119
  %v744 = vunpack.c.l.b16 %v120
  %v745 = vunpack.c.h.b16 %v120
  %v746 = vunpack.c.l.b16 %v121
  %v747 = vunpack.c.h.b16 %v121
  %v748 = vunpack.c.l.b16 %v122
  %v749 = vunpack.c.h.b16 %v122
  %v750 = vunpack.c.l.b16 %v123
  %v751 = vunpack.c.h.b16 %v123
  %v752 = vunpack.c.l.b16 %v124
  %v753 = vunpack.c.h.b16 %v124
  %v754 = vunpack.c.l.b16 %v125
  %v755 = vunpack.c.h.b16 %v125
  %v756 = vunpack.c.l.b16 %v126
  %v757 = vunpack.c.h.b16 %v126
  %v758 = vunpack.c.l.b16 %v127
  %v759 = vunpack.c.h.b16 %v127
  %v760 = vunpack.c.l.b16 %v128
  %v761 = vunpack.c.h.b16 %v128
  %v762 = vunpack.c.l.b16 %v129
  %v763 = vunpack.c.h.b16 %v129
  %v764 = vunpack.c.l.b16 %v130
  %v765 = vunpack.c.h.b16 %v130
  %v766 = vunpack.c.l.b16 %v131
  %v767 = vunpack.c.h.b16 %v131
  %v768 = vunpack.c.l.b16 %v132
  %v769 = vunpack.c.h.b16 %v132
  %v770 = vunpack.c.l.b16 %v133
  %v771 = vunpack.c.h.b16 %v133
  %v772 = vunpack.c.l.b16 %v134
  %v773 = vunpack.c.h.b16 %v134
  %v774 = vunpack.c.l.b16 %v135
  %v775 = vunpack.c.h.b16 %v135
  %v776 = vunpack.c.l.b16 %v136
  %v777 = vunpack.c.h.b16 %v136
  %v778 = vunpack.c.l.b16 %v137
  %v779 = vunpack.c.h.b16 %v137
  %v780 = vunpack.c.l.b16 %v138
  %v781 = vunpack.c.h.b16 %v138
  %v782 = vunpack.c.l.b16 %v139
  %v783 = vunpack.c.h.b16 %v139
  %v784 = vunpack.c.l.b16 %v140
  %v785 = vunpack.c.h.b16 %v140
  %v786 = vunpack.c.l.b16 %v141
  %v787 = vunpack.c.h.b16 %v141
  %v788 = vunpack.c.l.b16 %v142
  %v789 = vunpack.c.h.b16 %v142
  %v790 = vpack.c.b16 %v550, %v534
  %v791 = vpack.c.b16 %v551, %v535
  %v792 = vpack.c.b16 %v552, %v536
  %v793 = vpack.c.b16 %v553, %v537
  %v794 = vpack.c.b16 %v554, %v538
  %v795 = vpack.c.b16 %v555, %v539
  %v796 = vpack.c.b16 %v556, %v540
  %v797 = vpack.c.b16 %v557, %v541
  %v798 = vpack.c.b16 %v558, %v542
  %v799 = vpack.c.b16 %v559, %v543
  %v800 = vpack.c.b16 %v560, %v544
  %v801 = vpack.c.b16 %v561, %v545
  %v802 = vpack.c.b16 %v562, %v546
  %v803 = vpack.c.b16 %v563, %v547
  %v804 = vpack.c.b16 %v564, %v548
  %v805 = vpack.c.b16 %v565, %v549
  %v806 = vpack.c.b16 %v582, %v566
  %v807 = vpack.c.b16 %v583, %v567
  %v808 = vpack.c.b16 %v584, %v568
  %v809 = vpack.c.b16 %v585, %v569
  %v810 = vpack.c.b16 %v586, %v570
  %v811 = vpack.c.b16 %v587, %v571
  %v812 = vpack.c.b16 %v588, %v572
  %v813 = vpack.c.b16 %v589, %v573
  %v814 = vpack.c.b16 %v590, %v574
  %v815 = vpack.c.b16 %v591, %v575
  %v816 = vpack.c.b16 %v592, %v576
  %v817 = vpack.c.b16 %v593, %v577
  %v818 = vpack.c.b16 %v594, %v578
  %v819 = vpack.c.b16 %v595, %v579
  %v820 = vpack.c.b16 %v596, %v580
  %v821 = vpack.c.b16 %v597, %v581
  %v822 = vpack.c.b16 %v614, %v598
  %v823 = vpack.c.b16 %v615, %v599
  %v824 = vpack.c.b16 %v616, %v600
  %v825 = vpack.c.b16 %v617, %v601
  %v826 = vpack.c.b16 %v618, %v602
  %v827 = vpack.c.b16 %v619, %v603
  %v828 = vpack.c.b16 %v620, %v604
  %v829 = vpack.c.b16 %v621, %v605
  %v830 = vpack.c.b16 %v622, %v606
  %v831 = vpack.c.b16 %v623, %v607
  %v832 = vpack.c.b16 %v624, %v608
  %v833 = vpack.c.b16 %v625, %v609
  %v834 = vpack.c.b16 %v626, %v610
  %v835 = vpack.c.b16 %v627, %v611
  %v836 = vpack.c.b16 %v628, %v612
  %v837 = vpack.c.b16 %v629, %v613
  %v838 = vpack.c.b16 %v646, %v630
  %v839 = vpack.c.b16 %v647, %v631
  %v840 = vpack.c.b16 %v648, %v632
  %v841 = vpack.c.b16 %v649, %v633
  %v842 = vpack.c.b16 %v650, %v634
  %v843 = vpack.c.b16 %v651, %v635
  %v844 = vpack.c.b16 %v652, %v636
  %v845 = vpack.c.b16 %v653, %v637
  %v846 = vpack.c.b16 %v654, %v638
  %v847 = vpack.c.b16 %v655, %v639
  %v848 = vpack.c.b16 %v656, %v640
  %v849 = vpack.c.b16 %v657, %v641
  %v850 = vpack.c.b16 %v658, %v642
  %v851 = vpack.c.b16 %v659, %v643
  %v852 = vpack.c.b16 %v660, %v644
  %v853 = vpack.c.b16 %v661, %v645
  %v854 = vpack.c.b16 %v678, %v662
  %v855 = vpack.c.b16 %v679, %v663
  %v856 = vpack.c.b16 %v680, %v664
  %v857 = vpack.c.b16 %v681, %v665
  %v858 = vpack.c.b16 %v682, %v666
  %v859 = vpack.c.b16 %v683, %v667
  %v860 = vpack.c.b16 %v684, %v668
  %v861 = vpack.c.b16 %v685, %v669
  %v862 = vpack.c.b16 %v686, %v670
  %v863 = vpack.c.b16 %v687, %v671
  %v864 = vpack.c.b16 %v688, %v672
  %v865 = vpack.c.b16 %v689, %v673
  %v866 = vpack.c.b16 %v690, %v674
  %v867 = vpack.c.b16 %v691, %v675
  %v868 = vpack.c.b16 %v692, %v676
  %v869 = vpack.c.b16 %v693, %v677
  %v870 = vpack.c.b16 %v710, %v694
  %v871 = vpack.c.b16 %v711, %v695
  %v872 = vpack.c.b16 %v712, %v696
  %v873 = vpack.c.b16 %v713, %v697
  %v874 = vpack.c.b16 %v714, %v698
  %v875 = vpack.c.b16 %v715, %v699
  %v876 = vpack.c.b16 %v716, %v700
  %v877 = vpack.c.b16 %v717, %v701
  %v878 = vpack.c.b16 %v718, %v702
  %v879 = vpack.c.b16 %v719, %v703
  %v880 = vpack.c.b16 %v720, %v704
  %v881 = vpack.c.b16 %v721, %v705
  %v882 = vpack.c.b16 %v722, %v706
  %v883 = vpack.c.b16 %v723, %v707
  %v884 = vpack.c.b16 %v724, %v708
  %v885 = vpack.c.b16 %v725, %v709
  %v886 = vpack.c.b16 %v742, %v726
  %v887 = vpack.c.b16 %v743, %v727
  %v888 = vpack.c.b16 %v744, %v728
  %v889 = vpack.c.b16 %v745, %v729
  %v890 = vpack.c.b16 %v746, %v730
  %v891 = vpack.c.b16 %v747, %v731
  %v892 = vpack.c.b16 %v748, %v732
  %v893 = vpack.c.b16 %v749, %v733
  %v894 = vpack.c.b16 %v750, %v734
  %v895 = vpack.c.b16 %v751, %v735
  %v896 = vpack.c.b16 %v752, %v736
  %v897 = vpack.c.b16 %v753, %v737
  %v898 = vpack.c.b16 %v754, %v738
  %v899 = vpack.c.b16 %v755, %v739
  %v900 = vpack.c.b16 %v756, %v740
  %v901 = vpack.c.b16 %v757, %v741
  %v902 = vpack.c.b16 %v774, %v758
  %v903 = vpack.c.b16 %v775, %v759
  %v904 = vpack.c.b16 %v776, %v760
  %v905 = vpack.c.b16 %v777, %v761
  %v906 = vpack.c.b16 %v778, %v762
  %v907 = vpack.c.b16 %v779, %v763
  %v908 = vpack.c.b16 %v780, %v764
  %v909 = vpack.c.b16 %v781, %v765
  %v910 = vpack.c.b16 %v782, %v766
  %v911 = vpack.c.b16 %v783, %v767
  %v912 = vpack.c.b16 %v784, %v768
  %v913 = vpack.c.b16 %v785, %v769
  %v914 = vpack.c.b16 %v786, %v770
  %v915 = vpack.c.b16 %v787, %v771
  %v916 = vpack.c.b16 %v788, %v772
  %v917 = vpack.c.b16 %v789, %v773
  %v1302 = vunpack.c.l.b16 %v143
  %v1303 = vunpack.c.l.b16 %v144
  %v1304 = vunpack.c.l.b16 %v145
  %v1305 = vunpack.c.l.b16 %v146
  %v1306 = vunpack.c.l.b16 %v147
  %v1307 = vunpack.c.l.b16 %v148
  %v1308 = vunpack.c.l.b16 %v149
  %v1309 = vunpack.c.l.b16 %v150
  %v1310 = vunpack.c.l.b16 %v151
  %v1311 = vunpack.c.l.b16 %v152
  %v1312 = vunpack.c.l.b16 %v153
  %v1313 = vunpack.c.l.b16 %v154
  %v1314 = vunpack.c.l.b16 %v155
  %v1315 = vunpack.c.l.b16 %v156
  %v1316 = vunpack.c.l.b16 %v157
  %v1317 = vunpack.c.l.b16 %v158
  %v1318 = vunpack.c.l.b16 %v159
  %v1319 = vunpack.c.l.b16 %v160
  %v1320 = vunpack.c.l.b16 %v161
  %v1321 = vunpack.c.l.b16 %v162
  %v1322 = vunpack.c.l.b16 %v163
  %v1323 = vunpack.c.l.b16 %v164
  %v1324 = vunpack.c.l.b16 %v165
  %v1325 = vunpack.c.l.b16 %v166
  %v1326 = vunpack.c.l.b16 %v167
  %v1327 = vunpack.c.l.b16 %v168
  %v1328 = vunpack.c.l.b16 %v169
  %v1329 = vunpack.c.l.b16 %v170
  %v1330 = vunpack.c.l.b16 %v171
  %v1331 = vunpack.c.l.b16 %v172
  %v1332 = vunpack.c.l.b16 %v173
  %v1333 = vunpack.c.l.b16 %v174
  %v1334 = vunpack.c.l.b16 %v175
  %v1335 = vunpack.c.l.b16 %v176
  %v1336 = vunpack.c.l.b16 %v177
  %v1337 = vunpack.c.l.b16 %v178
  %v1338 = vunpack.c.l.b16 %v179
  %v1339 = vunpack.c.l.b16 %v180
  %v1340 = vunpack.c.l.b16 %v181
  %v1341 = vunpack.c.l.b16 %v182
  %v1342 = vunpack.c.l.b16 %v183
  %v1343 = vunpack.c.l.b16 %v184
  %v1344 = vunpack.c.l.b16 %v185
  %v1345 = vunpack.c.l.b16 %v186
  %v1346 = vunpack.c.l.b16 %v187
  %v1347 = vunpack.c.l.b16 %v188
  %v1348 = vunpack.c.l.b16 %v189
  %v1349 = vunpack.c.l.b16 %v190
  %v1350 = vunpack.c.l.b16 %v191
  %v1351 = vunpack.c.l.b16 %v192
  %v1352 = vunpack.c.l.b16 %v193
  %v1353 = vunpack.c.l.b16 %v194
  %v1354 = vunpack.c.l.b16 %v195
  %v1355 = vunpack.c.l.b16 %v196
  %v1356 = vunpack.c.l.b16 %v197
  %v1357 = vunpack.c.l.b16 %v198
  %v1358 = vunpack.c.l.b16 %v199
  %v1359 = vunpack.c.l.b16 %v200
  %v1360 = vunpack.c.l.b16 %v201
  %v1361 = vunpack.c.l.b16 %v202
  %v1362 = vunpack.c.l.b16 %v203
  %v1363 = vunpack.c.l.b16 %v204
  %v1364 = vunpack.c.l.b16 %v205
  %v1365 = vunpack.c.l.b16 %v206
  %v1366 = vunpack.c.l.b16 %v207
  %v1367 = vunpack.c.l.b16 %v208
  %v1368 = vunpack.c.l.b16 %v209
  %v1369 = vunpack.c.l.b16 %v210
  %v1370 = vunpack.c.l.b16 %v211
  %v1371 = vunpack.c.l.b16 %v212
  %v1372 = vunpack.c.l.b16 %v213
  %v1373 = vunpack.c.l.b16 %v214
  %v1374 = vunpack.c.l.b16 %v215
  %v1375 = vunpack.c.l.b16 %v216
  %v1376 = vunpack.c.l.b16 %v217
  %v1377 = vunpack.c.l.b16 %v218
  %v1378 = vunpack.c.l.b16 %v219
  %v1379 = vunpack.c.l.b16 %v220
  %v1380 = vunpack.c.l.b16 %v221
  %v1381 = vunpack.c.l.b16 %v222
  %v1382 = vunpack.c.l.b16 %v223
  %v1383 = vunpack.c.l.b16 %v224
  %v1384 = vunpack.c.l.b16 %v225
  %v1385 = vunpack.c.l.b16 %v226
  %v1386 = vunpack.c.l.b16 %v227
  %v1387 = vunpack.c.l.b16 %v228
  %v1388 = vunpack.c.l.b16 %v229
  %v1389 = vunpack.c.l.b16 %v230
  %v1390 = vunpack.c.l.b16 %v231
  %v1391 = vunpack.c.l.b16 %v232
  %v1392 = vunpack.c.l.b16 %v233
  %v1393 = vunpack.c.l.b16 %v234
  %v1394 = vunpack.c.l.b16 %v235
  %v1395 = vunpack.c.l.b16 %v236
  %v1396 = vunpack.c.l.b16 %v237
  %v1397 = vunpack.c.l.b16 %v238
  %v1398 = vunpack.c.l.b16 %v239
  %v1399 = vunpack.c.l.b16 %v240
  %v1400 = vunpack.c.l.b16 %v241
  %v1401 = vunpack.c.l.b16 %v242
  %v1402 = vunpack.c.l.b16 %v243
  %v1403 = vunpack.c.l.b16 %v244
  %v1404 = vunpack.c.l.b16 %v245
  %v1405 = vunpack.c.l.b16 %v246
  %v1406 = vunpack.c.l.b16 %v247
  %v1407 = vunpack.c.l.b16 %v248
  %v1408 = vunpack.c.l.b16 %v249
  %v1409 = vunpack.c.l.b16 %v250
  %v1410 = vunpack.c.l.b16 %v251
  %v1411 = vunpack.c.l.b16 %v252
  %v1412 = vunpack.c.l.b16 %v253
  %v1413 = vunpack.c.l.b16 %v254
  %v1414 = vunpack.c.l.b16 %v255
  %v1415 = vunpack.c.l.b16 %v256
  %v1416 = vunpack.c.l.b16 %v257
  %v1417 = vunpack.c.l.b16 %v258
  %v1418 = vunpack.c.l.b16 %v259
  %v1419 = vunpack.c.l.b16 %v260
  %v1420 = vunpack.c.l.b16 %v261
  %v1421 = vunpack.c.l.b16 %v262
  %v1422 = vunpack.c.l.b16 %v263
  %v1423 = vunpack.c.l.b16 %v264
  %v1424 = vunpack.c.l.b16 %v265
  %v1425 = vunpack.c.l.b16 %v266
  %v1426 = vunpack.c.l.b16 %v267
  %v1427 = vunpack.c.l.b16 %v268
  %v1428 = vunpack.c.l.b16 %v269
  %v1429 = vunpack.c.l.b16 %v270
  %v1430 = vunpack.c.l.b16 %v271
  %v1431 = vunpack.c.l.b16 %v272
  %v1432 = vunpack.c.l.b16 %v273
  %v1433 = vunpack.c.l.b16 %v274
  %v1434 = vunpack.c.l.b16 %v275
  %v1435 = vunpack.c.l.b16 %v276
  %v1436 = vunpack.c.l.b16 %v277
  %v1437 = vunpack.c.l.b16 %v278
  %v1438 = vunpack.c.l.b16 %v279
  %v1439 = vunpack.c.l.b16 %v280
  %v1440 = vunpack.c.l.b16 %v281
  %v1441 = vunpack.c.l.b16 %v282
  %v1442 = vunpack.c.l.b16 %v283
  %v1443 = vunpack.c.l.b16 %v284
  %v1444 = vunpack.c.l.b16 %v285
  %v1445 = vunpack.c.l.b16 %v286
  %v1446 = vunpack.c.l.b16 %v287
  %v1447 = vunpack.c.l.b16 %v288
  %v1448 = vunpack.c.l.b16 %v289
  %v1449 = vunpack.c.l.b16 %v290
  %v1450 = vunpack.c.l.b16 %v291
  %v1451 = vunpack.c.l.b16 %v292
  %v1452 = vunpack.c.l.b16 %v293
  %v1453 = vunpack.c.l.b16 %v294
  %v1454 = vunpack.c.l.b16 %v295
  %v1455 = vunpack.c.l.b16 %v296
  %v1456 = vunpack.c.l.b16 %v297
  %v1457 = vunpack.c.l.b16 %v298
  %v1458 = vunpack.c.l.b16 %v299
  %v1459 = vunpack.c.l.b16 %v300
  %v1460 = vunpack.c.l.b16 %v301
  %v1461 = vunpack.c.l.b16 %v302
  %v1462 = vunpack.c.l.b16 %v303
  %v1463 = vunpack.c.l.b16 %v304
  %v1464 = vunpack.c.l.b16 %v305
  %v1465 = vunpack.c.l.b16 %v306
  %v1466 = vunpack.c.l.b16 %v307
  %v1467 = vunpack.c.l.b16 %v308
  %v1468 = vunpack.c.l.b16 %v309
  %v1469 = vunpack.c.l.b16 %v310
  %v1470 = vunpack.c.l.b16 %v311
  %v1471 = vunpack.c.l.b16 %v312
  %v1472 = vunpack.c.l.b16 %v313
  %v1473 = vunpack.c.l.b16 %v314
  %v1474 = vunpack.c.l.b16 %v315
  %v1475 = vunpack.c.l.b16 %v316
  %v1476 = vunpack.c.l.b16 %v317
  %v1477 = vunpack.c.l.b16 %v318
  %v1478 = vunpack.c.l.b16 %v319
  %v1479 = vunpack.c.l.b16 %v320
  %v1480 = vunpack.c.l.b16 %v321
  %v1481 = vunpack.c.l.b16 %v322
  %v1482 = vunpack.c.l.b16 %v323
  %v1483 = vunpack.c.l.b16 %v324
  %v1484 = vunpack.c.l.b16 %v325
  %v1485 = vunpack.c.l.b16 %v326
  %v1486 = vunpack.c.l.b16 %v327
  %v1487 = vunpack.c.l.b16 %v328
  %v1488 = vunpack.c.l.b16 %v329
  %v1489 = vunpack.c.l.b16 %v330
  %v1490 = vunpack.c.l.b16 %v331
  %v1491 = vunpack.c.l.b16 %v332
  %v1492 = vunpack.c.l.b16 %v333
  %v1493 = vunpack.c.l.b16 %v334
  %v1494 = vunpack.c.l.b16 %v335
  %v1495 = vunpack.c.l.b16 %v336
  %v1496 = vunpack.c.l.b16 %v337
  %v1497 = vunpack.c.l.b16 %v338
  %v1498 = vunpack.c.l.b16 %v339
  %v1499 = vunpack.c.l.b16 %v340
  %v1500 = vunpack.c.l.b16 %v341
  %v1501 = vunpack.c.l.b16 %v342
  %v1502 = vunpack.c.l.b16 %v343
  %v1503 = vunpack.c.l.b16 %v344
  %v1504 = vunpack.c.l.b16 %v345
  %v1505 = vunpack.c.l.b16 %v346
  %v1506 = vunpack.c.l.b16 %v347
  %v1507 = vunpack.c.l.b16 %v348
  %v1508 = vunpack.c.l.b16 %v349
  %v1509 = vunpack.c.l.b16 %v350
  %v1510 = vunpack.c.l.b16 %v351
  %v1511 = vunpack.c.l.b16 %v352
  %v1512 = vunpack.c.l.b16 %v353
  %v1513 = vunpack.c.l.b16 %v354
  %v1514 = vunpack.c.l.b16 %v355
  %v1515 = vunpack.c.l.b16 %v356
  %v1516 = vunpack.c.l.b16 %v357
  %v1517 = vunpack.c.l.b16 %v358
  %v1518 = vunpack.c.l.b16 %v359
  %v1519 = vunpack.c.l.b16 %v360
  %v1520 = vunpack.c.l.b16 %v361
  %v1521 = vunpack.c.l.b16 %v362
  %v1522 = vunpack.c.l.b16 %v363
  %v1523 = vunpack.c.l.b16 %v364
  %v1524 = vunpack.c.l.b16 %v365
  %v1525 = vunpack.c.l.b16 %v366
  %v1526 = vunpack.c.l.b16 %v367
  %v1527 = vunpack.c.l.b16 %v368
  %v1528 = vunpack.c.l.b16 %v369
  %v1529 = vunpack.c.l.b16 %v370
  %v1530 = vunpack.c.l.b16 %v371
  %v1531 = vunpack.c.l.b16 %v372
  %v1532 = vunpack.c.l.b16 %v373
  %v1533 = vunpack.c.l.b16 %v374
  %v1534 = vunpack.c.l.b16 %v375
  %v1535 = vunpack.c.l.b16 %v376
  %v1536 = vunpack.c.l.b16 %v377
  %v1537 = vunpack.c.l.b16 %v378
  %v1538 = vunpack.c.l.b16 %v379
  %v1539 = vunpack.c.l.b16 %v380
  %v1540 = vunpack.c.l.b16 %v381
  %v1541 = vunpack.c.l.b16 %v382
  %v1542 = vunpack.c.l.b16 %v383
  %v1543 = vunpack.c.l.b16 %v384
  %v1544 = vunpack.c.l.b16 %v385
  %v1545 = vunpack.c.l.b16 %v386
  %v1546 = vunpack.c.l.b16 %v387
  %v1547 = vunpack.c.l.b16 %v388
  %v1548 = vunpack.c.l.b16 %v389
  %v1549 = vunpack.c.l.b16 %v390
  %v1550 = vunpack.c.l.b16 %v391
  %v1551 = vunpack.c.l.b16 %v392
  %v1552 = vunpack.c.l.b16 %v393
  %v1553 = vunpack.c.l.b16 %v394
  %v1554 = vunpack.c.l.b16 %v395
  %v1555 = vunpack.c.l.b16 %v396
  %v1556 = vunpack.c.l.b16 %v397
  %v1557 = vunpack.c.l.b16 %v398
  %v1558 = vpack.c.b16 %v1303, %v1302
  %v1559 = vpack.c.b16 %v1305, %v1304
  %v1560 = vpack.c.b16 %v1307, %v1306
  %v1561 = vpack.c.b16 %v1309, %v1308
  %v1562 = vpack.c.b16 %v1311, %v1310
  %v1563 = vpack.c.b16 %v1313, %v1312
  %v1564 = vpack.c.b16 %v1315, %v1314
  %v1565 = vpack.c.b16 %v1317, %v1316
  %v1566 = vpack.c.b16 %v1319, %v1318
  %v1567 = vpack.c.b16 %v1321, %v1320
  %v1568 = vpack.c.b16 %v1323, %v1322
  %v1569 = vpack.c.b16 %v1325, %v1324
  %v1570 = vpack.c.b16 %v1327, %v1326
  %v1571 = vpack.c.b16 %v1329, %v1328
  %v1572 = vpack.c.b16 %v1331, %v1330
  %v1573 = vpack.c.b16 %v1333, %v1332
  %v1574 = vpack.c.b16 %v1335, %v1334
  %v1575 = vpack.c.b16 %v1337, %v1336
  %v1576 = vpack.c.b16 %v1339, %v1338
  %v1577 = vpack.c.b16 %v1341, %v1340
  %v1578 = vpack.c.b16 %v1343, %v1342
  %v1579 = vpack.c.b16 %v1345, %v1344
  %v1580 = vpack.c.b16 %v1347, %v1346
  %v1581 = vpack.c.b16 %v1349, %v1348
  %v1582 = vpack.c.b16 %v1351, %v1350
  %v1583 = vpack.c.b16 %v1353, %v1352
  %v1584 = vpack.c.b16 %v1355, %v1354
  %v1585 = vpack.c.b16 %v1357, %v1356
  %v1586 = vpack.c.b16 %v1359, %v1358
  %v1587 = vpack.c.b16 %v1361, %v1360
  %v1588 = vpack.c.b16 %v1363, %v1362
  %v1589 = vpack.c.b16 %v1365, %v1364
  %v1590 = vpack.c.b16 %v1367, %v1366
  %v1591 = vpack.c.b16 %v1369, %v1368
  %v1592 = vpack.c.b16 %v1371, %v1370
  %v1593 = vpack.c.b16 %v1373, %v1372
  %v1594 = vpack.c.b16 %v1375, %v1374
  %v1595 = vpack.c.b16 %v1377, %v1376
  %v1596 = vpack.c.b16 %v1379, %v1378
  %v1597 = vpack.c.b16 %v1381, %v1380
  %v1598 = vpack.c.b16 %v1383, %v1382
  %v1599 = vpack.c.b16 %v1385, %v1384
  %v1600 = vpack.c.b16 %v1387, %v1386
  %v1601 = vpack.c.b16 %v1389, %v1388
  %v1602 = vpack.c.b16 %v1391, %v1390
  %v1603 = vpack.c.b16 %v1393, %v1392
  %v1604 = vpack.c.b16 %v1395, %v1394
  %v1605 = vpack.c.b16 %v1397, %v1396
  %v1606 = vpack.c.b16 %v1399, %v1398
  %v1607 = vpack.c.b16 %v1401, %v1400
  %v1608 = vpack.c.b16 %v1403, %v1402
  %v1609 = vpack.c.b16 %v1405, %v1404
  %v1610 = vpack.c.b16 %v1407, %v1406
  %v1611 = vpack.c.b16 %v1409, %v1408
  %v1612 = vpack.c.b16 %v1411, %v1410
  %v1613 = vpack.c.b16 %v1413, %v1412
  %v1614 = vpack.c.b16 %v1415, %v1414
  %v1615 = vpack.c.b16 %v1417, %v1416
  %v1616 = vpack.c.b16 %v1419, %v1418
  %v1617 = vpack.c.b16 %v1421, %v1420
  %v1618 = vpack.c.b16 %v1423, %v1422
  %v1619 = vpack.c.b16 %v1425, %v1424
  %v1620 = vpack.c.b16 %v1427, %v1426
  %v1621 = vpack.c.b16 %v1429, %v1428
  %v1622 = vpack.c.b16 %v1431, %v1430
  %v1623 = vpack.c.b16 %v1433, %v1432
  %v1624 = vpack.c.b16 %v1435, %v1434
  %v1625 = vpack.c.b16 %v1437, %v1436
  %v1626 = vpack.c.b16 %v1439, %v1438
  %v1627 = vpack.c.b16 %v1441, %v1440
  %v1628 = vpack.c.b16 %v1443, %v1442
  %v1629 = vpack.c.b16 %v1445, %v1444
  %v1630 = vpack.c.b16 %v1447, %v1446
  %v1631 = vpack.c.b16 %v1449, %v1448
  %v1632 = vpack.c.b16 %v1451, %v1450
  %v1633 = vpack.c.b16 %v1453, %v1452
  %v1634 = vpack.c.b16 %v1455, %v1454
  %v1635 = vpack.c.b16 %v1457, %v1456
  %v1636 = vpack.c.b16 %v1459, %v1458
  %v1637 = vpack.c.b16 %v1461, %v1460
  %v1638 = vpack.c.b16 %v1463, %v1462
  %v1639 = vpack.c.b16 %v1465, %v1464
  %v1640 = vpack.c.b16 %v1467, %v1466
  %v1641 = vpack.c.b16 %v1469, %v1468
  %v1642 = vpack.c.b16 %v1471, %v1470
  %v1643 = vpack.c.b16 %v1473, %v1472
  %v1644 = vpack.c.b16 %v1475, %v1474
  %v1645 = vpack.c.b16 %v1477, %v1476
  %v1646 = vpack.c.b16 %v1479, %v1478
  %v1647 = vpack.c.b16 %v1481, %v1480
  %v1648 = vpack.c.b16 %v1483, %v1482
  %v1649 = vpack.c.b16 %v1485, %v1484
  %v1650 = vpack.c.b16 %v1487, %v1486
  %v1651 = vpack.c.b16 %v1489, %v1488
  %v1652 = vpack.c.b16 %v1491, %v1490
  %v1653 = vpack.c.b16 %v1493, %v1492
  %v1654 = vpack.c.b16 %v1495, %v1494
  %v1655 = vpack.c.b16 %v1497, %v1496
  %v1656 = vpack.c.b16 %v1499, %v1498
  %v1657 = vpack.c.b16 %v1501, %v1500
  %v1658 = vpack.c.b16 %v1503, %v1502
  %v1659 = vpack.c.b16 %v1505, %v1504
  %v1660 = vpack.c.b16 %v1507, %v1506
  %v1661 = vpack.c.b16 %v1509, %v1508
  %v1662 = vpack.c.b16 %v1511, %v1510
  %v1663 = vpack.c.b16 %v1513, %v1512
  %v1664 = vpack.c.b16 %v1515, %v1514
  %v1665 = vpack.c.b16 %v1517, %v1516
  %v1666 = vpack.c.b16 %v1519, %v1518
  %v1667 = vpack.c.b16 %v1521, %v1520
  %v1668 = vpack.c.b16 %v1523, %v1522
  %v1669 = vpack.c.b16 %v1525, %v1524
  %v1670 = vpack.c.b16 %v1527, %v1526
  %v1671 = vpack.c.b16 %v1529, %v1528
  %v1672 = vpack.c.b16 %v1531, %v1530
  %v1673 = vpack.c.b16 %v1533, %v1532
  %v1674 = vpack.c.b16 %v1535, %v1534
  %v1675 = vpack.c.b16 %v1537, %v1536
  %v1676 = vpack.c.b16 %v1539, %v1538
  %v1677 = vpack.c.b16 %v1541, %v1540
  %v1678 = vpack.c.b16 %v1543, %v1542
  %v1679 = vpack.c.b16 %v1545, %v1544
  %v1680 = vpack.c.b16 %v1547, %v1546
  %v1681 = vpack.c.b16 %v1549, %v1548
  %v1682 = vpack.c.b16 %v1551, %v1550
  %v1683 = vpack.c.b16 %v1553, %v1552
  %v1684 = vpack.c.b16 %v1555, %v1554
  %v1685 = vpack.c.b16 %v1557, %v1556
  %1814 = vmatprep.subr.bf16.mxu0 0
  %1815 = vmatpush1.bf16.msra.mxu0 %v1558
  %1816 = vmatprep.subr.bf16.mxu0 0
  %1817 = vmatpush1.bf16.msra.mxu0 %v1559
  %1818 = vmatprep.subr.bf16.mxu0 0
  %1819 = vmatpush1.bf16.msra.mxu0 %v1560
  %1820 = vmatprep.subr.bf16.mxu0 0
  %1821 = vmatpush1.bf16.msra.mxu0 %v1561
  %1822 = vmatprep.subr.bf16.mxu0 0
  %1823 = vmatpush1.bf16.msra.mxu0 %v1562
  %1824 = vmatprep.subr.bf16.mxu0 0
  %1825 = vmatpush1.bf16.msra.mxu0 %v1563
  %1826 = vmatprep.subr.bf16.mxu0 0
  %1827 = vmatpush1.bf16.msra.mxu0 %v1564
  %1828 = vmatprep.subr.bf16.mxu0 0
  %1829 = vmatpush1.bf16.msra.mxu0 %v1565
  %1830 = vmatprep.subr.bf16.mxu0 0
  %1831 = vmatpush1.bf16.msra.mxu0 %v1566
  %1832 = vmatprep.subr.bf16.mxu0 0
  %1833 = vmatpush1.bf16.msra.mxu0 %v1567
  %1834 = vmatprep.subr.bf16.mxu0 0
  %1835 = vmatpush1.bf16.msra.mxu0 %v1568
  %1836 = vmatprep.subr.bf16.mxu0 0
  %1837 = vmatpush1.bf16.msra.mxu0 %v1569
  %1838 = vmatprep.subr.bf16.mxu0 0
  %1839 = vmatpush1.bf16.msra.mxu0 %v1570
  %1840 = vmatprep.subr.bf16.mxu0 0
  %1841 = vmatpush1.bf16.msra.mxu0 %v1571
  %1842 = vmatprep.subr.bf16.mxu0 0
  %1843 = vmatpush1.bf16.msra.mxu0 %v1572
  %1844 = vmatprep.subr.bf16.mxu0 0
  %1845 = vmatpush1.bf16.msra.mxu0 %v1573
  %1846 = vmatprep.mubr.bf16.mxu0 %v791
  %1847 = vmatmul.mubr.bf16.gmra.mrb[0].mxu0 %v790
  %v1848 = vpop.f32.mrb[0].mxu0
  %v1849 = vadd.f32 %v404, %v1848
  %v1850 = vpop.f32.mrb[0].mxu0
  %v1851 = vpop.f32.mrb[0].mxu0
  %v1852 = vadd.f32 %v404, %v1851
  %v1853 = vpop.f32.mrb[0].mxu0
  %1854 = vmatprep.mubr.bf16.mxu0 %v807
  %1855 = vmatmul.mubr.bf16.gmra.mrb[0].mxu0 %v806
  %v1856 = vpop.f32.mrb[0].mxu0
  %v1857 = vadd.f32 %v404, %v1856
  %v1858 = vpop.f32.mrb[0].mxu0
  %v1859 = vpop.f32.mrb[0].mxu0
  %v1860 = vadd.f32 %v404, %v1859
  %v1861 = vpop.f32.mrb[0].mxu0
  %1862 = vmatprep.mubr.bf16.mxu0 %v823
  %1863 = vmatmul.mubr.bf16.gmra.mrb[0].mxu0 %v822
  %v1864 = vpop.f32.mrb[0].mxu0
  %v1865 = vadd.f32 %v404, %v1864
  %v1866 = vpop.f32.mrb[0].mxu0
  %v1867 = vpop.f32.mrb[0].mxu0
  %v1868 = vadd.f32 %v404, %v1867
  %v1869 = vpop.f32.mrb[0].mxu0
  %1870 = vmatprep.mubr.bf16.mxu0 %v839
  %1871 = vmatmul.mubr.bf16.gmra.mrb[0].mxu0 %v838
  %v1872 = vpop.f32.mrb[0].mxu0
  %v1873 = vadd.f32 %v404, %v1872
  %v1874 = vpop.f32.mrb[0].mxu0
  %v1875 = vpop.f32.mrb[0].mxu0
  %v1876 = vadd.f32 %v404, %v1875
  %v1877 = vpop.f32.mrb[0].mxu0
  %1878 = vmatprep.mubr.bf16.mxu0 %v855
  %1879 = vmatmul.mubr.bf16.gmra.mrb[0].mxu0 %v854
  %v1880 = vpop.f32.mrb[0].mxu0
  %v1881 = vadd.f32 %v404, %v1880
  %v1882 = vpop.f32.mrb[0].mxu0
  %v1883 = vpop.f32.mrb[0].mxu0
  %v1884 = vadd.f32 %v404, %v1883
  %v1885 = vpop.f32.mrb[0].mxu0
  %1886 = vmatprep.mubr.bf16.mxu0 %v871
  %1887 = vmatmul.mubr.bf16.gmra.mrb[0].mxu0 %v870
  %v1888 = vpop.f32.mrb[0].mxu0
  %v1889 = vadd.f32 %v404, %v1888
  %v1890 = vpop.f32.mrb[0].mxu0
  %v1891 = vpop.f32.mrb[0].mxu0
  %v1892 = vadd.f32 %v404, %v1891
  %v1893 = vpop.f32.mrb[0].mxu0
  %1894 = vmatprep.mubr.bf16.mxu0 %v887
  %1895 = vmatmul.mubr.bf16.gmra.mrb[0].mxu0 %v886
  %v1896 = vpop.f32.mrb[0].mxu0
  %v1897 = vadd.f32 %v404, %v1896
  %v1898 = vpop.f32.mrb[0].mxu0
  %v1899 = vpop.f32.mrb[0].mxu0
  %v1900 = vadd.f32 %v404, %v1899
  %v1901 = vpop.f32.mrb[0].mxu0
  %1902 = vmatprep.mubr.bf16.mxu0 %v903
  %1903 = vmatmul.mubr.bf16.gmra.mrb[0].mxu0 %v902
  %v1904 = vpop.f32.mrb[0].mxu0
  %v1905 = vadd.f32 %v404, %v1904
  %v1906 = vpop.f32.mrb[0].mxu0
  %v1907 = vpop.f32.mrb[0].mxu0
  %v1908 = vadd.f32 %v404, %v1907
  %v1909 = vpop.f32.mrb[0].mxu0
  %1910 = vdwg.mxu0
  %1911 = vmatprep.subr.bf16.mxu0 0
  %1912 = vmatpush1.bf16.msra.mxu0 %v1574
  %1913 = vmatprep.subr.bf16.mxu0 0
  %1914 = vmatpush1.bf16.msra.mxu0 %v1575
  %1915 = vmatprep.subr.bf16.mxu0 0
  %1916 = vmatpush1.bf16.msra.mxu0 %v1576
  %1917 = vmatprep.subr.bf16.mxu0 0
  %1918 = vmatpush1.bf16.msra.mxu0 %v1577
  %1919 = vmatprep.subr.bf16.mxu0 0
  %1920 = vmatpush1.bf16.msra.mxu0 %v1578
  %1921 = vmatprep.subr.bf16.mxu0 0
  %1922 = vmatpush1.bf16.msra.mxu0 %v1579
  %1923 = vmatprep.subr.bf16.mxu0 0
  %1924 = vmatpush1.bf16.msra.mxu0 %v1580
  %1925 = vmatprep.subr.bf16.mxu0 0
  %1926 = vmatpush1.bf16.msra.mxu0 %v1581
  %1927 = vmatprep.subr.bf16.mxu0 0
  %1928 = vmatpush1.bf16.msra.mxu0 %v1582
  %1929 = vmatprep.subr.bf16.mxu0 0
  %1930 = vmatpush1.bf16.msra.mxu0 %v1583
  %1931 = vmatprep.subr.bf16.mxu0 0
  %1932 = vmatpush1.bf16.msra.mxu0 %v1584
  %1933 = vmatprep.subr.bf16.mxu0 0
  %1934 = vmatpush1.bf16.msra.mxu0 %v1585
  %1935 = vmatprep.subr.bf16.mxu0 0
  %1936 = vmatpush1.bf16.msra.mxu0 %v1586
  %1937 = vmatprep.subr.bf16.mxu0 0
  %1938 = vmatpush1.bf16.msra.mxu0 %v1587
  %1939 = vmatprep.subr.bf16.mxu0 0
  %1940 = vmatpush1.bf16.msra.mxu0 %v1588
  %1941 = vmatprep.subr.bf16.mxu0 0
  %1942 = vmatpush1.bf16.msra.mxu0 %v1589
  %1943 = vmatprep.mubr.bf16.mxu0 %v793
  %1944 = vmatmul.mubr.bf16.gmra.mrb[0].mxu0 %v792
  %v1945 = vpop.f32.mrb[0].mxu0
  %v1946 = vadd.f32 %v1849, %v1945
  %v1947 = vpop.f32.mrb[0].mxu0
  %v1948 = vpop.f32.mrb[0].mxu0
  %v1949 = vadd.f32 %v1852, %v1948
  %v1950 = vpop.f32.mrb[0].mxu0
  %1951 = vmatprep.mubr.bf16.mxu0 %v809
  %1952 = vmatmul.mubr.bf16.gmra.mrb[0].mxu0 %v808
  %v1953 = vpop.f32.mrb[0].mxu0
  %v1954 = vadd.f32 %v1857, %v1953
  %v1955 = vpop.f32.mrb[0].mxu0
  %v1956 = vpop.f32.mrb[0].mxu0
  %v1957 = vadd.f32 %v1860, %v1956
  %v1958 = vpop.f32.mrb[0].mxu0
  %1959 = vmatprep.mubr.bf16.mxu0 %v825
  %1960 = vmatmul.mubr.bf16.gmra.mrb[0].mxu0 %v824
  %v1961 = vpop.f32.mrb[0].mxu0
  %v1962 = vadd.f32 %v1865, %v1961
  %v1963 = vpop.f32.mrb[0].mxu0
  %v1964 = vpop.f32.mrb[0].mxu0
  %v1965 = vadd.f32 %v1868, %v1964
  %v1966 = vpop.f32.mrb[0].mxu0
  %1967 = vmatprep.mubr.bf16.mxu0 %v841
  %1968 = vmatmul.mubr.bf16.gmra.mrb[0].mxu0 %v840
  %v1969 = vpop.f32.mrb[0].mxu0
  %v1970 = vadd.f32 %v1873, %v1969
  %v1971 = vpop.f32.mrb[0].mxu0
  %v1972 = vpop.f32.mrb[0].mxu0
  %v1973 = vadd.f32 %v1876, %v1972
  %v1974 = vpop.f32.mrb[0].mxu0
  %1975 = vmatprep.mubr.bf16.mxu0 %v857
  %1976 = vmatmul.mubr.bf16.gmra.mrb[0].mxu0 %v856
  %v1977 = vpop.f32.mrb[0].mxu0
  %v1978 = vadd.f32 %v1881, %v1977
  %v1979 = vpop.f32.mrb[0].mxu0
  %v1980 = vpop.f32.mrb[0].mxu0
  %v1981 = vadd.f32 %v1884, %v1980
  %v1982 = vpop.f32.mrb[0].mxu0
  %1983 = vmatprep.mubr.bf16.mxu0 %v873
  %1984 = vmatmul.mubr.bf16.gmra.mrb[0].mxu0 %v872
  %v1985 = vpop.f32.mrb[0].mxu0
  %v1986 = vadd.f32 %v1889, %v1985
  %v1987 = vpop.f32.mrb[0].mxu0
  %v1988 = vpop.f32.mrb[0].mxu0
  %v1989 = vadd.f32 %v1892, %v1988
  %v1990 = vpop.f32.mrb[0].mxu0
  %1991 = vmatprep.mubr.bf16.mxu0 %v889
  %1992 = vmatmul.mubr.bf16.gmra.mrb[0].mxu0 %v888
  %v1993 = vpop.f32.mrb[0].mxu0
  %v1994 = vadd.f32 %v1897, %v1993
  %v1995 = vpop.f32.mrb[0].mxu0
  %v1996 = vpop.f32.mrb[0].mxu0
  %v1997 = vadd.f32 %v1900, %v1996
  %v1998 = vpop.f32.mrb[0].mxu0
  %1999 = vmatprep.mubr.bf16.mxu0 %v905
  %2000 = vmatmul.mubr.bf16.gmra.mrb[0].mxu0 %v904
  %v2001 = vpop.f32.mrb[0].mxu0
  %v2002 = vadd.f32 %v1905, %v2001
  %v2003 = vpop.f32.mrb[0].mxu0
  %v2004 = vpop.f32.mrb[0].mxu0
  %v2005 = vadd.f32 %v1908, %v2004
  %v2006 = vpop.f32.mrb[0].mxu0
  %2007 = vdwg.mxu0
  %2008 = vmatprep.subr.bf16.mxu0 0
  %2009 = vmatpush1.bf16.msra.mxu0 %v1590
  %2010 = vmatprep.subr.bf16.mxu0 0
  %2011 = vmatpush1.bf16.msra.mxu0 %v1591
  %2012 = vmatprep.subr.bf16.mxu0 0
  %2013 = vmatpush1.bf16.msra.mxu0 %v1592
  %2014 = vmatprep.subr.bf16.mxu0 0
  %2015 = vmatpush1.bf16.msra.mxu0 %v1593
  %2016 = vmatprep.subr.bf16.mxu0 0
  %2017 = vmatpush1.bf16.msra.mxu0 %v1594
  %2018 = vmatprep.subr.bf16.mxu0 0
  %2019 = vmatpush1.bf16.msra.mxu0 %v1595
  %2020 = vmatprep.subr.bf16.mxu0 0
  %2021 = vmatpush1.bf16.msra.mxu0 %v1596
  %2022 = vmatprep.subr.bf16.mxu0 0
  %2023 = vmatpush1.bf16.msra.mxu0 %v1597
  %2024 = vmatprep.subr.bf16.mxu0 0
  %2025 = vmatpush1.bf16.msra.mxu0 %v1598
  %2026 = vmatprep.subr.bf16.mxu0 0
  %2027 = vmatpush1.bf16.msra.mxu0 %v1599
  %2028 = vmatprep.subr.bf16.mxu0 0
  %2029 = vmatpush1.bf16.msra.mxu0 %v1600
  %2030 = vmatprep.subr.bf16.mxu0 0
  %2031 = vmatpush1.bf16.msra.mxu0 %v1601
  %2032 = vmatprep.subr.bf16.mxu0 0
  %2033 = vmatpush1.bf16.msra.mxu0 %v1602
  %2034 = vmatprep.subr.bf16.mxu0 0
  %2035 = vmatpush1.bf16.msra.mxu0 %v1603
  %2036 = vmatprep.subr.bf16.mxu0 0
  %2037 = vmatpush1.bf16.msra.mxu0 %v1604
  %2038 = vmatprep.subr.bf16.mxu0 0
  %2039 = vmatpush1.bf16.msra.mxu0 %v1605
  %2040 = vmatprep.mubr.bf16.mxu0 %v795
  %2041 = vmatmul.mubr.bf16.gmra.mrb[0].mxu0 %v794
  %v2042 = vpop.f32.mrb[0].mxu0
  %v2043 = vadd.f32 %v1946, %v2042
  %v2044 = vpop.f32.mrb[0].mxu0
  %v2045 = vpop.f32.mrb[0].mxu0
  %v2046 = vadd.f32 %v1949, %v2045
  %v2047 = vpop.f32.mrb[0].mxu0
  %2048 = vmatprep.mubr.bf16.mxu0 %v811
  %2049 = vmatmul.mubr.bf16.gmra.mrb[0].mxu0 %v810
  %v2050 = vpop.f32.mrb[0].mxu0
  %v2051 = vadd.f32 %v1954, %v2050
  %v2052 = vpop.f32.mrb[0].mxu0
  %v2053 = vpop.f32.mrb[0].mxu0
  %v2054 = vadd.f32 %v1957, %v2053
  %v2055 = vpop.f32.mrb[0].mxu0
  %2056 = vmatprep.mubr.bf16.mxu0 %v827
  %2057 = vmatmul.mubr.bf16.gmra.mrb[0].mxu0 %v826
  %v2058 = vpop.f32.mrb[0].mxu0
  %v2059 = vadd.f32 %v1962, %v2058
  %v2060 = vpop.f32.mrb[0].mxu0
  %v2061 = vpop.f32.mrb[0].mxu0
  %v2062 = vadd.f32 %v1965, %v2061
  %v2063 = vpop.f32.mrb[0].mxu0
  %2064 = vmatprep.mubr.bf16.mxu0 %v843
  %2065 = vmatmul.mubr.bf16.gmra.mrb[0].mxu0 %v842
  %v2066 = vpop.f32.mrb[0].mxu0
  %v2067 = vadd.f32 %v1970, %v2066
  %v2068 = vpop.f32.mrb[0].mxu0
  %v2069 = vpop.f32.mrb[0].mxu0
  %v2070 = vadd.f32 %v1973, %v2069
  %v2071 = vpop.f32.mrb[0].mxu0
  %2072 = vmatprep.mubr.bf16.mxu0 %v859
  %2073 = vmatmul.mubr.bf16.gmra.mrb[0].mxu0 %v858
  %v2074 = vpop.f32.mrb[0].mxu0
  %v2075 = vadd.f32 %v1978, %v2074
  %v2076 = vpop.f32.mrb[0].mxu0
  %v2077 = vpop.f32.mrb[0].mxu0
  %v2078 = vadd.f32 %v1981, %v2077
  %v2079 = vpop.f32.mrb[0].mxu0
  %2080 = vmatprep.mubr.bf16.mxu0 %v875
  %2081 = vmatmul.mubr.bf16.gmra.mrb[0].mxu0 %v874
  %v2082 = vpop.f32.mrb[0].mxu0
  %v2083 = vadd.f32 %v1986, %v2082
  %v2084 = vpop.f32.mrb[0].mxu0
  %v2085 = vpop.f32.mrb[0].mxu0
  %v2086 = vadd.f32 %v1989, %v2085
  %v2087 = vpop.f32.mrb[0].mxu0
  %2088 = vmatprep.mubr.bf16.mxu0 %v891
  %2089 = vmatmul.mubr.bf16.gmra.mrb[0].mxu0 %v890
  %v2090 = vpop.f32.mrb[0].mxu0
  %v2091 = vadd.f32 %v1994, %v2090
  %v2092 = vpop.f32.mrb[0].mxu0
  %v2093 = vpop.f32.mrb[0].mxu0
  %v2094 = vadd.f32 %v1997, %v2093
  %v2095 = vpop.f32.mrb[0].mxu0
  %2096 = vmatprep.mubr.bf16.mxu0 %v907
  %2097 = vmatmul.mubr.bf16.gmra.mrb[0].mxu0 %v906
  %v2098 = vpop.f32.mrb[0].mxu0
  %v2099 = vadd.f32 %v2002, %v2098
  %v2100 = vpop.f32.mrb[0].mxu0
  %v2101 = vpop.f32.mrb[0].mxu0
  %v2102 = vadd.f32 %v2005, %v2101
  %v2103 = vpop.f32.mrb[0].mxu0
  %2104 = vdwg.mxu0
  %2105 = vmatprep.subr.bf16.mxu0 0
  %2106 = vmatpush1.bf16.msra.mxu0 %v1606
  %2107 = vmatprep.subr.bf16.mxu0 0
  %2108 = vmatpush1.bf16.msra.mxu0 %v1607
  %2109 = vmatprep.subr.bf16.mxu0 0
  %2110 = vmatpush1.bf16.msra.mxu0 %v1608
  %2111 = vmatprep.subr.bf16.mxu0 0
  %2112 = vmatpush1.bf16.msra.mxu0 %v1609
  %2113 = vmatprep.subr.bf16.mxu0 0
  %2114 = vmatpush1.bf16.msra.mxu0 %v1610
  %2115 = vmatprep.subr.bf16.mxu0 0
  %2116 = vmatpush1.bf16.msra.mxu0 %v1611
  %2117 = vmatprep.subr.bf16.mxu0 0
  %2118 = vmatpush1.bf16.msra.mxu0 %v1612
  %2119 = vmatprep.subr.bf16.mxu0 0
  %2120 = vmatpush1.bf16.msra.mxu0 %v1613
  %2121 = vmatprep.subr.bf16.mxu0 0
  %2122 = vmatpush1.bf16.msra.mxu0 %v1614
  %2123 = vmatprep.subr.bf16.mxu0 0
  %2124 = vmatpush1.bf16.msra.mxu0 %v1615
  %2125 = vmatprep.subr.bf16.mxu0 0
  %2126 = vmatpush1.bf16.msra.mxu0 %v1616
  %2127 = vmatprep.subr.bf16.mxu0 0
  %2128 = vmatpush1.bf16.msra.mxu0 %v1617
  %2129 = vmatprep.subr.bf16.mxu0 0
  %2130 = vmatpush1.bf16.msra.mxu0 %v1618
  %2131 = vmatprep.subr.bf16.mxu0 0
  %2132 = vmatpush1.bf16.msra.mxu0 %v1619
  %2133 = vmatprep.subr.bf16.mxu0 0
  %2134 = vmatpush1.bf16.msra.mxu0 %v1620
  %2135 = vmatprep.subr.bf16.mxu0 0
  %2136 = vmatpush1.bf16.msra.mxu0 %v1621
  %2137 = vmatprep.mubr.bf16.mxu0 %v797
  %2138 = vmatmul.mubr.bf16.gmra.mrb[0].mxu0 %v796
  %v2139 = vpop.f32.mrb[0].mxu0
  %v2140 = vadd.f32 %v2043, %v2139
  %v2141 = vpop.f32.mrb[0].mxu0
  %v2142 = vpop.f32.mrb[0].mxu0
  %v2143 = vadd.f32 %v2046, %v2142
  %v2144 = vpop.f32.mrb[0].mxu0
  %2145 = vmatprep.mubr.bf16.mxu0 %v813
  %2146 = vmatmul.mubr.bf16.gmra.mrb[0].mxu0 %v812
  %v2147 = vpop.f32.mrb[0].mxu0
  %v2148 = vadd.f32 %v2051, %v2147
  %v2149 = vpop.f32.mrb[0].mxu0
  %v2150 = vpop.f32.mrb[0].mxu0
  %v2151 = vadd.f32 %v2054, %v2150
  %v2152 = vpop.f32.mrb[0].mxu0
  %2153 = vmatprep.mubr.bf16.mxu0 %v829
  %2154 = vmatmul.mubr.bf16.gmra.mrb[0].mxu0 %v828
  %v2155 = vpop.f32.mrb[0].mxu0
  %v2156 = vadd.f32 %v2059, %v2155
  %v2157 = vpop.f32.mrb[0].mxu0
  %v2158 = vpop.f32.mrb[0].mxu0
  %v2159 = vadd.f32 %v2062, %v2158
  %v2160 = vpop.f32.mrb[0].mxu0
  %2161 = vmatprep.mubr.bf16.mxu0 %v845
  %2162 = vmatmul.mubr.bf16.gmra.mrb[0].mxu0 %v844
  %v2163 = vpop.f32.mrb[0].mxu0
  %v2164 = vadd.f32 %v2067, %v2163
  %v2165 = vpop.f32.mrb[0].mxu0
  %v2166 = vpop.f32.mrb[0].mxu0
  %v2167 = vadd.f32 %v2070, %v2166
  %v2168 = vpop.f32.mrb[0].mxu0
  %2169 = vmatprep.mubr.bf16.mxu0 %v861
  %2170 = vmatmul.mubr.bf16.gmra.mrb[0].mxu0 %v860
  %v2171 = vpop.f32.mrb[0].mxu0
  %v2172 = vadd.f32 %v2075, %v2171
  %v2173 = vpop.f32.mrb[0].mxu0
  %v2174 = vpop.f32.mrb[0].mxu0
  %v2175 = vadd.f32 %v2078, %v2174
  %v2176 = vpop.f32.mrb[0].mxu0
  %2177 = vmatprep.mubr.bf16.mxu0 %v877
  %2178 = vmatmul.mubr.bf16.gmra.mrb[0].mxu0 %v876
  %v2179 = vpop.f32.mrb[0].mxu0
  %v2180 = vadd.f32 %v2083, %v2179
  %v2181 = vpop.f32.mrb[0].mxu0
  %v2182 = vpop.f32.mrb[0].mxu0
  %v2183 = vadd.f32 %v2086, %v2182
  %v2184 = vpop.f32.mrb[0].mxu0
  %2185 = vmatprep.mubr.bf16.mxu0 %v893
  %2186 = vmatmul.mubr.bf16.gmra.mrb[0].mxu0 %v892
  %v2187 = vpop.f32.mrb[0].mxu0
  %v2188 = vadd.f32 %v2091, %v2187
  %v2189 = vpop.f32.mrb[0].mxu0
  %v2190 = vpop.f32.mrb[0].mxu0
  %v2191 = vadd.f32 %v2094, %v2190
  %v2192 = vpop.f32.mrb[0].mxu0
  %2193 = vmatprep.mubr.bf16.mxu0 %v909
  %2194 = vmatmul.mubr.bf16.gmra.mrb[0].mxu0 %v908
  %v2195 = vpop.f32.mrb[0].mxu0
  %v2196 = vadd.f32 %v2099, %v2195
  %v2197 = vpop.f32.mrb[0].mxu0
  %v2198 = vpop.f32.mrb[0].mxu0
  %v2199 = vadd.f32 %v2102, %v2198
  %v2200 = vpop.f32.mrb[0].mxu0
  %2201 = vdwg.mxu0
  %2202 = vmatprep.subr.bf16.mxu0 0
  %2203 = vmatpush1.bf16.msra.mxu0 %v1622
  %2204 = vmatprep.subr.bf16.mxu0 0
  %2205 = vmatpush1.bf16.msra.mxu0 %v1623
  %2206 = vmatprep.subr.bf16.mxu0 0
  %2207 = vmatpush1.bf16.msra.mxu0 %v1624
  %2208 = vmatprep.subr.bf16.mxu0 0
  %2209 = vmatpush1.bf16.msra.mxu0 %v1625
  %2210 = vmatprep.subr.bf16.mxu0 0
  %2211 = vmatpush1.bf16.msra.mxu0 %v1626
  %2212 = vmatprep.subr.bf16.mxu0 0
  %2213 = vmatpush1.bf16.msra.mxu0 %v1627
  %2214 = vmatprep.subr.bf16.mxu0 0
  %2215 = vmatpush1.bf16.msra.mxu0 %v1628
  %2216 = vmatprep.subr.bf16.mxu0 0
  %2217 = vmatpush1.bf16.msra.mxu0 %v1629
  %2218 = vmatprep.subr.bf16.mxu0 0
  %2219 = vmatpush1.bf16.msra.mxu0 %v1630
  %2220 = vmatprep.subr.bf16.mxu0 0
  %2221 = vmatpush1.bf16.msra.mxu0 %v1631
  %2222 = vmatprep.subr.bf16.mxu0 0
  %2223 = vmatpush1.bf16.msra.mxu0 %v1632
  %2224 = vmatprep.subr.bf16.mxu0 0
  %2225 = vmatpush1.bf16.msra.mxu0 %v1633
  %2226 = vmatprep.subr.bf16.mxu0 0
  %2227 = vmatpush1.bf16.msra.mxu0 %v1634
  %2228 = vmatprep.subr.bf16.mxu0 0
  %2229 = vmatpush1.bf16.msra.mxu0 %v1635
  %2230 = vmatprep.subr.bf16.mxu0 0
  %2231 = vmatpush1.bf16.msra.mxu0 %v1636
  %2232 = vmatprep.subr.bf16.mxu0 0
  %2233 = vmatpush1.bf16.msra.mxu0 %v1637
  %2234 = vmatprep.mubr.bf16.mxu0 %v799
  %2235 = vmatmul.mubr.bf16.gmra.mrb[0].mxu0 %v798
  %v2236 = vpop.f32.mrb[0].mxu0
  %v2237 = vadd.f32 %v2140, %v2236
  %v2238 = vpop.f32.mrb[0].mxu0
  %v2239 = vpop.f32.mrb[0].mxu0
  %v2240 = vadd.f32 %v2143, %v2239
  %v2241 = vpop.f32.mrb[0].mxu0
  %2242 = vmatprep.mubr.bf16.mxu0 %v815
  %2243 = vmatmul.mubr.bf16.gmra.mrb[0].mxu0 %v814
  %v2244 = vpop.f32.mrb[0].mxu0
  %v2245 = vadd.f32 %v2148, %v2244
  %v2246 = vpop.f32.mrb[0].mxu0
  %v2247 = vpop.f32.mrb[0].mxu0
  %v2248 = vadd.f32 %v2151, %v2247
  %v2249 = vpop.f32.mrb[0].mxu0
  %2250 = vmatprep.mubr.bf16.mxu0 %v831
  %2251 = vmatmul.mubr.bf16.gmra.mrb[0].mxu0 %v830
  %v2252 = vpop.f32.mrb[0].mxu0
  %v2253 = vadd.f32 %v2156, %v2252
  %v2254 = vpop.f32.mrb[0].mxu0
  %v2255 = vpop.f32.mrb[0].mxu0
  %v2256 = vadd.f32 %v2159, %v2255
  %v2257 = vpop.f32.mrb[0].mxu0
  %2258 = vmatprep.mubr.bf16.mxu0 %v847
  %2259 = vmatmul.mubr.bf16.gmra.mrb[0].mxu0 %v846
  %v2260 = vpop.f32.mrb[0].mxu0
  %v2261 = vadd.f32 %v2164, %v2260
  %v2262 = vpop.f32.mrb[0].mxu0
  %v2263 = vpop.f32.mrb[0].mxu0
  %v2264 = vadd.f32 %v2167, %v2263
  %v2265 = vpop.f32.mrb[0].mxu0
  %2266 = vmatprep.mubr.bf16.mxu0 %v863
  %2267 = vmatmul.mubr.bf16.gmra.mrb[0].mxu0 %v862
  %v2268 = vpop.f32.mrb[0].mxu0
  %v2269 = vadd.f32 %v2172, %v2268
  %v2270 = vpop.f32.mrb[0].mxu0
  %v2271 = vpop.f32.mrb[0].mxu0
  %v2272 = vadd.f32 %v2175, %v2271
  %v2273 = vpop.f32.mrb[0].mxu0
  %2274 = vmatprep.mubr.bf16.mxu0 %v879
  %2275 = vmatmul.mubr.bf16.gmra.mrb[0].mxu0 %v878
  %v2276 = vpop.f32.mrb[0].mxu0
  %v2277 = vadd.f32 %v2180, %v2276
  %v2278 = vpop.f32.mrb[0].mxu0
  %v2279 = vpop.f32.mrb[0].mxu0
  %v2280 = vadd.f32 %v2183, %v2279
  %v2281 = vpop.f32.mrb[0].mxu0
  %2282 = vmatprep.mubr.bf16.mxu0 %v895
  %2283 = vmatmul.mubr.bf16.gmra.mrb[0].mxu0 %v894
  %v2284 = vpop.f32.mrb[0].mxu0
  %v2285 = vadd.f32 %v2188, %v2284
  %v2286 = vpop.f32.mrb[0].mxu0
  %v2287 = vpop.f32.mrb[0].mxu0
  %v2288 = vadd.f32 %v2191, %v2287
  %v2289 = vpop.f32.mrb[0].mxu0
  %2290 = vmatprep.mubr.bf16.mxu0 %v911
  %2291 = vmatmul.mubr.bf16.gmra.mrb[0].mxu0 %v910
  %v2292 = vpop.f32.mrb[0].mxu0
  %v2293 = vadd.f32 %v2196, %v2292
  %v2294 = vpop.f32.mrb[0].mxu0
  %v2295 = vpop.f32.mrb[0].mxu0
  %v2296 = vadd.f32 %v2199, %v2295
  %v2297 = vpop.f32.mrb[0].mxu0
  %2298 = vdwg.mxu0
  %2299 = vmatprep.subr.bf16.mxu0 0
  %2300 = vmatpush1.bf16.msra.mxu0 %v1638
  %2301 = vmatprep.subr.bf16.mxu0 0
  %2302 = vmatpush1.bf16.msra.mxu0 %v1639
  %2303 = vmatprep.subr.bf16.mxu0 0
  %2304 = vmatpush1.bf16.msra.mxu0 %v1640
  %2305 = vmatprep.subr.bf16.mxu0 0
  %2306 = vmatpush1.bf16.msra.mxu0 %v1641
  %2307 = vmatprep.subr.bf16.mxu0 0
  %2308 = vmatpush1.bf16.msra.mxu0 %v1642
  %2309 = vmatprep.subr.bf16.mxu0 0
  %2310 = vmatpush1.bf16.msra.mxu0 %v1643
  %2311 = vmatprep.subr.bf16.mxu0 0
  %2312 = vmatpush1.bf16.msra.mxu0 %v1644
  %2313 = vmatprep.subr.bf16.mxu0 0
  %2314 = vmatpush1.bf16.msra.mxu0 %v1645
  %2315 = vmatprep.subr.bf16.mxu0 0
  %2316 = vmatpush1.bf16.msra.mxu0 %v1646
  %2317 = vmatprep.subr.bf16.mxu0 0
  %2318 = vmatpush1.bf16.msra.mxu0 %v1647
  %2319 = vmatprep.subr.bf16.mxu0 0
  %2320 = vmatpush1.bf16.msra.mxu0 %v1648
  %2321 = vmatprep.subr.bf16.mxu0 0
  %2322 = vmatpush1.bf16.msra.mxu0 %v1649
  %2323 = vmatprep.subr.bf16.mxu0 0
  %2324 = vmatpush1.bf16.msra.mxu0 %v1650
  %2325 = vmatprep.subr.bf16.mxu0 0
  %2326 = vmatpush1.bf16.msra.mxu0 %v1651
  %2327 = vmatprep.subr.bf16.mxu0 0
  %2328 = vmatpush1.bf16.msra.mxu0 %v1652
  %2329 = vmatprep.subr.bf16.mxu0 0
  %2330 = vmatpush1.bf16.msra.mxu0 %v1653
  %2331 = vmatprep.mubr.bf16.mxu0 %v801
  %2332 = vmatmul.mubr.bf16.gmra.mrb[0].mxu0 %v800
  %v2333 = vpop.f32.mrb[0].mxu0
  %v2334 = vadd.f32 %v2237, %v2333
  %v2335 = vpop.f32.mrb[0].mxu0
  %v2336 = vpop.f32.mrb[0].mxu0
  %v2337 = vadd.f32 %v2240, %v2336
  %v2338 = vpop.f32.mrb[0].mxu0
  %2339 = vmatprep.mubr.bf16.mxu0 %v817
  %2340 = vmatmul.mubr.bf16.gmra.mrb[0].mxu0 %v816
  %v2341 = vpop.f32.mrb[0].mxu0
  %v2342 = vadd.f32 %v2245, %v2341
  %v2343 = vpop.f32.mrb[0].mxu0
  %v2344 = vpop.f32.mrb[0].mxu0
  %v2345 = vadd.f32 %v2248, %v2344
  %v2346 = vpop.f32.mrb[0].mxu0
  %2347 = vmatprep.mubr.bf16.mxu0 %v833
  %2348 = vmatmul.mubr.bf16.gmra.mrb[0].mxu0 %v832
  %v2349 = vpop.f32.mrb[0].mxu0
  %v2350 = vadd.f32 %v2253, %v2349
  %v2351 = vpop.f32.mrb[0].mxu0
  %v2352 = vpop.f32.mrb[0].mxu0
  %v2353 = vadd.f32 %v2256, %v2352
  %v2354 = vpop.f32.mrb[0].mxu0
  %2355 = vmatprep.mubr.bf16.mxu0 %v849
  %2356 = vmatmul.mubr.bf16.gmra.mrb[0].mxu0 %v848
  %v2357 = vpop.f32.mrb[0].mxu0
  %v2358 = vadd.f32 %v2261, %v2357
  %v2359 = vpop.f32.mrb[0].mxu0
  %v2360 = vpop.f32.mrb[0].mxu0
  %v2361 = vadd.f32 %v2264, %v2360
  %v2362 = vpop.f32.mrb[0].mxu0
  %2363 = vmatprep.mubr.bf16.mxu0 %v865
  %2364 = vmatmul.mubr.bf16.gmra.mrb[0].mxu0 %v864
  %v2365 = vpop.f32.mrb[0].mxu0
  %v2366 = vadd.f32 %v2269, %v2365
  %v2367 = vpop.f32.mrb[0].mxu0
  %v2368 = vpop.f32.mrb[0].mxu0
  %v2369 = vadd.f32 %v2272, %v2368
  %v2370 = vpop.f32.mrb[0].mxu0
  %2371 = vmatprep.mubr.bf16.mxu0 %v881
  %2372 = vmatmul.mubr.bf16.gmra.mrb[0].mxu0 %v880
  %v2373 = vpop.f32.mrb[0].mxu0
  %v2374 = vadd.f32 %v2277, %v2373
  %v2375 = vpop.f32.mrb[0].mxu0
  %v2376 = vpop.f32.mrb[0].mxu0
  %v2377 = vadd.f32 %v2280, %v2376
  %v2378 = vpop.f32.mrb[0].mxu0
  %2379 = vmatprep.mubr.bf16.mxu0 %v897
  %2380 = vmatmul.mubr.bf16.gmra.mrb[0].mxu0 %v896
  %v2381 = vpop.f32.mrb[0].mxu0
  %v2382 = vadd.f32 %v2285, %v2381
  %v2383 = vpop.f32.mrb[0].mxu0
  %v2384 = vpop.f32.mrb[0].mxu0
  %v2385 = vadd.f32 %v2288, %v2384
  %v2386 = vpop.f32.mrb[0].mxu0
  %2387 = vmatprep.mubr.bf16.mxu0 %v913
  %2388 = vmatmul.mubr.bf16.gmra.mrb[0].mxu0 %v912
  %v2389 = vpop.f32.mrb[0].mxu0
  %v2390 = vadd.f32 %v2293, %v2389
  %v2391 = vpop.f32.mrb[0].mxu0
  %v2392 = vpop.f32.mrb[0].mxu0
  %v2393 = vadd.f32 %v2296, %v2392
  %v2394 = vpop.f32.mrb[0].mxu0
  %2395 = vdwg.mxu0
  %2396 = vmatprep.subr.bf16.mxu0 0
  %2397 = vmatpush1.bf16.msra.mxu0 %v1654
  %2398 = vmatprep.subr.bf16.mxu0 0
  %2399 = vmatpush1.bf16.msra.mxu0 %v1655
  %2400 = vmatprep.subr.bf16.mxu0 0
  %2401 = vmatpush1.bf16.msra.mxu0 %v1656
  %2402 = vmatprep.subr.bf16.mxu0 0
  %2403 = vmatpush1.bf16.msra.mxu0 %v1657
  %2404 = vmatprep.subr.bf16.mxu0 0
  %2405 = vmatpush1.bf16.msra.mxu0 %v1658
  %2406 = vmatprep.subr.bf16.mxu0 0
  %2407 = vmatpush1.bf16.msra.mxu0 %v1659
  %2408 = vmatprep.subr.bf16.mxu0 0
  %2409 = vmatpush1.bf16.msra.mxu0 %v1660
  %2410 = vmatprep.subr.bf16.mxu0 0
  %2411 = vmatpush1.bf16.msra.mxu0 %v1661
  %2412 = vmatprep.subr.bf16.mxu0 0
  %2413 = vmatpush1.bf16.msra.mxu0 %v1662
  %2414 = vmatprep.subr.bf16.mxu0 0
  %2415 = vmatpush1.bf16.msra.mxu0 %v1663
  %2416 = vmatprep.subr.bf16.mxu0 0
  %2417 = vmatpush1.bf16.msra.mxu0 %v1664
  %2418 = vmatprep.subr.bf16.mxu0 0
  %2419 = vmatpush1.bf16.msra.mxu0 %v1665
  %2420 = vmatprep.subr.bf16.mxu0 0
  %2421 = vmatpush1.bf16.msra.mxu0 %v1666
  %2422 = vmatprep.subr.bf16.mxu0 0
  %2423 = vmatpush1.bf16.msra.mxu0 %v1667
  %2424 = vmatprep.subr.bf16.mxu0 0
  %2425 = vmatpush1.bf16.msra.mxu0 %v1668
  %2426 = vmatprep.subr.bf16.mxu0 0
  %2427 = vmatpush1.bf16.msra.mxu0 %v1669
  %2428 = vmatprep.mubr.bf16.mxu0 %v803
  %2429 = vmatmul.mubr.bf16.gmra.mrb[0].mxu0 %v802
  %v2430 = vpop.f32.mrb[0].mxu0
  %v2431 = vadd.f32 %v2334, %v2430
  %v2432 = vpop.f32.mrb[0].mxu0
  %v2433 = vpop.f32.mrb[0].mxu0
  %v2434 = vadd.f32 %v2337, %v2433
  %v2435 = vpop.f32.mrb[0].mxu0
  %2436 = vmatprep.mubr.bf16.mxu0 %v819
  %2437 = vmatmul.mubr.bf16.gmra.mrb[0].mxu0 %v818
  %v2438 = vpop.f32.mrb[0].mxu0
  %v2439 = vadd.f32 %v2342, %v2438
  %v2440 = vpop.f32.mrb[0].mxu0
  %v2441 = vpop.f32.mrb[0].mxu0
  %v2442 = vadd.f32 %v2345, %v2441
  %v2443 = vpop.f32.mrb[0].mxu0
  %2444 = vmatprep.mubr.bf16.mxu0 %v835
  %2445 = vmatmul.mubr.bf16.gmra.mrb[0].mxu0 %v834
  %v2446 = vpop.f32.mrb[0].mxu0
  %v2447 = vadd.f32 %v2350, %v2446
  %v2448 = vpop.f32.mrb[0].mxu0
  %v2449 = vpop.f32.mrb[0].mxu0
  %v2450 = vadd.f32 %v2353, %v2449
  %v2451 = vpop.f32.mrb[0].mxu0
  %2452 = vmatprep.mubr.bf16.mxu0 %v851
  %2453 = vmatmul.mubr.bf16.gmra.mrb[0].mxu0 %v850
  %v2454 = vpop.f32.mrb[0].mxu0
  %v2455 = vadd.f32 %v2358, %v2454
  %v2456 = vpop.f32.mrb[0].mxu0
  %v2457 = vpop.f32.mrb[0].mxu0
  %v2458 = vadd.f32 %v2361, %v2457
  %v2459 = vpop.f32.mrb[0].mxu0
  %2460 = vmatprep.mubr.bf16.mxu0 %v867
  %2461 = vmatmul.mubr.bf16.gmra.mrb[0].mxu0 %v866
  %v2462 = vpop.f32.mrb[0].mxu0
  %v2463 = vadd.f32 %v2366, %v2462
  %v2464 = vpop.f32.mrb[0].mxu0
  %v2465 = vpop.f32.mrb[0].mxu0
  %v2466 = vadd.f32 %v2369, %v2465
  %v2467 = vpop.f32.mrb[0].mxu0
  %2468 = vmatprep.mubr.bf16.mxu0 %v883
  %2469 = vmatmul.mubr.bf16.gmra.mrb[0].mxu0 %v882
  %v2470 = vpop.f32.mrb[0].mxu0
  %v2471 = vadd.f32 %v2374, %v2470
  %v2472 = vpop.f32.mrb[0].mxu0
  %v2473 = vpop.f32.mrb[0].mxu0
  %v2474 = vadd.f32 %v2377, %v2473
  %v2475 = vpop.f32.mrb[0].mxu0
  %2476 = vmatprep.mubr.bf16.mxu0 %v899
  %2477 = vmatmul.mubr.bf16.gmra.mrb[0].mxu0 %v898
  %v2478 = vpop.f32.mrb[0].mxu0
  %v2479 = vadd.f32 %v2382, %v2478
  %v2480 = vpop.f32.mrb[0].mxu0
  %v2481 = vpop.f32.mrb[0].mxu0
  %v2482 = vadd.f32 %v2385, %v2481
  %v2483 = vpop.f32.mrb[0].mxu0
  %2484 = vmatprep.mubr.bf16.mxu0 %v915
  %2485 = vmatmul.mubr.bf16.gmra.mrb[0].mxu0 %v914
  %v2486 = vpop.f32.mrb[0].mxu0
  %v2487 = vadd.f32 %v2390, %v2486
  %v2488 = vpop.f32.mrb[0].mxu0
  %v2489 = vpop.f32.mrb[0].mxu0
  %v2490 = vadd.f32 %v2393, %v2489
  %v2491 = vpop.f32.mrb[0].mxu0
  %2492 = vdwg.mxu0
  %2493 = vmatprep.subr.bf16.mxu0 0
  %2494 = vmatpush1.bf16.msra.mxu0 %v1670
  %2495 = vmatprep.subr.bf16.mxu0 0
  %2496 = vmatpush1.bf16.msra.mxu0 %v1671
  %2497 = vmatprep.subr.bf16.mxu0 0
  %2498 = vmatpush1.bf16.msra.mxu0 %v1672
  %2499 = vmatprep.subr.bf16.mxu0 0
  %2500 = vmatpush1.bf16.msra.mxu0 %v1673
  %2501 = vmatprep.subr.bf16.mxu0 0
  %2502 = vmatpush1.bf16.msra.mxu0 %v1674
  %2503 = vmatprep.subr.bf16.mxu0 0
  %2504 = vmatpush1.bf16.msra.mxu0 %v1675
  %2505 = vmatprep.subr.bf16.mxu0 0
  %2506 = vmatpush1.bf16.msra.mxu0 %v1676
  %2507 = vmatprep.subr.bf16.mxu0 0
  %2508 = vmatpush1.bf16.msra.mxu0 %v1677
  %2509 = vmatprep.subr.bf16.mxu0 0
  %2510 = vmatpush1.bf16.msra.mxu0 %v1678
  %2511 = vmatprep.subr.bf16.mxu0 0
  %2512 = vmatpush1.bf16.msra.mxu0 %v1679
  %2513 = vmatprep.subr.bf16.mxu0 0
  %2514 = vmatpush1.bf16.msra.mxu0 %v1680
  %2515 = vmatprep.subr.bf16.mxu0 0
  %2516 = vmatpush1.bf16.msra.mxu0 %v1681
  %2517 = vmatprep.subr.bf16.mxu0 0
  %2518 = vmatpush1.bf16.msra.mxu0 %v1682
  %2519 = vmatprep.subr.bf16.mxu0 0
  %2520 = vmatpush1.bf16.msra.mxu0 %v1683
  %2521 = vmatprep.subr.bf16.mxu0 0
  %2522 = vmatpush1.bf16.msra.mxu0 %v1684
  %2523 = vmatprep.subr.bf16.mxu0 0
  %2524 = vmatpush1.bf16.msra.mxu0 %v1685
  %2525 = vmatprep.mubr.bf16.mxu0 %v805
  %2526 = vmatmul.mubr.bf16.gmra.mrb[0].mxu0 %v804
  %v2527 = vpop.f32.mrb[0].mxu0
  %v2528 = vadd.f32 %v2431, %v2527
  %v2529 = vpop.f32.mrb[0].mxu0
  %v2530 = vpop.f32.mrb[0].mxu0
  %v2531 = vadd.f32 %v2434, %v2530
  %v2532 = vpop.f32.mrb[0].mxu0
  %2533 = vmatprep.mubr.bf16.mxu0 %v821
  %2534 = vmatmul.mubr.bf16.gmra.mrb[0].mxu0 %v820
  %v2535 = vpop.f32.mrb[0].mxu0
  %v2536 = vadd.f32 %v2439, %v2535
  %v2537 = vpop.f32.mrb[0].mxu0
  %v2538 = vpop.f32.mrb[0].mxu0
  %v2539 = vadd.f32 %v2442, %v2538
  %v2540 = vpop.f32.mrb[0].mxu0
  %2541 = vmatprep.mubr.bf16.mxu0 %v837
  %2542 = vmatmul.mubr.bf16.gmra.mrb[0].mxu0 %v836
  %v2543 = vpop.f32.mrb[0].mxu0
  %v2544 = vadd.f32 %v2447, %v2543
  %v2545 = vpop.f32.mrb[0].mxu0
  %v2546 = vpop.f32.mrb[0].mxu0
  %v2547 = vadd.f32 %v2450, %v2546
  %v2548 = vpop.f32.mrb[0].mxu0
  %2549 = vmatprep.mubr.bf16.mxu0 %v853
  %2550 = vmatmul.mubr.bf16.gmra.mrb[0].mxu0 %v852
  %v2551 = vpop.f32.mrb[0].mxu0
  %v2552 = vadd.f32 %v2455, %v2551
  %v2553 = vpop.f32.mrb[0].mxu0
  %v2554 = vpop.f32.mrb[0].mxu0
  %v2555 = vadd.f32 %v2458, %v2554
  %v2556 = vpop.f32.mrb[0].mxu0
  %2557 = vmatprep.mubr.bf16.mxu0 %v869
  %2558 = vmatmul.mubr.bf16.gmra.mrb[0].mxu0 %v868
  %v2559 = vpop.f32.mrb[0].mxu0
  %v2560 = vadd.f32 %v2463, %v2559
  %v2561 = vpop.f32.mrb[0].mxu0
  %v2562 = vpop.f32.mrb[0].mxu0
  %v2563 = vadd.f32 %v2466, %v2562
  %v2564 = vpop.f32.mrb[0].mxu0
  %2565 = vmatprep.mubr.bf16.mxu0 %v885
  %2566 = vmatmul.mubr.bf16.gmra.mrb[0].mxu0 %v884
  %v2567 = vpop.f32.mrb[0].mxu0
  %v2568 = vadd.f32 %v2471, %v2567
  %v2569 = vpop.f32.mrb[0].mxu0
  %v2570 = vpop.f32.mrb[0].mxu0
  %v2571 = vadd.f32 %v2474, %v2570
  %v2572 = vpop.f32.mrb[0].mxu0
  %2573 = vmatprep.mubr.bf16.mxu0 %v901
  %2574 = vmatmul.mubr.bf16.gmra.mrb[0].mxu0 %v900
  %v2575 = vpop.f32.mrb[0].mxu0
  %v2576 = vadd.f32 %v2479, %v2575
  %v2577 = vpop.f32.mrb[0].mxu0
  %v2578 = vpop.f32.mrb[0].mxu0
  %v2579 = vadd.f32 %v2482, %v2578
  %v2580 = vpop.f32.mrb[0].mxu0
  %2581 = vmatprep.mubr.bf16.mxu0 %v917
  %2582 = vmatmul.mubr.bf16.gmra.mrb[0].mxu0 %v916
  %v2583 = vpop.f32.mrb[0].mxu0
  %v2584 = vadd.f32 %v2487, %v2583
  %v2585 = vpop.f32.mrb[0].mxu0
  %v2586 = vpop.f32.mrb[0].mxu0
  %v2587 = vadd.f32 %v2490, %v2586
  %v2588 = vpop.f32.mrb[0].mxu0
  %2589 = vdwg.mxu0
  %vm2590 = vcmp.ge.f32.partialorder %v2528, 0.0
  %vm2591 = vcmp.ge.f32.partialorder %v2531, 0.0
  %vm2592 = vcmp.ge.f32.partialorder %v2536, 0.0
  %vm2593 = vcmp.ge.f32.partialorder %v2539, 0.0
  %vm2594 = vcmp.ge.f32.partialorder %v2544, 0.0
  %vm2595 = vcmp.ge.f32.partialorder %v2547, 0.0
  %vm2596 = vcmp.ge.f32.partialorder %v2552, 0.0
  %vm2597 = vcmp.ge.f32.partialorder %v2555, 0.0
  %vm2598 = vcmp.ge.f32.partialorder %v2560, 0.0
  %vm2599 = vcmp.ge.f32.partialorder %v2563, 0.0
  %vm2600 = vcmp.ge.f32.partialorder %v2568, 0.0
  %vm2601 = vcmp.ge.f32.partialorder %v2571, 0.0
  %vm2602 = vcmp.ge.f32.partialorder %v2576, 0.0
  %vm2603 = vcmp.ge.f32.partialorder %v2579, 0.0
  %vm2604 = vcmp.ge.f32.partialorder %v2584, 0.0
  %vm2605 = vcmp.ge.f32.partialorder %v2587, 0.0
  %v2606 = vmul.f32 %v2528, 0.2
  %v2607 = vmul.f32 %v2531, 0.2
  %v2608 = vmul.f32 %v2536, 0.2
  %v2609 = vmul.f32 %v2539, 0.2
  %v2610 = vmul.f32 %v2544, 0.2
  %v2611 = vmul.f32 %v2547, 0.2
  %v2612 = vmul.f32 %v2552, 0.2
  %v2613 = vmul.f32 %v2555, 0.2
  %v2614 = vmul.f32 %v2560, 0.2
  %v2615 = vmul.f32 %v2563, 0.2
  %v2616 = vmul.f32 %v2568, 0.2
  %v2617 = vmul.f32 %v2571, 0.2
  %v2618 = vmul.f32 %v2576, 0.2
  %v2619 = vmul.f32 %v2579, 0.2
  %v2620 = vmul.f32 %v2584, 0.2
  %v2621 = vmul.f32 %v2587, 0.2
  %v2622 = vsel %vm2590, %v2528, %v2606
  %v2623 = vsel %vm2591, %v2531, %v2607
  %v2624 = vsel %vm2592, %v2536, %v2608
  %v2625 = vsel %vm2593, %v2539, %v2609
  %v2626 = vsel %vm2594, %v2544, %v2610
  %v2627 = vsel %vm2595, %v2547, %v2611
  %v2628 = vsel %vm2596, %v2552, %v2612
  %v2629 = vsel %vm2597, %v2555, %v2613
  %v2630 = vsel %vm2598, %v2560, %v2614
  %v2631 = vsel %vm2599, %v2563, %v2615
  %v2632 = vsel %vm2600, %v2568, %v2616
  %v2633 = vsel %vm2601, %v2571, %v2617
  %v2634 = vsel %vm2602, %v2576, %v2618
  %v2635 = vsel %vm2603, %v2579, %v2619
  %v2636 = vsel %vm2604, %v2584, %v2620
  %v2637 = vsel %vm2605, %v2587, %v2621
  %v2638 = vpack.c.bf16 %v2623, %v2622
  %v2639 = vpack.c.bf16 %v2625, %v2624
  %v2640 = vpack.c.bf16 %v2627, %v2626
  %v2641 = vpack.c.bf16 %v2629, %v2628
  %v2642 = vpack.c.bf16 %v2631, %v2630
  %v2643 = vpack.c.bf16 %v2633, %v2632
  %v2644 = vpack.c.bf16 %v2635, %v2634
  %v2645 = vpack.c.bf16 %v2637, %v2636
  %v2654 = vunpack.c.l.b16 %v2638
  %v2655 = vunpack.c.h.b16 %v2638
  %v2656 = vunpack.c.l.b16 %v2639
  %v2657 = vunpack.c.h.b16 %v2639
  %v2658 = vunpack.c.l.b16 %v2640
  %v2659 = vunpack.c.h.b16 %v2640
  %v2660 = vunpack.c.l.b16 %v2641
  %v2661 = vunpack.c.h.b16 %v2641
  %v2662 = vunpack.c.l.b16 %v2642
  %v2663 = vunpack.c.h.b16 %v2642
  %v2664 = vunpack.c.l.b16 %v2643
  %v2665 = vunpack.c.h.b16 %v2643
  %v2666 = vunpack.c.l.b16 %v2644
  %v2667 = vunpack.c.h.b16 %v2644
  %v2668 = vunpack.c.l.b16 %v2645
  %v2669 = vunpack.c.h.b16 %v2645
  %v2670 = vpack.c.b16 %v2654, %v2654
  %v2671 = vpack.c.b16 %v2655, %v2655
  %v2672 = vpack.c.b16 %v2656, %v2656
  %v2673 = vpack.c.b16 %v2657, %v2657
  %v2674 = vpack.c.b16 %v2658, %v2658
  %v2675 = vpack.c.b16 %v2659, %v2659
  %v2676 = vpack.c.b16 %v2660, %v2660
  %v2677 = vpack.c.b16 %v2661, %v2661
  %v2678 = vpack.c.b16 %v2662, %v2662
  %v2679 = vpack.c.b16 %v2663, %v2663
  %v2680 = vpack.c.b16 %v2664, %v2664
  %v2681 = vpack.c.b16 %v2665, %v2665
  %v2682 = vpack.c.b16 %v2666, %v2666
  %v2683 = vpack.c.b16 %v2667, %v2667
  %v2684 = vpack.c.b16 %v2668, %v2668
  %v2685 = vpack.c.b16 %v2669, %v2669
  %2702 = vst [vmem:[%s3] sm:$0xf] %v2670
  %2703 = vst [vmem:[%s3 + $0x4] sm:$0xf] %v2671
  %2704 = vst [vmem:[%s3 + $0x8] sm:$0xf] %v2672
  %2705 = vst [vmem:[%s3 + $0xc] sm:$0xf] %v2673
  %2706 = vst [vmem:[%s3 + $0x10] sm:$0xf] %v2674
  %2707 = vst [vmem:[%s3 + $0x14] sm:$0xf] %v2675
  %2708 = vst [vmem:[%s3 + $0x18] sm:$0xf] %v2676
  %2709 = vst [vmem:[%s3 + $0x1c] sm:$0xf] %v2677
  %2710 = vst [vmem:[%s3 + $0x20] sm:$0xf] %v2678
  %2711 = vst [vmem:[%s3 + $0x24] sm:$0xf] %v2679
  %2712 = vst [vmem:[%s3 + $0x28] sm:$0xf] %v2680
  %2713 = vst [vmem:[%s3 + $0x2c] sm:$0xf] %v2681
  %2714 = vst [vmem:[%s3 + $0x30] sm:$0xf] %v2682
  %2715 = vst [vmem:[%s3 + $0x34] sm:$0xf] %v2683
  %2716 = vst [vmem:[%s3 + $0x38] sm:$0xf] %v2684
  %2717 = vst [vmem:[%s3 + $0x3c] sm:$0xf] %v2685
  // Predicated region
  $region14: #{dual_discriminator_forward.6} parent=0 // pred_check
    _
  $region15: #{dual_discriminator_forward.6} parent=0 // pred_check_branch
    %2719 = sbr.rel (0) target = $region17
  $region16: #{dual_discriminator_forward.6} parent=0 // pred_region
    _
  $region17: #{dual_discriminator_forward.6} parent=0 // pred_fallthru
    _
  // Predicated region
  $region18: #{dual_discriminator_forward.6} parent=0 // pred_check
    _
  $region19: #{dual_discriminator_forward.6} parent=0 // pred_check_branch
    %2721 = sbr.rel (0) target = $region21
  $region20: #{dual_discriminator_forward.6} parent=0 // pred_region
    _
  $region21: #{dual_discriminator_forward.6} parent=0 // pred_fallthru
    _

// kernel: dual_discriminator_forward.7
$region0: #{dual_discriminator_forward.7}
  #allocation0 [shape = 'u32[]', space=smem, size = 0x4, offset = 0x4, fixed_abs, tag = 'smem constant byte address 0x4 - core index']
  #allocation1 [shape = 'u32[144,128]{1,0:T(1,128)}', space=vmem, size = 0x12000, scoped, tag = 'internal scratch']
  %s0 = inlined_call_operand.vmem [shape: bf16[32,2048], index: 0, kind: input, shape index: {}]
  %s1 = inlined_call_operand.vmem [shape: bf16[2048,128], index: 1, kind: input, shape index: {}]
  %s2 = inlined_call_operand.vmem [shape: f32[1,128], index: 2, kind: input, shape index: {}]
  %s3 = inlined_call_operand.vmem [shape: bf16[32,128], index: 3, kind: output, shape index: {}]
  %s4 = sld [smem:[#allocation0]]
  $region22: #{dual_discriminator_forward.7} parent=0
    _
  %s6 = ssub.s32 1, %s4
  %s7 = scalar_select 0, %s6, %s4
  // Predicated region
  $region2: #{dual_discriminator_forward.7} parent=0 // pred_check
    _
  $region3: #{dual_discriminator_forward.7} parent=0 // pred_check_branch
    %9 = sbr.rel (0) target = $region5
  $region4: #{dual_discriminator_forward.7} parent=0 // pred_region
    _
  $region5: #{dual_discriminator_forward.7} parent=0 // pred_fallthru
    _
  // Predicated region
  $region6: #{dual_discriminator_forward.7} parent=0 // pred_check
    _
  $region7: #{dual_discriminator_forward.7} parent=0 // pred_check_branch
    %11 = sbr.rel (0) target = $region9
  $region8: #{dual_discriminator_forward.7} parent=0 // pred_region
    _
  $region9: #{dual_discriminator_forward.7} parent=0 // pred_fallthru
    _
  // Predicated region
  $region10: #{dual_discriminator_forward.7} parent=0 // pred_check
    _
  $region11: #{dual_discriminator_forward.7} parent=0 // pred_check_branch
    %13 = sbr.rel (0) target = $region13
  $region12: #{dual_discriminator_forward.7} parent=0 // pred_region
    _
  $region13: #{dual_discriminator_forward.7} parent=0 // pred_fallthru
    _
  %v15 = vld [vmem:[%s0] sm:$0xff]
  %v16 = vld [vmem:[%s0 + $0x8] sm:$0xff]
  %v17 = vld [vmem:[%s0 + $0x10] sm:$0xff]
  %v18 = vld [vmem:[%s0 + $0x18] sm:$0xff]
  %v19 = vld [vmem:[%s0 + $0x20] sm:$0xff]
  %v20 = vld [vmem:[%s0 + $0x28] sm:$0xff]
  %v21 = vld [vmem:[%s0 + $0x30] sm:$0xff]
  %v22 = vld [vmem:[%s0 + $0x38] sm:$0xff]
  %v23 = vld [vmem:[%s0 + $0x40] sm:$0xff]
  %v24 = vld [vmem:[%s0 + $0x48] sm:$0xff]
  %v25 = vld [vmem:[%s0 + $0x50] sm:$0xff]
  %v26 = vld [vmem:[%s0 + $0x58] sm:$0xff]
  %v27 = vld [vmem:[%s0 + $0x60] sm:$0xff]
  %v28 = vld [vmem:[%s0 + $0x68] sm:$0xff]
  %v29 = vld [vmem:[%s0 + $0x70] sm:$0xff]
  %v30 = vld [vmem:[%s0 + $0x78] sm:$0xff]
  %v31 = vld [vmem:[%s0 + $0x80] sm:$0xff]
  %v32 = vld [vmem:[%s0 + $0x88] sm:$0xff]
  %v33 = vld [vmem:[%s0 + $0x90] sm:$0xff]
  %v34 = vld [vmem:[%s0 + $0x98] sm:$0xff]
  %v35 = vld [vmem:[%s0 + $0xa0] sm:$0xff]
  %v36 = vld [vmem:[%s0 + $0xa8] sm:$0xff]
  %v37 = vld [vmem:[%s0 + $0xb0] sm:$0xff]
  %v38 = vld [vmem:[%s0 + $0xb8] sm:$0xff]
  %v39 = vld [vmem:[%s0 + $0xc0] sm:$0xff]
  %v40 = vld [vmem:[%s0 + $0xc8] sm:$0xff]
  %v41 = vld [vmem:[%s0 + $0xd0] sm:$0xff]
  %v42 = vld [vmem:[%s0 + $0xd8] sm:$0xff]
  %v43 = vld [vmem:[%s0 + $0xe0] sm:$0xff]
  %v44 = vld [vmem:[%s0 + $0xe8] sm:$0xff]
  %v45 = vld [vmem:[%s0 + $0xf0] sm:$0xff]
  %v46 = vld [vmem:[%s0 + $0xf8] sm:$0xff]
  %v47 = vld [vmem:[%s1] sm:$0xf]
  %v48 = vld [vmem:[%s1 + $0x4] sm:$0xf]
  %v49 = vld [vmem:[%s1 + $0x8] sm:$0xf]
  %v50 = vld [vmem:[%s1 + $0xc] sm:$0xf]
  %v51 = vld [vmem:[%s1 + $0x10] sm:$0xf]
  %v52 = vld [vmem:[%s1 + $0x14] sm:$0xf]
  %v53 = vld [vmem:[%s1 + $0x18] sm:$0xf]
  %v54 = vld [vmem:[%s1 + $0x1c] sm:$0xf]
  %v55 = vld [vmem:[%s1 + $0x20] sm:$0xf]
  %v56 = vld [vmem:[%s1 + $0x24] sm:$0xf]
  %v57 = vld [vmem:[%s1 + $0x28] sm:$0xf]
  %v58 = vld [vmem:[%s1 + $0x2c] sm:$0xf]
  %v59 = vld [vmem:[%s1 + $0x30] sm:$0xf]
  %v60 = vld [vmem:[%s1 + $0x34] sm:$0xf]
  %v61 = vld [vmem:[%s1 + $0x38] sm:$0xf]
  %v62 = vld [vmem:[%s1 + $0x3c] sm:$0xf]
  %v63 = vld [vmem:[%s1 + $0x40] sm:$0xf]
  %v64 = vld [vmem:[%s1 + $0x44] sm:$0xf]
  %v65 = vld [vmem:[%s1 + $0x48] sm:$0xf]
  %v66 = vld [vmem:[%s1 + $0x4c] sm:$0xf]
  %v67 = vld [vmem:[%s1 + $0x50] sm:$0xf]
  %v68 = vld [vmem:[%s1 + $0x54] sm:$0xf]
  %v69 = vld [vmem:[%s1 + $0x58] sm:$0xf]
  %v70 = vld [vmem:[%s1 + $0x5c] sm:$0xf]
  %v71 = vld [vmem:[%s1 + $0x60] sm:$0xf]
  %v72 = vld [vmem:[%s1 + $0x64] sm:$0xf]
  %v73 = vld [vmem:[%s1 + $0x68] sm:$0xf]
  %v74 = vld [vmem:[%s1 + $0x6c] sm:$0xf]
  %v75 = vld [vmem:[%s1 + $0x70] sm:$0xf]
  %v76 = vld [vmem:[%s1 + $0x74] sm:$0xf]
  %v77 = vld [vmem:[%s1 + $0x78] sm:$0xf]
  %v78 = vld [vmem:[%s1 + $0x7c] sm:$0xf]
  %v79 = vld [vmem:[%s1 + $0x80] sm:$0xf]
  %v80 = vld [vmem:[%s1 + $0x84] sm:$0xf]
  %v81 = vld [vmem:[%s1 + $0x88] sm:$0xf]
  %v82 = vld [vmem:[%s1 + $0x8c] sm:$0xf]
  %v83 = vld [vmem:[%s1 + $0x90] sm:$0xf]
  %v84 = vld [vmem:[%s1 + $0x94] sm:$0xf]
  %v85 = vld [vmem:[%s1 + $0x98] sm:$0xf]
  %v86 = vld [vmem:[%s1 + $0x9c] sm:$0xf]
  %v87 = vld [vmem:[%s1 + $0xa0] sm:$0xf]
  %v88 = vld [vmem:[%s1 + $0xa4] sm:$0xf]
  %v89 = vld [vmem:[%s1 + $0xa8] sm:$0xf]
  %v90 = vld [vmem:[%s1 + $0xac] sm:$0xf]
  %v91 = vld [vmem:[%s1 + $0xb0] sm:$0xf]
  %v92 = vld [vmem:[%s1 + $0xb4] sm:$0xf]
  %v93 = vld [vmem:[%s1 + $0xb8] sm:$0xf]
  %v94 = vld [vmem:[%s1 + $0xbc] sm:$0xf]
  %v95 = vld [vmem:[%s1 + $0xc0] sm:$0xf]
  %v96 = vld [vmem:[%s1 + $0xc4] sm:$0xf]
  %v97 = vld [vmem:[%s1 + $0xc8] sm:$0xf]
  %v98 = vld [vmem:[%s1 + $0xcc] sm:$0xf]
  %v99 = vld [vmem:[%s1 + $0xd0] sm:$0xf]
  %v100 = vld [vmem:[%s1 + $0xd4] sm:$0xf]
  %v101 = vld [vmem:[%s1 + $0xd8] sm:$0xf]
  %v102 = vld [vmem:[%s1 + $0xdc] sm:$0xf]
  %v103 = vld [vmem:[%s1 + $0xe0] sm:$0xf]
  %v104 = vld [vmem:[%s1 + $0xe4] sm:$0xf]
  %v105 = vld [vmem:[%s1 + $0xe8] sm:$0xf]
  %v106 = vld [vmem:[%s1 + $0xec] sm:$0xf]
  %v107 = vld [vmem:[%s1 + $0xf0] sm:$0xf]
  %v108 = vld [vmem:[%s1 + $0xf4] sm:$0xf]
  %v109 = vld [vmem:[%s1 + $0xf8] sm:$0xf]
  %v110 = vld [vmem:[%s1 + $0xfc] sm:$0xf]
  %v111 = vld [vmem:[%s1 + $0x100] sm:$0xf]
  %v112 = vld [vmem:[%s1 + $0x104] sm:$0xf]
  %v113 = vld [vmem:[%s1 + $0x108] sm:$0xf]
  %v114 = vld [vmem:[%s1 + $0x10c] sm:$0xf]
  %v115 = vld [vmem:[%s1 + $0x110] sm:$0xf]
  %v116 = vld [vmem:[%s1 + $0x114] sm:$0xf]
  %v117 = vld [vmem:[%s1 + $0x118] sm:$0xf]
  %v118 = vld [vmem:[%s1 + $0x11c] sm:$0xf]
  %v119 = vld [vmem:[%s1 + $0x120] sm:$0xf]
  %v120 = vld [vmem:[%s1 + $0x124] sm:$0xf]
  %v121 = vld [vmem:[%s1 + $0x128] sm:$0xf]
  %v122 = vld [vmem:[%s1 + $0x12c] sm:$0xf]
  %v123 = vld [vmem:[%s1 + $0x130] sm:$0xf]
  %v124 = vld [vmem:[%s1 + $0x134] sm:$0xf]
  %v125 = vld [vmem:[%s1 + $0x138] sm:$0xf]
  %v126 = vld [vmem:[%s1 + $0x13c] sm:$0xf]
  %v127 = vld [vmem:[%s1 + $0x140] sm:$0xf]
  %v128 = vld [vmem:[%s1 + $0x144] sm:$0xf]
  %v129 = vld [vmem:[%s1 + $0x148] sm:$0xf]
  %v130 = vld [vmem:[%s1 + $0x14c] sm:$0xf]
  %v131 = vld [vmem:[%s1 + $0x150] sm:$0xf]
  %v132 = vld [vmem:[%s1 + $0x154] sm:$0xf]
  %v133 = vld [vmem:[%s1 + $0x158] sm:$0xf]
  %v134 = vld [vmem:[%s1 + $0x15c] sm:$0xf]
  %v135 = vld [vmem:[%s1 + $0x160] sm:$0xf]
  %v136 = vld [vmem:[%s1 + $0x164] sm:$0xf]
  %v137 = vld [vmem:[%s1 + $0x168] sm:$0xf]
  %v138 = vld [vmem:[%s1 + $0x16c] sm:$0xf]
  %v139 = vld [vmem:[%s1 + $0x170] sm:$0xf]
  %v140 = vld [vmem:[%s1 + $0x174] sm:$0xf]
  %v141 = vld [vmem:[%s1 + $0x178] sm:$0xf]
  %v142 = vld [vmem:[%s1 + $0x17c] sm:$0xf]
  %v143 = vld [vmem:[%s1 + $0x180] sm:$0xf]
  %v144 = vld [vmem:[%s1 + $0x184] sm:$0xf]
  %v145 = vld [vmem:[%s1 + $0x188] sm:$0xf]
  %v146 = vld [vmem:[%s1 + $0x18c] sm:$0xf]
  %v147 = vld [vmem:[%s1 + $0x190] sm:$0xf]
  %v148 = vld [vmem:[%s1 + $0x194] sm:$0xf]
  %v149 = vld [vmem:[%s1 + $0x198] sm:$0xf]
  %v150 = vld [vmem:[%s1 + $0x19c] sm:$0xf]
  %v151 = vld [vmem:[%s1 + $0x1a0] sm:$0xf]
  %v152 = vld [vmem:[%s1 + $0x1a4] sm:$0xf]
  %v153 = vld [vmem:[%s1 + $0x1a8] sm:$0xf]
  %v154 = vld [vmem:[%s1 + $0x1ac] sm:$0xf]
  %v155 = vld [vmem:[%s1 + $0x1b0] sm:$0xf]
  %v156 = vld [vmem:[%s1 + $0x1b4] sm:$0xf]
  %v157 = vld [vmem:[%s1 + $0x1b8] sm:$0xf]
  %v158 = vld [vmem:[%s1 + $0x1bc] sm:$0xf]
  %v159 = vld [vmem:[%s1 + $0x1c0] sm:$0xf]
  %v160 = vld [vmem:[%s1 + $0x1c4] sm:$0xf]
  %v161 = vld [vmem:[%s1 + $0x1c8] sm:$0xf]
  %v162 = vld [vmem:[%s1 + $0x1cc] sm:$0xf]
  %v163 = vld [vmem:[%s1 + $0x1d0] sm:$0xf]
  %v164 = vld [vmem:[%s1 + $0x1d4] sm:$0xf]
  %v165 = vld [vmem:[%s1 + $0x1d8] sm:$0xf]
  %v166 = vld [vmem:[%s1 + $0x1dc] sm:$0xf]
  %v167 = vld [vmem:[%s1 + $0x1e0] sm:$0xf]
  %v168 = vld [vmem:[%s1 + $0x1e4] sm:$0xf]
  %v169 = vld [vmem:[%s1 + $0x1e8] sm:$0xf]
  %v170 = vld [vmem:[%s1 + $0x1ec] sm:$0xf]
  %v171 = vld [vmem:[%s1 + $0x1f0] sm:$0xf]
  %v172 = vld [vmem:[%s1 + $0x1f4] sm:$0xf]
  %v173 = vld [vmem:[%s1 + $0x1f8] sm:$0xf]
  %v174 = vld [vmem:[%s1 + $0x1fc] sm:$0xf]
  %v175 = vld [vmem:[%s1 + $0x200] sm:$0xf]
  %v176 = vld [vmem:[%s1 + $0x204] sm:$0xf]
  %v177 = vld [vmem:[%s1 + $0x208] sm:$0xf]
  %v178 = vld [vmem:[%s1 + $0x20c] sm:$0xf]
  %v179 = vld [vmem:[%s1 + $0x210] sm:$0xf]
  %v180 = vld [vmem:[%s1 + $0x214] sm:$0xf]
  %v181 = vld [vmem:[%s1 + $0x218] sm:$0xf]
  %v182 = vld [vmem:[%s1 + $0x21c] sm:$0xf]
  %v183 = vld [vmem:[%s1 + $0x220] sm:$0xf]
  %v184 = vld [vmem:[%s1 + $0x224] sm:$0xf]
  %v185 = vld [vmem:[%s1 + $0x228] sm:$0xf]
  %v186 = vld [vmem:[%s1 + $0x22c] sm:$0xf]
  %v187 = vld [vmem:[%s1 + $0x230] sm:$0xf]
  %v188 = vld [vmem:[%s1 + $0x234] sm:$0xf]
  %v189 = vld [vmem:[%s1 + $0x238] sm:$0xf]
  %v190 = vld [vmem:[%s1 + $0x23c] sm:$0xf]
  %v191 = vld [vmem:[%s1 + $0x240] sm:$0xf]
  %v192 = vld [vmem:[%s1 + $0x244] sm:$0xf]
  %v193 = vld [vmem:[%s1 + $0x248] sm:$0xf]
  %v194 = vld [vmem:[%s1 + $0x24c] sm:$0xf]
  %v195 = vld [vmem:[%s1 + $0x250] sm:$0xf]
  %v196 = vld [vmem:[%s1 + $0x254] sm:$0xf]
  %v197 = vld [vmem:[%s1 + $0x258] sm:$0xf]
  %v198 = vld [vmem:[%s1 + $0x25c] sm:$0xf]
  %v199 = vld [vmem:[%s1 + $0x260] sm:$0xf]
  %v200 = vld [vmem:[%s1 + $0x264] sm:$0xf]
  %v201 = vld [vmem:[%s1 + $0x268] sm:$0xf]
  %v202 = vld [vmem:[%s1 + $0x26c] sm:$0xf]
  %v203 = vld [vmem:[%s1 + $0x270] sm:$0xf]
  %v204 = vld [vmem:[%s1 + $0x274] sm:$0xf]
  %v205 = vld [vmem:[%s1 + $0x278] sm:$0xf]
  %v206 = vld [vmem:[%s1 + $0x27c] sm:$0xf]
  %v207 = vld [vmem:[%s1 + $0x280] sm:$0xf]
  %v208 = vld [vmem:[%s1 + $0x284] sm:$0xf]
  %v209 = vld [vmem:[%s1 + $0x288] sm:$0xf]
  %v210 = vld [vmem:[%s1 + $0x28c] sm:$0xf]
  %v211 = vld [vmem:[%s1 + $0x290] sm:$0xf]
  %v212 = vld [vmem:[%s1 + $0x294] sm:$0xf]
  %v213 = vld [vmem:[%s1 + $0x298] sm:$0xf]
  %v214 = vld [vmem:[%s1 + $0x29c] sm:$0xf]
  %v215 = vld [vmem:[%s1 + $0x2a0] sm:$0xf]
  %v216 = vld [vmem:[%s1 + $0x2a4] sm:$0xf]
  %v217 = vld [vmem:[%s1 + $0x2a8] sm:$0xf]
  %v218 = vld [vmem:[%s1 + $0x2ac] sm:$0xf]
  %v219 = vld [vmem:[%s1 + $0x2b0] sm:$0xf]
  %v220 = vld [vmem:[%s1 + $0x2b4] sm:$0xf]
  %v221 = vld [vmem:[%s1 + $0x2b8] sm:$0xf]
  %v222 = vld [vmem:[%s1 + $0x2bc] sm:$0xf]
  %v223 = vld [vmem:[%s1 + $0x2c0] sm:$0xf]
  %v224 = vld [vmem:[%s1 + $0x2c4] sm:$0xf]
  %v225 = vld [vmem:[%s1 + $0x2c8] sm:$0xf]
  %v226 = vld [vmem:[%s1 + $0x2cc] sm:$0xf]
  %v227 = vld [vmem:[%s1 + $0x2d0] sm:$0xf]
  %v228 = vld [vmem:[%s1 + $0x2d4] sm:$0xf]
  %v229 = vld [vmem:[%s1 + $0x2d8] sm:$0xf]
  %v230 = vld [vmem:[%s1 + $0x2dc] sm:$0xf]
  %v231 = vld [vmem:[%s1 + $0x2e0] sm:$0xf]
  %v232 = vld [vmem:[%s1 + $0x2e4] sm:$0xf]
  %v233 = vld [vmem:[%s1 + $0x2e8] sm:$0xf]
  %v234 = vld [vmem:[%s1 + $0x2ec] sm:$0xf]
  %v235 = vld [vmem:[%s1 + $0x2f0] sm:$0xf]
  %v236 = vld [vmem:[%s1 + $0x2f4] sm:$0xf]
  %v237 = vld [vmem:[%s1 + $0x2f8] sm:$0xf]
  %v238 = vld [vmem:[%s1 + $0x2fc] sm:$0xf]
  %v239 = vld [vmem:[%s1 + $0x300] sm:$0xf]
  %v240 = vld [vmem:[%s1 + $0x304] sm:$0xf]
  %v241 = vld [vmem:[%s1 + $0x308] sm:$0xf]
  %v242 = vld [vmem:[%s1 + $0x30c] sm:$0xf]
  %v243 = vld [vmem:[%s1 + $0x310] sm:$0xf]
  %v244 = vld [vmem:[%s1 + $0x314] sm:$0xf]
  %v245 = vld [vmem:[%s1 + $0x318] sm:$0xf]
  %v246 = vld [vmem:[%s1 + $0x31c] sm:$0xf]
  %v247 = vld [vmem:[%s1 + $0x320] sm:$0xf]
  %v248 = vld [vmem:[%s1 + $0x324] sm:$0xf]
  %v249 = vld [vmem:[%s1 + $0x328] sm:$0xf]
  %v250 = vld [vmem:[%s1 + $0x32c] sm:$0xf]
  %v251 = vld [vmem:[%s1 + $0x330] sm:$0xf]
  %v252 = vld [vmem:[%s1 + $0x334] sm:$0xf]
  %v253 = vld [vmem:[%s1 + $0x338] sm:$0xf]
  %v254 = vld [vmem:[%s1 + $0x33c] sm:$0xf]
  %v255 = vld [vmem:[%s1 + $0x340] sm:$0xf]
  %v256 = vld [vmem:[%s1 + $0x344] sm:$0xf]
  %v257 = vld [vmem:[%s1 + $0x348] sm:$0xf]
  %v258 = vld [vmem:[%s1 + $0x34c] sm:$0xf]
  %v259 = vld [vmem:[%s1 + $0x350] sm:$0xf]
  %v260 = vld [vmem:[%s1 + $0x354] sm:$0xf]
  %v261 = vld [vmem:[%s1 + $0x358] sm:$0xf]
  %v262 = vld [vmem:[%s1 + $0x35c] sm:$0xf]
  %v263 = vld [vmem:[%s1 + $0x360] sm:$0xf]
  %v264 = vld [vmem:[%s1 + $0x364] sm:$0xf]
  %v265 = vld [vmem:[%s1 + $0x368] sm:$0xf]
  %v266 = vld [vmem:[%s1 + $0x36c] sm:$0xf]
  %v267 = vld [vmem:[%s1 + $0x370] sm:$0xf]
  %v268 = vld [vmem:[%s1 + $0x374] sm:$0xf]
  %v269 = vld [vmem:[%s1 + $0x378] sm:$0xf]
  %v270 = vld [vmem:[%s1 + $0x37c] sm:$0xf]
  %v271 = vld [vmem:[%s1 + $0x380] sm:$0xf]
  %v272 = vld [vmem:[%s1 + $0x384] sm:$0xf]
  %v273 = vld [vmem:[%s1 + $0x388] sm:$0xf]
  %v274 = vld [vmem:[%s1 + $0x38c] sm:$0xf]
  %v275 = vld [vmem:[%s1 + $0x390] sm:$0xf]
  %v276 = vld [vmem:[%s1 + $0x394] sm:$0xf]
  %v277 = vld [vmem:[%s1 + $0x398] sm:$0xf]
  %v278 = vld [vmem:[%s1 + $0x39c] sm:$0xf]
  %v279 = vld [vmem:[%s1 + $0x3a0] sm:$0xf]
  %v280 = vld [vmem:[%s1 + $0x3a4] sm:$0xf]
  %v281 = vld [vmem:[%s1 + $0x3a8] sm:$0xf]
  %v282 = vld [vmem:[%s1 + $0x3ac] sm:$0xf]
  %v283 = vld [vmem:[%s1 + $0x3b0] sm:$0xf]
  %v284 = vld [vmem:[%s1 + $0x3b4] sm:$0xf]
  %v285 = vld [vmem:[%s1 + $0x3b8] sm:$0xf]
  %v286 = vld [vmem:[%s1 + $0x3bc] sm:$0xf]
  %v287 = vld [vmem:[%s1 + $0x3c0] sm:$0xf]
  %v288 = vld [vmem:[%s1 + $0x3c4] sm:$0xf]
  %v289 = vld [vmem:[%s1 + $0x3c8] sm:$0xf]
  %v290 = vld [vmem:[%s1 + $0x3cc] sm:$0xf]
  %v291 = vld [vmem:[%s1 + $0x3d0] sm:$0xf]
  %v292 = vld [vmem:[%s1 + $0x3d4] sm:$0xf]
  %v293 = vld [vmem:[%s1 + $0x3d8] sm:$0xf]
  %v294 = vld [vmem:[%s1 + $0x3dc] sm:$0xf]
  %v295 = vld [vmem:[%s1 + $0x3e0] sm:$0xf]
  %v296 = vld [vmem:[%s1 + $0x3e4] sm:$0xf]
  %v297 = vld [vmem:[%s1 + $0x3e8] sm:$0xf]
  %v298 = vld [vmem:[%s1 + $0x3ec] sm:$0xf]
  %v299 = vld [vmem:[%s1 + $0x3f0] sm:$0xf]
  %v300 = vld [vmem:[%s1 + $0x3f4] sm:$0xf]
  %v301 = vld [vmem:[%s1 + $0x3f8] sm:$0xf]
  %v302 = vld [vmem:[%s1 + $0x3fc] sm:$0xf]
  %v303 = vld [vmem:[%s2] sm:$0x1]
  %v305 = vlaneseq
  %v306 = vshrl.u32 %v305, 7
  %v307 = vsub.s32 0, %v306
  %v308 = vrot.slane %v303, %v307
  %v342 = vunpack.c.l.b16 %v15
  %v343 = vunpack.c.h.b16 %v15
  %v344 = vunpack.c.l.b16 %v16
  %v345 = vunpack.c.h.b16 %v16
  %v346 = vunpack.c.l.b16 %v17
  %v347 = vunpack.c.h.b16 %v17
  %v348 = vunpack.c.l.b16 %v18
  %v349 = vunpack.c.h.b16 %v18
  %v350 = vunpack.c.l.b16 %v19
  %v351 = vunpack.c.h.b16 %v19
  %v352 = vunpack.c.l.b16 %v20
  %v353 = vunpack.c.h.b16 %v20
  %v354 = vunpack.c.l.b16 %v21
  %v355 = vunpack.c.h.b16 %v21
  %v356 = vunpack.c.l.b16 %v22
  %v357 = vunpack.c.h.b16 %v22
  %v358 = vunpack.c.l.b16 %v23
  %v359 = vunpack.c.h.b16 %v23
  %v360 = vunpack.c.l.b16 %v24
  %v361 = vunpack.c.h.b16 %v24
  %v362 = vunpack.c.l.b16 %v25
  %v363 = vunpack.c.h.b16 %v25
  %v364 = vunpack.c.l.b16 %v26
  %v365 = vunpack.c.h.b16 %v26
  %v366 = vunpack.c.l.b16 %v27
  %v367 = vunpack.c.h.b16 %v27
  %v368 = vunpack.c.l.b16 %v28
  %v369 = vunpack.c.h.b16 %v28
  %v370 = vunpack.c.l.b16 %v29
  %v371 = vunpack.c.h.b16 %v29
  %v372 = vunpack.c.l.b16 %v30
  %v373 = vunpack.c.h.b16 %v30
  %v374 = vunpack.c.l.b16 %v31
  %v375 = vunpack.c.h.b16 %v31
  %v376 = vunpack.c.l.b16 %v32
  %v377 = vunpack.c.h.b16 %v32
  %v378 = vunpack.c.l.b16 %v33
  %v379 = vunpack.c.h.b16 %v33
  %v380 = vunpack.c.l.b16 %v34
  %v381 = vunpack.c.h.b16 %v34
  %v382 = vunpack.c.l.b16 %v35
  %v383 = vunpack.c.h.b16 %v35
  %v384 = vunpack.c.l.b16 %v36
  %v385 = vunpack.c.h.b16 %v36
  %v386 = vunpack.c.l.b16 %v37
  %v387 = vunpack.c.h.b16 %v37
  %v388 = vunpack.c.l.b16 %v38
  %v389 = vunpack.c.h.b16 %v38
  %v390 = vunpack.c.l.b16 %v39
  %v391 = vunpack.c.h.b16 %v39
  %v392 = vunpack.c.l.b16 %v40
  %v393 = vunpack.c.h.b16 %v40
  %v394 = vunpack.c.l.b16 %v41
  %v395 = vunpack.c.h.b16 %v41
  %v396 = vunpack.c.l.b16 %v42
  %v397 = vunpack.c.h.b16 %v42
  %v398 = vunpack.c.l.b16 %v43
  %v399 = vunpack.c.h.b16 %v43
  %v400 = vunpack.c.l.b16 %v44
  %v401 = vunpack.c.h.b16 %v44
  %v402 = vunpack.c.l.b16 %v45
  %v403 = vunpack.c.h.b16 %v45
  %v404 = vunpack.c.l.b16 %v46
  %v405 = vunpack.c.h.b16 %v46
  %v406 = vpack.c.b16 %v358, %v342
  %v407 = vpack.c.b16 %v359, %v343
  %v408 = vpack.c.b16 %v360, %v344
  %v409 = vpack.c.b16 %v361, %v345
  %v410 = vpack.c.b16 %v362, %v346
  %v411 = vpack.c.b16 %v363, %v347
  %v412 = vpack.c.b16 %v364, %v348
  %v413 = vpack.c.b16 %v365, %v349
  %v414 = vpack.c.b16 %v366, %v350
  %v415 = vpack.c.b16 %v367, %v351
  %v416 = vpack.c.b16 %v368, %v352
  %v417 = vpack.c.b16 %v369, %v353
  %v418 = vpack.c.b16 %v370, %v354
  %v419 = vpack.c.b16 %v371, %v355
  %v420 = vpack.c.b16 %v372, %v356
  %v421 = vpack.c.b16 %v373, %v357
  %v422 = vpack.c.b16 %v390, %v374
  %v423 = vpack.c.b16 %v391, %v375
  %v424 = vpack.c.b16 %v392, %v376
  %v425 = vpack.c.b16 %v393, %v377
  %v426 = vpack.c.b16 %v394, %v378
  %v427 = vpack.c.b16 %v395, %v379
  %v428 = vpack.c.b16 %v396, %v380
  %v429 = vpack.c.b16 %v397, %v381
  %v430 = vpack.c.b16 %v398, %v382
  %v431 = vpack.c.b16 %v399, %v383
  %v432 = vpack.c.b16 %v400, %v384
  %v433 = vpack.c.b16 %v401, %v385
  %v434 = vpack.c.b16 %v402, %v386
  %v435 = vpack.c.b16 %v403, %v387
  %v436 = vpack.c.b16 %v404, %v388
  %v437 = vpack.c.b16 %v405, %v389
  %v726 = vunpack.c.l.b16 %v47
  %v727 = vunpack.c.l.b16 %v48
  %v728 = vunpack.c.l.b16 %v49
  %v729 = vunpack.c.l.b16 %v50
  %v730 = vunpack.c.l.b16 %v51
  %v731 = vunpack.c.l.b16 %v52
  %v732 = vunpack.c.l.b16 %v53
  %v733 = vunpack.c.l.b16 %v54
  %v734 = vunpack.c.l.b16 %v55
  %v735 = vunpack.c.l.b16 %v56
  %v736 = vunpack.c.l.b16 %v57
  %v737 = vunpack.c.l.b16 %v58
  %v738 = vunpack.c.l.b16 %v59
  %v739 = vunpack.c.l.b16 %v60
  %v740 = vunpack.c.l.b16 %v61
  %v741 = vunpack.c.l.b16 %v62
  %v742 = vunpack.c.l.b16 %v63
  %v743 = vunpack.c.l.b16 %v64
  %v744 = vunpack.c.l.b16 %v65
  %v745 = vunpack.c.l.b16 %v66
  %v746 = vunpack.c.l.b16 %v67
  %v747 = vunpack.c.l.b16 %v68
  %v748 = vunpack.c.l.b16 %v69
  %v749 = vunpack.c.l.b16 %v70
  %v750 = vunpack.c.l.b16 %v71
  %v751 = vunpack.c.l.b16 %v72
  %v752 = vunpack.c.l.b16 %v73
  %v753 = vunpack.c.l.b16 %v74
  %v754 = vunpack.c.l.b16 %v75
  %v755 = vunpack.c.l.b16 %v76
  %v756 = vunpack.c.l.b16 %v77
  %v757 = vunpack.c.l.b16 %v78
  %v758 = vunpack.c.l.b16 %v79
  %v759 = vunpack.c.l.b16 %v80
  %v760 = vunpack.c.l.b16 %v81
  %v761 = vunpack.c.l.b16 %v82
  %v762 = vunpack.c.l.b16 %v83
  %v763 = vunpack.c.l.b16 %v84
  %v764 = vunpack.c.l.b16 %v85
  %v765 = vunpack.c.l.b16 %v86
  %v766 = vunpack.c.l.b16 %v87
  %v767 = vunpack.c.l.b16 %v88
  %v768 = vunpack.c.l.b16 %v89
  %v769 = vunpack.c.l.b16 %v90
  %v770 = vunpack.c.l.b16 %v91
  %v771 = vunpack.c.l.b16 %v92
  %v772 = vunpack.c.l.b16 %v93
  %v773 = vunpack.c.l.b16 %v94
  %v774 = vunpack.c.l.b16 %v95
  %v775 = vunpack.c.l.b16 %v96
  %v776 = vunpack.c.l.b16 %v97
  %v777 = vunpack.c.l.b16 %v98
  %v778 = vunpack.c.l.b16 %v99
  %v779 = vunpack.c.l.b16 %v100
  %v780 = vunpack.c.l.b16 %v101
  %v781 = vunpack.c.l.b16 %v102
  %v782 = vunpack.c.l.b16 %v103
  %v783 = vunpack.c.l.b16 %v104
  %v784 = vunpack.c.l.b16 %v105
  %v785 = vunpack.c.l.b16 %v106
  %v786 = vunpack.c.l.b16 %v107
  %v787 = vunpack.c.l.b16 %v108
  %v788 = vunpack.c.l.b16 %v109
  %v789 = vunpack.c.l.b16 %v110
  %v790 = vunpack.c.l.b16 %v111
  %v791 = vunpack.c.l.b16 %v112
  %v792 = vunpack.c.l.b16 %v113
  %v793 = vunpack.c.l.b16 %v114
  %v794 = vunpack.c.l.b16 %v115
  %v795 = vunpack.c.l.b16 %v116
  %v796 = vunpack.c.l.b16 %v117
  %v797 = vunpack.c.l.b16 %v118
  %v798 = vunpack.c.l.b16 %v119
  %v799 = vunpack.c.l.b16 %v120
  %v800 = vunpack.c.l.b16 %v121
  %v801 = vunpack.c.l.b16 %v122
  %v802 = vunpack.c.l.b16 %v123
  %v803 = vunpack.c.l.b16 %v124
  %v804 = vunpack.c.l.b16 %v125
  %v805 = vunpack.c.l.b16 %v126
  %v806 = vunpack.c.l.b16 %v127
  %v807 = vunpack.c.l.b16 %v128
  %v808 = vunpack.c.l.b16 %v129
  %v809 = vunpack.c.l.b16 %v130
  %v810 = vunpack.c.l.b16 %v131
  %v811 = vunpack.c.l.b16 %v132
  %v812 = vunpack.c.l.b16 %v133
  %v813 = vunpack.c.l.b16 %v134
  %v814 = vunpack.c.l.b16 %v135
  %v815 = vunpack.c.l.b16 %v136
  %v816 = vunpack.c.l.b16 %v137
  %v817 = vunpack.c.l.b16 %v138
  %v818 = vunpack.c.l.b16 %v139
  %v819 = vunpack.c.l.b16 %v140
  %v820 = vunpack.c.l.b16 %v141
  %v821 = vunpack.c.l.b16 %v142
  %v822 = vunpack.c.l.b16 %v143
  %v823 = vunpack.c.l.b16 %v144
  %v824 = vunpack.c.l.b16 %v145
  %v825 = vunpack.c.l.b16 %v146
  %v826 = vunpack.c.l.b16 %v147
  %v827 = vunpack.c.l.b16 %v148
  %v828 = vunpack.c.l.b16 %v149
  %v829 = vunpack.c.l.b16 %v150
  %v830 = vunpack.c.l.b16 %v151
  %v831 = vunpack.c.l.b16 %v152
  %v832 = vunpack.c.l.b16 %v153
  %v833 = vunpack.c.l.b16 %v154
  %v834 = vunpack.c.l.b16 %v155
  %v835 = vunpack.c.l.b16 %v156
  %v836 = vunpack.c.l.b16 %v157
  %v837 = vunpack.c.l.b16 %v158
  %v838 = vunpack.c.l.b16 %v159
  %v839 = vunpack.c.l.b16 %v160
  %v840 = vunpack.c.l.b16 %v161
  %v841 = vunpack.c.l.b16 %v162
  %v842 = vunpack.c.l.b16 %v163
  %v843 = vunpack.c.l.b16 %v164
  %v844 = vunpack.c.l.b16 %v165
  %v845 = vunpack.c.l.b16 %v166
  %v846 = vunpack.c.l.b16 %v167
  %v847 = vunpack.c.l.b16 %v168
  %v848 = vunpack.c.l.b16 %v169
  %v849 = vunpack.c.l.b16 %v170
  %v850 = vunpack.c.l.b16 %v171
  %v851 = vunpack.c.l.b16 %v172
  %v852 = vunpack.c.l.b16 %v173
  %v853 = vunpack.c.l.b16 %v174
  %v854 = vunpack.c.l.b16 %v175
  %v855 = vunpack.c.l.b16 %v176
  %v856 = vunpack.c.l.b16 %v177
  %v857 = vunpack.c.l.b16 %v178
  %v858 = vunpack.c.l.b16 %v179
  %v859 = vunpack.c.l.b16 %v180
  %v860 = vunpack.c.l.b16 %v181
  %v861 = vunpack.c.l.b16 %v182
  %v862 = vunpack.c.l.b16 %v183
  %v863 = vunpack.c.l.b16 %v184
  %v864 = vunpack.c.l.b16 %v185
  %v865 = vunpack.c.l.b16 %v186
  %v866 = vunpack.c.l.b16 %v187
  %v867 = vunpack.c.l.b16 %v188
  %v868 = vunpack.c.l.b16 %v189
  %v869 = vunpack.c.l.b16 %v190
  %v870 = vunpack.c.l.b16 %v191
  %v871 = vunpack.c.l.b16 %v192
  %v872 = vunpack.c.l.b16 %v193
  %v873 = vunpack.c.l.b16 %v194
  %v874 = vunpack.c.l.b16 %v195
  %v875 = vunpack.c.l.b16 %v196
  %v876 = vunpack.c.l.b16 %v197
  %v877 = vunpack.c.l.b16 %v198
  %v878 = vunpack.c.l.b16 %v199
  %v879 = vunpack.c.l.b16 %v200
  %v880 = vunpack.c.l.b16 %v201
  %v881 = vunpack.c.l.b16 %v202
  %v882 = vunpack.c.l.b16 %v203
  %v883 = vunpack.c.l.b16 %v204
  %v884 = vunpack.c.l.b16 %v205
  %v885 = vunpack.c.l.b16 %v206
  %v886 = vunpack.c.l.b16 %v207
  %v887 = vunpack.c.l.b16 %v208
  %v888 = vunpack.c.l.b16 %v209
  %v889 = vunpack.c.l.b16 %v210
  %v890 = vunpack.c.l.b16 %v211
  %v891 = vunpack.c.l.b16 %v212
  %v892 = vunpack.c.l.b16 %v213
  %v893 = vunpack.c.l.b16 %v214
  %v894 = vunpack.c.l.b16 %v215
  %v895 = vunpack.c.l.b16 %v216
  %v896 = vunpack.c.l.b16 %v217
  %v897 = vunpack.c.l.b16 %v218
  %v898 = vunpack.c.l.b16 %v219
  %v899 = vunpack.c.l.b16 %v220
  %v900 = vunpack.c.l.b16 %v221
  %v901 = vunpack.c.l.b16 %v222
  %v902 = vunpack.c.l.b16 %v223
  %v903 = vunpack.c.l.b16 %v224
  %v904 = vunpack.c.l.b16 %v225
  %v905 = vunpack.c.l.b16 %v226
  %v906 = vunpack.c.l.b16 %v227
  %v907 = vunpack.c.l.b16 %v228
  %v908 = vunpack.c.l.b16 %v229
  %v909 = vunpack.c.l.b16 %v230
  %v910 = vunpack.c.l.b16 %v231
  %v911 = vunpack.c.l.b16 %v232
  %v912 = vunpack.c.l.b16 %v233
  %v913 = vunpack.c.l.b16 %v234
  %v914 = vunpack.c.l.b16 %v235
  %v915 = vunpack.c.l.b16 %v236
  %v916 = vunpack.c.l.b16 %v237
  %v917 = vunpack.c.l.b16 %v238
  %v918 = vunpack.c.l.b16 %v239
  %v919 = vunpack.c.l.b16 %v240
  %v920 = vunpack.c.l.b16 %v241
  %v921 = vunpack.c.l.b16 %v242
  %v922 = vunpack.c.l.b16 %v243
  %v923 = vunpack.c.l.b16 %v244
  %v924 = vunpack.c.l.b16 %v245
  %v925 = vunpack.c.l.b16 %v246
  %v926 = vunpack.c.l.b16 %v247
  %v927 = vunpack.c.l.b16 %v248
  %v928 = vunpack.c.l.b16 %v249
  %v929 = vunpack.c.l.b16 %v250
  %v930 = vunpack.c.l.b16 %v251
  %v931 = vunpack.c.l.b16 %v252
  %v932 = vunpack.c.l.b16 %v253
  %v933 = vunpack.c.l.b16 %v254
  %v934 = vunpack.c.l.b16 %v255
  %v935 = vunpack.c.l.b16 %v256
  %v936 = vunpack.c.l.b16 %v257
  %v937 = vunpack.c.l.b16 %v258
  %v938 = vunpack.c.l.b16 %v259
  %v939 = vunpack.c.l.b16 %v260
  %v940 = vunpack.c.l.b16 %v261
  %v941 = vunpack.c.l.b16 %v262
  %v942 = vunpack.c.l.b16 %v263
  %v943 = vunpack.c.l.b16 %v264
  %v944 = vunpack.c.l.b16 %v265
  %v945 = vunpack.c.l.b16 %v266
  %v946 = vunpack.c.l.b16 %v267
  %v947 = vunpack.c.l.b16 %v268
  %v948 = vunpack.c.l.b16 %v269
  %v949 = vunpack.c.l.b16 %v270
  %v950 = vunpack.c.l.b16 %v271
  %v951 = vunpack.c.l.b16 %v272
  %v952 = vunpack.c.l.b16 %v273
  %v953 = vunpack.c.l.b16 %v274
  %v954 = vunpack.c.l.b16 %v275
  %v955 = vunpack.c.l.b16 %v276
  %v956 = vunpack.c.l.b16 %v277
  %v957 = vunpack.c.l.b16 %v278
  %v958 = vunpack.c.l.b16 %v279
  %v959 = vunpack.c.l.b16 %v280
  %v960 = vunpack.c.l.b16 %v281
  %v961 = vunpack.c.l.b16 %v282
  %v962 = vunpack.c.l.b16 %v283
  %v963 = vunpack.c.l.b16 %v284
  %v964 = vunpack.c.l.b16 %v285
  %v965 = vunpack.c.l.b16 %v286
  %v966 = vunpack.c.l.b16 %v287
  %v967 = vunpack.c.l.b16 %v288
  %v968 = vunpack.c.l.b16 %v289
  %v969 = vunpack.c.l.b16 %v290
  %v970 = vunpack.c.l.b16 %v291
  %v971 = vunpack.c.l.b16 %v292
  %v972 = vunpack.c.l.b16 %v293
  %v973 = vunpack.c.l.b16 %v294
  %v974 = vunpack.c.l.b16 %v295
  %v975 = vunpack.c.l.b16 %v296
  %v976 = vunpack.c.l.b16 %v297
  %v977 = vunpack.c.l.b16 %v298
  %v978 = vunpack.c.l.b16 %v299
  %v979 = vunpack.c.l.b16 %v300
  %v980 = vunpack.c.l.b16 %v301
  %v981 = vunpack.c.l.b16 %v302
  %v982 = vpack.c.b16 %v727, %v726
  %v983 = vpack.c.b16 %v729, %v728
  %v984 = vpack.c.b16 %v731, %v730
  %v985 = vpack.c.b16 %v733, %v732
  %v986 = vpack.c.b16 %v735, %v734
  %v987 = vpack.c.b16 %v737, %v736
  %v988 = vpack.c.b16 %v739, %v738
  %v989 = vpack.c.b16 %v741, %v740
  %v990 = vpack.c.b16 %v743, %v742
  %v991 = vpack.c.b16 %v745, %v744
  %v992 = vpack.c.b16 %v747, %v746
  %v993 = vpack.c.b16 %v749, %v748
  %v994 = vpack.c.b16 %v751, %v750
  %v995 = vpack.c.b16 %v753, %v752
  %v996 = vpack.c.b16 %v755, %v754
  %v997 = vpack.c.b16 %v757, %v756
  %v998 = vpack.c.b16 %v759, %v758
  %v999 = vpack.c.b16 %v761, %v760
  %v1000 = vpack.c.b16 %v763, %v762
  %v1001 = vpack.c.b16 %v765, %v764
  %v1002 = vpack.c.b16 %v767, %v766
  %v1003 = vpack.c.b16 %v769, %v768
  %v1004 = vpack.c.b16 %v771, %v770
  %v1005 = vpack.c.b16 %v773, %v772
  %v1006 = vpack.c.b16 %v775, %v774
  %v1007 = vpack.c.b16 %v777, %v776
  %v1008 = vpack.c.b16 %v779, %v778
  %v1009 = vpack.c.b16 %v781, %v780
  %v1010 = vpack.c.b16 %v783, %v782
  %v1011 = vpack.c.b16 %v785, %v784
  %v1012 = vpack.c.b16 %v787, %v786
  %v1013 = vpack.c.b16 %v789, %v788
  %v1014 = vpack.c.b16 %v791, %v790
  %v1015 = vpack.c.b16 %v793, %v792
  %v1016 = vpack.c.b16 %v795, %v794
  %v1017 = vpack.c.b16 %v797, %v796
  %v1018 = vpack.c.b16 %v799, %v798
  %v1019 = vpack.c.b16 %v801, %v800
  %v1020 = vpack.c.b16 %v803, %v802
  %v1021 = vpack.c.b16 %v805, %v804
  %v1022 = vpack.c.b16 %v807, %v806
  %v1023 = vpack.c.b16 %v809, %v808
  %v1024 = vpack.c.b16 %v811, %v810
  %v1025 = vpack.c.b16 %v813, %v812
  %v1026 = vpack.c.b16 %v815, %v814
  %v1027 = vpack.c.b16 %v817, %v816
  %v1028 = vpack.c.b16 %v819, %v818
  %v1029 = vpack.c.b16 %v821, %v820
  %v1030 = vpack.c.b16 %v823, %v822
  %v1031 = vpack.c.b16 %v825, %v824
  %v1032 = vpack.c.b16 %v827, %v826
  %v1033 = vpack.c.b16 %v829, %v828
  %v1034 = vpack.c.b16 %v831, %v830
  %v1035 = vpack.c.b16 %v833, %v832
  %v1036 = vpack.c.b16 %v835, %v834
  %v1037 = vpack.c.b16 %v837, %v836
  %v1038 = vpack.c.b16 %v839, %v838
  %v1039 = vpack.c.b16 %v841, %v840
  %v1040 = vpack.c.b16 %v843, %v842
  %v1041 = vpack.c.b16 %v845, %v844
  %v1042 = vpack.c.b16 %v847, %v846
  %v1043 = vpack.c.b16 %v849, %v848
  %v1044 = vpack.c.b16 %v851, %v850
  %v1045 = vpack.c.b16 %v853, %v852
  %v1046 = vpack.c.b16 %v855, %v854
  %v1047 = vpack.c.b16 %v857, %v856
  %v1048 = vpack.c.b16 %v859, %v858
  %v1049 = vpack.c.b16 %v861, %v860
  %v1050 = vpack.c.b16 %v863, %v862
  %v1051 = vpack.c.b16 %v865, %v864
  %v1052 = vpack.c.b16 %v867, %v866
  %v1053 = vpack.c.b16 %v869, %v868
  %v1054 = vpack.c.b16 %v871, %v870
  %v1055 = vpack.c.b16 %v873, %v872
  %v1056 = vpack.c.b16 %v875, %v874
  %v1057 = vpack.c.b16 %v877, %v876
  %v1058 = vpack.c.b16 %v879, %v878
  %v1059 = vpack.c.b16 %v881, %v880
  %v1060 = vpack.c.b16 %v883, %v882
  %v1061 = vpack.c.b16 %v885, %v884
  %v1062 = vpack.c.b16 %v887, %v886
  %v1063 = vpack.c.b16 %v889, %v888
  %v1064 = vpack.c.b16 %v891, %v890
  %v1065 = vpack.c.b16 %v893, %v892
  %v1066 = vpack.c.b16 %v895, %v894
  %v1067 = vpack.c.b16 %v897, %v896
  %v1068 = vpack.c.b16 %v899, %v898
  %v1069 = vpack.c.b16 %v901, %v900
  %v1070 = vpack.c.b16 %v903, %v902
  %v1071 = vpack.c.b16 %v905, %v904
  %v1072 = vpack.c.b16 %v907, %v906
  %v1073 = vpack.c.b16 %v909, %v908
  %v1074 = vpack.c.b16 %v911, %v910
  %v1075 = vpack.c.b16 %v913, %v912
  %v1076 = vpack.c.b16 %v915, %v914
  %v1077 = vpack.c.b16 %v917, %v916
  %v1078 = vpack.c.b16 %v919, %v918
  %v1079 = vpack.c.b16 %v921, %v920
  %v1080 = vpack.c.b16 %v923, %v922
  %v1081 = vpack.c.b16 %v925, %v924
  %v1082 = vpack.c.b16 %v927, %v926
  %v1083 = vpack.c.b16 %v929, %v928
  %v1084 = vpack.c.b16 %v931, %v930
  %v1085 = vpack.c.b16 %v933, %v932
  %v1086 = vpack.c.b16 %v935, %v934
  %v1087 = vpack.c.b16 %v937, %v936
  %v1088 = vpack.c.b16 %v939, %v938
  %v1089 = vpack.c.b16 %v941, %v940
  %v1090 = vpack.c.b16 %v943, %v942
  %v1091 = vpack.c.b16 %v945, %v944
  %v1092 = vpack.c.b16 %v947, %v946
  %v1093 = vpack.c.b16 %v949, %v948
  %v1094 = vpack.c.b16 %v951, %v950
  %v1095 = vpack.c.b16 %v953, %v952
  %v1096 = vpack.c.b16 %v955, %v954
  %v1097 = vpack.c.b16 %v957, %v956
  %v1098 = vpack.c.b16 %v959, %v958
  %v1099 = vpack.c.b16 %v961, %v960
  %v1100 = vpack.c.b16 %v963, %v962
  %v1101 = vpack.c.b16 %v965, %v964
  %v1102 = vpack.c.b16 %v967, %v966
  %v1103 = vpack.c.b16 %v969, %v968
  %v1104 = vpack.c.b16 %v971, %v970
  %v1105 = vpack.c.b16 %v973, %v972
  %v1106 = vpack.c.b16 %v975, %v974
  %v1107 = vpack.c.b16 %v977, %v976
  %v1108 = vpack.c.b16 %v979, %v978
  %v1109 = vpack.c.b16 %v981, %v980
  %1238 = vmatprep.subr.bf16.mxu0 0
  %1239 = vmatpush1.bf16.msra.mxu0 %v982
  %1240 = vmatprep.subr.bf16.mxu0 0
  %1241 = vmatpush1.bf16.msra.mxu0 %v983
  %1242 = vmatprep.subr.bf16.mxu0 0
  %1243 = vmatpush1.bf16.msra.mxu0 %v984
  %1244 = vmatprep.subr.bf16.mxu0 0
  %1245 = vmatpush1.bf16.msra.mxu0 %v985
  %1246 = vmatprep.subr.bf16.mxu0 0
  %1247 = vmatpush1.bf16.msra.mxu0 %v986
  %1248 = vmatprep.subr.bf16.mxu0 0
  %1249 = vmatpush1.bf16.msra.mxu0 %v987
  %1250 = vmatprep.subr.bf16.mxu0 0
  %1251 = vmatpush1.bf16.msra.mxu0 %v988
  %1252 = vmatprep.subr.bf16.mxu0 0
  %1253 = vmatpush1.bf16.msra.mxu0 %v989
  %1254 = vmatprep.subr.bf16.mxu0 0
  %1255 = vmatpush1.bf16.msra.mxu0 %v990
  %1256 = vmatprep.subr.bf16.mxu0 0
  %1257 = vmatpush1.bf16.msra.mxu0 %v991
  %1258 = vmatprep.subr.bf16.mxu0 0
  %1259 = vmatpush1.bf16.msra.mxu0 %v992
  %1260 = vmatprep.subr.bf16.mxu0 0
  %1261 = vmatpush1.bf16.msra.mxu0 %v993
  %1262 = vmatprep.subr.bf16.mxu0 0
  %1263 = vmatpush1.bf16.msra.mxu0 %v994
  %1264 = vmatprep.subr.bf16.mxu0 0
  %1265 = vmatpush1.bf16.msra.mxu0 %v995
  %1266 = vmatprep.subr.bf16.mxu0 0
  %1267 = vmatpush1.bf16.msra.mxu0 %v996
  %1268 = vmatprep.subr.bf16.mxu0 0
  %1269 = vmatpush1.bf16.msra.mxu0 %v997
  %1270 = vmatprep.mubr.bf16.mxu0 %v407
  %1271 = vmatmul.mubr.bf16.gmra.mrb[0].mxu0 %v406
  %v1272 = vpop.f32.mrb[0].mxu0
  %v1273 = vadd.f32 %v308, %v1272
  %v1274 = vpop.f32.mrb[0].mxu0
  %v1275 = vpop.f32.mrb[0].mxu0
  %v1276 = vadd.f32 %v308, %v1275
  %v1277 = vpop.f32.mrb[0].mxu0
  %1278 = vmatprep.mubr.bf16.mxu0 %v423
  %1279 = vmatmul.mubr.bf16.gmra.mrb[0].mxu0 %v422
  %v1280 = vpop.f32.mrb[0].mxu0
  %v1281 = vadd.f32 %v308, %v1280
  %v1282 = vpop.f32.mrb[0].mxu0
  %v1283 = vpop.f32.mrb[0].mxu0
  %v1284 = vadd.f32 %v308, %v1283
  %v1285 = vpop.f32.mrb[0].mxu0
  %1286 = vdwg.mxu0
  %1287 = vmatprep.subr.bf16.mxu0 0
  %1288 = vmatpush1.bf16.msra.mxu0 %v998
  %1289 = vmatprep.subr.bf16.mxu0 0
  %1290 = vmatpush1.bf16.msra.mxu0 %v999
  %1291 = vmatprep.subr.bf16.mxu0 0
  %1292 = vmatpush1.bf16.msra.mxu0 %v1000
  %1293 = vmatprep.subr.bf16.mxu0 0
  %1294 = vmatpush1.bf16.msra.mxu0 %v1001
  %1295 = vmatprep.subr.bf16.mxu0 0
  %1296 = vmatpush1.bf16.msra.mxu0 %v1002
  %1297 = vmatprep.subr.bf16.mxu0 0
  %1298 = vmatpush1.bf16.msra.mxu0 %v1003
  %1299 = vmatprep.subr.bf16.mxu0 0
  %1300 = vmatpush1.bf16.msra.mxu0 %v1004
  %1301 = vmatprep.subr.bf16.mxu0 0
  %1302 = vmatpush1.bf16.msra.mxu0 %v1005
  %1303 = vmatprep.subr.bf16.mxu0 0
  %1304 = vmatpush1.bf16.msra.mxu0 %v1006
  %1305 = vmatprep.subr.bf16.mxu0 0
  %1306 = vmatpush1.bf16.msra.mxu0 %v1007
  %1307 = vmatprep.subr.bf16.mxu0 0
  %1308 = vmatpush1.bf16.msra.mxu0 %v1008
  %1309 = vmatprep.subr.bf16.mxu0 0
  %1310 = vmatpush1.bf16.msra.mxu0 %v1009
  %1311 = vmatprep.subr.bf16.mxu0 0
  %1312 = vmatpush1.bf16.msra.mxu0 %v1010
  %1313 = vmatprep.subr.bf16.mxu0 0
  %1314 = vmatpush1.bf16.msra.mxu0 %v1011
  %1315 = vmatprep.subr.bf16.mxu0 0
  %1316 = vmatpush1.bf16.msra.mxu0 %v1012
  %1317 = vmatprep.subr.bf16.mxu0 0
  %1318 = vmatpush1.bf16.msra.mxu0 %v1013
  %1319 = vmatprep.mubr.bf16.mxu0 %v409
  %1320 = vmatmul.mubr.bf16.gmra.mrb[0].mxu0 %v408
  %v1321 = vpop.f32.mrb[0].mxu0
  %v1322 = vadd.f32 %v1273, %v1321
  %v1323 = vpop.f32.mrb[0].mxu0
  %v1324 = vpop.f32.mrb[0].mxu0
  %v1325 = vadd.f32 %v1276, %v1324
  %v1326 = vpop.f32.mrb[0].mxu0
  %1327 = vmatprep.mubr.bf16.mxu0 %v425
  %1328 = vmatmul.mubr.bf16.gmra.mrb[0].mxu0 %v424
  %v1329 = vpop.f32.mrb[0].mxu0
  %v1330 = vadd.f32 %v1281, %v1329
  %v1331 = vpop.f32.mrb[0].mxu0
  %v1332 = vpop.f32.mrb[0].mxu0
  %v1333 = vadd.f32 %v1284, %v1332
  %v1334 = vpop.f32.mrb[0].mxu0
  %1335 = vdwg.mxu0
  %1336 = vmatprep.subr.bf16.mxu0 0
  %1337 = vmatpush1.bf16.msra.mxu0 %v1014
  %1338 = vmatprep.subr.bf16.mxu0 0
  %1339 = vmatpush1.bf16.msra.mxu0 %v1015
  %1340 = vmatprep.subr.bf16.mxu0 0
  %1341 = vmatpush1.bf16.msra.mxu0 %v1016
  %1342 = vmatprep.subr.bf16.mxu0 0
  %1343 = vmatpush1.bf16.msra.mxu0 %v1017
  %1344 = vmatprep.subr.bf16.mxu0 0
  %1345 = vmatpush1.bf16.msra.mxu0 %v1018
  %1346 = vmatprep.subr.bf16.mxu0 0
  %1347 = vmatpush1.bf16.msra.mxu0 %v1019
  %1348 = vmatprep.subr.bf16.mxu0 0
  %1349 = vmatpush1.bf16.msra.mxu0 %v1020
  %1350 = vmatprep.subr.bf16.mxu0 0
  %1351 = vmatpush1.bf16.msra.mxu0 %v1021
  %1352 = vmatprep.subr.bf16.mxu0 0
  %1353 = vmatpush1.bf16.msra.mxu0 %v1022
  %1354 = vmatprep.subr.bf16.mxu0 0
  %1355 = vmatpush1.bf16.msra.mxu0 %v1023
  %1356 = vmatprep.subr.bf16.mxu0 0
  %1357 = vmatpush1.bf16.msra.mxu0 %v1024
  %1358 = vmatprep.subr.bf16.mxu0 0
  %1359 = vmatpush1.bf16.msra.mxu0 %v1025
  %1360 = vmatprep.subr.bf16.mxu0 0
  %1361 = vmatpush1.bf16.msra.mxu0 %v1026
  %1362 = vmatprep.subr.bf16.mxu0 0
  %1363 = vmatpush1.bf16.msra.mxu0 %v1027
  %1364 = vmatprep.subr.bf16.mxu0 0
  %1365 = vmatpush1.bf16.msra.mxu0 %v1028
  %1366 = vmatprep.subr.bf16.mxu0 0
  %1367 = vmatpush1.bf16.msra.mxu0 %v1029
  %1368 = vmatprep.mubr.bf16.mxu0 %v411
  %1369 = vmatmul.mubr.bf16.gmra.mrb[0].mxu0 %v410
  %v1370 = vpop.f32.mrb[0].mxu0
  %v1371 = vadd.f32 %v1322, %v1370
  %v1372 = vpop.f32.mrb[0].mxu0
  %v1373 = vpop.f32.mrb[0].mxu0
  %v1374 = vadd.f32 %v1325, %v1373
  %v1375 = vpop.f32.mrb[0].mxu0
  %1376 = vmatprep.mubr.bf16.mxu0 %v427
  %1377 = vmatmul.mubr.bf16.gmra.mrb[0].mxu0 %v426
  %v1378 = vpop.f32.mrb[0].mxu0
  %v1379 = vadd.f32 %v1330, %v1378
  %v1380 = vpop.f32.mrb[0].mxu0
  %v1381 = vpop.f32.mrb[0].mxu0
  %v1382 = vadd.f32 %v1333, %v1381
  %v1383 = vpop.f32.mrb[0].mxu0
  %1384 = vdwg.mxu0
  %1385 = vmatprep.subr.bf16.mxu0 0
  %1386 = vmatpush1.bf16.msra.mxu0 %v1030
  %1387 = vmatprep.subr.bf16.mxu0 0
  %1388 = vmatpush1.bf16.msra.mxu0 %v1031
  %1389 = vmatprep.subr.bf16.mxu0 0
  %1390 = vmatpush1.bf16.msra.mxu0 %v1032
  %1391 = vmatprep.subr.bf16.mxu0 0
  %1392 = vmatpush1.bf16.msra.mxu0 %v1033
  %1393 = vmatprep.subr.bf16.mxu0 0
  %1394 = vmatpush1.bf16.msra.mxu0 %v1034
  %1395 = vmatprep.subr.bf16.mxu0 0
  %1396 = vmatpush1.bf16.msra.mxu0 %v1035
  %1397 = vmatprep.subr.bf16.mxu0 0
  %1398 = vmatpush1.bf16.msra.mxu0 %v1036
  %1399 = vmatprep.subr.bf16.mxu0 0
  %1400 = vmatpush1.bf16.msra.mxu0 %v1037
  %1401 = vmatprep.subr.bf16.mxu0 0
  %1402 = vmatpush1.bf16.msra.mxu0 %v1038
  %1403 = vmatprep.subr.bf16.mxu0 0
  %1404 = vmatpush1.bf16.msra.mxu0 %v1039
  %1405 = vmatprep.subr.bf16.mxu0 0
  %1406 = vmatpush1.bf16.msra.mxu0 %v1040
  %1407 = vmatprep.subr.bf16.mxu0 0
  %1408 = vmatpush1.bf16.msra.mxu0 %v1041
  %1409 = vmatprep.subr.bf16.mxu0 0
  %1410 = vmatpush1.bf16.msra.mxu0 %v1042
  %1411 = vmatprep.subr.bf16.mxu0 0
  %1412 = vmatpush1.bf16.msra.mxu0 %v1043
  %1413 = vmatprep.subr.bf16.mxu0 0
  %1414 = vmatpush1.bf16.msra.mxu0 %v1044
  %1415 = vmatprep.subr.bf16.mxu0 0
  %1416 = vmatpush1.bf16.msra.mxu0 %v1045
  %1417 = vmatprep.mubr.bf16.mxu0 %v413
  %1418 = vmatmul.mubr.bf16.gmra.mrb[0].mxu0 %v412
  %v1419 = vpop.f32.mrb[0].mxu0
  %v1420 = vadd.f32 %v1371, %v1419
  %v1421 = vpop.f32.mrb[0].mxu0
  %v1422 = vpop.f32.mrb[0].mxu0
  %v1423 = vadd.f32 %v1374, %v1422
  %v1424 = vpop.f32.mrb[0].mxu0
  %1425 = vmatprep.mubr.bf16.mxu0 %v429
  %1426 = vmatmul.mubr.bf16.gmra.mrb[0].mxu0 %v428
  %v1427 = vpop.f32.mrb[0].mxu0
  %v1428 = vadd.f32 %v1379, %v1427
  %v1429 = vpop.f32.mrb[0].mxu0
  %v1430 = vpop.f32.mrb[0].mxu0
  %v1431 = vadd.f32 %v1382, %v1430
  %v1432 = vpop.f32.mrb[0].mxu0
  %1433 = vdwg.mxu0
  %1434 = vmatprep.subr.bf16.mxu0 0
  %1435 = vmatpush1.bf16.msra.mxu0 %v1046
  %1436 = vmatprep.subr.bf16.mxu0 0
  %1437 = vmatpush1.bf16.msra.mxu0 %v1047
  %1438 = vmatprep.subr.bf16.mxu0 0
  %1439 = vmatpush1.bf16.msra.mxu0 %v1048
  %1440 = vmatprep.subr.bf16.mxu0 0
  %1441 = vmatpush1.bf16.msra.mxu0 %v1049
  %1442 = vmatprep.subr.bf16.mxu0 0
  %1443 = vmatpush1.bf16.msra.mxu0 %v1050
  %1444 = vmatprep.subr.bf16.mxu0 0
  %1445 = vmatpush1.bf16.msra.mxu0 %v1051
  %1446 = vmatprep.subr.bf16.mxu0 0
  %1447 = vmatpush1.bf16.msra.mxu0 %v1052
  %1448 = vmatprep.subr.bf16.mxu0 0
  %1449 = vmatpush1.bf16.msra.mxu0 %v1053
  %1450 = vmatprep.subr.bf16.mxu0 0
  %1451 = vmatpush1.bf16.msra.mxu0 %v1054
  %1452 = vmatprep.subr.bf16.mxu0 0
  %1453 = vmatpush1.bf16.msra.mxu0 %v1055
  %1454 = vmatprep.subr.bf16.mxu0 0
  %1455 = vmatpush1.bf16.msra.mxu0 %v1056
  %1456 = vmatprep.subr.bf16.mxu0 0
  %1457 = vmatpush1.bf16.msra.mxu0 %v1057
  %1458 = vmatprep.subr.bf16.mxu0 0
  %1459 = vmatpush1.bf16.msra.mxu0 %v1058
  %1460 = vmatprep.subr.bf16.mxu0 0
  %1461 = vmatpush1.bf16.msra.mxu0 %v1059
  %1462 = vmatprep.subr.bf16.mxu0 0
  %1463 = vmatpush1.bf16.msra.mxu0 %v1060
  %1464 = vmatprep.subr.bf16.mxu0 0
  %1465 = vmatpush1.bf16.msra.mxu0 %v1061
  %1466 = vmatprep.mubr.bf16.mxu0 %v415
  %1467 = vmatmul.mubr.bf16.gmra.mrb[0].mxu0 %v414
  %v1468 = vpop.f32.mrb[0].mxu0
  %v1469 = vadd.f32 %v1420, %v1468
  %v1470 = vpop.f32.mrb[0].mxu0
  %v1471 = vpop.f32.mrb[0].mxu0
  %v1472 = vadd.f32 %v1423, %v1471
  %v1473 = vpop.f32.mrb[0].mxu0
  %1474 = vmatprep.mubr.bf16.mxu0 %v431
  %1475 = vmatmul.mubr.bf16.gmra.mrb[0].mxu0 %v430
  %v1476 = vpop.f32.mrb[0].mxu0
  %v1477 = vadd.f32 %v1428, %v1476
  %v1478 = vpop.f32.mrb[0].mxu0
  %v1479 = vpop.f32.mrb[0].mxu0
  %v1480 = vadd.f32 %v1431, %v1479
  %v1481 = vpop.f32.mrb[0].mxu0
  %1482 = vdwg.mxu0
  %1483 = vmatprep.subr.bf16.mxu0 0
  %1484 = vmatpush1.bf16.msra.mxu0 %v1062
  %1485 = vmatprep.subr.bf16.mxu0 0
  %1486 = vmatpush1.bf16.msra.mxu0 %v1063
  %1487 = vmatprep.subr.bf16.mxu0 0
  %1488 = vmatpush1.bf16.msra.mxu0 %v1064
  %1489 = vmatprep.subr.bf16.mxu0 0
  %1490 = vmatpush1.bf16.msra.mxu0 %v1065
  %1491 = vmatprep.subr.bf16.mxu0 0
  %1492 = vmatpush1.bf16.msra.mxu0 %v1066
  %1493 = vmatprep.subr.bf16.mxu0 0
  %1494 = vmatpush1.bf16.msra.mxu0 %v1067
  %1495 = vmatprep.subr.bf16.mxu0 0
  %1496 = vmatpush1.bf16.msra.mxu0 %v1068
  %1497 = vmatprep.subr.bf16.mxu0 0
  %1498 = vmatpush1.bf16.msra.mxu0 %v1069
  %1499 = vmatprep.subr.bf16.mxu0 0
  %1500 = vmatpush1.bf16.msra.mxu0 %v1070
  %1501 = vmatprep.subr.bf16.mxu0 0
  %1502 = vmatpush1.bf16.msra.mxu0 %v1071
  %1503 = vmatprep.subr.bf16.mxu0 0
  %1504 = vmatpush1.bf16.msra.mxu0 %v1072
  %1505 = vmatprep.subr.bf16.mxu0 0
  %1506 = vmatpush1.bf16.msra.mxu0 %v1073
  %1507 = vmatprep.subr.bf16.mxu0 0
  %1508 = vmatpush1.bf16.msra.mxu0 %v1074
  %1509 = vmatprep.subr.bf16.mxu0 0
  %1510 = vmatpush1.bf16.msra.mxu0 %v1075
  %1511 = vmatprep.subr.bf16.mxu0 0
  %1512 = vmatpush1.bf16.msra.mxu0 %v1076
  %1513 = vmatprep.subr.bf16.mxu0 0
  %1514 = vmatpush1.bf16.msra.mxu0 %v1077
  %1515 = vmatprep.mubr.bf16.mxu0 %v417
  %1516 = vmatmul.mubr.bf16.gmra.mrb[0].mxu0 %v416
  %v1517 = vpop.f32.mrb[0].mxu0
  %v1518 = vadd.f32 %v1469, %v1517
  %v1519 = vpop.f32.mrb[0].mxu0
  %v1520 = vpop.f32.mrb[0].mxu0
  %v1521 = vadd.f32 %v1472, %v1520
  %v1522 = vpop.f32.mrb[0].mxu0
  %1523 = vmatprep.mubr.bf16.mxu0 %v433
  %1524 = vmatmul.mubr.bf16.gmra.mrb[0].mxu0 %v432
  %v1525 = vpop.f32.mrb[0].mxu0
  %v1526 = vadd.f32 %v1477, %v1525
  %v1527 = vpop.f32.mrb[0].mxu0
  %v1528 = vpop.f32.mrb[0].mxu0
  %v1529 = vadd.f32 %v1480, %v1528
  %v1530 = vpop.f32.mrb[0].mxu0
  %1531 = vdwg.mxu0
  %1532 = vmatprep.subr.bf16.mxu0 0
  %1533 = vmatpush1.bf16.msra.mxu0 %v1078
  %1534 = vmatprep.subr.bf16.mxu0 0
  %1535 = vmatpush1.bf16.msra.mxu0 %v1079
  %1536 = vmatprep.subr.bf16.mxu0 0
  %1537 = vmatpush1.bf16.msra.mxu0 %v1080
  %1538 = vmatprep.subr.bf16.mxu0 0
  %1539 = vmatpush1.bf16.msra.mxu0 %v1081
  %1540 = vmatprep.subr.bf16.mxu0 0
  %1541 = vmatpush1.bf16.msra.mxu0 %v1082
  %1542 = vmatprep.subr.bf16.mxu0 0
  %1543 = vmatpush1.bf16.msra.mxu0 %v1083
  %1544 = vmatprep.subr.bf16.mxu0 0
  %1545 = vmatpush1.bf16.msra.mxu0 %v1084
  %1546 = vmatprep.subr.bf16.mxu0 0
  %1547 = vmatpush1.bf16.msra.mxu0 %v1085
  %1548 = vmatprep.subr.bf16.mxu0 0
  %1549 = vmatpush1.bf16.msra.mxu0 %v1086
  %1550 = vmatprep.subr.bf16.mxu0 0
  %1551 = vmatpush1.bf16.msra.mxu0 %v1087
  %1552 = vmatprep.subr.bf16.mxu0 0
  %1553 = vmatpush1.bf16.msra.mxu0 %v1088
  %1554 = vmatprep.subr.bf16.mxu0 0
  %1555 = vmatpush1.bf16.msra.mxu0 %v1089
  %1556 = vmatprep.subr.bf16.mxu0 0
  %1557 = vmatpush1.bf16.msra.mxu0 %v1090
  %1558 = vmatprep.subr.bf16.mxu0 0
  %1559 = vmatpush1.bf16.msra.mxu0 %v1091
  %1560 = vmatprep.subr.bf16.mxu0 0
  %1561 = vmatpush1.bf16.msra.mxu0 %v1092
  %1562 = vmatprep.subr.bf16.mxu0 0
  %1563 = vmatpush1.bf16.msra.mxu0 %v1093
  %1564 = vmatprep.mubr.bf16.mxu0 %v419
  %1565 = vmatmul.mubr.bf16.gmra.mrb[0].mxu0 %v418
  %v1566 = vpop.f32.mrb[0].mxu0
  %v1567 = vadd.f32 %v1518, %v1566
  %v1568 = vpop.f32.mrb[0].mxu0
  %v1569 = vpop.f32.mrb[0].mxu0
  %v1570 = vadd.f32 %v1521, %v1569
  %v1571 = vpop.f32.mrb[0].mxu0
  %1572 = vmatprep.mubr.bf16.mxu0 %v435
  %1573 = vmatmul.mubr.bf16.gmra.mrb[0].mxu0 %v434
  %v1574 = vpop.f32.mrb[0].mxu0
  %v1575 = vadd.f32 %v1526, %v1574
  %v1576 = vpop.f32.mrb[0].mxu0
  %v1577 = vpop.f32.mrb[0].mxu0
  %v1578 = vadd.f32 %v1529, %v1577
  %v1579 = vpop.f32.mrb[0].mxu0
  %1580 = vdwg.mxu0
  %1581 = vmatprep.subr.bf16.mxu0 0
  %1582 = vmatpush1.bf16.msra.mxu0 %v1094
  %1583 = vmatprep.subr.bf16.mxu0 0
  %1584 = vmatpush1.bf16.msra.mxu0 %v1095
  %1585 = vmatprep.subr.bf16.mxu0 0
  %1586 = vmatpush1.bf16.msra.mxu0 %v1096
  %1587 = vmatprep.subr.bf16.mxu0 0
  %1588 = vmatpush1.bf16.msra.mxu0 %v1097
  %1589 = vmatprep.subr.bf16.mxu0 0
  %1590 = vmatpush1.bf16.msra.mxu0 %v1098
  %1591 = vmatprep.subr.bf16.mxu0 0
  %1592 = vmatpush1.bf16.msra.mxu0 %v1099
  %1593 = vmatprep.subr.bf16.mxu0 0
  %1594 = vmatpush1.bf16.msra.mxu0 %v1100
  %1595 = vmatprep.subr.bf16.mxu0 0
  %1596 = vmatpush1.bf16.msra.mxu0 %v1101
  %1597 = vmatprep.subr.bf16.mxu0 0
  %1598 = vmatpush1.bf16.msra.mxu0 %v1102
  %1599 = vmatprep.subr.bf16.mxu0 0
  %1600 = vmatpush1.bf16.msra.mxu0 %v1103
  %1601 = vmatprep.subr.bf16.mxu0 0
  %1602 = vmatpush1.bf16.msra.mxu0 %v1104
  %1603 = vmatprep.subr.bf16.mxu0 0
  %1604 = vmatpush1.bf16.msra.mxu0 %v1105
  %1605 = vmatprep.subr.bf16.mxu0 0
  %1606 = vmatpush1.bf16.msra.mxu0 %v1106
  %1607 = vmatprep.subr.bf16.mxu0 0
  %1608 = vmatpush1.bf16.msra.mxu0 %v1107
  %1609 = vmatprep.subr.bf16.mxu0 0
  %1610 = vmatpush1.bf16.msra.mxu0 %v1108
  %1611 = vmatprep.subr.bf16.mxu0 0
  %1612 = vmatpush1.bf16.msra.mxu0 %v1109
  %1613 = vmatprep.mubr.bf16.mxu0 %v421
  %1614 = vmatmul.mubr.bf16.gmra.mrb[0].mxu0 %v420
  %v1615 = vpop.f32.mrb[0].mxu0
  %v1616 = vadd.f32 %v1567, %v1615
  %v1617 = vpop.f32.mrb[0].mxu0
  %v1618 = vpop.f32.mrb[0].mxu0
  %v1619 = vadd.f32 %v1570, %v1618
  %v1620 = vpop.f32.mrb[0].mxu0
  %1621 = vmatprep.mubr.bf16.mxu0 %v437
  %1622 = vmatmul.mubr.bf16.gmra.mrb[0].mxu0 %v436
  %v1623 = vpop.f32.mrb[0].mxu0
  %v1624 = vadd.f32 %v1575, %v1623
  %v1625 = vpop.f32.mrb[0].mxu0
  %v1626 = vpop.f32.mrb[0].mxu0
  %v1627 = vadd.f32 %v1578, %v1626
  %v1628 = vpop.f32.mrb[0].mxu0
  %1629 = vdwg.mxu0
  %vm1630 = vcmp.ge.f32.partialorder %v1616, 0.0
  %vm1631 = vcmp.ge.f32.partialorder %v1619, 0.0
  %vm1632 = vcmp.ge.f32.partialorder %v1624, 0.0
  %vm1633 = vcmp.ge.f32.partialorder %v1627, 0.0
  %v1634 = vmul.f32 %v1616, 0.2
  %v1635 = vmul.f32 %v1619, 0.2
  %v1636 = vmul.f32 %v1624, 0.2
  %v1637 = vmul.f32 %v1627, 0.2
  %v1638 = vsel %vm1630, %v1616, %v1634
  %v1639 = vsel %vm1631, %v1619, %v1635
  %v1640 = vsel %vm1632, %v1624, %v1636
  %v1641 = vsel %vm1633, %v1627, %v1637
  %v1642 = vpack.c.bf16 %v1639, %v1638
  %v1643 = vpack.c.bf16 %v1641, %v1640
  %v1646 = vunpack.c.l.b16 %v1642
  %v1647 = vunpack.c.h.b16 %v1642
  %v1648 = vunpack.c.l.b16 %v1643
  %v1649 = vunpack.c.h.b16 %v1643
  %v1650 = vpack.c.b16 %v1646, %v1646
  %v1651 = vpack.c.b16 %v1647, %v1647
  %v1652 = vpack.c.b16 %v1648, %v1648
  %v1653 = vpack.c.b16 %v1649, %v1649
  %1658 = vst [vmem:[%s3] sm:$0xf] %v1650
  %1659 = vst [vmem:[%s3 + $0x4] sm:$0xf] %v1651
  %1660 = vst [vmem:[%s3 + $0x8] sm:$0xf] %v1652
  %1661 = vst [vmem:[%s3 + $0xc] sm:$0xf] %v1653
  // Predicated region
  $region14: #{dual_discriminator_forward.7} parent=0 // pred_check
    _
  $region15: #{dual_discriminator_forward.7} parent=0 // pred_check_branch
    %1663 = sbr.rel (0) target = $region17
  $region16: #{dual_discriminator_forward.7} parent=0 // pred_region
    _
  $region17: #{dual_discriminator_forward.7} parent=0 // pred_fallthru
    _
  // Predicated region
  $region18: #{dual_discriminator_forward.7} parent=0 // pred_check
    _
  $region19: #{dual_discriminator_forward.7} parent=0 // pred_check_branch
    %1665 = sbr.rel (0) target = $region21
  $region20: #{dual_discriminator_forward.7} parent=0 // pred_region
    _
  $region21: #{dual_discriminator_forward.7} parent=0 // pred_fallthru
    _

// kernel: dual_discriminator_forward.8
$region0: #{dual_discriminator_forward.8}
  #allocation0 [shape = 'u32[]', space=smem, size = 0x4, offset = 0x4, fixed_abs, tag = 'smem constant byte address 0x4 - core index']
  #allocation1 [shape = 'u32[144,128]{1,0:T(1,128)}', space=vmem, size = 0x12000, scoped, tag = 'internal scratch']
  %s0 = inlined_call_operand.vmem [shape: bf16[8,2048], index: 0, kind: input, shape index: {}]
  %s1 = inlined_call_operand.vmem [shape: bf16[2048,128], index: 1, kind: input, shape index: {}]
  %s2 = inlined_call_operand.vmem [shape: f32[1,128], index: 2, kind: input, shape index: {}]
  %s3 = inlined_call_operand.vmem [shape: bf16[8,128], index: 3, kind: output, shape index: {}]
  %s4 = sld [smem:[#allocation0]]
  $region22: #{dual_discriminator_forward.8} parent=0
    _
  %s6 = ssub.s32 1, %s4
  %s7 = scalar_select 0, %s6, %s4
  // Predicated region
  $region2: #{dual_discriminator_forward.8} parent=0 // pred_check
    _
  $region3: #{dual_discriminator_forward.8} parent=0 // pred_check_branch
    %9 = sbr.rel (0) target = $region5
  $region4: #{dual_discriminator_forward.8} parent=0 // pred_region
    _
  $region5: #{dual_discriminator_forward.8} parent=0 // pred_fallthru
    _
  // Predicated region
  $region6: #{dual_discriminator_forward.8} parent=0 // pred_check
    _
  $region7: #{dual_discriminator_forward.8} parent=0 // pred_check_branch
    %11 = sbr.rel (0) target = $region9
  $region8: #{dual_discriminator_forward.8} parent=0 // pred_region
    _
  $region9: #{dual_discriminator_forward.8} parent=0 // pred_fallthru
    _
  // Predicated region
  $region10: #{dual_discriminator_forward.8} parent=0 // pred_check
    _
  $region11: #{dual_discriminator_forward.8} parent=0 // pred_check_branch
    %13 = sbr.rel (0) target = $region13
  $region12: #{dual_discriminator_forward.8} parent=0 // pred_region
    _
  $region13: #{dual_discriminator_forward.8} parent=0 // pred_fallthru
    _
  %v15 = vld [vmem:[%s0] sm:$0xff]
  %v16 = vld [vmem:[%s0 + $0x8] sm:$0xff]
  %v17 = vld [vmem:[%s0 + $0x10] sm:$0xff]
  %v18 = vld [vmem:[%s0 + $0x18] sm:$0xff]
  %v19 = vld [vmem:[%s0 + $0x20] sm:$0xff]
  %v20 = vld [vmem:[%s0 + $0x28] sm:$0xff]
  %v21 = vld [vmem:[%s0 + $0x30] sm:$0xff]
  %v22 = vld [vmem:[%s0 + $0x38] sm:$0xff]
  %v23 = vld [vmem:[%s1] sm:$0xf]
  %v24 = vld [vmem:[%s1 + $0x4] sm:$0xf]
  %v25 = vld [vmem:[%s1 + $0x8] sm:$0xf]
  %v26 = vld [vmem:[%s1 + $0xc] sm:$0xf]
  %v27 = vld [vmem:[%s1 + $0x10] sm:$0xf]
  %v28 = vld [vmem:[%s1 + $0x14] sm:$0xf]
  %v29 = vld [vmem:[%s1 + $0x18] sm:$0xf]
  %v30 = vld [vmem:[%s1 + $0x1c] sm:$0xf]
  %v31 = vld [vmem:[%s1 + $0x20] sm:$0xf]
  %v32 = vld [vmem:[%s1 + $0x24] sm:$0xf]
  %v33 = vld [vmem:[%s1 + $0x28] sm:$0xf]
  %v34 = vld [vmem:[%s1 + $0x2c] sm:$0xf]
  %v35 = vld [vmem:[%s1 + $0x30] sm:$0xf]
  %v36 = vld [vmem:[%s1 + $0x34] sm:$0xf]
  %v37 = vld [vmem:[%s1 + $0x38] sm:$0xf]
  %v38 = vld [vmem:[%s1 + $0x3c] sm:$0xf]
  %v39 = vld [vmem:[%s1 + $0x40] sm:$0xf]
  %v40 = vld [vmem:[%s1 + $0x44] sm:$0xf]
  %v41 = vld [vmem:[%s1 + $0x48] sm:$0xf]
  %v42 = vld [vmem:[%s1 + $0x4c] sm:$0xf]
  %v43 = vld [vmem:[%s1 + $0x50] sm:$0xf]
  %v44 = vld [vmem:[%s1 + $0x54] sm:$0xf]
  %v45 = vld [vmem:[%s1 + $0x58] sm:$0xf]
  %v46 = vld [vmem:[%s1 + $0x5c] sm:$0xf]
  %v47 = vld [vmem:[%s1 + $0x60] sm:$0xf]
  %v48 = vld [vmem:[%s1 + $0x64] sm:$0xf]
  %v49 = vld [vmem:[%s1 + $0x68] sm:$0xf]
  %v50 = vld [vmem:[%s1 + $0x6c] sm:$0xf]
  %v51 = vld [vmem:[%s1 + $0x70] sm:$0xf]
  %v52 = vld [vmem:[%s1 + $0x74] sm:$0xf]
  %v53 = vld [vmem:[%s1 + $0x78] sm:$0xf]
  %v54 = vld [vmem:[%s1 + $0x7c] sm:$0xf]
  %v55 = vld [vmem:[%s1 + $0x80] sm:$0xf]
  %v56 = vld [vmem:[%s1 + $0x84] sm:$0xf]
  %v57 = vld [vmem:[%s1 + $0x88] sm:$0xf]
  %v58 = vld [vmem:[%s1 + $0x8c] sm:$0xf]
  %v59 = vld [vmem:[%s1 + $0x90] sm:$0xf]
  %v60 = vld [vmem:[%s1 + $0x94] sm:$0xf]
  %v61 = vld [vmem:[%s1 + $0x98] sm:$0xf]
  %v62 = vld [vmem:[%s1 + $0x9c] sm:$0xf]
  %v63 = vld [vmem:[%s1 + $0xa0] sm:$0xf]
  %v64 = vld [vmem:[%s1 + $0xa4] sm:$0xf]
  %v65 = vld [vmem:[%s1 + $0xa8] sm:$0xf]
  %v66 = vld [vmem:[%s1 + $0xac] sm:$0xf]
  %v67 = vld [vmem:[%s1 + $0xb0] sm:$0xf]
  %v68 = vld [vmem:[%s1 + $0xb4] sm:$0xf]
  %v69 = vld [vmem:[%s1 + $0xb8] sm:$0xf]
  %v70 = vld [vmem:[%s1 + $0xbc] sm:$0xf]
  %v71 = vld [vmem:[%s1 + $0xc0] sm:$0xf]
  %v72 = vld [vmem:[%s1 + $0xc4] sm:$0xf]
  %v73 = vld [vmem:[%s1 + $0xc8] sm:$0xf]
  %v74 = vld [vmem:[%s1 + $0xcc] sm:$0xf]
  %v75 = vld [vmem:[%s1 + $0xd0] sm:$0xf]
  %v76 = vld [vmem:[%s1 + $0xd4] sm:$0xf]
  %v77 = vld [vmem:[%s1 + $0xd8] sm:$0xf]
  %v78 = vld [vmem:[%s1 + $0xdc] sm:$0xf]
  %v79 = vld [vmem:[%s1 + $0xe0] sm:$0xf]
  %v80 = vld [vmem:[%s1 + $0xe4] sm:$0xf]
  %v81 = vld [vmem:[%s1 + $0xe8] sm:$0xf]
  %v82 = vld [vmem:[%s1 + $0xec] sm:$0xf]
  %v83 = vld [vmem:[%s1 + $0xf0] sm:$0xf]
  %v84 = vld [vmem:[%s1 + $0xf4] sm:$0xf]
  %v85 = vld [vmem:[%s1 + $0xf8] sm:$0xf]
  %v86 = vld [vmem:[%s1 + $0xfc] sm:$0xf]
  %v87 = vld [vmem:[%s1 + $0x100] sm:$0xf]
  %v88 = vld [vmem:[%s1 + $0x104] sm:$0xf]
  %v89 = vld [vmem:[%s1 + $0x108] sm:$0xf]
  %v90 = vld [vmem:[%s1 + $0x10c] sm:$0xf]
  %v91 = vld [vmem:[%s1 + $0x110] sm:$0xf]
  %v92 = vld [vmem:[%s1 + $0x114] sm:$0xf]
  %v93 = vld [vmem:[%s1 + $0x118] sm:$0xf]
  %v94 = vld [vmem:[%s1 + $0x11c] sm:$0xf]
  %v95 = vld [vmem:[%s1 + $0x120] sm:$0xf]
  %v96 = vld [vmem:[%s1 + $0x124] sm:$0xf]
  %v97 = vld [vmem:[%s1 + $0x128] sm:$0xf]
  %v98 = vld [vmem:[%s1 + $0x12c] sm:$0xf]
  %v99 = vld [vmem:[%s1 + $0x130] sm:$0xf]
  %v100 = vld [vmem:[%s1 + $0x134] sm:$0xf]
  %v101 = vld [vmem:[%s1 + $0x138] sm:$0xf]
  %v102 = vld [vmem:[%s1 + $0x13c] sm:$0xf]
  %v103 = vld [vmem:[%s1 + $0x140] sm:$0xf]
  %v104 = vld [vmem:[%s1 + $0x144] sm:$0xf]
  %v105 = vld [vmem:[%s1 + $0x148] sm:$0xf]
  %v106 = vld [vmem:[%s1 + $0x14c] sm:$0xf]
  %v107 = vld [vmem:[%s1 + $0x150] sm:$0xf]
  %v108 = vld [vmem:[%s1 + $0x154] sm:$0xf]
  %v109 = vld [vmem:[%s1 + $0x158] sm:$0xf]
  %v110 = vld [vmem:[%s1 + $0x15c] sm:$0xf]
  %v111 = vld [vmem:[%s1 + $0x160] sm:$0xf]
  %v112 = vld [vmem:[%s1 + $0x164] sm:$0xf]
  %v113 = vld [vmem:[%s1 + $0x168] sm:$0xf]
  %v114 = vld [vmem:[%s1 + $0x16c] sm:$0xf]
  %v115 = vld [vmem:[%s1 + $0x170] sm:$0xf]
  %v116 = vld [vmem:[%s1 + $0x174] sm:$0xf]
  %v117 = vld [vmem:[%s1 + $0x178] sm:$0xf]
  %v118 = vld [vmem:[%s1 + $0x17c] sm:$0xf]
  %v119 = vld [vmem:[%s1 + $0x180] sm:$0xf]
  %v120 = vld [vmem:[%s1 + $0x184] sm:$0xf]
  %v121 = vld [vmem:[%s1 + $0x188] sm:$0xf]
  %v122 = vld [vmem:[%s1 + $0x18c] sm:$0xf]
  %v123 = vld [vmem:[%s1 + $0x190] sm:$0xf]
  %v124 = vld [vmem:[%s1 + $0x194] sm:$0xf]
  %v125 = vld [vmem:[%s1 + $0x198] sm:$0xf]
  %v126 = vld [vmem:[%s1 + $0x19c] sm:$0xf]
  %v127 = vld [vmem:[%s1 + $0x1a0] sm:$0xf]
  %v128 = vld [vmem:[%s1 + $0x1a4] sm:$0xf]
  %v129 = vld [vmem:[%s1 + $0x1a8] sm:$0xf]
  %v130 = vld [vmem:[%s1 + $0x1ac] sm:$0xf]
  %v131 = vld [vmem:[%s1 + $0x1b0] sm:$0xf]
  %v132 = vld [vmem:[%s1 + $0x1b4] sm:$0xf]
  %v133 = vld [vmem:[%s1 + $0x1b8] sm:$0xf]
  %v134 = vld [vmem:[%s1 + $0x1bc] sm:$0xf]
  %v135 = vld [vmem:[%s1 + $0x1c0] sm:$0xf]
  %v136 = vld [vmem:[%s1 + $0x1c4] sm:$0xf]
  %v137 = vld [vmem:[%s1 + $0x1c8] sm:$0xf]
  %v138 = vld [vmem:[%s1 + $0x1cc] sm:$0xf]
  %v139 = vld [vmem:[%s1 + $0x1d0] sm:$0xf]
  %v140 = vld [vmem:[%s1 + $0x1d4] sm:$0xf]
  %v141 = vld [vmem:[%s1 + $0x1d8] sm:$0xf]
  %v142 = vld [vmem:[%s1 + $0x1dc] sm:$0xf]
  %v143 = vld [vmem:[%s1 + $0x1e0] sm:$0xf]
  %v144 = vld [vmem:[%s1 + $0x1e4] sm:$0xf]
  %v145 = vld [vmem:[%s1 + $0x1e8] sm:$0xf]
  %v146 = vld [vmem:[%s1 + $0x1ec] sm:$0xf]
  %v147 = vld [vmem:[%s1 + $0x1f0] sm:$0xf]
  %v148 = vld [vmem:[%s1 + $0x1f4] sm:$0xf]
  %v149 = vld [vmem:[%s1 + $0x1f8] sm:$0xf]
  %v150 = vld [vmem:[%s1 + $0x1fc] sm:$0xf]
  %v151 = vld [vmem:[%s1 + $0x200] sm:$0xf]
  %v152 = vld [vmem:[%s1 + $0x204] sm:$0xf]
  %v153 = vld [vmem:[%s1 + $0x208] sm:$0xf]
  %v154 = vld [vmem:[%s1 + $0x20c] sm:$0xf]
  %v155 = vld [vmem:[%s1 + $0x210] sm:$0xf]
  %v156 = vld [vmem:[%s1 + $0x214] sm:$0xf]
  %v157 = vld [vmem:[%s1 + $0x218] sm:$0xf]
  %v158 = vld [vmem:[%s1 + $0x21c] sm:$0xf]
  %v159 = vld [vmem:[%s1 + $0x220] sm:$0xf]
  %v160 = vld [vmem:[%s1 + $0x224] sm:$0xf]
  %v161 = vld [vmem:[%s1 + $0x228] sm:$0xf]
  %v162 = vld [vmem:[%s1 + $0x22c] sm:$0xf]
  %v163 = vld [vmem:[%s1 + $0x230] sm:$0xf]
  %v164 = vld [vmem:[%s1 + $0x234] sm:$0xf]
  %v165 = vld [vmem:[%s1 + $0x238] sm:$0xf]
  %v166 = vld [vmem:[%s1 + $0x23c] sm:$0xf]
  %v167 = vld [vmem:[%s1 + $0x240] sm:$0xf]
  %v168 = vld [vmem:[%s1 + $0x244] sm:$0xf]
  %v169 = vld [vmem:[%s1 + $0x248] sm:$0xf]
  %v170 = vld [vmem:[%s1 + $0x24c] sm:$0xf]
  %v171 = vld [vmem:[%s1 + $0x250] sm:$0xf]
  %v172 = vld [vmem:[%s1 + $0x254] sm:$0xf]
  %v173 = vld [vmem:[%s1 + $0x258] sm:$0xf]
  %v174 = vld [vmem:[%s1 + $0x25c] sm:$0xf]
  %v175 = vld [vmem:[%s1 + $0x260] sm:$0xf]
  %v176 = vld [vmem:[%s1 + $0x264] sm:$0xf]
  %v177 = vld [vmem:[%s1 + $0x268] sm:$0xf]
  %v178 = vld [vmem:[%s1 + $0x26c] sm:$0xf]
  %v179 = vld [vmem:[%s1 + $0x270] sm:$0xf]
  %v180 = vld [vmem:[%s1 + $0x274] sm:$0xf]
  %v181 = vld [vmem:[%s1 + $0x278] sm:$0xf]
  %v182 = vld [vmem:[%s1 + $0x27c] sm:$0xf]
  %v183 = vld [vmem:[%s1 + $0x280] sm:$0xf]
  %v184 = vld [vmem:[%s1 + $0x284] sm:$0xf]
  %v185 = vld [vmem:[%s1 + $0x288] sm:$0xf]
  %v186 = vld [vmem:[%s1 + $0x28c] sm:$0xf]
  %v187 = vld [vmem:[%s1 + $0x290] sm:$0xf]
  %v188 = vld [vmem:[%s1 + $0x294] sm:$0xf]
  %v189 = vld [vmem:[%s1 + $0x298] sm:$0xf]
  %v190 = vld [vmem:[%s1 + $0x29c] sm:$0xf]
  %v191 = vld [vmem:[%s1 + $0x2a0] sm:$0xf]
  %v192 = vld [vmem:[%s1 + $0x2a4] sm:$0xf]
  %v193 = vld [vmem:[%s1 + $0x2a8] sm:$0xf]
  %v194 = vld [vmem:[%s1 + $0x2ac] sm:$0xf]
  %v195 = vld [vmem:[%s1 + $0x2b0] sm:$0xf]
  %v196 = vld [vmem:[%s1 + $0x2b4] sm:$0xf]
  %v197 = vld [vmem:[%s1 + $0x2b8] sm:$0xf]
  %v198 = vld [vmem:[%s1 + $0x2bc] sm:$0xf]
  %v199 = vld [vmem:[%s1 + $0x2c0] sm:$0xf]
  %v200 = vld [vmem:[%s1 + $0x2c4] sm:$0xf]
  %v201 = vld [vmem:[%s1 + $0x2c8] sm:$0xf]
  %v202 = vld [vmem:[%s1 + $0x2cc] sm:$0xf]
  %v203 = vld [vmem:[%s1 + $0x2d0] sm:$0xf]
  %v204 = vld [vmem:[%s1 + $0x2d4] sm:$0xf]
  %v205 = vld [vmem:[%s1 + $0x2d8] sm:$0xf]
  %v206 = vld [vmem:[%s1 + $0x2dc] sm:$0xf]
  %v207 = vld [vmem:[%s1 + $0x2e0] sm:$0xf]
  %v208 = vld [vmem:[%s1 + $0x2e4] sm:$0xf]
  %v209 = vld [vmem:[%s1 + $0x2e8] sm:$0xf]
  %v210 = vld [vmem:[%s1 + $0x2ec] sm:$0xf]
  %v211 = vld [vmem:[%s1 + $0x2f0] sm:$0xf]
  %v212 = vld [vmem:[%s1 + $0x2f4] sm:$0xf]
  %v213 = vld [vmem:[%s1 + $0x2f8] sm:$0xf]
  %v214 = vld [vmem:[%s1 + $0x2fc] sm:$0xf]
  %v215 = vld [vmem:[%s1 + $0x300] sm:$0xf]
  %v216 = vld [vmem:[%s1 + $0x304] sm:$0xf]
  %v217 = vld [vmem:[%s1 + $0x308] sm:$0xf]
  %v218 = vld [vmem:[%s1 + $0x30c] sm:$0xf]
  %v219 = vld [vmem:[%s1 + $0x310] sm:$0xf]
  %v220 = vld [vmem:[%s1 + $0x314] sm:$0xf]
  %v221 = vld [vmem:[%s1 + $0x318] sm:$0xf]
  %v222 = vld [vmem:[%s1 + $0x31c] sm:$0xf]
  %v223 = vld [vmem:[%s1 + $0x320] sm:$0xf]
  %v224 = vld [vmem:[%s1 + $0x324] sm:$0xf]
  %v225 = vld [vmem:[%s1 + $0x328] sm:$0xf]
  %v226 = vld [vmem:[%s1 + $0x32c] sm:$0xf]
  %v227 = vld [vmem:[%s1 + $0x330] sm:$0xf]
  %v228 = vld [vmem:[%s1 + $0x334] sm:$0xf]
  %v229 = vld [vmem:[%s1 + $0x338] sm:$0xf]
  %v230 = vld [vmem:[%s1 + $0x33c] sm:$0xf]
  %v231 = vld [vmem:[%s1 + $0x340] sm:$0xf]
  %v232 = vld [vmem:[%s1 + $0x344] sm:$0xf]
  %v233 = vld [vmem:[%s1 + $0x348] sm:$0xf]
  %v234 = vld [vmem:[%s1 + $0x34c] sm:$0xf]
  %v235 = vld [vmem:[%s1 + $0x350] sm:$0xf]
  %v236 = vld [vmem:[%s1 + $0x354] sm:$0xf]
  %v237 = vld [vmem:[%s1 + $0x358] sm:$0xf]
  %v238 = vld [vmem:[%s1 + $0x35c] sm:$0xf]
  %v239 = vld [vmem:[%s1 + $0x360] sm:$0xf]
  %v240 = vld [vmem:[%s1 + $0x364] sm:$0xf]
  %v241 = vld [vmem:[%s1 + $0x368] sm:$0xf]
  %v242 = vld [vmem:[%s1 + $0x36c] sm:$0xf]
  %v243 = vld [vmem:[%s1 + $0x370] sm:$0xf]
  %v244 = vld [vmem:[%s1 + $0x374] sm:$0xf]
  %v245 = vld [vmem:[%s1 + $0x378] sm:$0xf]
  %v246 = vld [vmem:[%s1 + $0x37c] sm:$0xf]
  %v247 = vld [vmem:[%s1 + $0x380] sm:$0xf]
  %v248 = vld [vmem:[%s1 + $0x384] sm:$0xf]
  %v249 = vld [vmem:[%s1 + $0x388] sm:$0xf]
  %v250 = vld [vmem:[%s1 + $0x38c] sm:$0xf]
  %v251 = vld [vmem:[%s1 + $0x390] sm:$0xf]
  %v252 = vld [vmem:[%s1 + $0x394] sm:$0xf]
  %v253 = vld [vmem:[%s1 + $0x398] sm:$0xf]
  %v254 = vld [vmem:[%s1 + $0x39c] sm:$0xf]
  %v255 = vld [vmem:[%s1 + $0x3a0] sm:$0xf]
  %v256 = vld [vmem:[%s1 + $0x3a4] sm:$0xf]
  %v257 = vld [vmem:[%s1 + $0x3a8] sm:$0xf]
  %v258 = vld [vmem:[%s1 + $0x3ac] sm:$0xf]
  %v259 = vld [vmem:[%s1 + $0x3b0] sm:$0xf]
  %v260 = vld [vmem:[%s1 + $0x3b4] sm:$0xf]
  %v261 = vld [vmem:[%s1 + $0x3b8] sm:$0xf]
  %v262 = vld [vmem:[%s1 + $0x3bc] sm:$0xf]
  %v263 = vld [vmem:[%s1 + $0x3c0] sm:$0xf]
  %v264 = vld [vmem:[%s1 + $0x3c4] sm:$0xf]
  %v265 = vld [vmem:[%s1 + $0x3c8] sm:$0xf]
  %v266 = vld [vmem:[%s1 + $0x3cc] sm:$0xf]
  %v267 = vld [vmem:[%s1 + $0x3d0] sm:$0xf]
  %v268 = vld [vmem:[%s1 + $0x3d4] sm:$0xf]
  %v269 = vld [vmem:[%s1 + $0x3d8] sm:$0xf]
  %v270 = vld [vmem:[%s1 + $0x3dc] sm:$0xf]
  %v271 = vld [vmem:[%s1 + $0x3e0] sm:$0xf]
  %v272 = vld [vmem:[%s1 + $0x3e4] sm:$0xf]
  %v273 = vld [vmem:[%s1 + $0x3e8] sm:$0xf]
  %v274 = vld [vmem:[%s1 + $0x3ec] sm:$0xf]
  %v275 = vld [vmem:[%s1 + $0x3f0] sm:$0xf]
  %v276 = vld [vmem:[%s1 + $0x3f4] sm:$0xf]
  %v277 = vld [vmem:[%s1 + $0x3f8] sm:$0xf]
  %v278 = vld [vmem:[%s1 + $0x3fc] sm:$0xf]
  %v279 = vld [vmem:[%s2] sm:$0x1]
  %v281 = vlaneseq
  %v282 = vshrl.u32 %v281, 7
  %v283 = vsub.s32 0, %v282
  %v284 = vrot.slane %v279, %v283
  %v294 = vunpack.c.l.b16 %v15
  %v295 = vunpack.c.h.b16 %v15
  %v296 = vunpack.c.l.b16 %v16
  %v297 = vunpack.c.h.b16 %v16
  %v298 = vunpack.c.l.b16 %v17
  %v299 = vunpack.c.h.b16 %v17
  %v300 = vunpack.c.l.b16 %v18
  %v301 = vunpack.c.h.b16 %v18
  %v302 = vunpack.c.l.b16 %v19
  %v303 = vunpack.c.h.b16 %v19
  %v304 = vunpack.c.l.b16 %v20
  %v305 = vunpack.c.h.b16 %v20
  %v306 = vunpack.c.l.b16 %v21
  %v307 = vunpack.c.h.b16 %v21
  %v308 = vunpack.c.l.b16 %v22
  %v309 = vunpack.c.h.b16 %v22
  %v310 = vpack.c.b16 %v294, %v294
  %v311 = vpack.c.b16 %v295, %v295
  %v312 = vpack.c.b16 %v296, %v296
  %v313 = vpack.c.b16 %v297, %v297
  %v314 = vpack.c.b16 %v298, %v298
  %v315 = vpack.c.b16 %v299, %v299
  %v316 = vpack.c.b16 %v300, %v300
  %v317 = vpack.c.b16 %v301, %v301
  %v318 = vpack.c.b16 %v302, %v302
  %v319 = vpack.c.b16 %v303, %v303
  %v320 = vpack.c.b16 %v304, %v304
  %v321 = vpack.c.b16 %v305, %v305
  %v322 = vpack.c.b16 %v306, %v306
  %v323 = vpack.c.b16 %v307, %v307
  %v324 = vpack.c.b16 %v308, %v308
  %v325 = vpack.c.b16 %v309, %v309
  %v598 = vunpack.c.l.b16 %v23
  %v599 = vunpack.c.l.b16 %v24
  %v600 = vunpack.c.l.b16 %v25
  %v601 = vunpack.c.l.b16 %v26
  %v602 = vunpack.c.l.b16 %v27
  %v603 = vunpack.c.l.b16 %v28
  %v604 = vunpack.c.l.b16 %v29
  %v605 = vunpack.c.l.b16 %v30
  %v606 = vunpack.c.l.b16 %v31
  %v607 = vunpack.c.l.b16 %v32
  %v608 = vunpack.c.l.b16 %v33
  %v609 = vunpack.c.l.b16 %v34
  %v610 = vunpack.c.l.b16 %v35
  %v611 = vunpack.c.l.b16 %v36
  %v612 = vunpack.c.l.b16 %v37
  %v613 = vunpack.c.l.b16 %v38
  %v614 = vunpack.c.l.b16 %v39
  %v615 = vunpack.c.l.b16 %v40
  %v616 = vunpack.c.l.b16 %v41
  %v617 = vunpack.c.l.b16 %v42
  %v618 = vunpack.c.l.b16 %v43
  %v619 = vunpack.c.l.b16 %v44
  %v620 = vunpack.c.l.b16 %v45
  %v621 = vunpack.c.l.b16 %v46
  %v622 = vunpack.c.l.b16 %v47
  %v623 = vunpack.c.l.b16 %v48
  %v624 = vunpack.c.l.b16 %v49
  %v625 = vunpack.c.l.b16 %v50
  %v626 = vunpack.c.l.b16 %v51
  %v627 = vunpack.c.l.b16 %v52
  %v628 = vunpack.c.l.b16 %v53
  %v629 = vunpack.c.l.b16 %v54
  %v630 = vunpack.c.l.b16 %v55
  %v631 = vunpack.c.l.b16 %v56
  %v632 = vunpack.c.l.b16 %v57
  %v633 = vunpack.c.l.b16 %v58
  %v634 = vunpack.c.l.b16 %v59
  %v635 = vunpack.c.l.b16 %v60
  %v636 = vunpack.c.l.b16 %v61
  %v637 = vunpack.c.l.b16 %v62
  %v638 = vunpack.c.l.b16 %v63
  %v639 = vunpack.c.l.b16 %v64
  %v640 = vunpack.c.l.b16 %v65
  %v641 = vunpack.c.l.b16 %v66
  %v642 = vunpack.c.l.b16 %v67
  %v643 = vunpack.c.l.b16 %v68
  %v644 = vunpack.c.l.b16 %v69
  %v645 = vunpack.c.l.b16 %v70
  %v646 = vunpack.c.l.b16 %v71
  %v647 = vunpack.c.l.b16 %v72
  %v648 = vunpack.c.l.b16 %v73
  %v649 = vunpack.c.l.b16 %v74
  %v650 = vunpack.c.l.b16 %v75
  %v651 = vunpack.c.l.b16 %v76
  %v652 = vunpack.c.l.b16 %v77
  %v653 = vunpack.c.l.b16 %v78
  %v654 = vunpack.c.l.b16 %v79
  %v655 = vunpack.c.l.b16 %v80
  %v656 = vunpack.c.l.b16 %v81
  %v657 = vunpack.c.l.b16 %v82
  %v658 = vunpack.c.l.b16 %v83
  %v659 = vunpack.c.l.b16 %v84
  %v660 = vunpack.c.l.b16 %v85
  %v661 = vunpack.c.l.b16 %v86
  %v662 = vunpack.c.l.b16 %v87
  %v663 = vunpack.c.l.b16 %v88
  %v664 = vunpack.c.l.b16 %v89
  %v665 = vunpack.c.l.b16 %v90
  %v666 = vunpack.c.l.b16 %v91
  %v667 = vunpack.c.l.b16 %v92
  %v668 = vunpack.c.l.b16 %v93
  %v669 = vunpack.c.l.b16 %v94
  %v670 = vunpack.c.l.b16 %v95
  %v671 = vunpack.c.l.b16 %v96
  %v672 = vunpack.c.l.b16 %v97
  %v673 = vunpack.c.l.b16 %v98
  %v674 = vunpack.c.l.b16 %v99
  %v675 = vunpack.c.l.b16 %v100
  %v676 = vunpack.c.l.b16 %v101
  %v677 = vunpack.c.l.b16 %v102
  %v678 = vunpack.c.l.b16 %v103
  %v679 = vunpack.c.l.b16 %v104
  %v680 = vunpack.c.l.b16 %v105
  %v681 = vunpack.c.l.b16 %v106
  %v682 = vunpack.c.l.b16 %v107
  %v683 = vunpack.c.l.b16 %v108
  %v684 = vunpack.c.l.b16 %v109
  %v685 = vunpack.c.l.b16 %v110
  %v686 = vunpack.c.l.b16 %v111
  %v687 = vunpack.c.l.b16 %v112
  %v688 = vunpack.c.l.b16 %v113
  %v689 = vunpack.c.l.b16 %v114
  %v690 = vunpack.c.l.b16 %v115
  %v691 = vunpack.c.l.b16 %v116
  %v692 = vunpack.c.l.b16 %v117
  %v693 = vunpack.c.l.b16 %v118
  %v694 = vunpack.c.l.b16 %v119
  %v695 = vunpack.c.l.b16 %v120
  %v696 = vunpack.c.l.b16 %v121
  %v697 = vunpack.c.l.b16 %v122
  %v698 = vunpack.c.l.b16 %v123
  %v699 = vunpack.c.l.b16 %v124
  %v700 = vunpack.c.l.b16 %v125
  %v701 = vunpack.c.l.b16 %v126
  %v702 = vunpack.c.l.b16 %v127
  %v703 = vunpack.c.l.b16 %v128
  %v704 = vunpack.c.l.b16 %v129
  %v705 = vunpack.c.l.b16 %v130
  %v706 = vunpack.c.l.b16 %v131
  %v707 = vunpack.c.l.b16 %v132
  %v708 = vunpack.c.l.b16 %v133
  %v709 = vunpack.c.l.b16 %v134
  %v710 = vunpack.c.l.b16 %v135
  %v711 = vunpack.c.l.b16 %v136
  %v712 = vunpack.c.l.b16 %v137
  %v713 = vunpack.c.l.b16 %v138
  %v714 = vunpack.c.l.b16 %v139
  %v715 = vunpack.c.l.b16 %v140
  %v716 = vunpack.c.l.b16 %v141
  %v717 = vunpack.c.l.b16 %v142
  %v718 = vunpack.c.l.b16 %v143
  %v719 = vunpack.c.l.b16 %v144
  %v720 = vunpack.c.l.b16 %v145
  %v721 = vunpack.c.l.b16 %v146
  %v722 = vunpack.c.l.b16 %v147
  %v723 = vunpack.c.l.b16 %v148
  %v724 = vunpack.c.l.b16 %v149
  %v725 = vunpack.c.l.b16 %v150
  %v726 = vunpack.c.l.b16 %v151
  %v727 = vunpack.c.l.b16 %v152
  %v728 = vunpack.c.l.b16 %v153
  %v729 = vunpack.c.l.b16 %v154
  %v730 = vunpack.c.l.b16 %v155
  %v731 = vunpack.c.l.b16 %v156
  %v732 = vunpack.c.l.b16 %v157
  %v733 = vunpack.c.l.b16 %v158
  %v734 = vunpack.c.l.b16 %v159
  %v735 = vunpack.c.l.b16 %v160
  %v736 = vunpack.c.l.b16 %v161
  %v737 = vunpack.c.l.b16 %v162
  %v738 = vunpack.c.l.b16 %v163
  %v739 = vunpack.c.l.b16 %v164
  %v740 = vunpack.c.l.b16 %v165
  %v741 = vunpack.c.l.b16 %v166
  %v742 = vunpack.c.l.b16 %v167
  %v743 = vunpack.c.l.b16 %v168
  %v744 = vunpack.c.l.b16 %v169
  %v745 = vunpack.c.l.b16 %v170
  %v746 = vunpack.c.l.b16 %v171
  %v747 = vunpack.c.l.b16 %v172
  %v748 = vunpack.c.l.b16 %v173
  %v749 = vunpack.c.l.b16 %v174
  %v750 = vunpack.c.l.b16 %v175
  %v751 = vunpack.c.l.b16 %v176
  %v752 = vunpack.c.l.b16 %v177
  %v753 = vunpack.c.l.b16 %v178
  %v754 = vunpack.c.l.b16 %v179
  %v755 = vunpack.c.l.b16 %v180
  %v756 = vunpack.c.l.b16 %v181
  %v757 = vunpack.c.l.b16 %v182
  %v758 = vunpack.c.l.b16 %v183
  %v759 = vunpack.c.l.b16 %v184
  %v760 = vunpack.c.l.b16 %v185
  %v761 = vunpack.c.l.b16 %v186
  %v762 = vunpack.c.l.b16 %v187
  %v763 = vunpack.c.l.b16 %v188
  %v764 = vunpack.c.l.b16 %v189
  %v765 = vunpack.c.l.b16 %v190
  %v766 = vunpack.c.l.b16 %v191
  %v767 = vunpack.c.l.b16 %v192
  %v768 = vunpack.c.l.b16 %v193
  %v769 = vunpack.c.l.b16 %v194
  %v770 = vunpack.c.l.b16 %v195
  %v771 = vunpack.c.l.b16 %v196
  %v772 = vunpack.c.l.b16 %v197
  %v773 = vunpack.c.l.b16 %v198
  %v774 = vunpack.c.l.b16 %v199
  %v775 = vunpack.c.l.b16 %v200
  %v776 = vunpack.c.l.b16 %v201
  %v777 = vunpack.c.l.b16 %v202
  %v778 = vunpack.c.l.b16 %v203
  %v779 = vunpack.c.l.b16 %v204
  %v780 = vunpack.c.l.b16 %v205
  %v781 = vunpack.c.l.b16 %v206
  %v782 = vunpack.c.l.b16 %v207
  %v783 = vunpack.c.l.b16 %v208
  %v784 = vunpack.c.l.b16 %v209
  %v785 = vunpack.c.l.b16 %v210
  %v786 = vunpack.c.l.b16 %v211
  %v787 = vunpack.c.l.b16 %v212
  %v788 = vunpack.c.l.b16 %v213
  %v789 = vunpack.c.l.b16 %v214
  %v790 = vunpack.c.l.b16 %v215
  %v791 = vunpack.c.l.b16 %v216
  %v792 = vunpack.c.l.b16 %v217
  %v793 = vunpack.c.l.b16 %v218
  %v794 = vunpack.c.l.b16 %v219
  %v795 = vunpack.c.l.b16 %v220
  %v796 = vunpack.c.l.b16 %v221
  %v797 = vunpack.c.l.b16 %v222
  %v798 = vunpack.c.l.b16 %v223
  %v799 = vunpack.c.l.b16 %v224
  %v800 = vunpack.c.l.b16 %v225
  %v801 = vunpack.c.l.b16 %v226
  %v802 = vunpack.c.l.b16 %v227
  %v803 = vunpack.c.l.b16 %v228
  %v804 = vunpack.c.l.b16 %v229
  %v805 = vunpack.c.l.b16 %v230
  %v806 = vunpack.c.l.b16 %v231
  %v807 = vunpack.c.l.b16 %v232
  %v808 = vunpack.c.l.b16 %v233
  %v809 = vunpack.c.l.b16 %v234
  %v810 = vunpack.c.l.b16 %v235
  %v811 = vunpack.c.l.b16 %v236
  %v812 = vunpack.c.l.b16 %v237
  %v813 = vunpack.c.l.b16 %v238
  %v814 = vunpack.c.l.b16 %v239
  %v815 = vunpack.c.l.b16 %v240
  %v816 = vunpack.c.l.b16 %v241
  %v817 = vunpack.c.l.b16 %v242
  %v818 = vunpack.c.l.b16 %v243
  %v819 = vunpack.c.l.b16 %v244
  %v820 = vunpack.c.l.b16 %v245
  %v821 = vunpack.c.l.b16 %v246
  %v822 = vunpack.c.l.b16 %v247
  %v823 = vunpack.c.l.b16 %v248
  %v824 = vunpack.c.l.b16 %v249
  %v825 = vunpack.c.l.b16 %v250
  %v826 = vunpack.c.l.b16 %v251
  %v827 = vunpack.c.l.b16 %v252
  %v828 = vunpack.c.l.b16 %v253
  %v829 = vunpack.c.l.b16 %v254
  %v830 = vunpack.c.l.b16 %v255
  %v831 = vunpack.c.l.b16 %v256
  %v832 = vunpack.c.l.b16 %v257
  %v833 = vunpack.c.l.b16 %v258
  %v834 = vunpack.c.l.b16 %v259
  %v835 = vunpack.c.l.b16 %v260
  %v836 = vunpack.c.l.b16 %v261
  %v837 = vunpack.c.l.b16 %v262
  %v838 = vunpack.c.l.b16 %v263
  %v839 = vunpack.c.l.b16 %v264
  %v840 = vunpack.c.l.b16 %v265
  %v841 = vunpack.c.l.b16 %v266
  %v842 = vunpack.c.l.b16 %v267
  %v843 = vunpack.c.l.b16 %v268
  %v844 = vunpack.c.l.b16 %v269
  %v845 = vunpack.c.l.b16 %v270
  %v846 = vunpack.c.l.b16 %v271
  %v847 = vunpack.c.l.b16 %v272
  %v848 = vunpack.c.l.b16 %v273
  %v849 = vunpack.c.l.b16 %v274
  %v850 = vunpack.c.l.b16 %v275
  %v851 = vunpack.c.l.b16 %v276
  %v852 = vunpack.c.l.b16 %v277
  %v853 = vunpack.c.l.b16 %v278
  %v854 = vpack.c.b16 %v599, %v598
  %v855 = vpack.c.b16 %v601, %v600
  %v856 = vpack.c.b16 %v603, %v602
  %v857 = vpack.c.b16 %v605, %v604
  %v858 = vpack.c.b16 %v607, %v606
  %v859 = vpack.c.b16 %v609, %v608
  %v860 = vpack.c.b16 %v611, %v610
  %v861 = vpack.c.b16 %v613, %v612
  %v862 = vpack.c.b16 %v615, %v614
  %v863 = vpack.c.b16 %v617, %v616
  %v864 = vpack.c.b16 %v619, %v618
  %v865 = vpack.c.b16 %v621, %v620
  %v866 = vpack.c.b16 %v623, %v622
  %v867 = vpack.c.b16 %v625, %v624
  %v868 = vpack.c.b16 %v627, %v626
  %v869 = vpack.c.b16 %v629, %v628
  %v870 = vpack.c.b16 %v631, %v630
  %v871 = vpack.c.b16 %v633, %v632
  %v872 = vpack.c.b16 %v635, %v634
  %v873 = vpack.c.b16 %v637, %v636
  %v874 = vpack.c.b16 %v639, %v638
  %v875 = vpack.c.b16 %v641, %v640
  %v876 = vpack.c.b16 %v643, %v642
  %v877 = vpack.c.b16 %v645, %v644
  %v878 = vpack.c.b16 %v647, %v646
  %v879 = vpack.c.b16 %v649, %v648
  %v880 = vpack.c.b16 %v651, %v650
  %v881 = vpack.c.b16 %v653, %v652
  %v882 = vpack.c.b16 %v655, %v654
  %v883 = vpack.c.b16 %v657, %v656
  %v884 = vpack.c.b16 %v659, %v658
  %v885 = vpack.c.b16 %v661, %v660
  %v886 = vpack.c.b16 %v663, %v662
  %v887 = vpack.c.b16 %v665, %v664
  %v888 = vpack.c.b16 %v667, %v666
  %v889 = vpack.c.b16 %v669, %v668
  %v890 = vpack.c.b16 %v671, %v670
  %v891 = vpack.c.b16 %v673, %v672
  %v892 = vpack.c.b16 %v675, %v674
  %v893 = vpack.c.b16 %v677, %v676
  %v894 = vpack.c.b16 %v679, %v678
  %v895 = vpack.c.b16 %v681, %v680
  %v896 = vpack.c.b16 %v683, %v682
  %v897 = vpack.c.b16 %v685, %v684
  %v898 = vpack.c.b16 %v687, %v686
  %v899 = vpack.c.b16 %v689, %v688
  %v900 = vpack.c.b16 %v691, %v690
  %v901 = vpack.c.b16 %v693, %v692
  %v902 = vpack.c.b16 %v695, %v694
  %v903 = vpack.c.b16 %v697, %v696
  %v904 = vpack.c.b16 %v699, %v698
  %v905 = vpack.c.b16 %v701, %v700
  %v906 = vpack.c.b16 %v703, %v702
  %v907 = vpack.c.b16 %v705, %v704
  %v908 = vpack.c.b16 %v707, %v706
  %v909 = vpack.c.b16 %v709, %v708
  %v910 = vpack.c.b16 %v711, %v710
  %v911 = vpack.c.b16 %v713, %v712
  %v912 = vpack.c.b16 %v715, %v714
  %v913 = vpack.c.b16 %v717, %v716
  %v914 = vpack.c.b16 %v719, %v718
  %v915 = vpack.c.b16 %v721, %v720
  %v916 = vpack.c.b16 %v723, %v722
  %v917 = vpack.c.b16 %v725, %v724
  %v918 = vpack.c.b16 %v727, %v726
  %v919 = vpack.c.b16 %v729, %v728
  %v920 = vpack.c.b16 %v731, %v730
  %v921 = vpack.c.b16 %v733, %v732
  %v922 = vpack.c.b16 %v735, %v734
  %v923 = vpack.c.b16 %v737, %v736
  %v924 = vpack.c.b16 %v739, %v738
  %v925 = vpack.c.b16 %v741, %v740
  %v926 = vpack.c.b16 %v743, %v742
  %v927 = vpack.c.b16 %v745, %v744
  %v928 = vpack.c.b16 %v747, %v746
  %v929 = vpack.c.b16 %v749, %v748
  %v930 = vpack.c.b16 %v751, %v750
  %v931 = vpack.c.b16 %v753, %v752
  %v932 = vpack.c.b16 %v755, %v754
  %v933 = vpack.c.b16 %v757, %v756
  %v934 = vpack.c.b16 %v759, %v758
  %v935 = vpack.c.b16 %v761, %v760
  %v936 = vpack.c.b16 %v763, %v762
  %v937 = vpack.c.b16 %v765, %v764
  %v938 = vpack.c.b16 %v767, %v766
  %v939 = vpack.c.b16 %v769, %v768
  %v940 = vpack.c.b16 %v771, %v770
  %v941 = vpack.c.b16 %v773, %v772
  %v942 = vpack.c.b16 %v775, %v774
  %v943 = vpack.c.b16 %v777, %v776
  %v944 = vpack.c.b16 %v779, %v778
  %v945 = vpack.c.b16 %v781, %v780
  %v946 = vpack.c.b16 %v783, %v782
  %v947 = vpack.c.b16 %v785, %v784
  %v948 = vpack.c.b16 %v787, %v786
  %v949 = vpack.c.b16 %v789, %v788
  %v950 = vpack.c.b16 %v791, %v790
  %v951 = vpack.c.b16 %v793, %v792
  %v952 = vpack.c.b16 %v795, %v794
  %v953 = vpack.c.b16 %v797, %v796
  %v954 = vpack.c.b16 %v799, %v798
  %v955 = vpack.c.b16 %v801, %v800
  %v956 = vpack.c.b16 %v803, %v802
  %v957 = vpack.c.b16 %v805, %v804
  %v958 = vpack.c.b16 %v807, %v806
  %v959 = vpack.c.b16 %v809, %v808
  %v960 = vpack.c.b16 %v811, %v810
  %v961 = vpack.c.b16 %v813, %v812
  %v962 = vpack.c.b16 %v815, %v814
  %v963 = vpack.c.b16 %v817, %v816
  %v964 = vpack.c.b16 %v819, %v818
  %v965 = vpack.c.b16 %v821, %v820
  %v966 = vpack.c.b16 %v823, %v822
  %v967 = vpack.c.b16 %v825, %v824
  %v968 = vpack.c.b16 %v827, %v826
  %v969 = vpack.c.b16 %v829, %v828
  %v970 = vpack.c.b16 %v831, %v830
  %v971 = vpack.c.b16 %v833, %v832
  %v972 = vpack.c.b16 %v835, %v834
  %v973 = vpack.c.b16 %v837, %v836
  %v974 = vpack.c.b16 %v839, %v838
  %v975 = vpack.c.b16 %v841, %v840
  %v976 = vpack.c.b16 %v843, %v842
  %v977 = vpack.c.b16 %v845, %v844
  %v978 = vpack.c.b16 %v847, %v846
  %v979 = vpack.c.b16 %v849, %v848
  %v980 = vpack.c.b16 %v851, %v850
  %v981 = vpack.c.b16 %v853, %v852
  %1110 = vmatprep.subr.bf16.mxu0 0
  %1111 = vmatpush1.bf16.msra.mxu0 %v854
  %1112 = vmatprep.subr.bf16.mxu0 0
  %1113 = vmatpush1.bf16.msra.mxu0 %v855
  %1114 = vmatprep.subr.bf16.mxu0 0
  %1115 = vmatpush1.bf16.msra.mxu0 %v856
  %1116 = vmatprep.subr.bf16.mxu0 0
  %1117 = vmatpush1.bf16.msra.mxu0 %v857
  %1118 = vmatprep.subr.bf16.mxu0 0
  %1119 = vmatpush1.bf16.msra.mxu0 %v858
  %1120 = vmatprep.subr.bf16.mxu0 0
  %1121 = vmatpush1.bf16.msra.mxu0 %v859
  %1122 = vmatprep.subr.bf16.mxu0 0
  %1123 = vmatpush1.bf16.msra.mxu0 %v860
  %1124 = vmatprep.subr.bf16.mxu0 0
  %1125 = vmatpush1.bf16.msra.mxu0 %v861
  %1126 = vmatprep.subr.bf16.mxu0 0
  %1127 = vmatpush1.bf16.msra.mxu0 %v862
  %1128 = vmatprep.subr.bf16.mxu0 0
  %1129 = vmatpush1.bf16.msra.mxu0 %v863
  %1130 = vmatprep.subr.bf16.mxu0 0
  %1131 = vmatpush1.bf16.msra.mxu0 %v864
  %1132 = vmatprep.subr.bf16.mxu0 0
  %1133 = vmatpush1.bf16.msra.mxu0 %v865
  %1134 = vmatprep.subr.bf16.mxu0 0
  %1135 = vmatpush1.bf16.msra.mxu0 %v866
  %1136 = vmatprep.subr.bf16.mxu0 0
  %1137 = vmatpush1.bf16.msra.mxu0 %v867
  %1138 = vmatprep.subr.bf16.mxu0 0
  %1139 = vmatpush1.bf16.msra.mxu0 %v868
  %1140 = vmatprep.subr.bf16.mxu0 0
  %1141 = vmatpush1.bf16.msra.mxu0 %v869
  %1142 = vmatprep.mubr.bf16.mxu0 %v311
  %1143 = vmatmul.mubr.bf16.gmra.mrb[0].mxu0 %v310
  %v1144 = vpop.f32.mrb[0].mxu0
  %v1145 = vadd.f32 %v284, %v1144
  %v1146 = vpop.f32.mrb[0].mxu0
  %v1147 = vpop.f32.mrb[0].mxu0
  %v1148 = vpop.f32.mrb[0].mxu0
  %1149 = vdwg.mxu0
  %1150 = vmatprep.subr.bf16.mxu0 0
  %1151 = vmatpush1.bf16.msra.mxu0 %v870
  %1152 = vmatprep.subr.bf16.mxu0 0
  %1153 = vmatpush1.bf16.msra.mxu0 %v871
  %1154 = vmatprep.subr.bf16.mxu0 0
  %1155 = vmatpush1.bf16.msra.mxu0 %v872
  %1156 = vmatprep.subr.bf16.mxu0 0
  %1157 = vmatpush1.bf16.msra.mxu0 %v873
  %1158 = vmatprep.subr.bf16.mxu0 0
  %1159 = vmatpush1.bf16.msra.mxu0 %v874
  %1160 = vmatprep.subr.bf16.mxu0 0
  %1161 = vmatpush1.bf16.msra.mxu0 %v875
  %1162 = vmatprep.subr.bf16.mxu0 0
  %1163 = vmatpush1.bf16.msra.mxu0 %v876
  %1164 = vmatprep.subr.bf16.mxu0 0
  %1165 = vmatpush1.bf16.msra.mxu0 %v877
  %1166 = vmatprep.subr.bf16.mxu0 0
  %1167 = vmatpush1.bf16.msra.mxu0 %v878
  %1168 = vmatprep.subr.bf16.mxu0 0
  %1169 = vmatpush1.bf16.msra.mxu0 %v879
  %1170 = vmatprep.subr.bf16.mxu0 0
  %1171 = vmatpush1.bf16.msra.mxu0 %v880
  %1172 = vmatprep.subr.bf16.mxu0 0
  %1173 = vmatpush1.bf16.msra.mxu0 %v881
  %1174 = vmatprep.subr.bf16.mxu0 0
  %1175 = vmatpush1.bf16.msra.mxu0 %v882
  %1176 = vmatprep.subr.bf16.mxu0 0
  %1177 = vmatpush1.bf16.msra.mxu0 %v883
  %1178 = vmatprep.subr.bf16.mxu0 0
  %1179 = vmatpush1.bf16.msra.mxu0 %v884
  %1180 = vmatprep.subr.bf16.mxu0 0
  %1181 = vmatpush1.bf16.msra.mxu0 %v885
  %1182 = vmatprep.mubr.bf16.mxu0 %v313
  %1183 = vmatmul.mubr.bf16.gmra.mrb[0].mxu0 %v312
  %v1184 = vpop.f32.mrb[0].mxu0
  %v1185 = vadd.f32 %v1145, %v1184
  %v1186 = vpop.f32.mrb[0].mxu0
  %v1187 = vpop.f32.mrb[0].mxu0
  %v1188 = vpop.f32.mrb[0].mxu0
  %1189 = vdwg.mxu0
  %1190 = vmatprep.subr.bf16.mxu0 0
  %1191 = vmatpush1.bf16.msra.mxu0 %v886
  %1192 = vmatprep.subr.bf16.mxu0 0
  %1193 = vmatpush1.bf16.msra.mxu0 %v887
  %1194 = vmatprep.subr.bf16.mxu0 0
  %1195 = vmatpush1.bf16.msra.mxu0 %v888
  %1196 = vmatprep.subr.bf16.mxu0 0
  %1197 = vmatpush1.bf16.msra.mxu0 %v889
  %1198 = vmatprep.subr.bf16.mxu0 0
  %1199 = vmatpush1.bf16.msra.mxu0 %v890
  %1200 = vmatprep.subr.bf16.mxu0 0
  %1201 = vmatpush1.bf16.msra.mxu0 %v891
  %1202 = vmatprep.subr.bf16.mxu0 0
  %1203 = vmatpush1.bf16.msra.mxu0 %v892
  %1204 = vmatprep.subr.bf16.mxu0 0
  %1205 = vmatpush1.bf16.msra.mxu0 %v893
  %1206 = vmatprep.subr.bf16.mxu0 0
  %1207 = vmatpush1.bf16.msra.mxu0 %v894
  %1208 = vmatprep.subr.bf16.mxu0 0
  %1209 = vmatpush1.bf16.msra.mxu0 %v895
  %1210 = vmatprep.subr.bf16.mxu0 0
  %1211 = vmatpush1.bf16.msra.mxu0 %v896
  %1212 = vmatprep.subr.bf16.mxu0 0
  %1213 = vmatpush1.bf16.msra.mxu0 %v897
  %1214 = vmatprep.subr.bf16.mxu0 0
  %1215 = vmatpush1.bf16.msra.mxu0 %v898
  %1216 = vmatprep.subr.bf16.mxu0 0
  %1217 = vmatpush1.bf16.msra.mxu0 %v899
  %1218 = vmatprep.subr.bf16.mxu0 0
  %1219 = vmatpush1.bf16.msra.mxu0 %v900
  %1220 = vmatprep.subr.bf16.mxu0 0
  %1221 = vmatpush1.bf16.msra.mxu0 %v901
  %1222 = vmatprep.mubr.bf16.mxu0 %v315
  %1223 = vmatmul.mubr.bf16.gmra.mrb[0].mxu0 %v314
  %v1224 = vpop.f32.mrb[0].mxu0
  %v1225 = vadd.f32 %v1185, %v1224
  %v1226 = vpop.f32.mrb[0].mxu0
  %v1227 = vpop.f32.mrb[0].mxu0
  %v1228 = vpop.f32.mrb[0].mxu0
  %1229 = vdwg.mxu0
  %1230 = vmatprep.subr.bf16.mxu0 0
  %1231 = vmatpush1.bf16.msra.mxu0 %v902
  %1232 = vmatprep.subr.bf16.mxu0 0
  %1233 = vmatpush1.bf16.msra.mxu0 %v903
  %1234 = vmatprep.subr.bf16.mxu0 0
  %1235 = vmatpush1.bf16.msra.mxu0 %v904
  %1236 = vmatprep.subr.bf16.mxu0 0
  %1237 = vmatpush1.bf16.msra.mxu0 %v905
  %1238 = vmatprep.subr.bf16.mxu0 0
  %1239 = vmatpush1.bf16.msra.mxu0 %v906
  %1240 = vmatprep.subr.bf16.mxu0 0
  %1241 = vmatpush1.bf16.msra.mxu0 %v907
  %1242 = vmatprep.subr.bf16.mxu0 0
  %1243 = vmatpush1.bf16.msra.mxu0 %v908
  %1244 = vmatprep.subr.bf16.mxu0 0
  %1245 = vmatpush1.bf16.msra.mxu0 %v909
  %1246 = vmatprep.subr.bf16.mxu0 0
  %1247 = vmatpush1.bf16.msra.mxu0 %v910
  %1248 = vmatprep.subr.bf16.mxu0 0
  %1249 = vmatpush1.bf16.msra.mxu0 %v911
  %1250 = vmatprep.subr.bf16.mxu0 0
  %1251 = vmatpush1.bf16.msra.mxu0 %v912
  %1252 = vmatprep.subr.bf16.mxu0 0
  %1253 = vmatpush1.bf16.msra.mxu0 %v913
  %1254 = vmatprep.subr.bf16.mxu0 0
  %1255 = vmatpush1.bf16.msra.mxu0 %v914
  %1256 = vmatprep.subr.bf16.mxu0 0
  %1257 = vmatpush1.bf16.msra.mxu0 %v915
  %1258 = vmatprep.subr.bf16.mxu0 0
  %1259 = vmatpush1.bf16.msra.mxu0 %v916
  %1260 = vmatprep.subr.bf16.mxu0 0
  %1261 = vmatpush1.bf16.msra.mxu0 %v917
  %1262 = vmatprep.mubr.bf16.mxu0 %v317
  %1263 = vmatmul.mubr.bf16.gmra.mrb[0].mxu0 %v316
  %v1264 = vpop.f32.mrb[0].mxu0
  %v1265 = vadd.f32 %v1225, %v1264
  %v1266 = vpop.f32.mrb[0].mxu0
  %v1267 = vpop.f32.mrb[0].mxu0
  %v1268 = vpop.f32.mrb[0].mxu0
  %1269 = vdwg.mxu0
  %1270 = vmatprep.subr.bf16.mxu0 0
  %1271 = vmatpush1.bf16.msra.mxu0 %v918
  %1272 = vmatprep.subr.bf16.mxu0 0
  %1273 = vmatpush1.bf16.msra.mxu0 %v919
  %1274 = vmatprep.subr.bf16.mxu0 0
  %1275 = vmatpush1.bf16.msra.mxu0 %v920
  %1276 = vmatprep.subr.bf16.mxu0 0
  %1277 = vmatpush1.bf16.msra.mxu0 %v921
  %1278 = vmatprep.subr.bf16.mxu0 0
  %1279 = vmatpush1.bf16.msra.mxu0 %v922
  %1280 = vmatprep.subr.bf16.mxu0 0
  %1281 = vmatpush1.bf16.msra.mxu0 %v923
  %1282 = vmatprep.subr.bf16.mxu0 0
  %1283 = vmatpush1.bf16.msra.mxu0 %v924
  %1284 = vmatprep.subr.bf16.mxu0 0
  %1285 = vmatpush1.bf16.msra.mxu0 %v925
  %1286 = vmatprep.subr.bf16.mxu0 0
  %1287 = vmatpush1.bf16.msra.mxu0 %v926
  %1288 = vmatprep.subr.bf16.mxu0 0
  %1289 = vmatpush1.bf16.msra.mxu0 %v927
  %1290 = vmatprep.subr.bf16.mxu0 0
  %1291 = vmatpush1.bf16.msra.mxu0 %v928
  %1292 = vmatprep.subr.bf16.mxu0 0
  %1293 = vmatpush1.bf16.msra.mxu0 %v929
  %1294 = vmatprep.subr.bf16.mxu0 0
  %1295 = vmatpush1.bf16.msra.mxu0 %v930
  %1296 = vmatprep.subr.bf16.mxu0 0
  %1297 = vmatpush1.bf16.msra.mxu0 %v931
  %1298 = vmatprep.subr.bf16.mxu0 0
  %1299 = vmatpush1.bf16.msra.mxu0 %v932
  %1300 = vmatprep.subr.bf16.mxu0 0
  %1301 = vmatpush1.bf16.msra.mxu0 %v933
  %1302 = vmatprep.mubr.bf16.mxu0 %v319
  %1303 = vmatmul.mubr.bf16.gmra.mrb[0].mxu0 %v318
  %v1304 = vpop.f32.mrb[0].mxu0
  %v1305 = vadd.f32 %v1265, %v1304
  %v1306 = vpop.f32.mrb[0].mxu0
  %v1307 = vpop.f32.mrb[0].mxu0
  %v1308 = vpop.f32.mrb[0].mxu0
  %1309 = vdwg.mxu0
  %1310 = vmatprep.subr.bf16.mxu0 0
  %1311 = vmatpush1.bf16.msra.mxu0 %v934
  %1312 = vmatprep.subr.bf16.mxu0 0
  %1313 = vmatpush1.bf16.msra.mxu0 %v935
  %1314 = vmatprep.subr.bf16.mxu0 0
  %1315 = vmatpush1.bf16.msra.mxu0 %v936
  %1316 = vmatprep.subr.bf16.mxu0 0
  %1317 = vmatpush1.bf16.msra.mxu0 %v937
  %1318 = vmatprep.subr.bf16.mxu0 0
  %1319 = vmatpush1.bf16.msra.mxu0 %v938
  %1320 = vmatprep.subr.bf16.mxu0 0
  %1321 = vmatpush1.bf16.msra.mxu0 %v939
  %1322 = vmatprep.subr.bf16.mxu0 0
  %1323 = vmatpush1.bf16.msra.mxu0 %v940
  %1324 = vmatprep.subr.bf16.mxu0 0
  %1325 = vmatpush1.bf16.msra.mxu0 %v941
  %1326 = vmatprep.subr.bf16.mxu0 0
  %1327 = vmatpush1.bf16.msra.mxu0 %v942
  %1328 = vmatprep.subr.bf16.mxu0 0
  %1329 = vmatpush1.bf16.msra.mxu0 %v943
  %1330 = vmatprep.subr.bf16.mxu0 0
  %1331 = vmatpush1.bf16.msra.mxu0 %v944
  %1332 = vmatprep.subr.bf16.mxu0 0
  %1333 = vmatpush1.bf16.msra.mxu0 %v945
  %1334 = vmatprep.subr.bf16.mxu0 0
  %1335 = vmatpush1.bf16.msra.mxu0 %v946
  %1336 = vmatprep.subr.bf16.mxu0 0
  %1337 = vmatpush1.bf16.msra.mxu0 %v947
  %1338 = vmatprep.subr.bf16.mxu0 0
  %1339 = vmatpush1.bf16.msra.mxu0 %v948
  %1340 = vmatprep.subr.bf16.mxu0 0
  %1341 = vmatpush1.bf16.msra.mxu0 %v949
  %1342 = vmatprep.mubr.bf16.mxu0 %v321
  %1343 = vmatmul.mubr.bf16.gmra.mrb[0].mxu0 %v320
  %v1344 = vpop.f32.mrb[0].mxu0
  %v1345 = vadd.f32 %v1305, %v1344
  %v1346 = vpop.f32.mrb[0].mxu0
  %v1347 = vpop.f32.mrb[0].mxu0
  %v1348 = vpop.f32.mrb[0].mxu0
  %1349 = vdwg.mxu0
  %1350 = vmatprep.subr.bf16.mxu0 0
  %1351 = vmatpush1.bf16.msra.mxu0 %v950
  %1352 = vmatprep.subr.bf16.mxu0 0
  %1353 = vmatpush1.bf16.msra.mxu0 %v951
  %1354 = vmatprep.subr.bf16.mxu0 0
  %1355 = vmatpush1.bf16.msra.mxu0 %v952
  %1356 = vmatprep.subr.bf16.mxu0 0
  %1357 = vmatpush1.bf16.msra.mxu0 %v953
  %1358 = vmatprep.subr.bf16.mxu0 0
  %1359 = vmatpush1.bf16.msra.mxu0 %v954
  %1360 = vmatprep.subr.bf16.mxu0 0
  %1361 = vmatpush1.bf16.msra.mxu0 %v955
  %1362 = vmatprep.subr.bf16.mxu0 0
  %1363 = vmatpush1.bf16.msra.mxu0 %v956
  %1364 = vmatprep.subr.bf16.mxu0 0
  %1365 = vmatpush1.bf16.msra.mxu0 %v957
  %1366 = vmatprep.subr.bf16.mxu0 0
  %1367 = vmatpush1.bf16.msra.mxu0 %v958
  %1368 = vmatprep.subr.bf16.mxu0 0
  %1369 = vmatpush1.bf16.msra.mxu0 %v959
  %1370 = vmatprep.subr.bf16.mxu0 0
  %1371 = vmatpush1.bf16.msra.mxu0 %v960
  %1372 = vmatprep.subr.bf16.mxu0 0
  %1373 = vmatpush1.bf16.msra.mxu0 %v961
  %1374 = vmatprep.subr.bf16.mxu0 0
  %1375 = vmatpush1.bf16.msra.mxu0 %v962
  %1376 = vmatprep.subr.bf16.mxu0 0
  %1377 = vmatpush1.bf16.msra.mxu0 %v963
  %1378 = vmatprep.subr.bf16.mxu0 0
  %1379 = vmatpush1.bf16.msra.mxu0 %v964
  %1380 = vmatprep.subr.bf16.mxu0 0
  %1381 = vmatpush1.bf16.msra.mxu0 %v965
  %1382 = vmatprep.mubr.bf16.mxu0 %v323
  %1383 = vmatmul.mubr.bf16.gmra.mrb[0].mxu0 %v322
  %v1384 = vpop.f32.mrb[0].mxu0
  %v1385 = vadd.f32 %v1345, %v1384
  %v1386 = vpop.f32.mrb[0].mxu0
  %v1387 = vpop.f32.mrb[0].mxu0
  %v1388 = vpop.f32.mrb[0].mxu0
  %1389 = vdwg.mxu0
  %1390 = vmatprep.subr.bf16.mxu0 0
  %1391 = vmatpush1.bf16.msra.mxu0 %v966
  %1392 = vmatprep.subr.bf16.mxu0 0
  %1393 = vmatpush1.bf16.msra.mxu0 %v967
  %1394 = vmatprep.subr.bf16.mxu0 0
  %1395 = vmatpush1.bf16.msra.mxu0 %v968
  %1396 = vmatprep.subr.bf16.mxu0 0
  %1397 = vmatpush1.bf16.msra.mxu0 %v969
  %1398 = vmatprep.subr.bf16.mxu0 0
  %1399 = vmatpush1.bf16.msra.mxu0 %v970
  %1400 = vmatprep.subr.bf16.mxu0 0
  %1401 = vmatpush1.bf16.msra.mxu0 %v971
  %1402 = vmatprep.subr.bf16.mxu0 0
  %1403 = vmatpush1.bf16.msra.mxu0 %v972
  %1404 = vmatprep.subr.bf16.mxu0 0
  %1405 = vmatpush1.bf16.msra.mxu0 %v973
  %1406 = vmatprep.subr.bf16.mxu0 0
  %1407 = vmatpush1.bf16.msra.mxu0 %v974
  %1408 = vmatprep.subr.bf16.mxu0 0
  %1409 = vmatpush1.bf16.msra.mxu0 %v975
  %1410 = vmatprep.subr.bf16.mxu0 0
  %1411 = vmatpush1.bf16.msra.mxu0 %v976
  %1412 = vmatprep.subr.bf16.mxu0 0
  %1413 = vmatpush1.bf16.msra.mxu0 %v977
  %1414 = vmatprep.subr.bf16.mxu0 0
  %1415 = vmatpush1.bf16.msra.mxu0 %v978
  %1416 = vmatprep.subr.bf16.mxu0 0
  %1417 = vmatpush1.bf16.msra.mxu0 %v979
  %1418 = vmatprep.subr.bf16.mxu0 0
  %1419 = vmatpush1.bf16.msra.mxu0 %v980
  %1420 = vmatprep.subr.bf16.mxu0 0
  %1421 = vmatpush1.bf16.msra.mxu0 %v981
  %1422 = vmatprep.mubr.bf16.mxu0 %v325
  %1423 = vmatmul.mubr.bf16.gmra.mrb[0].mxu0 %v324
  %v1424 = vpop.f32.mrb[0].mxu0
  %v1425 = vadd.f32 %v1385, %v1424
  %v1426 = vpop.f32.mrb[0].mxu0
  %v1427 = vpop.f32.mrb[0].mxu0
  %v1428 = vpop.f32.mrb[0].mxu0
  %1429 = vdwg.mxu0
  %vm1430 = vcmp.ge.f32.partialorder %v1425, 0.0
  %v1431 = vmul.f32 %v1425, 0.2
  %v1432 = vsel %vm1430, %v1425, %v1431
  %v1433 = vpack.c.bf16 %v1432, %v1432
  %1434 = vst [vmem:[%s3] sm:$0xf] %v1433
  // Predicated region
  $region14: #{dual_discriminator_forward.8} parent=0 // pred_check
    _
  $region15: #{dual_discriminator_forward.8} parent=0 // pred_check_branch
    %1436 = sbr.rel (0) target = $region17
  $region16: #{dual_discriminator_forward.8} parent=0 // pred_region
    _
  $region17: #{dual_discriminator_forward.8} parent=0 // pred_fallthru
    _
  // Predicated region
  $region18: #{dual_discriminator_forward.8} parent=0 // pred_check
    _
  $region19: #{dual_discriminator_forward.8} parent=0 // pred_check_branch
    %1438 = sbr.rel (0) target = $region21
  $region20: #{dual_discriminator_forward.8} parent=0 // pred_region
    _
  $region21: #{dual_discriminator_forward.8} parent=0 // pred_fallthru
    _

// kernel: dual_discriminator_forward.9
$region0: #{dual_discriminator_forward.9}
  #allocation0 [shape = 'u32[]', space=smem, size = 0x4, offset = 0x4, fixed_abs, tag = 'smem constant byte address 0x4 - core index']
  #allocation1 [shape = 'u32[144,128]{1,0:T(1,128)}', space=vmem, size = 0x12000, scoped, tag = 'internal scratch']
  #allocation2 [shape = 'f32[1,1]{1,0:T(1,128)S(1)}', space=vmem, size = 0x200, scoped, tag = 'scoped memory for dual_discriminator_forward.9']
  %s0 = inlined_call_operand.vmem [shape: bf16[2,16], index: 0, kind: input, shape index: {}]
  %s1 = inlined_call_operand.vmem [shape: bf16[2,512], index: 1, kind: input, shape index: {}]
  %s2 = inlined_call_operand.vmem [shape: bf16[16,128], index: 2, kind: input, shape index: {}]
  %s3 = inlined_call_operand.vmem [shape: f32[1,128], index: 3, kind: input, shape index: {}]
  %s4 = inlined_call_operand.vmem [shape: bf16[128,128], index: 4, kind: input, shape index: {}]
  %s5 = inlined_call_operand.vmem [shape: f32[1,128], index: 5, kind: input, shape index: {}]
  %s6 = inlined_call_operand.vmem [shape: bf16[128,128], index: 6, kind: input, shape index: {}]
  %s7 = inlined_call_operand.vmem [shape: f32[1,128], index: 7, kind: input, shape index: {}]
  %s8 = inlined_call_operand.vmem [shape: bf16[512,128], index: 8, kind: input, shape index: {}]
  %s9 = inlined_call_operand.vmem [shape: f32[1,128], index: 9, kind: input, shape index: {}]
  %s10 = inlined_call_operand.vmem [shape: bf16[128,128], index: 10, kind: input, shape index: {}]
  %s11 = inlined_call_operand.vmem [shape: bf16[128,128], index: 11, kind: input, shape index: {}]
  %s12 = inlined_call_operand.vmem [shape: f32[1,128], index: 12, kind: input, shape index: {}]
  %s13 = inlined_call_operand.vmem [shape: bf16[128,128], index: 13, kind: input, shape index: {}]
  %s14 = inlined_call_operand.vmem [shape: f32[1,128], index: 14, kind: input, shape index: {}]
  %s15 = inlined_call_operand.vmem [shape: f32[1,128], index: 15, kind: input, shape index: {}]
  %s16 = inlined_call_operand.<no memory space> [shape: f32[1,1], index: 16, kind: input, shape index: {}]
  %s17 = inlined_call_operand.vmem [shape: f32[2,1], index: 17, kind: output, shape index: {0}]
  %s18 = inlined_call_operand.hbm [shape: f32[2,128], index: 18, kind: output, shape index: {1}]
  %19 = xla_tuple %s17, %s18
  %s20 = sld [smem:[#allocation0]]
  $region86: #{dual_discriminator_forward.9} parent=0
    _
  %s22 = ssub.s32 1, %s20
  %s23 = scalar_select 0, %s22, %s20
  %v24 = vstv %s16
  %25 = vst [vmem:[#allocation2] sm:$0x1] %v24
  $region1: #{dual_discriminator_forward.9} parent=0
    #allocation3 [shape = 'u8[1024]{0}', space=vmem, size = 0x400, scoped, tag = 'output window, operand 1, single buffered']
    #allocation4 [shape = 's32[1]{0}', space=sflag, size = 0x4, scoped, tag = 'scoped memory for dual_discriminator_forward.9']
    %26 = vsyncpa [#allocation4], 0
    // Predicated region
    $region2: #{dual_discriminator_forward.9} parent=1 // pred_check
      _
    $region3: #{dual_discriminator_forward.9} parent=1 // pred_check_branch
      %28 = sbr.rel (0) target = $region5
    $region4: #{dual_discriminator_forward.9} parent=1 // pred_region
      _
    $region5: #{dual_discriminator_forward.9} parent=1 // pred_fallthru
      _
    // Predicated region
    $region6: #{dual_discriminator_forward.9} parent=1 // pred_check
      _
    $region7: #{dual_discriminator_forward.9} parent=1 // pred_check_branch
      %30 = sbr.rel (0) target = $region9
    $region8: #{dual_discriminator_forward.9} parent=1 // pred_region
      _
    $region9: #{dual_discriminator_forward.9} parent=1 // pred_fallthru
      _
    // Predicated region
    $region10: #{dual_discriminator_forward.9} parent=1 // pred_check
      _
    $region11: #{dual_discriminator_forward.9} parent=1 // pred_check_branch
      %32 = sbr.rel (0) target = $region13
    $region12: #{dual_discriminator_forward.9} parent=1 // pred_region
      _
    $region13: #{dual_discriminator_forward.9} parent=1 // pred_fallthru
      _
    // Predicated region
    $region14: #{dual_discriminator_forward.9} parent=1 // pred_check
      _
    $region15: #{dual_discriminator_forward.9} parent=1 // pred_check_branch
      %34 = sbr.rel (0) target = $region17
    $region16: #{dual_discriminator_forward.9} parent=1 // pred_region
      _
    $region17: #{dual_discriminator_forward.9} parent=1 // pred_fallthru
      _
    // Predicated region
    $region18: #{dual_discriminator_forward.9} parent=1 // pred_check
      _
    $region19: #{dual_discriminator_forward.9} parent=1 // pred_check_branch
      %36 = sbr.rel (0) target = $region21
    $region20: #{dual_discriminator_forward.9} parent=1 // pred_region
      _
    $region21: #{dual_discriminator_forward.9} parent=1 // pred_fallthru
      _
    // Predicated region
    $region22: #{dual_discriminator_forward.9} parent=1 // pred_check
      _
    $region23: #{dual_discriminator_forward.9} parent=1 // pred_check_branch
      %38 = sbr.rel (0) target = $region25
    $region24: #{dual_discriminator_forward.9} parent=1 // pred_region
      _
    $region25: #{dual_discriminator_forward.9} parent=1 // pred_fallthru
      _
    // Predicated region
    $region26: #{dual_discriminator_forward.9} parent=1 // pred_check
      _
    $region27: #{dual_discriminator_forward.9} parent=1 // pred_check_branch
      %40 = sbr.rel (0) target = $region29
    $region28: #{dual_discriminator_forward.9} parent=1 // pred_region
      _
    $region29: #{dual_discriminator_forward.9} parent=1 // pred_fallthru
      _
    // Predicated region
    $region30: #{dual_discriminator_forward.9} parent=1 // pred_check
      _
    $region31: #{dual_discriminator_forward.9} parent=1 // pred_check_branch
      %42 = sbr.rel (0) target = $region33
    $region32: #{dual_discriminator_forward.9} parent=1 // pred_region
      _
    $region33: #{dual_discriminator_forward.9} parent=1 // pred_fallthru
      _
    // Predicated region
    $region34: #{dual_discriminator_forward.9} parent=1 // pred_check
      _
    $region35: #{dual_discriminator_forward.9} parent=1 // pred_check_branch
      %44 = sbr.rel (0) target = $region37
    $region36: #{dual_discriminator_forward.9} parent=1 // pred_region
      _
    $region37: #{dual_discriminator_forward.9} parent=1 // pred_fallthru
      _
    // Predicated region
    $region38: #{dual_discriminator_forward.9} parent=1 // pred_check
      _
    $region39: #{dual_discriminator_forward.9} parent=1 // pred_check_branch
      %46 = sbr.rel (0) target = $region41
    $region40: #{dual_discriminator_forward.9} parent=1 // pred_region
      _
    $region41: #{dual_discriminator_forward.9} parent=1 // pred_fallthru
      _
    // Predicated region
    $region42: #{dual_discriminator_forward.9} parent=1 // pred_check
      _
    $region43: #{dual_discriminator_forward.9} parent=1 // pred_check_branch
      %48 = sbr.rel (0) target = $region45
    $region44: #{dual_discriminator_forward.9} parent=1 // pred_region
      _
    $region45: #{dual_discriminator_forward.9} parent=1 // pred_fallthru
      _
    // Predicated region
    $region46: #{dual_discriminator_forward.9} parent=1 // pred_check
      _
    $region47: #{dual_discriminator_forward.9} parent=1 // pred_check_branch
      %50 = sbr.rel (0) target = $region49
    $region48: #{dual_discriminator_forward.9} parent=1 // pred_region
      _
    $region49: #{dual_discriminator_forward.9} parent=1 // pred_fallthru
      _
    // Predicated region
    $region50: #{dual_discriminator_forward.9} parent=1 // pred_check
      _
    $region51: #{dual_discriminator_forward.9} parent=1 // pred_check_branch
      %52 = sbr.rel (0) target = $region53
    $region52: #{dual_discriminator_forward.9} parent=1 // pred_region
      _
    $region53: #{dual_discriminator_forward.9} parent=1 // pred_fallthru
      _
    // Predicated region
    $region54: #{dual_discriminator_forward.9} parent=1 // pred_check
      _
    $region55: #{dual_discriminator_forward.9} parent=1 // pred_check_branch
      %54 = sbr.rel (0) target = $region57
    $region56: #{dual_discriminator_forward.9} parent=1 // pred_region
      _
    $region57: #{dual_discriminator_forward.9} parent=1 // pred_fallthru
      _
    // Predicated region
    $region58: #{dual_discriminator_forward.9} parent=1 // pred_check
      _
    $region59: #{dual_discriminator_forward.9} parent=1 // pred_check_branch
      %56 = sbr.rel (0) target = $region61
    $region60: #{dual_discriminator_forward.9} parent=1 // pred_region
      _
    $region61: #{dual_discriminator_forward.9} parent=1 // pred_fallthru
      _
    // Predicated region
    $region62: #{dual_discriminator_forward.9} parent=1 // pred_check
      _
    $region63: #{dual_discriminator_forward.9} parent=1 // pred_check_branch
      %58 = sbr.rel (0) target = $region65
    $region64: #{dual_discriminator_forward.9} parent=1 // pred_region
      _
    $region65: #{dual_discriminator_forward.9} parent=1 // pred_fallthru
      _
    // Predicated region
    $region66: #{dual_discriminator_forward.9} parent=1 // pred_check
      _
    $region67: #{dual_discriminator_forward.9} parent=1 // pred_check_branch
      %60 = sbr.rel (0) target = $region69
    $region68: #{dual_discriminator_forward.9} parent=1 // pred_region
      _
    $region69: #{dual_discriminator_forward.9} parent=1 // pred_fallthru
      _
    %v62 = vld [vmem:[%s0] sm:$0x1]
    %v63 = vld [vmem:[%s2] sm:$0xf]
    %v64 = vld [vmem:[%s2 + $0x4] sm:$0xf]
    %v65 = vld [vmem:[%s3] sm:$0x1]
    %v67 = vlaneseq
    %v68 = vshrl.u32 %v67, 7
    %v69 = vsub.s32 0, %v68
    %v70 = vrot.slane %v65, %v69
    %v74 = vunpack.c.l.b16 %v63
    %v75 = vunpack.c.l.b16 %v64
    %v76 = vpack.c.b16 %v75, %v74
    %vm78 = vcmask 130048
    %v80 = vsel %vm78, %v62, 0
    %82 = vmatprep.subr.bf16.mxu0 0
    %83 = vmatpush1.bf16.msra.mxu0 %v76
    %84 = vmatprep.subr.bf16.mxu0 0
    %85 = vmatpush1.bf16.msra.mxu0 0
    %86 = vmatprep.subr.bf16.mxu0 0
    %87 = vmatpush1.bf16.msra.mxu0 0
    %88 = vmatprep.subr.bf16.mxu0 0
    %89 = vmatpush1.bf16.msra.mxu0 0
    %90 = vmatprep.subr.bf16.mxu0 0
    %91 = vmatpush1.bf16.msra.mxu0 0
    %92 = vmatprep.subr.bf16.mxu0 0
    %93 = vmatpush1.bf16.msra.mxu0 0
    %94 = vmatprep.subr.bf16.mxu0 0
    %95 = vmatpush1.bf16.msra.mxu0 0
    %96 = vmatprep.subr.bf16.mxu0 0
    %97 = vmatpush1.bf16.msra.mxu0 0
    %98 = vmatprep.subr.bf16.mxu0 0
    %99 = vmatpush1.bf16.msra.mxu0 0
    %100 = vmatprep.subr.bf16.mxu0 0
    %101 = vmatpush1.bf16.msra.mxu0 0
    %102 = vmatprep.subr.bf16.mxu0 0
    %103 = vmatpush1.bf16.msra.mxu0 0
    %104 = vmatprep.subr.bf16.mxu0 0
    %105 = vmatpush1.bf16.msra.mxu0 0
    %106 = vmatprep.subr.bf16.mxu0 0
    %107 = vmatpush1.bf16.msra.mxu0 0
    %108 = vmatprep.subr.bf16.mxu0 0
    %109 = vmatpush1.bf16.msra.mxu0 0
    %110 = vmatprep.subr.bf16.mxu0 0
    %111 = vmatpush1.bf16.msra.mxu0 0
    %112 = vmatprep.subr.bf16.mxu0 0
    %113 = vmatpush1.bf16.msra.mxu0 0
    %114 = vmatprep.mubr.bf16.mxu0 0
    %115 = vmatmul.mubr.bf16.gmra.mrb[0].mxu0 %v80
    %v116 = vpop.f32.mrb[0].mxu0
    %v117 = vadd.f32 %v70, %v116
    %v118 = vpop.f32.mrb[0].mxu0
    %v119 = vpop.f32.mrb[0].mxu0
    %v120 = vpop.f32.mrb[0].mxu0
    %121 = vdwg.mxu0
    %vm122 = vcmp.ge.f32.partialorder %v117, 0.0
    %v123 = vmul.f32 %v117, 0.2
    %v124 = vsel %vm122, %v117, %v123
    %v125 = vpack.c.bf16 %v124, %v124
    %v126 = vld [vmem:[%s4] sm:$0xf]
    %v127 = vld [vmem:[%s4 + $0x4] sm:$0xf]
    %v128 = vld [vmem:[%s4 + $0x8] sm:$0xf]
    %v129 = vld [vmem:[%s4 + $0xc] sm:$0xf]
    %v130 = vld [vmem:[%s4 + $0x10] sm:$0xf]
    %v131 = vld [vmem:[%s4 + $0x14] sm:$0xf]
    %v132 = vld [vmem:[%s4 + $0x18] sm:$0xf]
    %v133 = vld [vmem:[%s4 + $0x1c] sm:$0xf]
    %v134 = vld [vmem:[%s4 + $0x20] sm:$0xf]
    %v135 = vld [vmem:[%s4 + $0x24] sm:$0xf]
    %v136 = vld [vmem:[%s4 + $0x28] sm:$0xf]
    %v137 = vld [vmem:[%s4 + $0x2c] sm:$0xf]
    %v138 = vld [vmem:[%s4 + $0x30] sm:$0xf]
    %v139 = vld [vmem:[%s4 + $0x34] sm:$0xf]
    %v140 = vld [vmem:[%s4 + $0x38] sm:$0xf]
    %v141 = vld [vmem:[%s4 + $0x3c] sm:$0xf]
    %v142 = vld [vmem:[%s5] sm:$0x1]
    %v144 = vlaneseq
    %v145 = vshrl.u32 %v144, 7
    %v146 = vsub.s32 0, %v145
    %v147 = vrot.slane %v142, %v146
    %v165 = vunpack.c.l.b16 %v126
    %v166 = vunpack.c.l.b16 %v127
    %v167 = vunpack.c.l.b16 %v128
    %v168 = vunpack.c.l.b16 %v129
    %v169 = vunpack.c.l.b16 %v130
    %v170 = vunpack.c.l.b16 %v131
    %v171 = vunpack.c.l.b16 %v132
    %v172 = vunpack.c.l.b16 %v133
    %v173 = vunpack.c.l.b16 %v134
    %v174 = vunpack.c.l.b16 %v135
    %v175 = vunpack.c.l.b16 %v136
    %v176 = vunpack.c.l.b16 %v137
    %v177 = vunpack.c.l.b16 %v138
    %v178 = vunpack.c.l.b16 %v139
    %v179 = vunpack.c.l.b16 %v140
    %v180 = vunpack.c.l.b16 %v141
    %v181 = vpack.c.b16 %v166, %v165
    %v182 = vpack.c.b16 %v168, %v167
    %v183 = vpack.c.b16 %v170, %v169
    %v184 = vpack.c.b16 %v172, %v171
    %v185 = vpack.c.b16 %v174, %v173
    %v186 = vpack.c.b16 %v176, %v175
    %v187 = vpack.c.b16 %v178, %v177
    %v188 = vpack.c.b16 %v180, %v179
    %197 = vmatprep.subr.bf16.mxu0 0
    %198 = vmatpush1.bf16.msra.mxu0 %v181
    %199 = vmatprep.subr.bf16.mxu0 0
    %200 = vmatpush1.bf16.msra.mxu0 %v182
    %201 = vmatprep.subr.bf16.mxu0 0
    %202 = vmatpush1.bf16.msra.mxu0 %v183
    %203 = vmatprep.subr.bf16.mxu0 0
    %204 = vmatpush1.bf16.msra.mxu0 %v184
    %205 = vmatprep.subr.bf16.mxu0 0
    %206 = vmatpush1.bf16.msra.mxu0 %v185
    %207 = vmatprep.subr.bf16.mxu0 0
    %208 = vmatpush1.bf16.msra.mxu0 %v186
    %209 = vmatprep.subr.bf16.mxu0 0
    %210 = vmatpush1.bf16.msra.mxu0 %v187
    %211 = vmatprep.subr.bf16.mxu0 0
    %212 = vmatpush1.bf16.msra.mxu0 %v188
    %213 = vmatprep.subr.bf16.mxu0 0
    %214 = vmatpush1.bf16.msra.mxu0 0
    %215 = vmatprep.subr.bf16.mxu0 0
    %216 = vmatpush1.bf16.msra.mxu0 0
    %217 = vmatprep.subr.bf16.mxu0 0
    %218 = vmatpush1.bf16.msra.mxu0 0
    %219 = vmatprep.subr.bf16.mxu0 0
    %220 = vmatpush1.bf16.msra.mxu0 0
    %221 = vmatprep.subr.bf16.mxu0 0
    %222 = vmatpush1.bf16.msra.mxu0 0
    %223 = vmatprep.subr.bf16.mxu0 0
    %224 = vmatpush1.bf16.msra.mxu0 0
    %225 = vmatprep.subr.bf16.mxu0 0
    %226 = vmatpush1.bf16.msra.mxu0 0
    %227 = vmatprep.subr.bf16.mxu0 0
    %228 = vmatpush1.bf16.msra.mxu0 0
    %229 = vmatprep.mubr.bf16.mxu0 0
    %230 = vmatmul.mubr.bf16.gmra.mrb[0].mxu0 %v125
    %v231 = vpop.f32.mrb[0].mxu0
    %v232 = vadd.f32 %v147, %v231
    %v233 = vpop.f32.mrb[0].mxu0
    %v234 = vpop.f32.mrb[0].mxu0
    %v235 = vpop.f32.mrb[0].mxu0
    %236 = vdwg.mxu0
    %vm237 = vcmp.ge.f32.partialorder %v232, 0.0
    %v238 = vmul.f32 %v232, 0.2
    %v239 = vsel %vm237, %v232, %v238
    %v240 = vpack.c.bf16 %v239, %v239
    %v241 = vld [vmem:[%s6] sm:$0xf]
    %v242 = vld [vmem:[%s6 + $0x4] sm:$0xf]
    %v243 = vld [vmem:[%s6 + $0x8] sm:$0xf]
    %v244 = vld [vmem:[%s6 + $0xc] sm:$0xf]
    %v245 = vld [vmem:[%s6 + $0x10] sm:$0xf]
    %v246 = vld [vmem:[%s6 + $0x14] sm:$0xf]
    %v247 = vld [vmem:[%s6 + $0x18] sm:$0xf]
    %v248 = vld [vmem:[%s6 + $0x1c] sm:$0xf]
    %v249 = vld [vmem:[%s6 + $0x20] sm:$0xf]
    %v250 = vld [vmem:[%s6 + $0x24] sm:$0xf]
    %v251 = vld [vmem:[%s6 + $0x28] sm:$0xf]
    %v252 = vld [vmem:[%s6 + $0x2c] sm:$0xf]
    %v253 = vld [vmem:[%s6 + $0x30] sm:$0xf]
    %v254 = vld [vmem:[%s6 + $0x34] sm:$0xf]
    %v255 = vld [vmem:[%s6 + $0x38] sm:$0xf]
    %v256 = vld [vmem:[%s6 + $0x3c] sm:$0xf]
    %v257 = vld [vmem:[%s7] sm:$0x1]
    %v259 = vlaneseq
    %v260 = vshrl.u32 %v259, 7
    %v261 = vsub.s32 0, %v260
    %v262 = vrot.slane %v257, %v261
    %v280 = vunpack.c.l.b16 %v241
    %v281 = vunpack.c.l.b16 %v242
    %v282 = vunpack.c.l.b16 %v243
    %v283 = vunpack.c.l.b16 %v244
    %v284 = vunpack.c.l.b16 %v245
    %v285 = vunpack.c.l.b16 %v246
    %v286 = vunpack.c.l.b16 %v247
    %v287 = vunpack.c.l.b16 %v248
    %v288 = vunpack.c.l.b16 %v249
    %v289 = vunpack.c.l.b16 %v250
    %v290 = vunpack.c.l.b16 %v251
    %v291 = vunpack.c.l.b16 %v252
    %v292 = vunpack.c.l.b16 %v253
    %v293 = vunpack.c.l.b16 %v254
    %v294 = vunpack.c.l.b16 %v255
    %v295 = vunpack.c.l.b16 %v256
    %v296 = vpack.c.b16 %v281, %v280
    %v297 = vpack.c.b16 %v283, %v282
    %v298 = vpack.c.b16 %v285, %v284
    %v299 = vpack.c.b16 %v287, %v286
    %v300 = vpack.c.b16 %v289, %v288
    %v301 = vpack.c.b16 %v291, %v290
    %v302 = vpack.c.b16 %v293, %v292
    %v303 = vpack.c.b16 %v295, %v294
    %312 = vmatprep.subr.bf16.mxu0 0
    %313 = vmatpush1.bf16.msra.mxu0 %v296
    %314 = vmatprep.subr.bf16.mxu0 0
    %315 = vmatpush1.bf16.msra.mxu0 %v297
    %316 = vmatprep.subr.bf16.mxu0 0
    %317 = vmatpush1.bf16.msra.mxu0 %v298
    %318 = vmatprep.subr.bf16.mxu0 0
    %319 = vmatpush1.bf16.msra.mxu0 %v299
    %320 = vmatprep.subr.bf16.mxu0 0
    %321 = vmatpush1.bf16.msra.mxu0 %v300
    %322 = vmatprep.subr.bf16.mxu0 0
    %323 = vmatpush1.bf16.msra.mxu0 %v301
    %324 = vmatprep.subr.bf16.mxu0 0
    %325 = vmatpush1.bf16.msra.mxu0 %v302
    %326 = vmatprep.subr.bf16.mxu0 0
    %327 = vmatpush1.bf16.msra.mxu0 %v303
    %328 = vmatprep.subr.bf16.mxu0 0
    %329 = vmatpush1.bf16.msra.mxu0 0
    %330 = vmatprep.subr.bf16.mxu0 0
    %331 = vmatpush1.bf16.msra.mxu0 0
    %332 = vmatprep.subr.bf16.mxu0 0
    %333 = vmatpush1.bf16.msra.mxu0 0
    %334 = vmatprep.subr.bf16.mxu0 0
    %335 = vmatpush1.bf16.msra.mxu0 0
    %336 = vmatprep.subr.bf16.mxu0 0
    %337 = vmatpush1.bf16.msra.mxu0 0
    %338 = vmatprep.subr.bf16.mxu0 0
    %339 = vmatpush1.bf16.msra.mxu0 0
    %340 = vmatprep.subr.bf16.mxu0 0
    %341 = vmatpush1.bf16.msra.mxu0 0
    %342 = vmatprep.subr.bf16.mxu0 0
    %343 = vmatpush1.bf16.msra.mxu0 0
    %344 = vmatprep.mubr.bf16.mxu0 0
    %345 = vmatmul.mubr.bf16.gmra.mrb[0].mxu0 %v240
    %v346 = vpop.f32.mrb[0].mxu0
    %v347 = vadd.f32 %v262, %v346
    %v348 = vpop.f32.mrb[0].mxu0
    %v349 = vpop.f32.mrb[0].mxu0
    %v350 = vpop.f32.mrb[0].mxu0
    %351 = vdwg.mxu0
    %vm352 = vcmp.ge.f32.partialorder %v347, 0.0
    %v353 = vmul.f32 %v347, 0.2
    %v354 = vsel %vm352, %v347, %v353
    %v355 = vld [vmem:[%s1] sm:$0xf]
    %v356 = vld [vmem:[%s8] sm:$0xf]
    %v357 = vld [vmem:[%s8 + $0x4] sm:$0xf]
    %v358 = vld [vmem:[%s8 + $0x8] sm:$0xf]
    %v359 = vld [vmem:[%s8 + $0xc] sm:$0xf]
    %v360 = vld [vmem:[%s8 + $0x10] sm:$0xf]
    %v361 = vld [vmem:[%s8 + $0x14] sm:$0xf]
    %v362 = vld [vmem:[%s8 + $0x18] sm:$0xf]
    %v363 = vld [vmem:[%s8 + $0x1c] sm:$0xf]
    %v364 = vld [vmem:[%s8 + $0x20] sm:$0xf]
    %v365 = vld [vmem:[%s8 + $0x24] sm:$0xf]
    %v366 = vld [vmem:[%s8 + $0x28] sm:$0xf]
    %v367 = vld [vmem:[%s8 + $0x2c] sm:$0xf]
    %v368 = vld [vmem:[%s8 + $0x30] sm:$0xf]
    %v369 = vld [vmem:[%s8 + $0x34] sm:$0xf]
    %v370 = vld [vmem:[%s8 + $0x38] sm:$0xf]
    %v371 = vld [vmem:[%s8 + $0x3c] sm:$0xf]
    %v372 = vld [vmem:[%s8 + $0x40] sm:$0xf]
    %v373 = vld [vmem:[%s8 + $0x44] sm:$0xf]
    %v374 = vld [vmem:[%s8 + $0x48] sm:$0xf]
    %v375 = vld [vmem:[%s8 + $0x4c] sm:$0xf]
    %v376 = vld [vmem:[%s8 + $0x50] sm:$0xf]
    %v377 = vld [vmem:[%s8 + $0x54] sm:$0xf]
    %v378 = vld [vmem:[%s8 + $0x58] sm:$0xf]
    %v379 = vld [vmem:[%s8 + $0x5c] sm:$0xf]
    %v380 = vld [vmem:[%s8 + $0x60] sm:$0xf]
    %v381 = vld [vmem:[%s8 + $0x64] sm:$0xf]
    %v382 = vld [vmem:[%s8 + $0x68] sm:$0xf]
    %v383 = vld [vmem:[%s8 + $0x6c] sm:$0xf]
    %v384 = vld [vmem:[%s8 + $0x70] sm:$0xf]
    %v385 = vld [vmem:[%s8 + $0x74] sm:$0xf]
    %v386 = vld [vmem:[%s8 + $0x78] sm:$0xf]
    %v387 = vld [vmem:[%s8 + $0x7c] sm:$0xf]
    %v388 = vld [vmem:[%s8 + $0x80] sm:$0xf]
    %v389 = vld [vmem:[%s8 + $0x84] sm:$0xf]
    %v390 = vld [vmem:[%s8 + $0x88] sm:$0xf]
    %v391 = vld [vmem:[%s8 + $0x8c] sm:$0xf]
    %v392 = vld [vmem:[%s8 + $0x90] sm:$0xf]
    %v393 = vld [vmem:[%s8 + $0x94] sm:$0xf]
    %v394 = vld [vmem:[%s8 + $0x98] sm:$0xf]
    %v395 = vld [vmem:[%s8 + $0x9c] sm:$0xf]
    %v396 = vld [vmem:[%s8 + $0xa0] sm:$0xf]
    %v397 = vld [vmem:[%s8 + $0xa4] sm:$0xf]
    %v398 = vld [vmem:[%s8 + $0xa8] sm:$0xf]
    %v399 = vld [vmem:[%s8 + $0xac] sm:$0xf]
    %v400 = vld [vmem:[%s8 + $0xb0] sm:$0xf]
    %v401 = vld [vmem:[%s8 + $0xb4] sm:$0xf]
    %v402 = vld [vmem:[%s8 + $0xb8] sm:$0xf]
    %v403 = vld [vmem:[%s8 + $0xbc] sm:$0xf]
    %v404 = vld [vmem:[%s8 + $0xc0] sm:$0xf]
    %v405 = vld [vmem:[%s8 + $0xc4] sm:$0xf]
    %v406 = vld [vmem:[%s8 + $0xc8] sm:$0xf]
    %v407 = vld [vmem:[%s8 + $0xcc] sm:$0xf]
    %v408 = vld [vmem:[%s8 + $0xd0] sm:$0xf]
    %v409 = vld [vmem:[%s8 + $0xd4] sm:$0xf]
    %v410 = vld [vmem:[%s8 + $0xd8] sm:$0xf]
    %v411 = vld [vmem:[%s8 + $0xdc] sm:$0xf]
    %v412 = vld [vmem:[%s8 + $0xe0] sm:$0xf]
    %v413 = vld [vmem:[%s8 + $0xe4] sm:$0xf]
    %v414 = vld [vmem:[%s8 + $0xe8] sm:$0xf]
    %v415 = vld [vmem:[%s8 + $0xec] sm:$0xf]
    %v416 = vld [vmem:[%s8 + $0xf0] sm:$0xf]
    %v417 = vld [vmem:[%s8 + $0xf4] sm:$0xf]
    %v418 = vld [vmem:[%s8 + $0xf8] sm:$0xf]
    %v419 = vld [vmem:[%s8 + $0xfc] sm:$0xf]
    %v420 = vld [vmem:[%s9] sm:$0x1]
    %v422 = vlaneseq
    %v423 = vshrl.u32 %v422, 7
    %v424 = vsub.s32 0, %v423
    %v425 = vrot.slane %v420, %v424
    %v429 = vunpack.c.l.s4 1966171168
    %v430 = vunpack.c.0.s8 %v429
    %v431 = vlaneseq
    %v432 = vshrl.u32 %v431, 7
    %v433 = vsub.s32 %v430, %v432
    %v434 = vrot.slane %v355, %v433
    %v435 = vcombine.high %v434, %v434
    %v437 = vunpack.c.l.s4 1966171168
    %v438 = vunpack.c.0.s8 %v437
    %v439 = vlaneseq
    %v440 = vshrl.u32 %v439, 7
    %v441 = vsub.s32 %v438, %v440
    %v442 = vrot.slane %v434, %v441
    %v444 = vunpack.c.l.s4 1966171168
    %v445 = vunpack.c.0.s8 %v444
    %v446 = vlaneseq
    %v447 = vshrl.u32 %v446, 7
    %v448 = vsub.s32 %v445, %v447
    %v449 = vrot.slane %v435, %v448
    %v450 = vcombine.high %v442, %v442
    %v451 = vcombine.high %v449, %v449
    %v520 = vunpack.c.l.b16 %v356
    %v521 = vunpack.c.l.b16 %v357
    %v522 = vunpack.c.l.b16 %v358
    %v523 = vunpack.c.l.b16 %v359
    %v524 = vunpack.c.l.b16 %v360
    %v525 = vunpack.c.l.b16 %v361
    %v526 = vunpack.c.l.b16 %v362
    %v527 = vunpack.c.l.b16 %v363
    %v528 = vunpack.c.l.b16 %v364
    %v529 = vunpack.c.l.b16 %v365
    %v530 = vunpack.c.l.b16 %v366
    %v531 = vunpack.c.l.b16 %v367
    %v532 = vunpack.c.l.b16 %v368
    %v533 = vunpack.c.l.b16 %v369
    %v534 = vunpack.c.l.b16 %v370
    %v535 = vunpack.c.l.b16 %v371
    %v536 = vunpack.c.l.b16 %v372
    %v537 = vunpack.c.l.b16 %v373
    %v538 = vunpack.c.l.b16 %v374
    %v539 = vunpack.c.l.b16 %v375
    %v540 = vunpack.c.l.b16 %v376
    %v541 = vunpack.c.l.b16 %v377
    %v542 = vunpack.c.l.b16 %v378
    %v543 = vunpack.c.l.b16 %v379
    %v544 = vunpack.c.l.b16 %v380
    %v545 = vunpack.c.l.b16 %v381
    %v546 = vunpack.c.l.b16 %v382
    %v547 = vunpack.c.l.b16 %v383
    %v548 = vunpack.c.l.b16 %v384
    %v549 = vunpack.c.l.b16 %v385
    %v550 = vunpack.c.l.b16 %v386
    %v551 = vunpack.c.l.b16 %v387
    %v552 = vunpack.c.l.b16 %v388
    %v553 = vunpack.c.l.b16 %v389
    %v554 = vunpack.c.l.b16 %v390
    %v555 = vunpack.c.l.b16 %v391
    %v556 = vunpack.c.l.b16 %v392
    %v557 = vunpack.c.l.b16 %v393
    %v558 = vunpack.c.l.b16 %v394
    %v559 = vunpack.c.l.b16 %v395
    %v560 = vunpack.c.l.b16 %v396
    %v561 = vunpack.c.l.b16 %v397
    %v562 = vunpack.c.l.b16 %v398
    %v563 = vunpack.c.l.b16 %v399
    %v564 = vunpack.c.l.b16 %v400
    %v565 = vunpack.c.l.b16 %v401
    %v566 = vunpack.c.l.b16 %v402
    %v567 = vunpack.c.l.b16 %v403
    %v568 = vunpack.c.l.b16 %v404
    %v569 = vunpack.c.l.b16 %v405
    %v570 = vunpack.c.l.b16 %v406
    %v571 = vunpack.c.l.b16 %v407
    %v572 = vunpack.c.l.b16 %v408
    %v573 = vunpack.c.l.b16 %v409
    %v574 = vunpack.c.l.b16 %v410
    %v575 = vunpack.c.l.b16 %v411
    %v576 = vunpack.c.l.b16 %v412
    %v577 = vunpack.c.l.b16 %v413
    %v578 = vunpack.c.l.b16 %v414
    %v579 = vunpack.c.l.b16 %v415
    %v580 = vunpack.c.l.b16 %v416
    %v581 = vunpack.c.l.b16 %v417
    %v582 = vunpack.c.l.b16 %v418
    %v583 = vunpack.c.l.b16 %v419
    %v584 = vpack.c.b16 %v521, %v520
    %v585 = vpack.c.b16 %v523, %v522
    %v586 = vpack.c.b16 %v525, %v524
    %v587 = vpack.c.b16 %v527, %v526
    %v588 = vpack.c.b16 %v529, %v528
    %v589 = vpack.c.b16 %v531, %v530
    %v590 = vpack.c.b16 %v533, %v532
    %v591 = vpack.c.b16 %v535, %v534
    %v592 = vpack.c.b16 %v537, %v536
    %v593 = vpack.c.b16 %v539, %v538
    %v594 = vpack.c.b16 %v541, %v540
    %v595 = vpack.c.b16 %v543, %v542
    %v596 = vpack.c.b16 %v545, %v544
    %v597 = vpack.c.b16 %v547, %v546
    %v598 = vpack.c.b16 %v549, %v548
    %v599 = vpack.c.b16 %v551, %v550
    %v600 = vpack.c.b16 %v553, %v552
    %v601 = vpack.c.b16 %v555, %v554
    %v602 = vpack.c.b16 %v557, %v556
    %v603 = vpack.c.b16 %v559, %v558
    %v604 = vpack.c.b16 %v561, %v560
    %v605 = vpack.c.b16 %v563, %v562
    %v606 = vpack.c.b16 %v565, %v564
    %v607 = vpack.c.b16 %v567, %v566
    %v608 = vpack.c.b16 %v569, %v568
    %v609 = vpack.c.b16 %v571, %v570
    %v610 = vpack.c.b16 %v573, %v572
    %v611 = vpack.c.b16 %v575, %v574
    %v612 = vpack.c.b16 %v577, %v576
    %v613 = vpack.c.b16 %v579, %v578
    %v614 = vpack.c.b16 %v581, %v580
    %v615 = vpack.c.b16 %v583, %v582
    %648 = vmatprep.subr.bf16.mxu0 0
    %649 = vmatpush1.bf16.msra.mxu0 %v584
    %650 = vmatprep.subr.bf16.mxu0 0
    %651 = vmatpush1.bf16.msra.mxu0 %v585
    %652 = vmatprep.subr.bf16.mxu0 0
    %653 = vmatpush1.bf16.msra.mxu0 %v586
    %654 = vmatprep.subr.bf16.mxu0 0
    %655 = vmatpush1.bf16.msra.mxu0 %v587
    %656 = vmatprep.subr.bf16.mxu0 0
    %657 = vmatpush1.bf16.msra.mxu0 %v588
    %658 = vmatprep.subr.bf16.mxu0 0
    %659 = vmatpush1.bf16.msra.mxu0 %v589
    %660 = vmatprep.subr.bf16.mxu0 0
    %661 = vmatpush1.bf16.msra.mxu0 %v590
    %662 = vmatprep.subr.bf16.mxu0 0
    %663 = vmatpush1.bf16.msra.mxu0 %v591
    %664 = vmatprep.subr.bf16.mxu0 0
    %665 = vmatpush1.bf16.msra.mxu0 %v592
    %666 = vmatprep.subr.bf16.mxu0 0
    %667 = vmatpush1.bf16.msra.mxu0 %v593
    %668 = vmatprep.subr.bf16.mxu0 0
    %669 = vmatpush1.bf16.msra.mxu0 %v594
    %670 = vmatprep.subr.bf16.mxu0 0
    %671 = vmatpush1.bf16.msra.mxu0 %v595
    %672 = vmatprep.subr.bf16.mxu0 0
    %673 = vmatpush1.bf16.msra.mxu0 %v596
    %674 = vmatprep.subr.bf16.mxu0 0
    %675 = vmatpush1.bf16.msra.mxu0 %v597
    %676 = vmatprep.subr.bf16.mxu0 0
    %677 = vmatpush1.bf16.msra.mxu0 %v598
    %678 = vmatprep.subr.bf16.mxu0 0
    %679 = vmatpush1.bf16.msra.mxu0 %v599
    %680 = vmatprep.mubr.bf16.mxu0 %v449
    %681 = vmatmul.mubr.bf16.gmra.mrb[0].mxu0 %v442
    %v682 = vpop.f32.mrb[0].mxu0
    %v683 = vadd.f32 %v425, %v682
    %v684 = vpop.f32.mrb[0].mxu0
    %v685 = vpop.f32.mrb[0].mxu0
    %v686 = vpop.f32.mrb[0].mxu0
    %687 = vdwg.mxu0
    %688 = vmatprep.subr.bf16.mxu0 0
    %689 = vmatpush1.bf16.msra.mxu0 %v600
    %690 = vmatprep.subr.bf16.mxu0 0
    %691 = vmatpush1.bf16.msra.mxu0 %v601
    %692 = vmatprep.subr.bf16.mxu0 0
    %693 = vmatpush1.bf16.msra.mxu0 %v602
    %694 = vmatprep.subr.bf16.mxu0 0
    %695 = vmatpush1.bf16.msra.mxu0 %v603
    %696 = vmatprep.subr.bf16.mxu0 0
    %697 = vmatpush1.bf16.msra.mxu0 %v604
    %698 = vmatprep.subr.bf16.mxu0 0
    %699 = vmatpush1.bf16.msra.mxu0 %v605
    %700 = vmatprep.subr.bf16.mxu0 0
    %701 = vmatpush1.bf16.msra.mxu0 %v606
    %702 = vmatprep.subr.bf16.mxu0 0
    %703 = vmatpush1.bf16.msra.mxu0 %v607
    %704 = vmatprep.subr.bf16.mxu0 0
    %705 = vmatpush1.bf16.msra.mxu0 %v608
    %706 = vmatprep.subr.bf16.mxu0 0
    %707 = vmatpush1.bf16.msra.mxu0 %v609
    %708 = vmatprep.subr.bf16.mxu0 0
    %709 = vmatpush1.bf16.msra.mxu0 %v610
    %710 = vmatprep.subr.bf16.mxu0 0
    %711 = vmatpush1.bf16.msra.mxu0 %v611
    %712 = vmatprep.subr.bf16.mxu0 0
    %713 = vmatpush1.bf16.msra.mxu0 %v612
    %714 = vmatprep.subr.bf16.mxu0 0
    %715 = vmatpush1.bf16.msra.mxu0 %v613
    %716 = vmatprep.subr.bf16.mxu0 0
    %717 = vmatpush1.bf16.msra.mxu0 %v614
    %718 = vmatprep.subr.bf16.mxu0 0
    %719 = vmatpush1.bf16.msra.mxu0 %v615
    %720 = vmatprep.mubr.bf16.mxu0 %v451
    %721 = vmatmul.mubr.bf16.gmra.mrb[0].mxu0 %v450
    %v722 = vpop.f32.mrb[0].mxu0
    %v723 = vadd.f32 %v683, %v722
    %v724 = vpop.f32.mrb[0].mxu0
    %v725 = vpop.f32.mrb[0].mxu0
    %v726 = vpop.f32.mrb[0].mxu0
    %727 = vdwg.mxu0
    %vm728 = vcmp.ge.f32.partialorder %v723, 0.0
    %v729 = vmul.f32 %v723, 0.2
    %v730 = vsel %vm728, %v723, %v729
    %731 = vst [vmem:[#allocation3] sm:$0x3] %v730
    %v732 = vadd.f32 %v354, 1e-06
    %v733 = vpack.c.bf16 %v732, %v732
    %v734 = vld [vmem:[%s10] sm:$0xf]
    %v735 = vld [vmem:[%s10 + $0x4] sm:$0xf]
    %v736 = vld [vmem:[%s10 + $0x8] sm:$0xf]
    %v737 = vld [vmem:[%s10 + $0xc] sm:$0xf]
    %v738 = vld [vmem:[%s10 + $0x10] sm:$0xf]
    %v739 = vld [vmem:[%s10 + $0x14] sm:$0xf]
    %v740 = vld [vmem:[%s10 + $0x18] sm:$0xf]
    %v741 = vld [vmem:[%s10 + $0x1c] sm:$0xf]
    %v742 = vld [vmem:[%s10 + $0x20] sm:$0xf]
    %v743 = vld [vmem:[%s10 + $0x24] sm:$0xf]
    %v744 = vld [vmem:[%s10 + $0x28] sm:$0xf]
    %v745 = vld [vmem:[%s10 + $0x2c] sm:$0xf]
    %v746 = vld [vmem:[%s10 + $0x30] sm:$0xf]
    %v747 = vld [vmem:[%s10 + $0x34] sm:$0xf]
    %v748 = vld [vmem:[%s10 + $0x38] sm:$0xf]
    %v749 = vld [vmem:[%s10 + $0x3c] sm:$0xf]
    %v750 = vadd.f32 %v730, 1e-06
    %v751 = vpack.c.bf16 %v750, %v750
    %v752 = vld [vmem:[%s11] sm:$0xf]
    %v753 = vld [vmem:[%s11 + $0x4] sm:$0xf]
    %v754 = vld [vmem:[%s11 + $0x8] sm:$0xf]
    %v755 = vld [vmem:[%s11 + $0xc] sm:$0xf]
    %v756 = vld [vmem:[%s11 + $0x10] sm:$0xf]
    %v757 = vld [vmem:[%s11 + $0x14] sm:$0xf]
    %v758 = vld [vmem:[%s11 + $0x18] sm:$0xf]
    %v759 = vld [vmem:[%s11 + $0x1c] sm:$0xf]
    %v760 = vld [vmem:[%s11 + $0x20] sm:$0xf]
    %v761 = vld [vmem:[%s11 + $0x24] sm:$0xf]
    %v762 = vld [vmem:[%s11 + $0x28] sm:$0xf]
    %v763 = vld [vmem:[%s11 + $0x2c] sm:$0xf]
    %v764 = vld [vmem:[%s11 + $0x30] sm:$0xf]
    %v765 = vld [vmem:[%s11 + $0x34] sm:$0xf]
    %v766 = vld [vmem:[%s11 + $0x38] sm:$0xf]
    %v767 = vld [vmem:[%s11 + $0x3c] sm:$0xf]
    %v784 = vunpack.c.l.b16 %v752
    %v785 = vunpack.c.l.b16 %v753
    %v786 = vunpack.c.l.b16 %v754
    %v787 = vunpack.c.l.b16 %v755
    %v788 = vunpack.c.l.b16 %v756
    %v789 = vunpack.c.l.b16 %v757
    %v790 = vunpack.c.l.b16 %v758
    %v791 = vunpack.c.l.b16 %v759
    %v792 = vunpack.c.l.b16 %v760
    %v793 = vunpack.c.l.b16 %v761
    %v794 = vunpack.c.l.b16 %v762
    %v795 = vunpack.c.l.b16 %v763
    %v796 = vunpack.c.l.b16 %v764
    %v797 = vunpack.c.l.b16 %v765
    %v798 = vunpack.c.l.b16 %v766
    %v799 = vunpack.c.l.b16 %v767
    %v800 = vpack.c.b16 %v785, %v784
    %v801 = vpack.c.b16 %v787, %v786
    %v802 = vpack.c.b16 %v789, %v788
    %v803 = vpack.c.b16 %v791, %v790
    %v804 = vpack.c.b16 %v793, %v792
    %v805 = vpack.c.b16 %v795, %v794
    %v806 = vpack.c.b16 %v797, %v796
    %v807 = vpack.c.b16 %v799, %v798
    %816 = vmatprep.subr.bf16.mxu0 0
    %817 = vmatpush1.bf16.msra.mxu0 %v800
    %818 = vmatprep.subr.bf16.mxu0 0
    %819 = vmatpush1.bf16.msra.mxu0 %v801
    %820 = vmatprep.subr.bf16.mxu0 0
    %821 = vmatpush1.bf16.msra.mxu0 %v802
    %822 = vmatprep.subr.bf16.mxu0 0
    %823 = vmatpush1.bf16.msra.mxu0 %v803
    %824 = vmatprep.subr.bf16.mxu0 0
    %825 = vmatpush1.bf16.msra.mxu0 %v804
    %826 = vmatprep.subr.bf16.mxu0 0
    %827 = vmatpush1.bf16.msra.mxu0 %v805
    %828 = vmatprep.subr.bf16.mxu0 0
    %829 = vmatpush1.bf16.msra.mxu0 %v806
    %830 = vmatprep.subr.bf16.mxu0 0
    %831 = vmatpush1.bf16.msra.mxu0 %v807
    %832 = vmatprep.subr.bf16.mxu0 0
    %833 = vmatpush1.bf16.msra.mxu0 0
    %834 = vmatprep.subr.bf16.mxu0 0
    %835 = vmatpush1.bf16.msra.mxu0 0
    %836 = vmatprep.subr.bf16.mxu0 0
    %837 = vmatpush1.bf16.msra.mxu0 0
    %838 = vmatprep.subr.bf16.mxu0 0
    %839 = vmatpush1.bf16.msra.mxu0 0
    %840 = vmatprep.subr.bf16.mxu0 0
    %841 = vmatpush1.bf16.msra.mxu0 0
    %842 = vmatprep.subr.bf16.mxu0 0
    %843 = vmatpush1.bf16.msra.mxu0 0
    %844 = vmatprep.subr.bf16.mxu0 0
    %845 = vmatpush1.bf16.msra.mxu0 0
    %846 = vmatprep.subr.bf16.mxu0 0
    %847 = vmatpush1.bf16.msra.mxu0 0
    %848 = vmatprep.mubr.bf16.mxu0 0
    %849 = vmatmul.mubr.bf16.gmra.mrb[0].mxu0 %v751
    %v850 = vpop.f32.mrb[0].mxu0
    %v851 = vadd.f32 0.0, %v850
    %v852 = vpop.f32.mrb[0].mxu0
    %v853 = vpop.f32.mrb[0].mxu0
    %v854 = vpop.f32.mrb[0].mxu0
    %855 = vdwg.mxu0
    %v872 = vunpack.c.l.b16 %v734
    %v873 = vunpack.c.l.b16 %v735
    %v874 = vunpack.c.l.b16 %v736
    %v875 = vunpack.c.l.b16 %v737
    %v876 = vunpack.c.l.b16 %v738
    %v877 = vunpack.c.l.b16 %v739
    %v878 = vunpack.c.l.b16 %v740
    %v879 = vunpack.c.l.b16 %v741
    %v880 = vunpack.c.l.b16 %v742
    %v881 = vunpack.c.l.b16 %v743
    %v882 = vunpack.c.l.b16 %v744
    %v883 = vunpack.c.l.b16 %v745
    %v884 = vunpack.c.l.b16 %v746
    %v885 = vunpack.c.l.b16 %v747
    %v886 = vunpack.c.l.b16 %v748
    %v887 = vunpack.c.l.b16 %v749
    %v888 = vpack.c.b16 %v873, %v872
    %v889 = vpack.c.b16 %v875, %v874
    %v890 = vpack.c.b16 %v877, %v876
    %v891 = vpack.c.b16 %v879, %v878
    %v892 = vpack.c.b16 %v881, %v880
    %v893 = vpack.c.b16 %v883, %v882
    %v894 = vpack.c.b16 %v885, %v884
    %v895 = vpack.c.b16 %v887, %v886
    %904 = vmatprep.subr.bf16.mxu0 0
    %905 = vmatpush1.bf16.msra.mxu0 %v888
    %906 = vmatprep.subr.bf16.mxu0 0
    %907 = vmatpush1.bf16.msra.mxu0 %v889
    %908 = vmatprep.subr.bf16.mxu0 0
    %909 = vmatpush1.bf16.msra.mxu0 %v890
    %910 = vmatprep.subr.bf16.mxu0 0
    %911 = vmatpush1.bf16.msra.mxu0 %v891
    %912 = vmatprep.subr.bf16.mxu0 0
    %913 = vmatpush1.bf16.msra.mxu0 %v892
    %914 = vmatprep.subr.bf16.mxu0 0
    %915 = vmatpush1.bf16.msra.mxu0 %v893
    %916 = vmatprep.subr.bf16.mxu0 0
    %917 = vmatpush1.bf16.msra.mxu0 %v894
    %918 = vmatprep.subr.bf16.mxu0 0
    %919 = vmatpush1.bf16.msra.mxu0 %v895
    %920 = vmatprep.subr.bf16.mxu0 0
    %921 = vmatpush1.bf16.msra.mxu0 0
    %922 = vmatprep.subr.bf16.mxu0 0
    %923 = vmatpush1.bf16.msra.mxu0 0
    %924 = vmatprep.subr.bf16.mxu0 0
    %925 = vmatpush1.bf16.msra.mxu0 0
    %926 = vmatprep.subr.bf16.mxu0 0
    %927 = vmatpush1.bf16.msra.mxu0 0
    %928 = vmatprep.subr.bf16.mxu0 0
    %929 = vmatpush1.bf16.msra.mxu0 0
    %930 = vmatprep.subr.bf16.mxu0 0
    %931 = vmatpush1.bf16.msra.mxu0 0
    %932 = vmatprep.subr.bf16.mxu0 0
    %933 = vmatpush1.bf16.msra.mxu0 0
    %934 = vmatprep.subr.bf16.mxu0 0
    %935 = vmatpush1.bf16.msra.mxu0 0
    %936 = vmatprep.mubr.bf16.mxu0 0
    %937 = vmatmul.mubr.bf16.gmra.mrb[0].mxu0 %v733
    %v938 = vpop.f32.mrb[0].mxu0
    %v939 = vadd.f32 %v851, %v938
    %v940 = vpop.f32.mrb[0].mxu0
    %v941 = vpop.f32.mrb[0].mxu0
    %v942 = vpop.f32.mrb[0].mxu0
    %943 = vdwg.mxu0
    %v944 = vld [vmem:[%s12] sm:$0x1]
    %v946 = vlaneseq
    %v947 = vshrl.u32 %v946, 7
    %v948 = vsub.s32 0, %v947
    %v949 = vrot.slane %v944, %v948
    %v951 = vadd.f32 %v939, %v949
    %vm952 = vcmp.ge.f32.partialorder %v951, 0.0
    %v953 = vmul.f32 %v951, 0.2
    %v954 = vsel %vm952, %v951, %v953
    %v955 = vpack.c.bf16 %v954, %v954
    %v956 = vld [vmem:[%s13] sm:$0xf]
    %v957 = vld [vmem:[%s13 + $0x4] sm:$0xf]
    %v958 = vld [vmem:[%s13 + $0x8] sm:$0xf]
    %v959 = vld [vmem:[%s13 + $0xc] sm:$0xf]
    %v960 = vld [vmem:[%s13 + $0x10] sm:$0xf]
    %v961 = vld [vmem:[%s13 + $0x14] sm:$0xf]
    %v962 = vld [vmem:[%s13 + $0x18] sm:$0xf]
    %v963 = vld [vmem:[%s13 + $0x1c] sm:$0xf]
    %v964 = vld [vmem:[%s13 + $0x20] sm:$0xf]
    %v965 = vld [vmem:[%s13 + $0x24] sm:$0xf]
    %v966 = vld [vmem:[%s13 + $0x28] sm:$0xf]
    %v967 = vld [vmem:[%s13 + $0x2c] sm:$0xf]
    %v968 = vld [vmem:[%s13 + $0x30] sm:$0xf]
    %v969 = vld [vmem:[%s13 + $0x34] sm:$0xf]
    %v970 = vld [vmem:[%s13 + $0x38] sm:$0xf]
    %v971 = vld [vmem:[%s13 + $0x3c] sm:$0xf]
    %v972 = vld [vmem:[%s14] sm:$0x1]
    %v974 = vlaneseq
    %v975 = vshrl.u32 %v974, 7
    %v976 = vsub.s32 0, %v975
    %v977 = vrot.slane %v972, %v976
    %v995 = vunpack.c.l.b16 %v956
    %v996 = vunpack.c.l.b16 %v957
    %v997 = vunpack.c.l.b16 %v958
    %v998 = vunpack.c.l.b16 %v959
    %v999 = vunpack.c.l.b16 %v960
    %v1000 = vunpack.c.l.b16 %v961
    %v1001 = vunpack.c.l.b16 %v962
    %v1002 = vunpack.c.l.b16 %v963
    %v1003 = vunpack.c.l.b16 %v964
    %v1004 = vunpack.c.l.b16 %v965
    %v1005 = vunpack.c.l.b16 %v966
    %v1006 = vunpack.c.l.b16 %v967
    %v1007 = vunpack.c.l.b16 %v968
    %v1008 = vunpack.c.l.b16 %v969
    %v1009 = vunpack.c.l.b16 %v970
    %v1010 = vunpack.c.l.b16 %v971
    %v1011 = vpack.c.b16 %v996, %v995
    %v1012 = vpack.c.b16 %v998, %v997
    %v1013 = vpack.c.b16 %v1000, %v999
    %v1014 = vpack.c.b16 %v1002, %v1001
    %v1015 = vpack.c.b16 %v1004, %v1003
    %v1016 = vpack.c.b16 %v1006, %v1005
    %v1017 = vpack.c.b16 %v1008, %v1007
    %v1018 = vpack.c.b16 %v1010, %v1009
    %1027 = vmatprep.subr.bf16.mxu0 0
    %1028 = vmatpush1.bf16.msra.mxu0 %v1011
    %1029 = vmatprep.subr.bf16.mxu0 0
    %1030 = vmatpush1.bf16.msra.mxu0 %v1012
    %1031 = vmatprep.subr.bf16.mxu0 0
    %1032 = vmatpush1.bf16.msra.mxu0 %v1013
    %1033 = vmatprep.subr.bf16.mxu0 0
    %1034 = vmatpush1.bf16.msra.mxu0 %v1014
    %1035 = vmatprep.subr.bf16.mxu0 0
    %1036 = vmatpush1.bf16.msra.mxu0 %v1015
    %1037 = vmatprep.subr.bf16.mxu0 0
    %1038 = vmatpush1.bf16.msra.mxu0 %v1016
    %1039 = vmatprep.subr.bf16.mxu0 0
    %1040 = vmatpush1.bf16.msra.mxu0 %v1017
    %1041 = vmatprep.subr.bf16.mxu0 0
    %1042 = vmatpush1.bf16.msra.mxu0 %v1018
    %1043 = vmatprep.subr.bf16.mxu0 0
    %1044 = vmatpush1.bf16.msra.mxu0 0
    %1045 = vmatprep.subr.bf16.mxu0 0
    %1046 = vmatpush1.bf16.msra.mxu0 0
    %1047 = vmatprep.subr.bf16.mxu0 0
    %1048 = vmatpush1.bf16.msra.mxu0 0
    %1049 = vmatprep.subr.bf16.mxu0 0
    %1050 = vmatpush1.bf16.msra.mxu0 0
    %1051 = vmatprep.subr.bf16.mxu0 0
    %1052 = vmatpush1.bf16.msra.mxu0 0
    %1053 = vmatprep.subr.bf16.mxu0 0
    %1054 = vmatpush1.bf16.msra.mxu0 0
    %1055 = vmatprep.subr.bf16.mxu0 0
    %1056 = vmatpush1.bf16.msra.mxu0 0
    %1057 = vmatprep.subr.bf16.mxu0 0
    %1058 = vmatpush1.bf16.msra.mxu0 0
    %1059 = vmatprep.mubr.bf16.mxu0 0
    %1060 = vmatmul.mubr.bf16.gmra.mrb[0].mxu0 %v955
    %v1061 = vpop.f32.mrb[0].mxu0
    %v1062 = vadd.f32 %v977, %v1061
    %v1063 = vpop.f32.mrb[0].mxu0
    %v1064 = vpop.f32.mrb[0].mxu0
    %v1065 = vpop.f32.mrb[0].mxu0
    %1066 = vdwg.mxu0
    %vm1067 = vcmp.ge.f32.partialorder %v1062, 0.0
    %v1068 = vmul.f32 %v1062, 0.2
    %v1069 = vsel %vm1067, %v1062, %v1068
    %v1070 = vld [vmem:[%s15] sm:$0x1]
    %v1072 = vlaneseq
    %v1073 = vshrl.u32 %v1072, 7
    %v1074 = vsub.s32 0, %v1073
    %v1075 = vrot.slane %v1070, %v1074
    %v1077 = vmul.f32 %v1069, %v1075
    %vm1078 = vcmask 1041408
    %v1079 = vsel %vm1078, %v1077, 0.0
    %1080 = vadd.xlane.f32.xlu0 %v1079
    %v1081 = vpop.xlane.xlu0 %1080
    %v1082 = vld [vmem:[#allocation2] sm:$0x1]
    %v1084 = vlaneseq
    %v1085 = vshrl.u32 %v1084, 7
    %v1086 = vsub.s32 0, %v1085
    %v1087 = vrot.slane %v1082, %v1086
    %v1089 = vadd.f32 %v1081, %v1087
    %v1090 = vsub.f32 0.0, %v1089
    %v1091 = vmul.f32 %v1090, 1.442695
    %v1092 = vpow.pop %v1091
    %v1093 = vadd.f32 %v1092, 1.0
    %v1094 = vrcp.pop %v1093
    %vm1095 = vcmask 1024
    %1096 = vst.msk [vmem:[%s17] sm:$0x3] %vm1095, %v1094
    // Predicated region
    $region70: #{dual_discriminator_forward.9} parent=1 // pred_check
      _
    $region71: #{dual_discriminator_forward.9} parent=1 // pred_check_branch
      %1098 = sbr.rel (0) target = $region73
    $region72: #{dual_discriminator_forward.9} parent=1 // pred_region
      _
    $region73: #{dual_discriminator_forward.9} parent=1 // pred_fallthru
      _
    // Predicated region
    $region74: #{dual_discriminator_forward.9} parent=1 // pred_check
      _
    $region75: #{dual_discriminator_forward.9} parent=1 // pred_check_branch
      %1100 = sbr.rel (0) target = $region77
    $region76: #{dual_discriminator_forward.9} parent=1 // pred_region
      %s1102 = ssub.s32 32, 32
      %1103 = vsyncadd [#allocation4], %s1102
      %s1105 = sshll.u32 [#allocation3], 4
      %s1106 = int_to_ptr.vmem [resolvable:$true] %s1105
      %1108 = dma.vmem_to_hbm [thread:$0]  %s1106, 32, %s18, [#allocation4]
    $region77: #{dual_discriminator_forward.9} parent=1 // pred_fallthru
      _
    // Predicated region
    $region78: #{dual_discriminator_forward.9} parent=1 // pred_check
      _
    $region79: #{dual_discriminator_forward.9} parent=1 // pred_check_branch
      %1110 = sbr.rel (0) target = $region81
    $region80: #{dual_discriminator_forward.9} parent=1 // pred_region
      _
    $region81: #{dual_discriminator_forward.9} parent=1 // pred_fallthru
      _
    // Predicated region
    $region82: #{dual_discriminator_forward.9} parent=1 // pred_check
      _
    $region83: #{dual_discriminator_forward.9} parent=1 // pred_check_branch
      %1112 = sbr.rel (0) target = $region85
    $region84: #{dual_discriminator_forward.9} parent=1 // pred_region
      %1113 = dma.done [#allocation4], 32
    $region85: #{dual_discriminator_forward.9} parent=1 // pred_fallthru
      _
    %1114 = vsyncpa [#allocation4], 1

</llo_original>
